<compile_context>
chip_gen: v7x
topology: tpu7x:2x2x1
jax: 0.10.0
libtpu: 0.0.40
codegen_flags: <defaults>
</compile_context>

<pallas_src>
import functools

import jax
import jax.numpy as jnp
from jax import lax
from jax.experimental import pallas as pl
from jax.experimental.pallas import tpu as pltpu


def _vecint_kernel(vec_ref, out_ref, cur_ref, nxt_ref, *,
                   H, W, nsteps, bt, compute_dtype):
    """Blocks: (bt, 2*H, W) image layout (channel-major rows: [flow_y; flow_x]).

    cur_ref / nxt_ref: (2*H, W) f32 VMEM scratch holding the current / next
    displacement field for one batch element.
    """
    scale = 1.0 / (2.0 ** nsteps)

    # Constant index vectors, hoisted once (tiny; int iota then cast).
    col_j = lax.broadcasted_iota(jnp.int32, (1, W), 1).astype(jnp.float32)  # (1, W)
    row_r = lax.broadcasted_iota(jnp.int32, (H, 1), 0).astype(jnp.float32)  # (H, 1)
    col_s = lax.broadcasted_iota(jnp.int32, (W, 1), 0).astype(jnp.float32)  # (W, 1)

    row_unroll = bool(H <= 32)

    for bi in range(bt):  # bt is small (<= 8); static loop
        cur_ref[...] = vec_ref[bi].astype(jnp.float32) * scale

        def step_body(_, carry):
            # Full field at the start of this step, as the MXU LHS: (2H, W).
            lhs = cur_ref[...].astype(compute_dtype)

            def row_body(i, c):
                # Flow at output row i: (1, W) each (dynamic sublane row reads).
                fy = cur_ref[pl.ds(i, 1), :]
                fx = cur_ref[pl.ds(H + i, 1), :]
                # Unnormalized sample coordinates for this output row
                # (align_corners=True => pixel coordinates).
                y = i.astype(jnp.float32) + fy                     # (1, W)
                x = col_j + fx                                     # (1, W)
                # Separable triangular (bilinear) weights; zero outside the
                # image == grid_sample padding_mode='zeros'.  Built in f32.
                wy = jnp.maximum(0.0, 1.0 - jnp.abs(y - row_r))    # (H, W)
                wx = jnp.maximum(0.0, 1.0 - jnp.abs(x - col_s))    # (W, W)
                # Stage 1 (MXU): x-direction interpolation for every source row
                # of both channels at once: (2H, W) @ (W, W) -> (2H, W), f32 acc.
                t = jnp.dot(lhs, wx.astype(compute_dtype),
                            preferred_element_type=jnp.float32)
                # Stage 2 (VPU + sublane reduce): y-direction interpolation.
                d0 = jnp.sum(t[0:H, :] * wy, axis=0, keepdims=True)      # (1, W)
                d1 = jnp.sum(t[H:2 * H, :] * wy, axis=0, keepdims=True)  # (1, W)
                nxt_ref[pl.ds(i, 1), :] = fy + d0
                nxt_ref[pl.ds(H + i, 1), :] = fx + d1
                return c

            lax.fori_loop(0, H, row_body, 0, unroll=row_unroll)
            cur_ref[...] = nxt_ref[...]
            return carry

        lax.fori_loop(0, nsteps, step_body, 0)
        out_ref[bi] = cur_ref[...].astype(out_ref.dtype)


def vecint_pallas(vec_nchw, nsteps, *, compute_dtype=jnp.bfloat16,
                  batch_tile=None):
    """vec_nchw: (N, 2, H, W) displacement field (PyTorch NCHW convention).

    compute_dtype: dtype of the MXU matmul operands (f32 accumulation always).
    bfloat16 is the fast path on v6e/v7x; use jnp.float32 on v5e or for
    bit-faithful-to-reference results.
    """
    N, C, H, W = vec_nchw.shape
    assert C == 2, "2-D VecInt expects 2 displacement channels"
    HW = H * W

    # Image layout (N, 2H, W): pure contiguous reshape, no XLA transposes.
    x = vec_nchw.reshape(N, C * H, W)

    # Pack several batch elements per grid step only for tiny fields (amortizes
    # the ~0.35us fixed per-grid-step overhead); realistic fields use bt=1 so
    # the "parallel" batch axis can feed multiple TensorCores.
    if batch_tile is None:
        cap = min(8, N, max(1, 4096 // HW))
        batch_tile = 1
        for d in range(1, cap + 1):
            if N % d == 0:
                batch_tile = d
    assert N % batch_tile == 0
    grid_n = N // batch_tile

    kernel = functools.partial(_vecint_kernel, H=H, W=W, nsteps=nsteps,
                               bt=batch_tile, compute_dtype=compute_dtype)

    # Advisory cost: dominant term is the separable matmul (4*HW^2 flops/step),
    # plus weight build and the y-reduction.
    flops = int(N) * int(nsteps) * (4 * HW * HW + 4 * HW * (H + W) + 4 * H * HW)
    bytes_accessed = int(2 * N * C * HW * 4)

    out = pl.pallas_call(
        kernel,
        out_shape=jax.ShapeDtypeStruct((N, C * H, W), vec_nchw.dtype),
        grid_spec=pltpu.PrefetchScalarGridSpec(
            num_scalar_prefetch=0,
            grid=(grid_n,),
            in_specs=[pl.BlockSpec((batch_tile, C * H, W), lambda b: (b, 0, 0))],
            out_specs=pl.BlockSpec((batch_tile, C * H, W), lambda b: (b, 0, 0)),
            scratch_shapes=[pltpu.VMEM((C * H, W), jnp.float32),
                            pltpu.VMEM((C * H, W), jnp.float32)],
        ),
        compiler_params=pltpu.CompilerParams(
            dimension_semantics=("parallel",),
        ),
        cost_estimate=pl.CostEstimate(flops=flops, transcendentals=0,
                                      bytes_accessed=bytes_accessed),
    )(x)

    return out.reshape(N, C, H, W)


# ---------- pure-JAX reference (gather-based bilinear, zero padding) ----------
def _bilinear_sample(src, y, x):
    # src: (C, H, W); y, x: (H, W) unnormalized sample coords.
    C, H, W = src.shape
    y0 = jnp.floor(y)
    x0 = jnp.floor(x)
    y1 = y0 + 1.0
    x1 = x0 + 1.0
    wy1 = y - y0
    wy0 = 1.0 - wy1
    wx1 = x - x0
    wx0 = 1.0 - wx1

    def gather(yy, xx):
        valid = (yy >= 0) & (yy <= H - 1) & (xx >= 0) & (xx <= W - 1)
        yc = jnp.clip(yy, 0, H - 1).astype(jnp.int32)
        xc = jnp.clip(xx, 0, W - 1).astype(jnp.int32)
        vals = src[:, yc, xc]                                      # (C, H, W)
        return jnp.where(valid[None], vals, 0.0)

    return (gather(y0, x0) * (wy0 * wx0)[None]
            + gather(y0, x1) * (wy0 * wx1)[None]
            + gather(y1, x0) * (wy1 * wx0)[None]
            + gather(y1, x1) * (wy1 * wx1)[None])


def vecint_ref(vec, nsteps):
    N, C, H, W = vec.shape
    scale = 1.0 / (2.0 ** nsteps)
    gy, gx = jnp.meshgrid(jnp.arange(H, dtype=jnp.float32),
                          jnp.arange(W, dtype=jnp.float32), indexing="ij")

    def one(v):
        v = v * scale
        for _ in range(nsteps):
            y = gy + v[0]
            x = gx + v[1]
            v = v + _bilinear_sample(v, y, x)
        return v

    return jax.vmap(one)(vec)


if __name__ == "__main__":
    key = jax.random.PRNGKey(0)
    N, C, H, W = 2, 2, 16, 16
    nsteps = 4

    vec = jax.random.normal(key, (N, C, H, W), dtype=jnp.float32) * 2.0

    ref = jax.block_until_ready(vecint_ref(vec, nsteps))

    # Exact path (f32 MXU operands): must match the gather-based reference.
    out_f32 = jax.block_until_ready(
        vecint_pallas(vec, nsteps, compute_dtype=jnp.float32))
    assert out_f32.shape == (N, C, H, W)
    assert jnp.allclose(out_f32, ref, atol=1e-4, rtol=1e-4), (
        float(jnp.max(jnp.abs(out_f32 - ref))))

    # bf16 MXU fast path (v6e/v7x): loose, nsteps-compounded tolerance —
    # exactness is established by the f32 check above.
    out_bf16 = jax.block_until_ready(
        vecint_pallas(vec, nsteps, compute_dtype=jnp.bfloat16))
    err_bf16 = float(jnp.max(jnp.abs(out_bf16 - ref)))
    assert err_bf16 < 0.5, err_bf16

    print("KERNEL_OK")
</pallas_src>

<mosaic_0001>
module attributes {stable_mosaic.version = 11 : i64} {
  func.func @_vecint_kernel(%arg0: i32, %arg1: memref<2x32x16xf32, #tpu.memory_space<vmem>>, %arg2: memref<2x32x16xf32, #tpu.memory_space<vmem>>, %arg3: memref<32x16xf32, #tpu.memory_space<vmem>>, %arg4: memref<32x16xf32, #tpu.memory_space<vmem>>) attributes {dimension_semantics = [#tpu.dimension_semantics<parallel>], iteration_bounds = array<i64: 1>, scalar_prefetch = 0 : i64, scratch_operands = 2 : i64, tpu.core_type = #tpu.core_type<tc>, window_params = [{transform_indices = @transform_0, window_bounds = array<i64: 2, 32, 16>}, {transform_indices = @transform_1, window_bounds = array<i64: 2, 32, 16>}]} {
    %0 = tpu.iota {dimensions = array<i32: 1>} : vector<1x16xi32>
    %1 = arith.sitofp %0 : vector<1x16xi32> to vector<1x16xf32>
    %2 = tpu.iota {dimensions = array<i32: 0>} : vector<16x1xi32>
    %3 = arith.sitofp %2 : vector<16x1xi32> to vector<16x1xf32>
    %4 = tpu.iota {dimensions = array<i32: 0>} : vector<16x1xi32>
    %5 = arith.sitofp %4 : vector<16x1xi32> to vector<16x1xf32>
    %c0 = arith.constant 0 : index
    %c0_0 = arith.constant 0 : index
    %c0_1 = arith.constant 0 : index
    %6 = vector.load %arg1[%c0, %c0_0, %c0_1] : memref<2x32x16xf32, #tpu.memory_space<vmem>>, vector<1x32x16xf32>
    %7 = vector.shape_cast %6 : vector<1x32x16xf32> to vector<32x16xf32>
    %cst = arith.constant 6.250000e-02 : f32
    %8 = vector.broadcast %cst : f32 to vector<32x16xf32>
    %9 = arith.mulf %7, %8 : vector<32x16xf32>
    %c0_2 = arith.constant 0 : index
    %c0_3 = arith.constant 0 : index
    %10 = vector.load %arg3[%c0_2, %c0_3] : memref<32x16xf32, #tpu.memory_space<vmem>>, vector<32x16xf32>
    tpu.vector_store %arg3[%c0_2, %c0_3], %9 {strides = array<i32>} : memref<32x16xf32, #tpu.memory_space<vmem>>, vector<32x16xf32>,
    %c0_i32 = arith.constant 0 : i32
    %c4_i32 = arith.constant 4 : i32
    %11 = arith.addi %c0_i32, %c4_i32 : i32
    %c1_i32 = arith.constant 1 : i32
    scf.for %arg5 = %c0_i32 to %11 step %c1_i32  : i32 {
      %c0_22 = arith.constant 0 : index
      %c0_23 = arith.constant 0 : index
      %26 = vector.load %arg3[%c0_22, %c0_23] : memref<32x16xf32, #tpu.memory_space<vmem>>, vector<32x16xf32>
      %c0_i32_24 = arith.constant 0 : i32
      %27 = arith.index_cast %c0_i32_24 : i32 to index
      %c0_25 = arith.constant 0 : index
      %28 = vector.load %arg3[%27, %c0_25] : memref<32x16xf32, #tpu.memory_space<vmem>>, vector<1x16xf32>
      %c16_i32 = arith.constant 16 : i32
      %29 = arith.addi %c16_i32, %c0_i32_24 : i32
      %30 = arith.index_cast %29 : i32 to index
      %c0_26 = arith.constant 0 : index
      %31 = vector.load %arg3[%30, %c0_26] : memref<32x16xf32, #tpu.memory_space<vmem>>, vector<1x16xf32>
      %32 = arith.sitofp %c0_i32_24 : i32 to f32
      %33 = vector.broadcast %32 : f32 to vector<1x16xf32>
      %34 = arith.addf %33, %28 : vector<1x16xf32>
      %35 = arith.addf %1, %31 : vector<1x16xf32>
      %36 = vector.broadcast %34 : vector<1x16xf32> to vector<16x16xf32>
      %37 = vector.broadcast %3 : vector<16x1xf32> to vector<16x16xf32>
      %38 = arith.subf %36, %37 : vector<16x16xf32>
      %39 = math.absf %38 : vector<16x16xf32>
      %cst_27 = arith.constant 1.000000e+00 : f32
      %40 = vector.broadcast %cst_27 : f32 to vector<16x16xf32>
      %41 = arith.subf %40, %39 : vector<16x16xf32>
      %cst_28 = arith.constant 0.000000e+00 : f32
      %42 = vector.broadcast %cst_28 : f32 to vector<16x16xf32>
      %43 = arith.maximumf %42, %41 : vector<16x16xf32>
      %44 = vector.broadcast %35 : vector<1x16xf32> to vector<16x16xf32>
      %45 = vector.broadcast %5 : vector<16x1xf32> to vector<16x16xf32>
      %46 = arith.subf %44, %45 : vector<16x16xf32>
      %47 = math.absf %46 : vector<16x16xf32>
      %cst_29 = arith.constant 1.000000e+00 : f32
      %48 = vector.broadcast %cst_29 : f32 to vector<16x16xf32>
      %49 = arith.subf %48, %47 : vector<16x16xf32>
      %cst_30 = arith.constant 0.000000e+00 : f32
      %50 = vector.broadcast %cst_30 : f32 to vector<16x16xf32>
      %51 = arith.maximumf %50, %49 : vector<16x16xf32>
      %cst_31 = arith.constant dense<0.000000e+00> : vector<32x16xf32>
      %52 = tpu.matmul %26, %51, %cst_31 {dimension_numbers = #tpu.dot_dimension_numbers<[1], [0], [0], [1], [0, 0, 1, 1], [], []>} : vector<32x16xf32>, vector<16x16xf32>, vector<32x16xf32> -> vector<32x16xf32>
      %53 = vector.extract_strided_slice %52 {offsets = [0, 0], sizes = [16, 16], strides = [1, 1]} : vector<32x16xf32> to vector<16x16xf32>
      %54 = arith.mulf %53, %43 : vector<16x16xf32>
      %cst_32 = arith.constant dense<0.000000e+00> : vector<16xf32>
      %55 = vector.multi_reduction <add>, %54, %cst_32 [0] : vector<16x16xf32> to vector<16xf32>
      %56 = vector.shape_cast %55 : vector<16xf32> to vector<1x16xf32>
      %57 = vector.extract_strided_slice %52 {offsets = [16, 0], sizes = [16, 16], strides = [1, 1]} : vector<32x16xf32> to vector<16x16xf32>
      %58 = arith.mulf %57, %43 : vector<16x16xf32>
      %cst_33 = arith.constant dense<0.000000e+00> : vector<16xf32>
      %59 = vector.multi_reduction <add>, %58, %cst_33 [0] : vector<16x16xf32> to vector<16xf32>
      %60 = vector.shape_cast %59 : vector<16xf32> to vector<1x16xf32>
      %61 = arith.addf %28, %56 : vector<1x16xf32>
      %62 = arith.index_cast %c0_i32_24 : i32 to index
      %c0_34 = arith.constant 0 : index
      %63 = vector.load %arg4[%62, %c0_34] : memref<32x16xf32, #tpu.memory_space<vmem>>, vector<1x16xf32>
      tpu.vector_store %arg4[%62, %c0_34], %61 {strides = array<i32>} : memref<32x16xf32, #tpu.memory_space<vmem>>, vector<1x16xf32>,
      %64 = arith.addf %31, %60 : vector<1x16xf32>
      %c16_i32_35 = arith.constant 16 : i32
      %65 = arith.addi %c16_i32_35, %c0_i32_24 : i32
      %66 = arith.index_cast %65 : i32 to index
      %c0_36 = arith.constant 0 : index
      %67 = vector.load %arg4[%66, %c0_36] : memref<32x16xf32, #tpu.memory_space<vmem>>, vector<1x16xf32>
      tpu.vector_store %arg4[%66, %c0_36], %64 {strides = array<i32>} : memref<32x16xf32, #tpu.memory_space<vmem>>, vector<1x16xf32>,
      %c1_i32_37 = arith.constant 1 : i32
      %68 = arith.index_cast %c1_i32_37 : i32 to index
      %c0_38 = arith.constant 0 : index
      %69 = vector.load %arg3[%68, %c0_38] : memref<32x16xf32, #tpu.memory_space<vmem>>, vector<1x16xf32>
      %c16_i32_39 = arith.constant 16 : i32
      %70 = arith.addi %c16_i32_39, %c1_i32_37 : i32
      %71 = arith.index_cast %70 : i32 to index
      %c0_40 = arith.constant 0 : index
      %72 = vector.load %arg3[%71, %c0_40] : memref<32x16xf32, #tpu.memory_space<vmem>>, vector<1x16xf32>
      %73 = arith.sitofp %c1_i32_37 : i32 to f32
      %74 = vector.broadcast %73 : f32 to vector<1x16xf32>
      %75 = arith.addf %74, %69 : vector<1x16xf32>
      %76 = arith.addf %1, %72 : vector<1x16xf32>
      %77 = vector.broadcast %75 : vector<1x16xf32> to vector<16x16xf32>
      %78 = vector.broadcast %3 : vector<16x1xf32> to vector<16x16xf32>
      %79 = arith.subf %77, %78 : vector<16x16xf32>
      %80 = math.absf %79 : vector<16x16xf32>
      %cst_41 = arith.constant 1.000000e+00 : f32
      %81 = vector.broadcast %cst_41 : f32 to vector<16x16xf32>
      %82 = arith.subf %81, %80 : vector<16x16xf32>
      %cst_42 = arith.constant 0.000000e+00 : f32
      %83 = vector.broadcast %cst_42 : f32 to vector<16x16xf32>
      %84 = arith.maximumf %83, %82 : vector<16x16xf32>
      %85 = vector.broadcast %76 : vector<1x16xf32> to vector<16x16xf32>
      %86 = vector.broadcast %5 : vector<16x1xf32> to vector<16x16xf32>
      %87 = arith.subf %85, %86 : vector<16x16xf32>
      %88 = math.absf %87 : vector<16x16xf32>
      %cst_43 = arith.constant 1.000000e+00 : f32
      %89 = vector.broadcast %cst_43 : f32 to vector<16x16xf32>
      %90 = arith.subf %89, %88 : vector<16x16xf32>
      %cst_44 = arith.constant 0.000000e+00 : f32
      %91 = vector.broadcast %cst_44 : f32 to vector<16x16xf32>
      %92 = arith.maximumf %91, %90 : vector<16x16xf32>
      %cst_45 = arith.constant dense<0.000000e+00> : vector<32x16xf32>
      %93 = tpu.matmul %26, %92, %cst_45 {dimension_numbers = #tpu.dot_dimension_numbers<[1], [0], [0], [1], [0, 0, 1, 1], [], []>} : vector<32x16xf32>, vector<16x16xf32>, vector<32x16xf32> -> vector<32x16xf32>
      %94 = vector.extract_strided_slice %93 {offsets = [0, 0], sizes = [16, 16], strides = [1, 1]} : vector<32x16xf32> to vector<16x16xf32>
      %95 = arith.mulf %94, %84 : vector<16x16xf32>
      %cst_46 = arith.constant dense<0.000000e+00> : vector<16xf32>
      %96 = vector.multi_reduction <add>, %95, %cst_46 [0] : vector<16x16xf32> to vector<16xf32>
      %97 = vector.shape_cast %96 : vector<16xf32> to vector<1x16xf32>
      %98 = vector.extract_strided_slice %93 {offsets = [16, 0], sizes = [16, 16], strides = [1, 1]} : vector<32x16xf32> to vector<16x16xf32>
      %99 = arith.mulf %98, %84 : vector<16x16xf32>
      %cst_47 = arith.constant dense<0.000000e+00> : vector<16xf32>
      %100 = vector.multi_reduction <add>, %99, %cst_47 [0] : vector<16x16xf32> to vector<16xf32>
      %101 = vector.shape_cast %100 : vector<16xf32> to vector<1x16xf32>
      %102 = arith.addf %69, %97 : vector<1x16xf32>
      %103 = arith.index_cast %c1_i32_37 : i32 to index
      %c0_48 = arith.constant 0 : index
      %104 = vector.load %arg4[%103, %c0_48] : memref<32x16xf32, #tpu.memory_space<vmem>>, vector<1x16xf32>
      tpu.vector_store %arg4[%103, %c0_48], %102 {strides = array<i32>} : memref<32x16xf32, #tpu.memory_space<vmem>>, vector<1x16xf32>,
      %105 = arith.addf %72, %101 : vector<1x16xf32>
      %c16_i32_49 = arith.constant 16 : i32
      %106 = arith.addi %c16_i32_49, %c1_i32_37 : i32
      %107 = arith.index_cast %106 : i32 to index
      %c0_50 = arith.constant 0 : index
      %108 = vector.load %arg4[%107, %c0_50] : memref<32x16xf32, #tpu.memory_space<vmem>>, vector<1x16xf32>
      tpu.vector_store %arg4[%107, %c0_50], %105 {strides = array<i32>} : memref<32x16xf32, #tpu.memory_space<vmem>>, vector<1x16xf32>,
      %c2_i32 = arith.constant 2 : i32
      %109 = arith.index_cast %c2_i32 : i32 to index
      %c0_51 = arith.constant 0 : index
      %110 = vector.load %arg3[%109, %c0_51] : memref<32x16xf32, #tpu.memory_space<vmem>>, vector<1x16xf32>
      %c16_i32_52 = arith.constant 16 : i32
      %111 = arith.addi %c16_i32_52, %c2_i32 : i32
      %112 = arith.index_cast %111 : i32 to index
      %c0_53 = arith.constant 0 : index
      %113 = vector.load %arg3[%112, %c0_53] : memref<32x16xf32, #tpu.memory_space<vmem>>, vector<1x16xf32>
      %114 = arith.sitofp %c2_i32 : i32 to f32
      %115 = vector.broadcast %114 : f32 to vector<1x16xf32>
      %116 = arith.addf %115, %110 : vector<1x16xf32>
      %117 = arith.addf %1, %113 : vector<1x16xf32>
      %118 = vector.broadcast %116 : vector<1x16xf32> to vector<16x16xf32>
      %119 = vector.broadcast %3 : vector<16x1xf32> to vector<16x16xf32>
      %120 = arith.subf %118, %119 : vector<16x16xf32>
      %121 = math.absf %120 : vector<16x16xf32>
      %cst_54 = arith.constant 1.000000e+00 : f32
      %122 = vector.broadcast %cst_54 : f32 to vector<16x16xf32>
      %123 = arith.subf %122, %121 : vector<16x16xf32>
      %cst_55 = arith.constant 0.000000e+00 : f32
      %124 = vector.broadcast %cst_55 : f32 to vector<16x16xf32>
      %125 = arith.maximumf %124, %123 : vector<16x16xf32>
      %126 = vector.broadcast %117 : vector<1x16xf32> to vector<16x16xf32>
      %127 = vector.broadcast %5 : vector<16x1xf32> to vector<16x16xf32>
      %128 = arith.subf %126, %127 : vector<16x16xf32>
      %129 = math.absf %128 : vector<16x16xf32>
      %cst_56 = arith.constant 1.000000e+00 : f32
      %130 = vector.broadcast %cst_56 : f32 to vector<16x16xf32>
      %131 = arith.subf %130, %129 : vector<16x16xf32>
      %cst_57 = arith.constant 0.000000e+00 : f32
      %132 = vector.broadcast %cst_57 : f32 to vector<16x16xf32>
      %133 = arith.maximumf %132, %131 : vector<16x16xf32>
      %cst_58 = arith.constant dense<0.000000e+00> : vector<32x16xf32>
      %134 = tpu.matmul %26, %133, %cst_58 {dimension_numbers = #tpu.dot_dimension_numbers<[1], [0], [0], [1], [0, 0, 1, 1], [], []>} : vector<32x16xf32>, vector<16x16xf32>, vector<32x16xf32> -> vector<32x16xf32>
      %135 = vector.extract_strided_slice %134 {offsets = [0, 0], sizes = [16, 16], strides = [1, 1]} : vector<32x16xf32> to vector<16x16xf32>
      %136 = arith.mulf %135, %125 : vector<16x16xf32>
      %cst_59 = arith.constant dense<0.000000e+00> : vector<16xf32>
      %137 = vector.multi_reduction <add>, %136, %cst_59 [0] : vector<16x16xf32> to vector<16xf32>
      %138 = vector.shape_cast %137 : vector<16xf32> to vector<1x16xf32>
      %139 = vector.extract_strided_slice %134 {offsets = [16, 0], sizes = [16, 16], strides = [1, 1]} : vector<32x16xf32> to vector<16x16xf32>
      %140 = arith.mulf %139, %125 : vector<16x16xf32>
      %cst_60 = arith.constant dense<0.000000e+00> : vector<16xf32>
      %141 = vector.multi_reduction <add>, %140, %cst_60 [0] : vector<16x16xf32> to vector<16xf32>
      %142 = vector.shape_cast %141 : vector<16xf32> to vector<1x16xf32>
      %143 = arith.addf %110, %138 : vector<1x16xf32>
      %144 = arith.index_cast %c2_i32 : i32 to index
      %c0_61 = arith.constant 0 : index
      %145 = vector.load %arg4[%144, %c0_61] : memref<32x16xf32, #tpu.memory_space<vmem>>, vector<1x16xf32>
      tpu.vector_store %arg4[%144, %c0_61], %143 {strides = array<i32>} : memref<32x16xf32, #tpu.memory_space<vmem>>, vector<1x16xf32>,
      %146 = arith.addf %113, %142 : vector<1x16xf32>
      %c16_i32_62 = arith.constant 16 : i32
      %147 = arith.addi %c16_i32_62, %c2_i32 : i32
      %148 = arith.index_cast %147 : i32 to index
      %c0_63 = arith.constant 0 : index
      %149 = vector.load %arg4[%148, %c0_63] : memref<32x16xf32, #tpu.memory_space<vmem>>, vector<1x16xf32>
      tpu.vector_store %arg4[%148, %c0_63], %146 {strides = array<i32>} : memref<32x16xf32, #tpu.memory_space<vmem>>, vector<1x16xf32>,
      %c3_i32 = arith.constant 3 : i32
      %150 = arith.index_cast %c3_i32 : i32 to index
      %c0_64 = arith.constant 0 : index
      %151 = vector.load %arg3[%150, %c0_64] : memref<32x16xf32, #tpu.memory_space<vmem>>, vector<1x16xf32>
      %c16_i32_65 = arith.constant 16 : i32
      %152 = arith.addi %c16_i32_65, %c3_i32 : i32
      %153 = arith.index_cast %152 : i32 to index
      %c0_66 = arith.constant 0 : index
      %154 = vector.load %arg3[%153, %c0_66] : memref<32x16xf32, #tpu.memory_space<vmem>>, vector<1x16xf32>
      %155 = arith.sitofp %c3_i32 : i32 to f32
      %156 = vector.broadcast %155 : f32 to vector<1x16xf32>
      %157 = arith.addf %156, %151 : vector<1x16xf32>
      %158 = arith.addf %1, %154 : vector<1x16xf32>
      %159 = vector.broadcast %157 : vector<1x16xf32> to vector<16x16xf32>
      %160 = vector.broadcast %3 : vector<16x1xf32> to vector<16x16xf32>
      %161 = arith.subf %159, %160 : vector<16x16xf32>
      %162 = math.absf %161 : vector<16x16xf32>
      %cst_67 = arith.constant 1.000000e+00 : f32
      %163 = vector.broadcast %cst_67 : f32 to vector<16x16xf32>
      %164 = arith.subf %163, %162 : vector<16x16xf32>
      %cst_68 = arith.constant 0.000000e+00 : f32
      %165 = vector.broadcast %cst_68 : f32 to vector<16x16xf32>
      %166 = arith.maximumf %165, %164 : vector<16x16xf32>
      %167 = vector.broadcast %158 : vector<1x16xf32> to vector<16x16xf32>
      %168 = vector.broadcast %5 : vector<16x1xf32> to vector<16x16xf32>
      %169 = arith.subf %167, %168 : vector<16x16xf32>
      %170 = math.absf %169 : vector<16x16xf32>
      %cst_69 = arith.constant 1.000000e+00 : f32
      %171 = vector.broadcast %cst_69 : f32 to vector<16x16xf32>
      %172 = arith.subf %171, %170 : vector<16x16xf32>
      %cst_70 = arith.constant 0.000000e+00 : f32
      %173 = vector.broadcast %cst_70 : f32 to vector<16x16xf32>
      %174 = arith.maximumf %173, %172 : vector<16x16xf32>
      %cst_71 = arith.constant dense<0.000000e+00> : vector<32x16xf32>
      %175 = tpu.matmul %26, %174, %cst_71 {dimension_numbers = #tpu.dot_dimension_numbers<[1], [0], [0], [1], [0, 0, 1, 1], [], []>} : vector<32x16xf32>, vector<16x16xf32>, vector<32x16xf32> -> vector<32x16xf32>
      %176 = vector.extract_strided_slice %175 {offsets = [0, 0], sizes = [16, 16], strides = [1, 1]} : vector<32x16xf32> to vector<16x16xf32>
      %177 = arith.mulf %176, %166 : vector<16x16xf32>
      %cst_72 = arith.constant dense<0.000000e+00> : vector<16xf32>
      %178 = vector.multi_reduction <add>, %177, %cst_72 [0] : vector<16x16xf32> to vector<16xf32>
      %179 = vector.shape_cast %178 : vector<16xf32> to vector<1x16xf32>
      %180 = vector.extract_strided_slice %175 {offsets = [16, 0], sizes = [16, 16], strides = [1, 1]} : vector<32x16xf32> to vector<16x16xf32>
      %181 = arith.mulf %180, %166 : vector<16x16xf32>
      %cst_73 = arith.constant dense<0.000000e+00> : vector<16xf32>
      %182 = vector.multi_reduction <add>, %181, %cst_73 [0] : vector<16x16xf32> to vector<16xf32>
      %183 = vector.shape_cast %182 : vector<16xf32> to vector<1x16xf32>
      %184 = arith.addf %151, %179 : vector<1x16xf32>
      %185 = arith.index_cast %c3_i32 : i32 to index
      %c0_74 = arith.constant 0 : index
      %186 = vector.load %arg4[%185, %c0_74] : memref<32x16xf32, #tpu.memory_space<vmem>>, vector<1x16xf32>
      tpu.vector_store %arg4[%185, %c0_74], %184 {strides = array<i32>} : memref<32x16xf32, #tpu.memory_space<vmem>>, vector<1x16xf32>,
      %187 = arith.addf %154, %183 : vector<1x16xf32>
      %c16_i32_75 = arith.constant 16 : i32
      %188 = arith.addi %c16_i32_75, %c3_i32 : i32
      %189 = arith.index_cast %188 : i32 to index
      %c0_76 = arith.constant 0 : index
      %190 = vector.load %arg4[%189, %c0_76] : memref<32x16xf32, #tpu.memory_space<vmem>>, vector<1x16xf32>
      tpu.vector_store %arg4[%189, %c0_76], %187 {strides = array<i32>} : memref<32x16xf32, #tpu.memory_space<vmem>>, vector<1x16xf32>,
      %c4_i32_77 = arith.constant 4 : i32
      %191 = arith.index_cast %c4_i32_77 : i32 to index
      %c0_78 = arith.constant 0 : index
      %192 = vector.load %arg3[%191, %c0_78] : memref<32x16xf32, #tpu.memory_space<vmem>>, vector<1x16xf32>
      %c16_i32_79 = arith.constant 16 : i32
      %193 = arith.addi %c16_i32_79, %c4_i32_77 : i32
      %194 = arith.index_cast %193 : i32 to index
      %c0_80 = arith.constant 0 : index
      %195 = vector.load %arg3[%194, %c0_80] : memref<32x16xf32, #tpu.memory_space<vmem>>, vector<1x16xf32>
      %196 = arith.sitofp %c4_i32_77 : i32 to f32
      %197 = vector.broadcast %196 : f32 to vector<1x16xf32>
      %198 = arith.addf %197, %192 : vector<1x16xf32>
      %199 = arith.addf %1, %195 : vector<1x16xf32>
      %200 = vector.broadcast %198 : vector<1x16xf32> to vector<16x16xf32>
      %201 = vector.broadcast %3 : vector<16x1xf32> to vector<16x16xf32>
      %202 = arith.subf %200, %201 : vector<16x16xf32>
      %203 = math.absf %202 : vector<16x16xf32>
      %cst_81 = arith.constant 1.000000e+00 : f32
      %204 = vector.broadcast %cst_81 : f32 to vector<16x16xf32>
      %205 = arith.subf %204, %203 : vector<16x16xf32>
      %cst_82 = arith.constant 0.000000e+00 : f32
      %206 = vector.broadcast %cst_82 : f32 to vector<16x16xf32>
      %207 = arith.maximumf %206, %205 : vector<16x16xf32>
      %208 = vector.broadcast %199 : vector<1x16xf32> to vector<16x16xf32>
      %209 = vector.broadcast %5 : vector<16x1xf32> to vector<16x16xf32>
      %210 = arith.subf %208, %209 : vector<16x16xf32>
      %211 = math.absf %210 : vector<16x16xf32>
      %cst_83 = arith.constant 1.000000e+00 : f32
      %212 = vector.broadcast %cst_83 : f32 to vector<16x16xf32>
      %213 = arith.subf %212, %211 : vector<16x16xf32>
      %cst_84 = arith.constant 0.000000e+00 : f32
      %214 = vector.broadcast %cst_84 : f32 to vector<16x16xf32>
      %215 = arith.maximumf %214, %213 : vector<16x16xf32>
      %cst_85 = arith.constant dense<0.000000e+00> : vector<32x16xf32>
      %216 = tpu.matmul %26, %215, %cst_85 {dimension_numbers = #tpu.dot_dimension_numbers<[1], [0], [0], [1], [0, 0, 1, 1], [], []>} : vector<32x16xf32>, vector<16x16xf32>, vector<32x16xf32> -> vector<32x16xf32>
      %217 = vector.extract_strided_slice %216 {offsets = [0, 0], sizes = [16, 16], strides = [1, 1]} : vector<32x16xf32> to vector<16x16xf32>
      %218 = arith.mulf %217, %207 : vector<16x16xf32>
      %cst_86 = arith.constant dense<0.000000e+00> : vector<16xf32>
      %219 = vector.multi_reduction <add>, %218, %cst_86 [0] : vector<16x16xf32> to vector<16xf32>
      %220 = vector.shape_cast %219 : vector<16xf32> to vector<1x16xf32>
      %221 = vector.extract_strided_slice %216 {offsets = [16, 0], sizes = [16, 16], strides = [1, 1]} : vector<32x16xf32> to vector<16x16xf32>
      %222 = arith.mulf %221, %207 : vector<16x16xf32>
      %cst_87 = arith.constant dense<0.000000e+00> : vector<16xf32>
      %223 = vector.multi_reduction <add>, %222, %cst_87 [0] : vector<16x16xf32> to vector<16xf32>
      %224 = vector.shape_cast %223 : vector<16xf32> to vector<1x16xf32>
      %225 = arith.addf %192, %220 : vector<1x16xf32>
      %226 = arith.index_cast %c4_i32_77 : i32 to index
      %c0_88 = arith.constant 0 : index
      %227 = vector.load %arg4[%226, %c0_88] : memref<32x16xf32, #tpu.memory_space<vmem>>, vector<1x16xf32>
      tpu.vector_store %arg4[%226, %c0_88], %225 {strides = array<i32>} : memref<32x16xf32, #tpu.memory_space<vmem>>, vector<1x16xf32>,
      %228 = arith.addf %195, %224 : vector<1x16xf32>
      %c16_i32_89 = arith.constant 16 : i32
      %229 = arith.addi %c16_i32_89, %c4_i32_77 : i32
      %230 = arith.index_cast %229 : i32 to index
      %c0_90 = arith.constant 0 : index
      %231 = vector.load %arg4[%230, %c0_90] : memref<32x16xf32, #tpu.memory_space<vmem>>, vector<1x16xf32>
      tpu.vector_store %arg4[%230, %c0_90], %228 {strides = array<i32>} : memref<32x16xf32, #tpu.memory_space<vmem>>, vector<1x16xf32>,
      %c5_i32 = arith.constant 5 : i32
      %232 = arith.index_cast %c5_i32 : i32 to index
      %c0_91 = arith.constant 0 : index
      %233 = vector.load %arg3[%232, %c0_91] : memref<32x16xf32, #tpu.memory_space<vmem>>, vector<1x16xf32>
      %c16_i32_92 = arith.constant 16 : i32
      %234 = arith.addi %c16_i32_92, %c5_i32 : i32
      %235 = arith.index_cast %234 : i32 to index
      %c0_93 = arith.constant 0 : index
      %236 = vector.load %arg3[%235, %c0_93] : memref<32x16xf32, #tpu.memory_space<vmem>>, vector<1x16xf32>
      %237 = arith.sitofp %c5_i32 : i32 to f32
      %238 = vector.broadcast %237 : f32 to vector<1x16xf32>
      %239 = arith.addf %238, %233 : vector<1x16xf32>
      %240 = arith.addf %1, %236 : vector<1x16xf32>
      %241 = vector.broadcast %239 : vector<1x16xf32> to vector<16x16xf32>
      %242 = vector.broadcast %3 : vector<16x1xf32> to vector<16x16xf32>
      %243 = arith.subf %241, %242 : vector<16x16xf32>
      %244 = math.absf %243 : vector<16x16xf32>
      %cst_94 = arith.constant 1.000000e+00 : f32
      %245 = vector.broadcast %cst_94 : f32 to vector<16x16xf32>
      %246 = arith.subf %245, %244 : vector<16x16xf32>
      %cst_95 = arith.constant 0.000000e+00 : f32
      %247 = vector.broadcast %cst_95 : f32 to vector<16x16xf32>
      %248 = arith.maximumf %247, %246 : vector<16x16xf32>
      %249 = vector.broadcast %240 : vector<1x16xf32> to vector<16x16xf32>
      %250 = vector.broadcast %5 : vector<16x1xf32> to vector<16x16xf32>
      %251 = arith.subf %249, %250 : vector<16x16xf32>
      %252 = math.absf %251 : vector<16x16xf32>
      %cst_96 = arith.constant 1.000000e+00 : f32
      %253 = vector.broadcast %cst_96 : f32 to vector<16x16xf32>
      %254 = arith.subf %253, %252 : vector<16x16xf32>
      %cst_97 = arith.constant 0.000000e+00 : f32
      %255 = vector.broadcast %cst_97 : f32 to vector<16x16xf32>
      %256 = arith.maximumf %255, %254 : vector<16x16xf32>
      %cst_98 = arith.constant dense<0.000000e+00> : vector<32x16xf32>
      %257 = tpu.matmul %26, %256, %cst_98 {dimension_numbers = #tpu.dot_dimension_numbers<[1], [0], [0], [1], [0, 0, 1, 1], [], []>} : vector<32x16xf32>, vector<16x16xf32>, vector<32x16xf32> -> vector<32x16xf32>
      %258 = vector.extract_strided_slice %257 {offsets = [0, 0], sizes = [16, 16], strides = [1, 1]} : vector<32x16xf32> to vector<16x16xf32>
      %259 = arith.mulf %258, %248 : vector<16x16xf32>
      %cst_99 = arith.constant dense<0.000000e+00> : vector<16xf32>
      %260 = vector.multi_reduction <add>, %259, %cst_99 [0] : vector<16x16xf32> to vector<16xf32>
      %261 = vector.shape_cast %260 : vector<16xf32> to vector<1x16xf32>
      %262 = vector.extract_strided_slice %257 {offsets = [16, 0], sizes = [16, 16], strides = [1, 1]} : vector<32x16xf32> to vector<16x16xf32>
      %263 = arith.mulf %262, %248 : vector<16x16xf32>
      %cst_100 = arith.constant dense<0.000000e+00> : vector<16xf32>
      %264 = vector.multi_reduction <add>, %263, %cst_100 [0] : vector<16x16xf32> to vector<16xf32>
      %265 = vector.shape_cast %264 : vector<16xf32> to vector<1x16xf32>
      %266 = arith.addf %233, %261 : vector<1x16xf32>
      %267 = arith.index_cast %c5_i32 : i32 to index
      %c0_101 = arith.constant 0 : index
      %268 = vector.load %arg4[%267, %c0_101] : memref<32x16xf32, #tpu.memory_space<vmem>>, vector<1x16xf32>
      tpu.vector_store %arg4[%267, %c0_101], %266 {strides = array<i32>} : memref<32x16xf32, #tpu.memory_space<vmem>>, vector<1x16xf32>,
      %269 = arith.addf %236, %265 : vector<1x16xf32>
      %c16_i32_102 = arith.constant 16 : i32
      %270 = arith.addi %c16_i32_102, %c5_i32 : i32
      %271 = arith.index_cast %270 : i32 to index
      %c0_103 = arith.constant 0 : index
      %272 = vector.load %arg4[%271, %c0_103] : memref<32x16xf32, #tpu.memory_space<vmem>>, vector<1x16xf32>
      tpu.vector_store %arg4[%271, %c0_103], %269 {strides = array<i32>} : memref<32x16xf32, #tpu.memory_space<vmem>>, vector<1x16xf32>,
      %c6_i32 = arith.constant 6 : i32
      %273 = arith.index_cast %c6_i32 : i32 to index
      %c0_104 = arith.constant 0 : index
      %274 = vector.load %arg3[%273, %c0_104] : memref<32x16xf32, #tpu.memory_space<vmem>>, vector<1x16xf32>
      %c16_i32_105 = arith.constant 16 : i32
      %275 = arith.addi %c16_i32_105, %c6_i32 : i32
      %276 = arith.index_cast %275 : i32 to index
      %c0_106 = arith.constant 0 : index
      %277 = vector.load %arg3[%276, %c0_106] : memref<32x16xf32, #tpu.memory_space<vmem>>, vector<1x16xf32>
      %278 = arith.sitofp %c6_i32 : i32 to f32
      %279 = vector.broadcast %278 : f32 to vector<1x16xf32>
      %280 = arith.addf %279, %274 : vector<1x16xf32>
      %281 = arith.addf %1, %277 : vector<1x16xf32>
      %282 = vector.broadcast %280 : vector<1x16xf32> to vector<16x16xf32>
      %283 = vector.broadcast %3 : vector<16x1xf32> to vector<16x16xf32>
      %284 = arith.subf %282, %283 : vector<16x16xf32>
      %285 = math.absf %284 : vector<16x16xf32>
      %cst_107 = arith.constant 1.000000e+00 : f32
      %286 = vector.broadcast %cst_107 : f32 to vector<16x16xf32>
      %287 = arith.subf %286, %285 : vector<16x16xf32>
      %cst_108 = arith.constant 0.000000e+00 : f32
      %288 = vector.broadcast %cst_108 : f32 to vector<16x16xf32>
      %289 = arith.maximumf %288, %287 : vector<16x16xf32>
      %290 = vector.broadcast %281 : vector<1x16xf32> to vector<16x16xf32>
      %291 = vector.broadcast %5 : vector<16x1xf32> to vector<16x16xf32>
      %292 = arith.subf %290, %291 : vector<16x16xf32>
      %293 = math.absf %292 : vector<16x16xf32>
      %cst_109 = arith.constant 1.000000e+00 : f32
      %294 = vector.broadcast %cst_109 : f32 to vector<16x16xf32>
      %295 = arith.subf %294, %293 : vector<16x16xf32>
      %cst_110 = arith.constant 0.000000e+00 : f32
      %296 = vector.broadcast %cst_110 : f32 to vector<16x16xf32>
      %297 = arith.maximumf %296, %295 : vector<16x16xf32>
      %cst_111 = arith.constant dense<0.000000e+00> : vector<32x16xf32>
      %298 = tpu.matmul %26, %297, %cst_111 {dimension_numbers = #tpu.dot_dimension_numbers<[1], [0], [0], [1], [0, 0, 1, 1], [], []>} : vector<32x16xf32>, vector<16x16xf32>, vector<32x16xf32> -> vector<32x16xf32>
      %299 = vector.extract_strided_slice %298 {offsets = [0, 0], sizes = [16, 16], strides = [1, 1]} : vector<32x16xf32> to vector<16x16xf32>
      %300 = arith.mulf %299, %289 : vector<16x16xf32>
      %cst_112 = arith.constant dense<0.000000e+00> : vector<16xf32>
      %301 = vector.multi_reduction <add>, %300, %cst_112 [0] : vector<16x16xf32> to vector<16xf32>
      %302 = vector.shape_cast %301 : vector<16xf32> to vector<1x16xf32>
      %303 = vector.extract_strided_slice %298 {offsets = [16, 0], sizes = [16, 16], strides = [1, 1]} : vector<32x16xf32> to vector<16x16xf32>
      %304 = arith.mulf %303, %289 : vector<16x16xf32>
      %cst_113 = arith.constant dense<0.000000e+00> : vector<16xf32>
      %305 = vector.multi_reduction <add>, %304, %cst_113 [0] : vector<16x16xf32> to vector<16xf32>
      %306 = vector.shape_cast %305 : vector<16xf32> to vector<1x16xf32>
      %307 = arith.addf %274, %302 : vector<1x16xf32>
      %308 = arith.index_cast %c6_i32 : i32 to index
      %c0_114 = arith.constant 0 : index
      %309 = vector.load %arg4[%308, %c0_114] : memref<32x16xf32, #tpu.memory_space<vmem>>, vector<1x16xf32>
      tpu.vector_store %arg4[%308, %c0_114], %307 {strides = array<i32>} : memref<32x16xf32, #tpu.memory_space<vmem>>, vector<1x16xf32>,
      %310 = arith.addf %277, %306 : vector<1x16xf32>
      %c16_i32_115 = arith.constant 16 : i32
      %311 = arith.addi %c16_i32_115, %c6_i32 : i32
      %312 = arith.index_cast %311 : i32 to index
      %c0_116 = arith.constant 0 : index
      %313 = vector.load %arg4[%312, %c0_116] : memref<32x16xf32, #tpu.memory_space<vmem>>, vector<1x16xf32>
      tpu.vector_store %arg4[%312, %c0_116], %310 {strides = array<i32>} : memref<32x16xf32, #tpu.memory_space<vmem>>, vector<1x16xf32>,
      %c7_i32 = arith.constant 7 : i32
      %314 = arith.index_cast %c7_i32 : i32 to index
      %c0_117 = arith.constant 0 : index
      %315 = vector.load %arg3[%314, %c0_117] : memref<32x16xf32, #tpu.memory_space<vmem>>, vector<1x16xf32>
      %c16_i32_118 = arith.constant 16 : i32
      %316 = arith.addi %c16_i32_118, %c7_i32 : i32
      %317 = arith.index_cast %316 : i32 to index
      %c0_119 = arith.constant 0 : index
      %318 = vector.load %arg3[%317, %c0_119] : memref<32x16xf32, #tpu.memory_space<vmem>>, vector<1x16xf32>
      %319 = arith.sitofp %c7_i32 : i32 to f32
      %320 = vector.broadcast %319 : f32 to vector<1x16xf32>
      %321 = arith.addf %320, %315 : vector<1x16xf32>
      %322 = arith.addf %1, %318 : vector<1x16xf32>
      %323 = vector.broadcast %321 : vector<1x16xf32> to vector<16x16xf32>
      %324 = vector.broadcast %3 : vector<16x1xf32> to vector<16x16xf32>
      %325 = arith.subf %323, %324 : vector<16x16xf32>
      %326 = math.absf %325 : vector<16x16xf32>
      %cst_120 = arith.constant 1.000000e+00 : f32
      %327 = vector.broadcast %cst_120 : f32 to vector<16x16xf32>
      %328 = arith.subf %327, %326 : vector<16x16xf32>
      %cst_121 = arith.constant 0.000000e+00 : f32
      %329 = vector.broadcast %cst_121 : f32 to vector<16x16xf32>
      %330 = arith.maximumf %329, %328 : vector<16x16xf32>
      %331 = vector.broadcast %322 : vector<1x16xf32> to vector<16x16xf32>
      %332 = vector.broadcast %5 : vector<16x1xf32> to vector<16x16xf32>
      %333 = arith.subf %331, %332 : vector<16x16xf32>
      %334 = math.absf %333 : vector<16x16xf32>
      %cst_122 = arith.constant 1.000000e+00 : f32
      %335 = vector.broadcast %cst_122 : f32 to vector<16x16xf32>
      %336 = arith.subf %335, %334 : vector<16x16xf32>
      %cst_123 = arith.constant 0.000000e+00 : f32
      %337 = vector.broadcast %cst_123 : f32 to vector<16x16xf32>
      %338 = arith.maximumf %337, %336 : vector<16x16xf32>
      %cst_124 = arith.constant dense<0.000000e+00> : vector<32x16xf32>
      %339 = tpu.matmul %26, %338, %cst_124 {dimension_numbers = #tpu.dot_dimension_numbers<[1], [0], [0], [1], [0, 0, 1, 1], [], []>} : vector<32x16xf32>, vector<16x16xf32>, vector<32x16xf32> -> vector<32x16xf32>
      %340 = vector.extract_strided_slice %339 {offsets = [0, 0], sizes = [16, 16], strides = [1, 1]} : vector<32x16xf32> to vector<16x16xf32>
      %341 = arith.mulf %340, %330 : vector<16x16xf32>
      %cst_125 = arith.constant dense<0.000000e+00> : vector<16xf32>
      %342 = vector.multi_reduction <add>, %341, %cst_125 [0] : vector<16x16xf32> to vector<16xf32>
      %343 = vector.shape_cast %342 : vector<16xf32> to vector<1x16xf32>
      %344 = vector.extract_strided_slice %339 {offsets = [16, 0], sizes = [16, 16], strides = [1, 1]} : vector<32x16xf32> to vector<16x16xf32>
      %345 = arith.mulf %344, %330 : vector<16x16xf32>
      %cst_126 = arith.constant dense<0.000000e+00> : vector<16xf32>
      %346 = vector.multi_reduction <add>, %345, %cst_126 [0] : vector<16x16xf32> to vector<16xf32>
      %347 = vector.shape_cast %346 : vector<16xf32> to vector<1x16xf32>
      %348 = arith.addf %315, %343 : vector<1x16xf32>
      %349 = arith.index_cast %c7_i32 : i32 to index
      %c0_127 = arith.constant 0 : index
      %350 = vector.load %arg4[%349, %c0_127] : memref<32x16xf32, #tpu.memory_space<vmem>>, vector<1x16xf32>
      tpu.vector_store %arg4[%349, %c0_127], %348 {strides = array<i32>} : memref<32x16xf32, #tpu.memory_space<vmem>>, vector<1x16xf32>,
      %351 = arith.addf %318, %347 : vector<1x16xf32>
      %c16_i32_128 = arith.constant 16 : i32
      %352 = arith.addi %c16_i32_128, %c7_i32 : i32
      %353 = arith.index_cast %352 : i32 to index
      %c0_129 = arith.constant 0 : index
      %354 = vector.load %arg4[%353, %c0_129] : memref<32x16xf32, #tpu.memory_space<vmem>>, vector<1x16xf32>
      tpu.vector_store %arg4[%353, %c0_129], %351 {strides = array<i32>} : memref<32x16xf32, #tpu.memory_space<vmem>>, vector<1x16xf32>,
      %c8_i32 = arith.constant 8 : i32
      %355 = arith.index_cast %c8_i32 : i32 to index
      %c0_130 = arith.constant 0 : index
      %356 = vector.load %arg3[%355, %c0_130] : memref<32x16xf32, #tpu.memory_space<vmem>>, vector<1x16xf32>
      %c16_i32_131 = arith.constant 16 : i32
      %357 = arith.addi %c16_i32_131, %c8_i32 : i32
      %358 = arith.index_cast %357 : i32 to index
      %c0_132 = arith.constant 0 : index
      %359 = vector.load %arg3[%358, %c0_132] : memref<32x16xf32, #tpu.memory_space<vmem>>, vector<1x16xf32>
      %360 = arith.sitofp %c8_i32 : i32 to f32
      %361 = vector.broadcast %360 : f32 to vector<1x16xf32>
      %362 = arith.addf %361, %356 : vector<1x16xf32>
      %363 = arith.addf %1, %359 : vector<1x16xf32>
      %364 = vector.broadcast %362 : vector<1x16xf32> to vector<16x16xf32>
      %365 = vector.broadcast %3 : vector<16x1xf32> to vector<16x16xf32>
      %366 = arith.subf %364, %365 : vector<16x16xf32>
      %367 = math.absf %366 : vector<16x16xf32>
      %cst_133 = arith.constant 1.000000e+00 : f32
      %368 = vector.broadcast %cst_133 : f32 to vector<16x16xf32>
      %369 = arith.subf %368, %367 : vector<16x16xf32>
      %cst_134 = arith.constant 0.000000e+00 : f32
      %370 = vector.broadcast %cst_134 : f32 to vector<16x16xf32>
      %371 = arith.maximumf %370, %369 : vector<16x16xf32>
      %372 = vector.broadcast %363 : vector<1x16xf32> to vector<16x16xf32>
      %373 = vector.broadcast %5 : vector<16x1xf32> to vector<16x16xf32>
      %374 = arith.subf %372, %373 : vector<16x16xf32>
      %375 = math.absf %374 : vector<16x16xf32>
      %cst_135 = arith.constant 1.000000e+00 : f32
      %376 = vector.broadcast %cst_135 : f32 to vector<16x16xf32>
      %377 = arith.subf %376, %375 : vector<16x16xf32>
      %cst_136 = arith.constant 0.000000e+00 : f32
      %378 = vector.broadcast %cst_136 : f32 to vector<16x16xf32>
      %379 = arith.maximumf %378, %377 : vector<16x16xf32>
      %cst_137 = arith.constant dense<0.000000e+00> : vector<32x16xf32>
      %380 = tpu.matmul %26, %379, %cst_137 {dimension_numbers = #tpu.dot_dimension_numbers<[1], [0], [0], [1], [0, 0, 1, 1], [], []>} : vector<32x16xf32>, vector<16x16xf32>, vector<32x16xf32> -> vector<32x16xf32>
      %381 = vector.extract_strided_slice %380 {offsets = [0, 0], sizes = [16, 16], strides = [1, 1]} : vector<32x16xf32> to vector<16x16xf32>
      %382 = arith.mulf %381, %371 : vector<16x16xf32>
      %cst_138 = arith.constant dense<0.000000e+00> : vector<16xf32>
      %383 = vector.multi_reduction <add>, %382, %cst_138 [0] : vector<16x16xf32> to vector<16xf32>
      %384 = vector.shape_cast %383 : vector<16xf32> to vector<1x16xf32>
      %385 = vector.extract_strided_slice %380 {offsets = [16, 0], sizes = [16, 16], strides = [1, 1]} : vector<32x16xf32> to vector<16x16xf32>
      %386 = arith.mulf %385, %371 : vector<16x16xf32>
      %cst_139 = arith.constant dense<0.000000e+00> : vector<16xf32>
      %387 = vector.multi_reduction <add>, %386, %cst_139 [0] : vector<16x16xf32> to vector<16xf32>
      %388 = vector.shape_cast %387 : vector<16xf32> to vector<1x16xf32>
      %389 = arith.addf %356, %384 : vector<1x16xf32>
      %390 = arith.index_cast %c8_i32 : i32 to index
      %c0_140 = arith.constant 0 : index
      %391 = vector.load %arg4[%390, %c0_140] : memref<32x16xf32, #tpu.memory_space<vmem>>, vector<1x16xf32>
      tpu.vector_store %arg4[%390, %c0_140], %389 {strides = array<i32>} : memref<32x16xf32, #tpu.memory_space<vmem>>, vector<1x16xf32>,
      %392 = arith.addf %359, %388 : vector<1x16xf32>
      %c16_i32_141 = arith.constant 16 : i32
      %393 = arith.addi %c16_i32_141, %c8_i32 : i32
      %394 = arith.index_cast %393 : i32 to index
      %c0_142 = arith.constant 0 : index
      %395 = vector.load %arg4[%394, %c0_142] : memref<32x16xf32, #tpu.memory_space<vmem>>, vector<1x16xf32>
      tpu.vector_store %arg4[%394, %c0_142], %392 {strides = array<i32>} : memref<32x16xf32, #tpu.memory_space<vmem>>, vector<1x16xf32>,
      %c9_i32 = arith.constant 9 : i32
      %396 = arith.index_cast %c9_i32 : i32 to index
      %c0_143 = arith.constant 0 : index
      %397 = vector.load %arg3[%396, %c0_143] : memref<32x16xf32, #tpu.memory_space<vmem>>, vector<1x16xf32>
      %c16_i32_144 = arith.constant 16 : i32
      %398 = arith.addi %c16_i32_144, %c9_i32 : i32
      %399 = arith.index_cast %398 : i32 to index
      %c0_145 = arith.constant 0 : index
      %400 = vector.load %arg3[%399, %c0_145] : memref<32x16xf32, #tpu.memory_space<vmem>>, vector<1x16xf32>
      %401 = arith.sitofp %c9_i32 : i32 to f32
      %402 = vector.broadcast %401 : f32 to vector<1x16xf32>
      %403 = arith.addf %402, %397 : vector<1x16xf32>
      %404 = arith.addf %1, %400 : vector<1x16xf32>
      %405 = vector.broadcast %403 : vector<1x16xf32> to vector<16x16xf32>
      %406 = vector.broadcast %3 : vector<16x1xf32> to vector<16x16xf32>
      %407 = arith.subf %405, %406 : vector<16x16xf32>
      %408 = math.absf %407 : vector<16x16xf32>
      %cst_146 = arith.constant 1.000000e+00 : f32
      %409 = vector.broadcast %cst_146 : f32 to vector<16x16xf32>
      %410 = arith.subf %409, %408 : vector<16x16xf32>
      %cst_147 = arith.constant 0.000000e+00 : f32
      %411 = vector.broadcast %cst_147 : f32 to vector<16x16xf32>
      %412 = arith.maximumf %411, %410 : vector<16x16xf32>
      %413 = vector.broadcast %404 : vector<1x16xf32> to vector<16x16xf32>
      %414 = vector.broadcast %5 : vector<16x1xf32> to vector<16x16xf32>
      %415 = arith.subf %413, %414 : vector<16x16xf32>
      %416 = math.absf %415 : vector<16x16xf32>
      %cst_148 = arith.constant 1.000000e+00 : f32
      %417 = vector.broadcast %cst_148 : f32 to vector<16x16xf32>
      %418 = arith.subf %417, %416 : vector<16x16xf32>
      %cst_149 = arith.constant 0.000000e+00 : f32
      %419 = vector.broadcast %cst_149 : f32 to vector<16x16xf32>
      %420 = arith.maximumf %419, %418 : vector<16x16xf32>
      %cst_150 = arith.constant dense<0.000000e+00> : vector<32x16xf32>
      %421 = tpu.matmul %26, %420, %cst_150 {dimension_numbers = #tpu.dot_dimension_numbers<[1], [0], [0], [1], [0, 0, 1, 1], [], []>} : vector<32x16xf32>, vector<16x16xf32>, vector<32x16xf32> -> vector<32x16xf32>
      %422 = vector.extract_strided_slice %421 {offsets = [0, 0], sizes = [16, 16], strides = [1, 1]} : vector<32x16xf32> to vector<16x16xf32>
      %423 = arith.mulf %422, %412 : vector<16x16xf32>
      %cst_151 = arith.constant dense<0.000000e+00> : vector<16xf32>
      %424 = vector.multi_reduction <add>, %423, %cst_151 [0] : vector<16x16xf32> to vector<16xf32>
      %425 = vector.shape_cast %424 : vector<16xf32> to vector<1x16xf32>
      %426 = vector.extract_strided_slice %421 {offsets = [16, 0], sizes = [16, 16], strides = [1, 1]} : vector<32x16xf32> to vector<16x16xf32>
      %427 = arith.mulf %426, %412 : vector<16x16xf32>
      %cst_152 = arith.constant dense<0.000000e+00> : vector<16xf32>
      %428 = vector.multi_reduction <add>, %427, %cst_152 [0] : vector<16x16xf32> to vector<16xf32>
      %429 = vector.shape_cast %428 : vector<16xf32> to vector<1x16xf32>
      %430 = arith.addf %397, %425 : vector<1x16xf32>
      %431 = arith.index_cast %c9_i32 : i32 to index
      %c0_153 = arith.constant 0 : index
      %432 = vector.load %arg4[%431, %c0_153] : memref<32x16xf32, #tpu.memory_space<vmem>>, vector<1x16xf32>
      tpu.vector_store %arg4[%431, %c0_153], %430 {strides = array<i32>} : memref<32x16xf32, #tpu.memory_space<vmem>>, vector<1x16xf32>,
      %433 = arith.addf %400, %429 : vector<1x16xf32>
      %c16_i32_154 = arith.constant 16 : i32
      %434 = arith.addi %c16_i32_154, %c9_i32 : i32
      %435 = arith.index_cast %434 : i32 to index
      %c0_155 = arith.constant 0 : index
      %436 = vector.load %arg4[%435, %c0_155] : memref<32x16xf32, #tpu.memory_space<vmem>>, vector<1x16xf32>
      tpu.vector_store %arg4[%435, %c0_155], %433 {strides = array<i32>} : memref<32x16xf32, #tpu.memory_space<vmem>>, vector<1x16xf32>,
      %c10_i32 = arith.constant 10 : i32
      %437 = arith.index_cast %c10_i32 : i32 to index
      %c0_156 = arith.constant 0 : index
      %438 = vector.load %arg3[%437, %c0_156] : memref<32x16xf32, #tpu.memory_space<vmem>>, vector<1x16xf32>
      %c16_i32_157 = arith.constant 16 : i32
      %439 = arith.addi %c16_i32_157, %c10_i32 : i32
      %440 = arith.index_cast %439 : i32 to index
      %c0_158 = arith.constant 0 : index
      %441 = vector.load %arg3[%440, %c0_158] : memref<32x16xf32, #tpu.memory_space<vmem>>, vector<1x16xf32>
      %442 = arith.sitofp %c10_i32 : i32 to f32
      %443 = vector.broadcast %442 : f32 to vector<1x16xf32>
      %444 = arith.addf %443, %438 : vector<1x16xf32>
      %445 = arith.addf %1, %441 : vector<1x16xf32>
      %446 = vector.broadcast %444 : vector<1x16xf32> to vector<16x16xf32>
      %447 = vector.broadcast %3 : vector<16x1xf32> to vector<16x16xf32>
      %448 = arith.subf %446, %447 : vector<16x16xf32>
      %449 = math.absf %448 : vector<16x16xf32>
      %cst_159 = arith.constant 1.000000e+00 : f32
      %450 = vector.broadcast %cst_159 : f32 to vector<16x16xf32>
      %451 = arith.subf %450, %449 : vector<16x16xf32>
      %cst_160 = arith.constant 0.000000e+00 : f32
      %452 = vector.broadcast %cst_160 : f32 to vector<16x16xf32>
      %453 = arith.maximumf %452, %451 : vector<16x16xf32>
      %454 = vector.broadcast %445 : vector<1x16xf32> to vector<16x16xf32>
      %455 = vector.broadcast %5 : vector<16x1xf32> to vector<16x16xf32>
      %456 = arith.subf %454, %455 : vector<16x16xf32>
      %457 = math.absf %456 : vector<16x16xf32>
      %cst_161 = arith.constant 1.000000e+00 : f32
      %458 = vector.broadcast %cst_161 : f32 to vector<16x16xf32>
      %459 = arith.subf %458, %457 : vector<16x16xf32>
      %cst_162 = arith.constant 0.000000e+00 : f32
      %460 = vector.broadcast %cst_162 : f32 to vector<16x16xf32>
      %461 = arith.maximumf %460, %459 : vector<16x16xf32>
      %cst_163 = arith.constant dense<0.000000e+00> : vector<32x16xf32>
      %462 = tpu.matmul %26, %461, %cst_163 {dimension_numbers = #tpu.dot_dimension_numbers<[1], [0], [0], [1], [0, 0, 1, 1], [], []>} : vector<32x16xf32>, vector<16x16xf32>, vector<32x16xf32> -> vector<32x16xf32>
      %463 = vector.extract_strided_slice %462 {offsets = [0, 0], sizes = [16, 16], strides = [1, 1]} : vector<32x16xf32> to vector<16x16xf32>
      %464 = arith.mulf %463, %453 : vector<16x16xf32>
      %cst_164 = arith.constant dense<0.000000e+00> : vector<16xf32>
      %465 = vector.multi_reduction <add>, %464, %cst_164 [0] : vector<16x16xf32> to vector<16xf32>
      %466 = vector.shape_cast %465 : vector<16xf32> to vector<1x16xf32>
      %467 = vector.extract_strided_slice %462 {offsets = [16, 0], sizes = [16, 16], strides = [1, 1]} : vector<32x16xf32> to vector<16x16xf32>
      %468 = arith.mulf %467, %453 : vector<16x16xf32>
      %cst_165 = arith.constant dense<0.000000e+00> : vector<16xf32>
      %469 = vector.multi_reduction <add>, %468, %cst_165 [0] : vector<16x16xf32> to vector<16xf32>
      %470 = vector.shape_cast %469 : vector<16xf32> to vector<1x16xf32>
      %471 = arith.addf %438, %466 : vector<1x16xf32>
      %472 = arith.index_cast %c10_i32 : i32 to index
      %c0_166 = arith.constant 0 : index
      %473 = vector.load %arg4[%472, %c0_166] : memref<32x16xf32, #tpu.memory_space<vmem>>, vector<1x16xf32>
      tpu.vector_store %arg4[%472, %c0_166], %471 {strides = array<i32>} : memref<32x16xf32, #tpu.memory_space<vmem>>, vector<1x16xf32>,
      %474 = arith.addf %441, %470 : vector<1x16xf32>
      %c16_i32_167 = arith.constant 16 : i32
      %475 = arith.addi %c16_i32_167, %c10_i32 : i32
      %476 = arith.index_cast %475 : i32 to index
      %c0_168 = arith.constant 0 : index
      %477 = vector.load %arg4[%476, %c0_168] : memref<32x16xf32, #tpu.memory_space<vmem>>, vector<1x16xf32>
      tpu.vector_store %arg4[%476, %c0_168], %474 {strides = array<i32>} : memref<32x16xf32, #tpu.memory_space<vmem>>, vector<1x16xf32>,
      %c11_i32 = arith.constant 11 : i32
      %478 = arith.index_cast %c11_i32 : i32 to index
      %c0_169 = arith.constant 0 : index
      %479 = vector.load %arg3[%478, %c0_169] : memref<32x16xf32, #tpu.memory_space<vmem>>, vector<1x16xf32>
      %c16_i32_170 = arith.constant 16 : i32
      %480 = arith.addi %c16_i32_170, %c11_i32 : i32
      %481 = arith.index_cast %480 : i32 to index
      %c0_171 = arith.constant 0 : index
      %482 = vector.load %arg3[%481, %c0_171] : memref<32x16xf32, #tpu.memory_space<vmem>>, vector<1x16xf32>
      %483 = arith.sitofp %c11_i32 : i32 to f32
      %484 = vector.broadcast %483 : f32 to vector<1x16xf32>
      %485 = arith.addf %484, %479 : vector<1x16xf32>
      %486 = arith.addf %1, %482 : vector<1x16xf32>
      %487 = vector.broadcast %485 : vector<1x16xf32> to vector<16x16xf32>
      %488 = vector.broadcast %3 : vector<16x1xf32> to vector<16x16xf32>
      %489 = arith.subf %487, %488 : vector<16x16xf32>
      %490 = math.absf %489 : vector<16x16xf32>
      %cst_172 = arith.constant 1.000000e+00 : f32
      %491 = vector.broadcast %cst_172 : f32 to vector<16x16xf32>
      %492 = arith.subf %491, %490 : vector<16x16xf32>
      %cst_173 = arith.constant 0.000000e+00 : f32
      %493 = vector.broadcast %cst_173 : f32 to vector<16x16xf32>
      %494 = arith.maximumf %493, %492 : vector<16x16xf32>
      %495 = vector.broadcast %486 : vector<1x16xf32> to vector<16x16xf32>
      %496 = vector.broadcast %5 : vector<16x1xf32> to vector<16x16xf32>
      %497 = arith.subf %495, %496 : vector<16x16xf32>
      %498 = math.absf %497 : vector<16x16xf32>
      %cst_174 = arith.constant 1.000000e+00 : f32
      %499 = vector.broadcast %cst_174 : f32 to vector<16x16xf32>
      %500 = arith.subf %499, %498 : vector<16x16xf32>
      %cst_175 = arith.constant 0.000000e+00 : f32
      %501 = vector.broadcast %cst_175 : f32 to vector<16x16xf32>
      %502 = arith.maximumf %501, %500 : vector<16x16xf32>
      %cst_176 = arith.constant dense<0.000000e+00> : vector<32x16xf32>
      %503 = tpu.matmul %26, %502, %cst_176 {dimension_numbers = #tpu.dot_dimension_numbers<[1], [0], [0], [1], [0, 0, 1, 1], [], []>} : vector<32x16xf32>, vector<16x16xf32>, vector<32x16xf32> -> vector<32x16xf32>
      %504 = vector.extract_strided_slice %503 {offsets = [0, 0], sizes = [16, 16], strides = [1, 1]} : vector<32x16xf32> to vector<16x16xf32>
      %505 = arith.mulf %504, %494 : vector<16x16xf32>
      %cst_177 = arith.constant dense<0.000000e+00> : vector<16xf32>
      %506 = vector.multi_reduction <add>, %505, %cst_177 [0] : vector<16x16xf32> to vector<16xf32>
      %507 = vector.shape_cast %506 : vector<16xf32> to vector<1x16xf32>
      %508 = vector.extract_strided_slice %503 {offsets = [16, 0], sizes = [16, 16], strides = [1, 1]} : vector<32x16xf32> to vector<16x16xf32>
      %509 = arith.mulf %508, %494 : vector<16x16xf32>
      %cst_178 = arith.constant dense<0.000000e+00> : vector<16xf32>
      %510 = vector.multi_reduction <add>, %509, %cst_178 [0] : vector<16x16xf32> to vector<16xf32>
      %511 = vector.shape_cast %510 : vector<16xf32> to vector<1x16xf32>
      %512 = arith.addf %479, %507 : vector<1x16xf32>
      %513 = arith.index_cast %c11_i32 : i32 to index
      %c0_179 = arith.constant 0 : index
      %514 = vector.load %arg4[%513, %c0_179] : memref<32x16xf32, #tpu.memory_space<vmem>>, vector<1x16xf32>
      tpu.vector_store %arg4[%513, %c0_179], %512 {strides = array<i32>} : memref<32x16xf32, #tpu.memory_space<vmem>>, vector<1x16xf32>,
      %515 = arith.addf %482, %511 : vector<1x16xf32>
      %c16_i32_180 = arith.constant 16 : i32
      %516 = arith.addi %c16_i32_180, %c11_i32 : i32
      %517 = arith.index_cast %516 : i32 to index
      %c0_181 = arith.constant 0 : index
      %518 = vector.load %arg4[%517, %c0_181] : memref<32x16xf32, #tpu.memory_space<vmem>>, vector<1x16xf32>
      tpu.vector_store %arg4[%517, %c0_181], %515 {strides = array<i32>} : memref<32x16xf32, #tpu.memory_space<vmem>>, vector<1x16xf32>,
      %c12_i32 = arith.constant 12 : i32
      %519 = arith.index_cast %c12_i32 : i32 to index
      %c0_182 = arith.constant 0 : index
      %520 = vector.load %arg3[%519, %c0_182] : memref<32x16xf32, #tpu.memory_space<vmem>>, vector<1x16xf32>
      %c16_i32_183 = arith.constant 16 : i32
      %521 = arith.addi %c16_i32_183, %c12_i32 : i32
      %522 = arith.index_cast %521 : i32 to index
      %c0_184 = arith.constant 0 : index
      %523 = vector.load %arg3[%522, %c0_184] : memref<32x16xf32, #tpu.memory_space<vmem>>, vector<1x16xf32>
      %524 = arith.sitofp %c12_i32 : i32 to f32
      %525 = vector.broadcast %524 : f32 to vector<1x16xf32>
      %526 = arith.addf %525, %520 : vector<1x16xf32>
      %527 = arith.addf %1, %523 : vector<1x16xf32>
      %528 = vector.broadcast %526 : vector<1x16xf32> to vector<16x16xf32>
      %529 = vector.broadcast %3 : vector<16x1xf32> to vector<16x16xf32>
      %530 = arith.subf %528, %529 : vector<16x16xf32>
      %531 = math.absf %530 : vector<16x16xf32>
      %cst_185 = arith.constant 1.000000e+00 : f32
      %532 = vector.broadcast %cst_185 : f32 to vector<16x16xf32>
      %533 = arith.subf %532, %531 : vector<16x16xf32>
      %cst_186 = arith.constant 0.000000e+00 : f32
      %534 = vector.broadcast %cst_186 : f32 to vector<16x16xf32>
      %535 = arith.maximumf %534, %533 : vector<16x16xf32>
      %536 = vector.broadcast %527 : vector<1x16xf32> to vector<16x16xf32>
      %537 = vector.broadcast %5 : vector<16x1xf32> to vector<16x16xf32>
      %538 = arith.subf %536, %537 : vector<16x16xf32>
      %539 = math.absf %538 : vector<16x16xf32>
      %cst_187 = arith.constant 1.000000e+00 : f32
      %540 = vector.broadcast %cst_187 : f32 to vector<16x16xf32>
      %541 = arith.subf %540, %539 : vector<16x16xf32>
      %cst_188 = arith.constant 0.000000e+00 : f32
      %542 = vector.broadcast %cst_188 : f32 to vector<16x16xf32>
      %543 = arith.maximumf %542, %541 : vector<16x16xf32>
      %cst_189 = arith.constant dense<0.000000e+00> : vector<32x16xf32>
      %544 = tpu.matmul %26, %543, %cst_189 {dimension_numbers = #tpu.dot_dimension_numbers<[1], [0], [0], [1], [0, 0, 1, 1], [], []>} : vector<32x16xf32>, vector<16x16xf32>, vector<32x16xf32> -> vector<32x16xf32>
      %545 = vector.extract_strided_slice %544 {offsets = [0, 0], sizes = [16, 16], strides = [1, 1]} : vector<32x16xf32> to vector<16x16xf32>
      %546 = arith.mulf %545, %535 : vector<16x16xf32>
      %cst_190 = arith.constant dense<0.000000e+00> : vector<16xf32>
      %547 = vector.multi_reduction <add>, %546, %cst_190 [0] : vector<16x16xf32> to vector<16xf32>
      %548 = vector.shape_cast %547 : vector<16xf32> to vector<1x16xf32>
      %549 = vector.extract_strided_slice %544 {offsets = [16, 0], sizes = [16, 16], strides = [1, 1]} : vector<32x16xf32> to vector<16x16xf32>
      %550 = arith.mulf %549, %535 : vector<16x16xf32>
      %cst_191 = arith.constant dense<0.000000e+00> : vector<16xf32>
      %551 = vector.multi_reduction <add>, %550, %cst_191 [0] : vector<16x16xf32> to vector<16xf32>
      %552 = vector.shape_cast %551 : vector<16xf32> to vector<1x16xf32>
      %553 = arith.addf %520, %548 : vector<1x16xf32>
      %554 = arith.index_cast %c12_i32 : i32 to index
      %c0_192 = arith.constant 0 : index
      %555 = vector.load %arg4[%554, %c0_192] : memref<32x16xf32, #tpu.memory_space<vmem>>, vector<1x16xf32>
      tpu.vector_store %arg4[%554, %c0_192], %553 {strides = array<i32>} : memref<32x16xf32, #tpu.memory_space<vmem>>, vector<1x16xf32>,
      %556 = arith.addf %523, %552 : vector<1x16xf32>
      %c16_i32_193 = arith.constant 16 : i32
      %557 = arith.addi %c16_i32_193, %c12_i32 : i32
      %558 = arith.index_cast %557 : i32 to index
      %c0_194 = arith.constant 0 : index
      %559 = vector.load %arg4[%558, %c0_194] : memref<32x16xf32, #tpu.memory_space<vmem>>, vector<1x16xf32>
      tpu.vector_store %arg4[%558, %c0_194], %556 {strides = array<i32>} : memref<32x16xf32, #tpu.memory_space<vmem>>, vector<1x16xf32>,
      %c13_i32 = arith.constant 13 : i32
      %560 = arith.index_cast %c13_i32 : i32 to index
      %c0_195 = arith.constant 0 : index
      %561 = vector.load %arg3[%560, %c0_195] : memref<32x16xf32, #tpu.memory_space<vmem>>, vector<1x16xf32>
      %c16_i32_196 = arith.constant 16 : i32
      %562 = arith.addi %c16_i32_196, %c13_i32 : i32
      %563 = arith.index_cast %562 : i32 to index
      %c0_197 = arith.constant 0 : index
      %564 = vector.load %arg3[%563, %c0_197] : memref<32x16xf32, #tpu.memory_space<vmem>>, vector<1x16xf32>
      %565 = arith.sitofp %c13_i32 : i32 to f32
      %566 = vector.broadcast %565 : f32 to vector<1x16xf32>
      %567 = arith.addf %566, %561 : vector<1x16xf32>
      %568 = arith.addf %1, %564 : vector<1x16xf32>
      %569 = vector.broadcast %567 : vector<1x16xf32> to vector<16x16xf32>
      %570 = vector.broadcast %3 : vector<16x1xf32> to vector<16x16xf32>
      %571 = arith.subf %569, %570 : vector<16x16xf32>
      %572 = math.absf %571 : vector<16x16xf32>
      %cst_198 = arith.constant 1.000000e+00 : f32
      %573 = vector.broadcast %cst_198 : f32 to vector<16x16xf32>
      %574 = arith.subf %573, %572 : vector<16x16xf32>
      %cst_199 = arith.constant 0.000000e+00 : f32
      %575 = vector.broadcast %cst_199 : f32 to vector<16x16xf32>
      %576 = arith.maximumf %575, %574 : vector<16x16xf32>
      %577 = vector.broadcast %568 : vector<1x16xf32> to vector<16x16xf32>
      %578 = vector.broadcast %5 : vector<16x1xf32> to vector<16x16xf32>
      %579 = arith.subf %577, %578 : vector<16x16xf32>
      %580 = math.absf %579 : vector<16x16xf32>
      %cst_200 = arith.constant 1.000000e+00 : f32
      %581 = vector.broadcast %cst_200 : f32 to vector<16x16xf32>
      %582 = arith.subf %581, %580 : vector<16x16xf32>
      %cst_201 = arith.constant 0.000000e+00 : f32
      %583 = vector.broadcast %cst_201 : f32 to vector<16x16xf32>
      %584 = arith.maximumf %583, %582 : vector<16x16xf32>
      %cst_202 = arith.constant dense<0.000000e+00> : vector<32x16xf32>
      %585 = tpu.matmul %26, %584, %cst_202 {dimension_numbers = #tpu.dot_dimension_numbers<[1], [0], [0], [1], [0, 0, 1, 1], [], []>} : vector<32x16xf32>, vector<16x16xf32>, vector<32x16xf32> -> vector<32x16xf32>
      %586 = vector.extract_strided_slice %585 {offsets = [0, 0], sizes = [16, 16], strides = [1, 1]} : vector<32x16xf32> to vector<16x16xf32>
      %587 = arith.mulf %586, %576 : vector<16x16xf32>
      %cst_203 = arith.constant dense<0.000000e+00> : vector<16xf32>
      %588 = vector.multi_reduction <add>, %587, %cst_203 [0] : vector<16x16xf32> to vector<16xf32>
      %589 = vector.shape_cast %588 : vector<16xf32> to vector<1x16xf32>
      %590 = vector.extract_strided_slice %585 {offsets = [16, 0], sizes = [16, 16], strides = [1, 1]} : vector<32x16xf32> to vector<16x16xf32>
      %591 = arith.mulf %590, %576 : vector<16x16xf32>
      %cst_204 = arith.constant dense<0.000000e+00> : vector<16xf32>
      %592 = vector.multi_reduction <add>, %591, %cst_204 [0] : vector<16x16xf32> to vector<16xf32>
      %593 = vector.shape_cast %592 : vector<16xf32> to vector<1x16xf32>
      %594 = arith.addf %561, %589 : vector<1x16xf32>
      %595 = arith.index_cast %c13_i32 : i32 to index
      %c0_205 = arith.constant 0 : index
      %596 = vector.load %arg4[%595, %c0_205] : memref<32x16xf32, #tpu.memory_space<vmem>>, vector<1x16xf32>
      tpu.vector_store %arg4[%595, %c0_205], %594 {strides = array<i32>} : memref<32x16xf32, #tpu.memory_space<vmem>>, vector<1x16xf32>,
      %597 = arith.addf %564, %593 : vector<1x16xf32>
      %c16_i32_206 = arith.constant 16 : i32
      %598 = arith.addi %c16_i32_206, %c13_i32 : i32
      %599 = arith.index_cast %598 : i32 to index
      %c0_207 = arith.constant 0 : index
      %600 = vector.load %arg4[%599, %c0_207] : memref<32x16xf32, #tpu.memory_space<vmem>>, vector<1x16xf32>
      tpu.vector_store %arg4[%599, %c0_207], %597 {strides = array<i32>} : memref<32x16xf32, #tpu.memory_space<vmem>>, vector<1x16xf32>,
      %c14_i32 = arith.constant 14 : i32
      %601 = arith.index_cast %c14_i32 : i32 to index
      %c0_208 = arith.constant 0 : index
      %602 = vector.load %arg3[%601, %c0_208] : memref<32x16xf32, #tpu.memory_space<vmem>>, vector<1x16xf32>
      %c16_i32_209 = arith.constant 16 : i32
      %603 = arith.addi %c16_i32_209, %c14_i32 : i32
      %604 = arith.index_cast %603 : i32 to index
      %c0_210 = arith.constant 0 : index
      %605 = vector.load %arg3[%604, %c0_210] : memref<32x16xf32, #tpu.memory_space<vmem>>, vector<1x16xf32>
      %606 = arith.sitofp %c14_i32 : i32 to f32
      %607 = vector.broadcast %606 : f32 to vector<1x16xf32>
      %608 = arith.addf %607, %602 : vector<1x16xf32>
      %609 = arith.addf %1, %605 : vector<1x16xf32>
      %610 = vector.broadcast %608 : vector<1x16xf32> to vector<16x16xf32>
      %611 = vector.broadcast %3 : vector<16x1xf32> to vector<16x16xf32>
      %612 = arith.subf %610, %611 : vector<16x16xf32>
      %613 = math.absf %612 : vector<16x16xf32>
      %cst_211 = arith.constant 1.000000e+00 : f32
      %614 = vector.broadcast %cst_211 : f32 to vector<16x16xf32>
      %615 = arith.subf %614, %613 : vector<16x16xf32>
      %cst_212 = arith.constant 0.000000e+00 : f32
      %616 = vector.broadcast %cst_212 : f32 to vector<16x16xf32>
      %617 = arith.maximumf %616, %615 : vector<16x16xf32>
      %618 = vector.broadcast %609 : vector<1x16xf32> to vector<16x16xf32>
      %619 = vector.broadcast %5 : vector<16x1xf32> to vector<16x16xf32>
      %620 = arith.subf %618, %619 : vector<16x16xf32>
      %621 = math.absf %620 : vector<16x16xf32>
      %cst_213 = arith.constant 1.000000e+00 : f32
      %622 = vector.broadcast %cst_213 : f32 to vector<16x16xf32>
      %623 = arith.subf %622, %621 : vector<16x16xf32>
      %cst_214 = arith.constant 0.000000e+00 : f32
      %624 = vector.broadcast %cst_214 : f32 to vector<16x16xf32>
      %625 = arith.maximumf %624, %623 : vector<16x16xf32>
      %cst_215 = arith.constant dense<0.000000e+00> : vector<32x16xf32>
      %626 = tpu.matmul %26, %625, %cst_215 {dimension_numbers = #tpu.dot_dimension_numbers<[1], [0], [0], [1], [0, 0, 1, 1], [], []>} : vector<32x16xf32>, vector<16x16xf32>, vector<32x16xf32> -> vector<32x16xf32>
      %627 = vector.extract_strided_slice %626 {offsets = [0, 0], sizes = [16, 16], strides = [1, 1]} : vector<32x16xf32> to vector<16x16xf32>
      %628 = arith.mulf %627, %617 : vector<16x16xf32>
      %cst_216 = arith.constant dense<0.000000e+00> : vector<16xf32>
      %629 = vector.multi_reduction <add>, %628, %cst_216 [0] : vector<16x16xf32> to vector<16xf32>
      %630 = vector.shape_cast %629 : vector<16xf32> to vector<1x16xf32>
      %631 = vector.extract_strided_slice %626 {offsets = [16, 0], sizes = [16, 16], strides = [1, 1]} : vector<32x16xf32> to vector<16x16xf32>
      %632 = arith.mulf %631, %617 : vector<16x16xf32>
      %cst_217 = arith.constant dense<0.000000e+00> : vector<16xf32>
      %633 = vector.multi_reduction <add>, %632, %cst_217 [0] : vector<16x16xf32> to vector<16xf32>
      %634 = vector.shape_cast %633 : vector<16xf32> to vector<1x16xf32>
      %635 = arith.addf %602, %630 : vector<1x16xf32>
      %636 = arith.index_cast %c14_i32 : i32 to index
      %c0_218 = arith.constant 0 : index
      %637 = vector.load %arg4[%636, %c0_218] : memref<32x16xf32, #tpu.memory_space<vmem>>, vector<1x16xf32>
      tpu.vector_store %arg4[%636, %c0_218], %635 {strides = array<i32>} : memref<32x16xf32, #tpu.memory_space<vmem>>, vector<1x16xf32>,
      %638 = arith.addf %605, %634 : vector<1x16xf32>
      %c16_i32_219 = arith.constant 16 : i32
      %639 = arith.addi %c16_i32_219, %c14_i32 : i32
      %640 = arith.index_cast %639 : i32 to index
      %c0_220 = arith.constant 0 : index
      %641 = vector.load %arg4[%640, %c0_220] : memref<32x16xf32, #tpu.memory_space<vmem>>, vector<1x16xf32>
      tpu.vector_store %arg4[%640, %c0_220], %638 {strides = array<i32>} : memref<32x16xf32, #tpu.memory_space<vmem>>, vector<1x16xf32>,
      %c15_i32 = arith.constant 15 : i32
      %642 = arith.index_cast %c15_i32 : i32 to index
      %c0_221 = arith.constant 0 : index
      %643 = vector.load %arg3[%642, %c0_221] : memref<32x16xf32, #tpu.memory_space<vmem>>, vector<1x16xf32>
      %c16_i32_222 = arith.constant 16 : i32
      %644 = arith.addi %c16_i32_222, %c15_i32 : i32
      %645 = arith.index_cast %644 : i32 to index
      %c0_223 = arith.constant 0 : index
      %646 = vector.load %arg3[%645, %c0_223] : memref<32x16xf32, #tpu.memory_space<vmem>>, vector<1x16xf32>
      %647 = arith.sitofp %c15_i32 : i32 to f32
      %648 = vector.broadcast %647 : f32 to vector<1x16xf32>
      %649 = arith.addf %648, %643 : vector<1x16xf32>
      %650 = arith.addf %1, %646 : vector<1x16xf32>
      %651 = vector.broadcast %649 : vector<1x16xf32> to vector<16x16xf32>
      %652 = vector.broadcast %3 : vector<16x1xf32> to vector<16x16xf32>
      %653 = arith.subf %651, %652 : vector<16x16xf32>
      %654 = math.absf %653 : vector<16x16xf32>
      %cst_224 = arith.constant 1.000000e+00 : f32
      %655 = vector.broadcast %cst_224 : f32 to vector<16x16xf32>
      %656 = arith.subf %655, %654 : vector<16x16xf32>
      %cst_225 = arith.constant 0.000000e+00 : f32
      %657 = vector.broadcast %cst_225 : f32 to vector<16x16xf32>
      %658 = arith.maximumf %657, %656 : vector<16x16xf32>
      %659 = vector.broadcast %650 : vector<1x16xf32> to vector<16x16xf32>
      %660 = vector.broadcast %5 : vector<16x1xf32> to vector<16x16xf32>
      %661 = arith.subf %659, %660 : vector<16x16xf32>
      %662 = math.absf %661 : vector<16x16xf32>
      %cst_226 = arith.constant 1.000000e+00 : f32
      %663 = vector.broadcast %cst_226 : f32 to vector<16x16xf32>
      %664 = arith.subf %663, %662 : vector<16x16xf32>
      %cst_227 = arith.constant 0.000000e+00 : f32
      %665 = vector.broadcast %cst_227 : f32 to vector<16x16xf32>
      %666 = arith.maximumf %665, %664 : vector<16x16xf32>
      %cst_228 = arith.constant dense<0.000000e+00> : vector<32x16xf32>
      %667 = tpu.matmul %26, %666, %cst_228 {dimension_numbers = #tpu.dot_dimension_numbers<[1], [0], [0], [1], [0, 0, 1, 1], [], []>} : vector<32x16xf32>, vector<16x16xf32>, vector<32x16xf32> -> vector<32x16xf32>
      %668 = vector.extract_strided_slice %667 {offsets = [0, 0], sizes = [16, 16], strides = [1, 1]} : vector<32x16xf32> to vector<16x16xf32>
      %669 = arith.mulf %668, %658 : vector<16x16xf32>
      %cst_229 = arith.constant dense<0.000000e+00> : vector<16xf32>
      %670 = vector.multi_reduction <add>, %669, %cst_229 [0] : vector<16x16xf32> to vector<16xf32>
      %671 = vector.shape_cast %670 : vector<16xf32> to vector<1x16xf32>
      %672 = vector.extract_strided_slice %667 {offsets = [16, 0], sizes = [16, 16], strides = [1, 1]} : vector<32x16xf32> to vector<16x16xf32>
      %673 = arith.mulf %672, %658 : vector<16x16xf32>
      %cst_230 = arith.constant dense<0.000000e+00> : vector<16xf32>
      %674 = vector.multi_reduction <add>, %673, %cst_230 [0] : vector<16x16xf32> to vector<16xf32>
      %675 = vector.shape_cast %674 : vector<16xf32> to vector<1x16xf32>
      %676 = arith.addf %643, %671 : vector<1x16xf32>
      %677 = arith.index_cast %c15_i32 : i32 to index
      %c0_231 = arith.constant 0 : index
      %678 = vector.load %arg4[%677, %c0_231] : memref<32x16xf32, #tpu.memory_space<vmem>>, vector<1x16xf32>
      tpu.vector_store %arg4[%677, %c0_231], %676 {strides = array<i32>} : memref<32x16xf32, #tpu.memory_space<vmem>>, vector<1x16xf32>,
      %679 = arith.addf %646, %675 : vector<1x16xf32>
      %c16_i32_232 = arith.constant 16 : i32
      %680 = arith.addi %c16_i32_232, %c15_i32 : i32
      %681 = arith.index_cast %680 : i32 to index
      %c0_233 = arith.constant 0 : index
      %682 = vector.load %arg4[%681, %c0_233] : memref<32x16xf32, #tpu.memory_space<vmem>>, vector<1x16xf32>
      tpu.vector_store %arg4[%681, %c0_233], %679 {strides = array<i32>} : memref<32x16xf32, #tpu.memory_space<vmem>>, vector<1x16xf32>,
      %c16_i32_234 = arith.constant 16 : i32
      %c0_235 = arith.constant 0 : index
      %c0_236 = arith.constant 0 : index
      %683 = vector.load %arg4[%c0_235, %c0_236] : memref<32x16xf32, #tpu.memory_space<vmem>>, vector<32x16xf32>
      %c0_237 = arith.constant 0 : index
      %c0_238 = arith.constant 0 : index
      %684 = vector.load %arg3[%c0_237, %c0_238] : memref<32x16xf32, #tpu.memory_space<vmem>>, vector<32x16xf32>
      tpu.vector_store %arg3[%c0_237, %c0_238], %683 {strides = array<i32>} : memref<32x16xf32, #tpu.memory_space<vmem>>, vector<32x16xf32>,
    }
    %c0_4 = arith.constant 0 : index
    %c0_5 = arith.constant 0 : index
    %12 = vector.load %arg3[%c0_4, %c0_5] : memref<32x16xf32, #tpu.memory_space<vmem>>, vector<32x16xf32>
    %c0_6 = arith.constant 0 : index
    %c0_7 = arith.constant 0 : index
    %c0_8 = arith.constant 0 : index
    %13 = vector.load %arg2[%c0_6, %c0_7, %c0_8] : memref<2x32x16xf32, #tpu.memory_space<vmem>>, vector<1x32x16xf32>
    %14 = vector.shape_cast %13 : vector<1x32x16xf32> to vector<32x16xf32>
    %15 = vector.shape_cast %12 : vector<32x16xf32> to vector<1x32x16xf32>
    tpu.vector_store %arg2[%c0_6, %c0_7, %c0_8], %15 {strides = array<i32>} : memref<2x32x16xf32, #tpu.memory_space<vmem>>, vector<1x32x16xf32>,
    %c1 = arith.constant 1 : index
    %c0_9 = arith.constant 0 : index
    %c0_10 = arith.constant 0 : index
    %16 = vector.load %arg1[%c1, %c0_9, %c0_10] : memref<2x32x16xf32, #tpu.memory_space<vmem>>, vector<1x32x16xf32>
    %17 = vector.shape_cast %16 : vector<1x32x16xf32> to vector<32x16xf32>
    %cst_11 = arith.constant 6.250000e-02 : f32
    %18 = vector.broadcast %cst_11 : f32 to vector<32x16xf32>
    %19 = arith.mulf %17, %18 : vector<32x16xf32>
    %c0_12 = arith.constant 0 : index
    %c0_13 = arith.constant 0 : index
    %20 = vector.load %arg3[%c0_12, %c0_13] : memref<32x16xf32, #tpu.memory_space<vmem>>, vector<32x16xf32>
    tpu.vector_store %arg3[%c0_12, %c0_13], %19 {strides = array<i32>} : memref<32x16xf32, #tpu.memory_space<vmem>>, vector<32x16xf32>,
    %c0_i32_14 = arith.constant 0 : i32
    %c4_i32_15 = arith.constant 4 : i32
    %21 = arith.addi %c0_i32_14, %c4_i32_15 : i32
    %c1_i32_16 = arith.constant 1 : i32
    scf.for %arg5 = %c0_i32_14 to %21 step %c1_i32_16  : i32 {
      %c0_22 = arith.constant 0 : index
      %c0_23 = arith.constant 0 : index
      %26 = vector.load %arg3[%c0_22, %c0_23] : memref<32x16xf32, #tpu.memory_space<vmem>>, vector<32x16xf32>
      %c0_i32_24 = arith.constant 0 : i32
      %27 = arith.index_cast %c0_i32_24 : i32 to index
      %c0_25 = arith.constant 0 : index
      %28 = vector.load %arg3[%27, %c0_25] : memref<32x16xf32, #tpu.memory_space<vmem>>, vector<1x16xf32>
      %c16_i32 = arith.constant 16 : i32
      %29 = arith.addi %c16_i32, %c0_i32_24 : i32
      %30 = arith.index_cast %29 : i32 to index
      %c0_26 = arith.constant 0 : index
      %31 = vector.load %arg3[%30, %c0_26] : memref<32x16xf32, #tpu.memory_space<vmem>>, vector<1x16xf32>
      %32 = arith.sitofp %c0_i32_24 : i32 to f32
      %33 = vector.broadcast %32 : f32 to vector<1x16xf32>
      %34 = arith.addf %33, %28 : vector<1x16xf32>
      %35 = arith.addf %1, %31 : vector<1x16xf32>
      %36 = vector.broadcast %34 : vector<1x16xf32> to vector<16x16xf32>
      %37 = vector.broadcast %3 : vector<16x1xf32> to vector<16x16xf32>
      %38 = arith.subf %36, %37 : vector<16x16xf32>
      %39 = math.absf %38 : vector<16x16xf32>
      %cst_27 = arith.constant 1.000000e+00 : f32
      %40 = vector.broadcast %cst_27 : f32 to vector<16x16xf32>
      %41 = arith.subf %40, %39 : vector<16x16xf32>
      %cst_28 = arith.constant 0.000000e+00 : f32
      %42 = vector.broadcast %cst_28 : f32 to vector<16x16xf32>
      %43 = arith.maximumf %42, %41 : vector<16x16xf32>
      %44 = vector.broadcast %35 : vector<1x16xf32> to vector<16x16xf32>
      %45 = vector.broadcast %5 : vector<16x1xf32> to vector<16x16xf32>
      %46 = arith.subf %44, %45 : vector<16x16xf32>
      %47 = math.absf %46 : vector<16x16xf32>
      %cst_29 = arith.constant 1.000000e+00 : f32
      %48 = vector.broadcast %cst_29 : f32 to vector<16x16xf32>
      %49 = arith.subf %48, %47 : vector<16x16xf32>
      %cst_30 = arith.constant 0.000000e+00 : f32
      %50 = vector.broadcast %cst_30 : f32 to vector<16x16xf32>
      %51 = arith.maximumf %50, %49 : vector<16x16xf32>
      %cst_31 = arith.constant dense<0.000000e+00> : vector<32x16xf32>
      %52 = tpu.matmul %26, %51, %cst_31 {dimension_numbers = #tpu.dot_dimension_numbers<[1], [0], [0], [1], [0, 0, 1, 1], [], []>} : vector<32x16xf32>, vector<16x16xf32>, vector<32x16xf32> -> vector<32x16xf32>
      %53 = vector.extract_strided_slice %52 {offsets = [0, 0], sizes = [16, 16], strides = [1, 1]} : vector<32x16xf32> to vector<16x16xf32>
      %54 = arith.mulf %53, %43 : vector<16x16xf32>
      %cst_32 = arith.constant dense<0.000000e+00> : vector<16xf32>
      %55 = vector.multi_reduction <add>, %54, %cst_32 [0] : vector<16x16xf32> to vector<16xf32>
      %56 = vector.shape_cast %55 : vector<16xf32> to vector<1x16xf32>
      %57 = vector.extract_strided_slice %52 {offsets = [16, 0], sizes = [16, 16], strides = [1, 1]} : vector<32x16xf32> to vector<16x16xf32>
      %58 = arith.mulf %57, %43 : vector<16x16xf32>
      %cst_33 = arith.constant dense<0.000000e+00> : vector<16xf32>
      %59 = vector.multi_reduction <add>, %58, %cst_33 [0] : vector<16x16xf32> to vector<16xf32>
      %60 = vector.shape_cast %59 : vector<16xf32> to vector<1x16xf32>
      %61 = arith.addf %28, %56 : vector<1x16xf32>
      %62 = arith.index_cast %c0_i32_24 : i32 to index
      %c0_34 = arith.constant 0 : index
      %63 = vector.load %arg4[%62, %c0_34] : memref<32x16xf32, #tpu.memory_space<vmem>>, vector<1x16xf32>
      tpu.vector_store %arg4[%62, %c0_34], %61 {strides = array<i32>} : memref<32x16xf32, #tpu.memory_space<vmem>>, vector<1x16xf32>,
      %64 = arith.addf %31, %60 : vector<1x16xf32>
      %c16_i32_35 = arith.constant 16 : i32
      %65 = arith.addi %c16_i32_35, %c0_i32_24 : i32
      %66 = arith.index_cast %65 : i32 to index
      %c0_36 = arith.constant 0 : index
      %67 = vector.load %arg4[%66, %c0_36] : memref<32x16xf32, #tpu.memory_space<vmem>>, vector<1x16xf32>
      tpu.vector_store %arg4[%66, %c0_36], %64 {strides = array<i32>} : memref<32x16xf32, #tpu.memory_space<vmem>>, vector<1x16xf32>,
      %c1_i32_37 = arith.constant 1 : i32
      %68 = arith.index_cast %c1_i32_37 : i32 to index
      %c0_38 = arith.constant 0 : index
      %69 = vector.load %arg3[%68, %c0_38] : memref<32x16xf32, #tpu.memory_space<vmem>>, vector<1x16xf32>
      %c16_i32_39 = arith.constant 16 : i32
      %70 = arith.addi %c16_i32_39, %c1_i32_37 : i32
      %71 = arith.index_cast %70 : i32 to index
      %c0_40 = arith.constant 0 : index
      %72 = vector.load %arg3[%71, %c0_40] : memref<32x16xf32, #tpu.memory_space<vmem>>, vector<1x16xf32>
      %73 = arith.sitofp %c1_i32_37 : i32 to f32
      %74 = vector.broadcast %73 : f32 to vector<1x16xf32>
      %75 = arith.addf %74, %69 : vector<1x16xf32>
      %76 = arith.addf %1, %72 : vector<1x16xf32>
      %77 = vector.broadcast %75 : vector<1x16xf32> to vector<16x16xf32>
      %78 = vector.broadcast %3 : vector<16x1xf32> to vector<16x16xf32>
      %79 = arith.subf %77, %78 : vector<16x16xf32>
      %80 = math.absf %79 : vector<16x16xf32>
      %cst_41 = arith.constant 1.000000e+00 : f32
      %81 = vector.broadcast %cst_41 : f32 to vector<16x16xf32>
      %82 = arith.subf %81, %80 : vector<16x16xf32>
      %cst_42 = arith.constant 0.000000e+00 : f32
      %83 = vector.broadcast %cst_42 : f32 to vector<16x16xf32>
      %84 = arith.maximumf %83, %82 : vector<16x16xf32>
      %85 = vector.broadcast %76 : vector<1x16xf32> to vector<16x16xf32>
      %86 = vector.broadcast %5 : vector<16x1xf32> to vector<16x16xf32>
      %87 = arith.subf %85, %86 : vector<16x16xf32>
      %88 = math.absf %87 : vector<16x16xf32>
      %cst_43 = arith.constant 1.000000e+00 : f32
      %89 = vector.broadcast %cst_43 : f32 to vector<16x16xf32>
      %90 = arith.subf %89, %88 : vector<16x16xf32>
      %cst_44 = arith.constant 0.000000e+00 : f32
      %91 = vector.broadcast %cst_44 : f32 to vector<16x16xf32>
      %92 = arith.maximumf %91, %90 : vector<16x16xf32>
      %cst_45 = arith.constant dense<0.000000e+00> : vector<32x16xf32>
      %93 = tpu.matmul %26, %92, %cst_45 {dimension_numbers = #tpu.dot_dimension_numbers<[1], [0], [0], [1], [0, 0, 1, 1], [], []>} : vector<32x16xf32>, vector<16x16xf32>, vector<32x16xf32> -> vector<32x16xf32>
      %94 = vector.extract_strided_slice %93 {offsets = [0, 0], sizes = [16, 16], strides = [1, 1]} : vector<32x16xf32> to vector<16x16xf32>
      %95 = arith.mulf %94, %84 : vector<16x16xf32>
      %cst_46 = arith.constant dense<0.000000e+00> : vector<16xf32>
      %96 = vector.multi_reduction <add>, %95, %cst_46 [0] : vector<16x16xf32> to vector<16xf32>
      %97 = vector.shape_cast %96 : vector<16xf32> to vector<1x16xf32>
      %98 = vector.extract_strided_slice %93 {offsets = [16, 0], sizes = [16, 16], strides = [1, 1]} : vector<32x16xf32> to vector<16x16xf32>
      %99 = arith.mulf %98, %84 : vector<16x16xf32>
      %cst_47 = arith.constant dense<0.000000e+00> : vector<16xf32>
      %100 = vector.multi_reduction <add>, %99, %cst_47 [0] : vector<16x16xf32> to vector<16xf32>
      %101 = vector.shape_cast %100 : vector<16xf32> to vector<1x16xf32>
      %102 = arith.addf %69, %97 : vector<1x16xf32>
      %103 = arith.index_cast %c1_i32_37 : i32 to index
      %c0_48 = arith.constant 0 : index
      %104 = vector.load %arg4[%103, %c0_48] : memref<32x16xf32, #tpu.memory_space<vmem>>, vector<1x16xf32>
      tpu.vector_store %arg4[%103, %c0_48], %102 {strides = array<i32>} : memref<32x16xf32, #tpu.memory_space<vmem>>, vector<1x16xf32>,
      %105 = arith.addf %72, %101 : vector<1x16xf32>
      %c16_i32_49 = arith.constant 16 : i32
      %106 = arith.addi %c16_i32_49, %c1_i32_37 : i32
      %107 = arith.index_cast %106 : i32 to index
      %c0_50 = arith.constant 0 : index
      %108 = vector.load %arg4[%107, %c0_50] : memref<32x16xf32, #tpu.memory_space<vmem>>, vector<1x16xf32>
      tpu.vector_store %arg4[%107, %c0_50], %105 {strides = array<i32>} : memref<32x16xf32, #tpu.memory_space<vmem>>, vector<1x16xf32>,
      %c2_i32 = arith.constant 2 : i32
      %109 = arith.index_cast %c2_i32 : i32 to index
      %c0_51 = arith.constant 0 : index
      %110 = vector.load %arg3[%109, %c0_51] : memref<32x16xf32, #tpu.memory_space<vmem>>, vector<1x16xf32>
      %c16_i32_52 = arith.constant 16 : i32
      %111 = arith.addi %c16_i32_52, %c2_i32 : i32
      %112 = arith.index_cast %111 : i32 to index
      %c0_53 = arith.constant 0 : index
      %113 = vector.load %arg3[%112, %c0_53] : memref<32x16xf32, #tpu.memory_space<vmem>>, vector<1x16xf32>
      %114 = arith.sitofp %c2_i32 : i32 to f32
      %115 = vector.broadcast %114 : f32 to vector<1x16xf32>
      %116 = arith.addf %115, %110 : vector<1x16xf32>
      %117 = arith.addf %1, %113 : vector<1x16xf32>
      %118 = vector.broadcast %116 : vector<1x16xf32> to vector<16x16xf32>
      %119 = vector.broadcast %3 : vector<16x1xf32> to vector<16x16xf32>
      %120 = arith.subf %118, %119 : vector<16x16xf32>
      %121 = math.absf %120 : vector<16x16xf32>
      %cst_54 = arith.constant 1.000000e+00 : f32
      %122 = vector.broadcast %cst_54 : f32 to vector<16x16xf32>
      %123 = arith.subf %122, %121 : vector<16x16xf32>
      %cst_55 = arith.constant 0.000000e+00 : f32
      %124 = vector.broadcast %cst_55 : f32 to vector<16x16xf32>
      %125 = arith.maximumf %124, %123 : vector<16x16xf32>
      %126 = vector.broadcast %117 : vector<1x16xf32> to vector<16x16xf32>
      %127 = vector.broadcast %5 : vector<16x1xf32> to vector<16x16xf32>
      %128 = arith.subf %126, %127 : vector<16x16xf32>
      %129 = math.absf %128 : vector<16x16xf32>
      %cst_56 = arith.constant 1.000000e+00 : f32
      %130 = vector.broadcast %cst_56 : f32 to vector<16x16xf32>
      %131 = arith.subf %130, %129 : vector<16x16xf32>
      %cst_57 = arith.constant 0.000000e+00 : f32
      %132 = vector.broadcast %cst_57 : f32 to vector<16x16xf32>
      %133 = arith.maximumf %132, %131 : vector<16x16xf32>
      %cst_58 = arith.constant dense<0.000000e+00> : vector<32x16xf32>
      %134 = tpu.matmul %26, %133, %cst_58 {dimension_numbers = #tpu.dot_dimension_numbers<[1], [0], [0], [1], [0, 0, 1, 1], [], []>} : vector<32x16xf32>, vector<16x16xf32>, vector<32x16xf32> -> vector<32x16xf32>
      %135 = vector.extract_strided_slice %134 {offsets = [0, 0], sizes = [16, 16], strides = [1, 1]} : vector<32x16xf32> to vector<16x16xf32>
      %136 = arith.mulf %135, %125 : vector<16x16xf32>
      %cst_59 = arith.constant dense<0.000000e+00> : vector<16xf32>
      %137 = vector.multi_reduction <add>, %136, %cst_59 [0] : vector<16x16xf32> to vector<16xf32>
      %138 = vector.shape_cast %137 : vector<16xf32> to vector<1x16xf32>
      %139 = vector.extract_strided_slice %134 {offsets = [16, 0], sizes = [16, 16], strides = [1, 1]} : vector<32x16xf32> to vector<16x16xf32>
      %140 = arith.mulf %139, %125 : vector<16x16xf32>
      %cst_60 = arith.constant dense<0.000000e+00> : vector<16xf32>
      %141 = vector.multi_reduction <add>, %140, %cst_60 [0] : vector<16x16xf32> to vector<16xf32>
      %142 = vector.shape_cast %141 : vector<16xf32> to vector<1x16xf32>
      %143 = arith.addf %110, %138 : vector<1x16xf32>
      %144 = arith.index_cast %c2_i32 : i32 to index
      %c0_61 = arith.constant 0 : index
      %145 = vector.load %arg4[%144, %c0_61] : memref<32x16xf32, #tpu.memory_space<vmem>>, vector<1x16xf32>
      tpu.vector_store %arg4[%144, %c0_61], %143 {strides = array<i32>} : memref<32x16xf32, #tpu.memory_space<vmem>>, vector<1x16xf32>,
      %146 = arith.addf %113, %142 : vector<1x16xf32>
      %c16_i32_62 = arith.constant 16 : i32
      %147 = arith.addi %c16_i32_62, %c2_i32 : i32
      %148 = arith.index_cast %147 : i32 to index
      %c0_63 = arith.constant 0 : index
      %149 = vector.load %arg4[%148, %c0_63] : memref<32x16xf32, #tpu.memory_space<vmem>>, vector<1x16xf32>
      tpu.vector_store %arg4[%148, %c0_63], %146 {strides = array<i32>} : memref<32x16xf32, #tpu.memory_space<vmem>>, vector<1x16xf32>,
      %c3_i32 = arith.constant 3 : i32
      %150 = arith.index_cast %c3_i32 : i32 to index
      %c0_64 = arith.constant 0 : index
      %151 = vector.load %arg3[%150, %c0_64] : memref<32x16xf32, #tpu.memory_space<vmem>>, vector<1x16xf32>
      %c16_i32_65 = arith.constant 16 : i32
      %152 = arith.addi %c16_i32_65, %c3_i32 : i32
      %153 = arith.index_cast %152 : i32 to index
      %c0_66 = arith.constant 0 : index
      %154 = vector.load %arg3[%153, %c0_66] : memref<32x16xf32, #tpu.memory_space<vmem>>, vector<1x16xf32>
      %155 = arith.sitofp %c3_i32 : i32 to f32
      %156 = vector.broadcast %155 : f32 to vector<1x16xf32>
      %157 = arith.addf %156, %151 : vector<1x16xf32>
      %158 = arith.addf %1, %154 : vector<1x16xf32>
      %159 = vector.broadcast %157 : vector<1x16xf32> to vector<16x16xf32>
      %160 = vector.broadcast %3 : vector<16x1xf32> to vector<16x16xf32>
      %161 = arith.subf %159, %160 : vector<16x16xf32>
      %162 = math.absf %161 : vector<16x16xf32>
      %cst_67 = arith.constant 1.000000e+00 : f32
      %163 = vector.broadcast %cst_67 : f32 to vector<16x16xf32>
      %164 = arith.subf %163, %162 : vector<16x16xf32>
      %cst_68 = arith.constant 0.000000e+00 : f32
      %165 = vector.broadcast %cst_68 : f32 to vector<16x16xf32>
      %166 = arith.maximumf %165, %164 : vector<16x16xf32>
      %167 = vector.broadcast %158 : vector<1x16xf32> to vector<16x16xf32>
      %168 = vector.broadcast %5 : vector<16x1xf32> to vector<16x16xf32>
      %169 = arith.subf %167, %168 : vector<16x16xf32>
      %170 = math.absf %169 : vector<16x16xf32>
      %cst_69 = arith.constant 1.000000e+00 : f32
      %171 = vector.broadcast %cst_69 : f32 to vector<16x16xf32>
      %172 = arith.subf %171, %170 : vector<16x16xf32>
      %cst_70 = arith.constant 0.000000e+00 : f32
      %173 = vector.broadcast %cst_70 : f32 to vector<16x16xf32>
      %174 = arith.maximumf %173, %172 : vector<16x16xf32>
      %cst_71 = arith.constant dense<0.000000e+00> : vector<32x16xf32>
      %175 = tpu.matmul %26, %174, %cst_71 {dimension_numbers = #tpu.dot_dimension_numbers<[1], [0], [0], [1], [0, 0, 1, 1], [], []>} : vector<32x16xf32>, vector<16x16xf32>, vector<32x16xf32> -> vector<32x16xf32>
      %176 = vector.extract_strided_slice %175 {offsets = [0, 0], sizes = [16, 16], strides = [1, 1]} : vector<32x16xf32> to vector<16x16xf32>
      %177 = arith.mulf %176, %166 : vector<16x16xf32>
      %cst_72 = arith.constant dense<0.000000e+00> : vector<16xf32>
      %178 = vector.multi_reduction <add>, %177, %cst_72 [0] : vector<16x16xf32> to vector<16xf32>
      %179 = vector.shape_cast %178 : vector<16xf32> to vector<1x16xf32>
      %180 = vector.extract_strided_slice %175 {offsets = [16, 0], sizes = [16, 16], strides = [1, 1]} : vector<32x16xf32> to vector<16x16xf32>
      %181 = arith.mulf %180, %166 : vector<16x16xf32>
      %cst_73 = arith.constant dense<0.000000e+00> : vector<16xf32>
      %182 = vector.multi_reduction <add>, %181, %cst_73 [0] : vector<16x16xf32> to vector<16xf32>
      %183 = vector.shape_cast %182 : vector<16xf32> to vector<1x16xf32>
      %184 = arith.addf %151, %179 : vector<1x16xf32>
      %185 = arith.index_cast %c3_i32 : i32 to index
      %c0_74 = arith.constant 0 : index
      %186 = vector.load %arg4[%185, %c0_74] : memref<32x16xf32, #tpu.memory_space<vmem>>, vector<1x16xf32>
      tpu.vector_store %arg4[%185, %c0_74], %184 {strides = array<i32>} : memref<32x16xf32, #tpu.memory_space<vmem>>, vector<1x16xf32>,
      %187 = arith.addf %154, %183 : vector<1x16xf32>
      %c16_i32_75 = arith.constant 16 : i32
      %188 = arith.addi %c16_i32_75, %c3_i32 : i32
      %189 = arith.index_cast %188 : i32 to index
      %c0_76 = arith.constant 0 : index
      %190 = vector.load %arg4[%189, %c0_76] : memref<32x16xf32, #tpu.memory_space<vmem>>, vector<1x16xf32>
      tpu.vector_store %arg4[%189, %c0_76], %187 {strides = array<i32>} : memref<32x16xf32, #tpu.memory_space<vmem>>, vector<1x16xf32>,
      %c4_i32_77 = arith.constant 4 : i32
      %191 = arith.index_cast %c4_i32_77 : i32 to index
      %c0_78 = arith.constant 0 : index
      %192 = vector.load %arg3[%191, %c0_78] : memref<32x16xf32, #tpu.memory_space<vmem>>, vector<1x16xf32>
      %c16_i32_79 = arith.constant 16 : i32
      %193 = arith.addi %c16_i32_79, %c4_i32_77 : i32
      %194 = arith.index_cast %193 : i32 to index
      %c0_80 = arith.constant 0 : index
      %195 = vector.load %arg3[%194, %c0_80] : memref<32x16xf32, #tpu.memory_space<vmem>>, vector<1x16xf32>
      %196 = arith.sitofp %c4_i32_77 : i32 to f32
      %197 = vector.broadcast %196 : f32 to vector<1x16xf32>
      %198 = arith.addf %197, %192 : vector<1x16xf32>
      %199 = arith.addf %1, %195 : vector<1x16xf32>
      %200 = vector.broadcast %198 : vector<1x16xf32> to vector<16x16xf32>
      %201 = vector.broadcast %3 : vector<16x1xf32> to vector<16x16xf32>
      %202 = arith.subf %200, %201 : vector<16x16xf32>
      %203 = math.absf %202 : vector<16x16xf32>
      %cst_81 = arith.constant 1.000000e+00 : f32
      %204 = vector.broadcast %cst_81 : f32 to vector<16x16xf32>
      %205 = arith.subf %204, %203 : vector<16x16xf32>
      %cst_82 = arith.constant 0.000000e+00 : f32
      %206 = vector.broadcast %cst_82 : f32 to vector<16x16xf32>
      %207 = arith.maximumf %206, %205 : vector<16x16xf32>
      %208 = vector.broadcast %199 : vector<1x16xf32> to vector<16x16xf32>
      %209 = vector.broadcast %5 : vector<16x1xf32> to vector<16x16xf32>
      %210 = arith.subf %208, %209 : vector<16x16xf32>
      %211 = math.absf %210 : vector<16x16xf32>
      %cst_83 = arith.constant 1.000000e+00 : f32
      %212 = vector.broadcast %cst_83 : f32 to vector<16x16xf32>
      %213 = arith.subf %212, %211 : vector<16x16xf32>
      %cst_84 = arith.constant 0.000000e+00 : f32
      %214 = vector.broadcast %cst_84 : f32 to vector<16x16xf32>
      %215 = arith.maximumf %214, %213 : vector<16x16xf32>
      %cst_85 = arith.constant dense<0.000000e+00> : vector<32x16xf32>
      %216 = tpu.matmul %26, %215, %cst_85 {dimension_numbers = #tpu.dot_dimension_numbers<[1], [0], [0], [1], [0, 0, 1, 1], [], []>} : vector<32x16xf32>, vector<16x16xf32>, vector<32x16xf32> -> vector<32x16xf32>
      %217 = vector.extract_strided_slice %216 {offsets = [0, 0], sizes = [16, 16], strides = [1, 1]} : vector<32x16xf32> to vector<16x16xf32>
      %218 = arith.mulf %217, %207 : vector<16x16xf32>
      %cst_86 = arith.constant dense<0.000000e+00> : vector<16xf32>
      %219 = vector.multi_reduction <add>, %218, %cst_86 [0] : vector<16x16xf32> to vector<16xf32>
      %220 = vector.shape_cast %219 : vector<16xf32> to vector<1x16xf32>
      %221 = vector.extract_strided_slice %216 {offsets = [16, 0], sizes = [16, 16], strides = [1, 1]} : vector<32x16xf32> to vector<16x16xf32>
      %222 = arith.mulf %221, %207 : vector<16x16xf32>
      %cst_87 = arith.constant dense<0.000000e+00> : vector<16xf32>
      %223 = vector.multi_reduction <add>, %222, %cst_87 [0] : vector<16x16xf32> to vector<16xf32>
      %224 = vector.shape_cast %223 : vector<16xf32> to vector<1x16xf32>
      %225 = arith.addf %192, %220 : vector<1x16xf32>
      %226 = arith.index_cast %c4_i32_77 : i32 to index
      %c0_88 = arith.constant 0 : index
      %227 = vector.load %arg4[%226, %c0_88] : memref<32x16xf32, #tpu.memory_space<vmem>>, vector<1x16xf32>
      tpu.vector_store %arg4[%226, %c0_88], %225 {strides = array<i32>} : memref<32x16xf32, #tpu.memory_space<vmem>>, vector<1x16xf32>,
      %228 = arith.addf %195, %224 : vector<1x16xf32>
      %c16_i32_89 = arith.constant 16 : i32
      %229 = arith.addi %c16_i32_89, %c4_i32_77 : i32
      %230 = arith.index_cast %229 : i32 to index
      %c0_90 = arith.constant 0 : index
      %231 = vector.load %arg4[%230, %c0_90] : memref<32x16xf32, #tpu.memory_space<vmem>>, vector<1x16xf32>
      tpu.vector_store %arg4[%230, %c0_90], %228 {strides = array<i32>} : memref<32x16xf32, #tpu.memory_space<vmem>>, vector<1x16xf32>,
      %c5_i32 = arith.constant 5 : i32
      %232 = arith.index_cast %c5_i32 : i32 to index
      %c0_91 = arith.constant 0 : index
      %233 = vector.load %arg3[%232, %c0_91] : memref<32x16xf32, #tpu.memory_space<vmem>>, vector<1x16xf32>
      %c16_i32_92 = arith.constant 16 : i32
      %234 = arith.addi %c16_i32_92, %c5_i32 : i32
      %235 = arith.index_cast %234 : i32 to index
      %c0_93 = arith.constant 0 : index
      %236 = vector.load %arg3[%235, %c0_93] : memref<32x16xf32, #tpu.memory_space<vmem>>, vector<1x16xf32>
      %237 = arith.sitofp %c5_i32 : i32 to f32
      %238 = vector.broadcast %237 : f32 to vector<1x16xf32>
      %239 = arith.addf %238, %233 : vector<1x16xf32>
      %240 = arith.addf %1, %236 : vector<1x16xf32>
      %241 = vector.broadcast %239 : vector<1x16xf32> to vector<16x16xf32>
      %242 = vector.broadcast %3 : vector<16x1xf32> to vector<16x16xf32>
      %243 = arith.subf %241, %242 : vector<16x16xf32>
      %244 = math.absf %243 : vector<16x16xf32>
      %cst_94 = arith.constant 1.000000e+00 : f32
      %245 = vector.broadcast %cst_94 : f32 to vector<16x16xf32>
      %246 = arith.subf %245, %244 : vector<16x16xf32>
      %cst_95 = arith.constant 0.000000e+00 : f32
      %247 = vector.broadcast %cst_95 : f32 to vector<16x16xf32>
      %248 = arith.maximumf %247, %246 : vector<16x16xf32>
      %249 = vector.broadcast %240 : vector<1x16xf32> to vector<16x16xf32>
      %250 = vector.broadcast %5 : vector<16x1xf32> to vector<16x16xf32>
      %251 = arith.subf %249, %250 : vector<16x16xf32>
      %252 = math.absf %251 : vector<16x16xf32>
      %cst_96 = arith.constant 1.000000e+00 : f32
      %253 = vector.broadcast %cst_96 : f32 to vector<16x16xf32>
      %254 = arith.subf %253, %252 : vector<16x16xf32>
      %cst_97 = arith.constant 0.000000e+00 : f32
      %255 = vector.broadcast %cst_97 : f32 to vector<16x16xf32>
      %256 = arith.maximumf %255, %254 : vector<16x16xf32>
      %cst_98 = arith.constant dense<0.000000e+00> : vector<32x16xf32>
      %257 = tpu.matmul %26, %256, %cst_98 {dimension_numbers = #tpu.dot_dimension_numbers<[1], [0], [0], [1], [0, 0, 1, 1], [], []>} : vector<32x16xf32>, vector<16x16xf32>, vector<32x16xf32> -> vector<32x16xf32>
      %258 = vector.extract_strided_slice %257 {offsets = [0, 0], sizes = [16, 16], strides = [1, 1]} : vector<32x16xf32> to vector<16x16xf32>
      %259 = arith.mulf %258, %248 : vector<16x16xf32>
      %cst_99 = arith.constant dense<0.000000e+00> : vector<16xf32>
      %260 = vector.multi_reduction <add>, %259, %cst_99 [0] : vector<16x16xf32> to vector<16xf32>
      %261 = vector.shape_cast %260 : vector<16xf32> to vector<1x16xf32>
      %262 = vector.extract_strided_slice %257 {offsets = [16, 0], sizes = [16, 16], strides = [1, 1]} : vector<32x16xf32> to vector<16x16xf32>
      %263 = arith.mulf %262, %248 : vector<16x16xf32>
      %cst_100 = arith.constant dense<0.000000e+00> : vector<16xf32>
      %264 = vector.multi_reduction <add>, %263, %cst_100 [0] : vector<16x16xf32> to vector<16xf32>
      %265 = vector.shape_cast %264 : vector<16xf32> to vector<1x16xf32>
      %266 = arith.addf %233, %261 : vector<1x16xf32>
      %267 = arith.index_cast %c5_i32 : i32 to index
      %c0_101 = arith.constant 0 : index
      %268 = vector.load %arg4[%267, %c0_101] : memref<32x16xf32, #tpu.memory_space<vmem>>, vector<1x16xf32>
      tpu.vector_store %arg4[%267, %c0_101], %266 {strides = array<i32>} : memref<32x16xf32, #tpu.memory_space<vmem>>, vector<1x16xf32>,
      %269 = arith.addf %236, %265 : vector<1x16xf32>
      %c16_i32_102 = arith.constant 16 : i32
      %270 = arith.addi %c16_i32_102, %c5_i32 : i32
      %271 = arith.index_cast %270 : i32 to index
      %c0_103 = arith.constant 0 : index
      %272 = vector.load %arg4[%271, %c0_103] : memref<32x16xf32, #tpu.memory_space<vmem>>, vector<1x16xf32>
      tpu.vector_store %arg4[%271, %c0_103], %269 {strides = array<i32>} : memref<32x16xf32, #tpu.memory_space<vmem>>, vector<1x16xf32>,
      %c6_i32 = arith.constant 6 : i32
      %273 = arith.index_cast %c6_i32 : i32 to index
      %c0_104 = arith.constant 0 : index
      %274 = vector.load %arg3[%273, %c0_104] : memref<32x16xf32, #tpu.memory_space<vmem>>, vector<1x16xf32>
      %c16_i32_105 = arith.constant 16 : i32
      %275 = arith.addi %c16_i32_105, %c6_i32 : i32
      %276 = arith.index_cast %275 : i32 to index
      %c0_106 = arith.constant 0 : index
      %277 = vector.load %arg3[%276, %c0_106] : memref<32x16xf32, #tpu.memory_space<vmem>>, vector<1x16xf32>
      %278 = arith.sitofp %c6_i32 : i32 to f32
      %279 = vector.broadcast %278 : f32 to vector<1x16xf32>
      %280 = arith.addf %279, %274 : vector<1x16xf32>
      %281 = arith.addf %1, %277 : vector<1x16xf32>
      %282 = vector.broadcast %280 : vector<1x16xf32> to vector<16x16xf32>
      %283 = vector.broadcast %3 : vector<16x1xf32> to vector<16x16xf32>
      %284 = arith.subf %282, %283 : vector<16x16xf32>
      %285 = math.absf %284 : vector<16x16xf32>
      %cst_107 = arith.constant 1.000000e+00 : f32
      %286 = vector.broadcast %cst_107 : f32 to vector<16x16xf32>
      %287 = arith.subf %286, %285 : vector<16x16xf32>
      %cst_108 = arith.constant 0.000000e+00 : f32
      %288 = vector.broadcast %cst_108 : f32 to vector<16x16xf32>
      %289 = arith.maximumf %288, %287 : vector<16x16xf32>
      %290 = vector.broadcast %281 : vector<1x16xf32> to vector<16x16xf32>
      %291 = vector.broadcast %5 : vector<16x1xf32> to vector<16x16xf32>
      %292 = arith.subf %290, %291 : vector<16x16xf32>
      %293 = math.absf %292 : vector<16x16xf32>
      %cst_109 = arith.constant 1.000000e+00 : f32
      %294 = vector.broadcast %cst_109 : f32 to vector<16x16xf32>
      %295 = arith.subf %294, %293 : vector<16x16xf32>
      %cst_110 = arith.constant 0.000000e+00 : f32
      %296 = vector.broadcast %cst_110 : f32 to vector<16x16xf32>
      %297 = arith.maximumf %296, %295 : vector<16x16xf32>
      %cst_111 = arith.constant dense<0.000000e+00> : vector<32x16xf32>
      %298 = tpu.matmul %26, %297, %cst_111 {dimension_numbers = #tpu.dot_dimension_numbers<[1], [0], [0], [1], [0, 0, 1, 1], [], []>} : vector<32x16xf32>, vector<16x16xf32>, vector<32x16xf32> -> vector<32x16xf32>
      %299 = vector.extract_strided_slice %298 {offsets = [0, 0], sizes = [16, 16], strides = [1, 1]} : vector<32x16xf32> to vector<16x16xf32>
      %300 = arith.mulf %299, %289 : vector<16x16xf32>
      %cst_112 = arith.constant dense<0.000000e+00> : vector<16xf32>
      %301 = vector.multi_reduction <add>, %300, %cst_112 [0] : vector<16x16xf32> to vector<16xf32>
      %302 = vector.shape_cast %301 : vector<16xf32> to vector<1x16xf32>
      %303 = vector.extract_strided_slice %298 {offsets = [16, 0], sizes = [16, 16], strides = [1, 1]} : vector<32x16xf32> to vector<16x16xf32>
      %304 = arith.mulf %303, %289 : vector<16x16xf32>
      %cst_113 = arith.constant dense<0.000000e+00> : vector<16xf32>
      %305 = vector.multi_reduction <add>, %304, %cst_113 [0] : vector<16x16xf32> to vector<16xf32>
      %306 = vector.shape_cast %305 : vector<16xf32> to vector<1x16xf32>
      %307 = arith.addf %274, %302 : vector<1x16xf32>
      %308 = arith.index_cast %c6_i32 : i32 to index
      %c0_114 = arith.constant 0 : index
      %309 = vector.load %arg4[%308, %c0_114] : memref<32x16xf32, #tpu.memory_space<vmem>>, vector<1x16xf32>
      tpu.vector_store %arg4[%308, %c0_114], %307 {strides = array<i32>} : memref<32x16xf32, #tpu.memory_space<vmem>>, vector<1x16xf32>,
      %310 = arith.addf %277, %306 : vector<1x16xf32>
      %c16_i32_115 = arith.constant 16 : i32
      %311 = arith.addi %c16_i32_115, %c6_i32 : i32
      %312 = arith.index_cast %311 : i32 to index
      %c0_116 = arith.constant 0 : index
      %313 = vector.load %arg4[%312, %c0_116] : memref<32x16xf32, #tpu.memory_space<vmem>>, vector<1x16xf32>
      tpu.vector_store %arg4[%312, %c0_116], %310 {strides = array<i32>} : memref<32x16xf32, #tpu.memory_space<vmem>>, vector<1x16xf32>,
      %c7_i32 = arith.constant 7 : i32
      %314 = arith.index_cast %c7_i32 : i32 to index
      %c0_117 = arith.constant 0 : index
      %315 = vector.load %arg3[%314, %c0_117] : memref<32x16xf32, #tpu.memory_space<vmem>>, vector<1x16xf32>
      %c16_i32_118 = arith.constant 16 : i32
      %316 = arith.addi %c16_i32_118, %c7_i32 : i32
      %317 = arith.index_cast %316 : i32 to index
      %c0_119 = arith.constant 0 : index
      %318 = vector.load %arg3[%317, %c0_119] : memref<32x16xf32, #tpu.memory_space<vmem>>, vector<1x16xf32>
      %319 = arith.sitofp %c7_i32 : i32 to f32
      %320 = vector.broadcast %319 : f32 to vector<1x16xf32>
      %321 = arith.addf %320, %315 : vector<1x16xf32>
      %322 = arith.addf %1, %318 : vector<1x16xf32>
      %323 = vector.broadcast %321 : vector<1x16xf32> to vector<16x16xf32>
      %324 = vector.broadcast %3 : vector<16x1xf32> to vector<16x16xf32>
      %325 = arith.subf %323, %324 : vector<16x16xf32>
      %326 = math.absf %325 : vector<16x16xf32>
      %cst_120 = arith.constant 1.000000e+00 : f32
      %327 = vector.broadcast %cst_120 : f32 to vector<16x16xf32>
      %328 = arith.subf %327, %326 : vector<16x16xf32>
      %cst_121 = arith.constant 0.000000e+00 : f32
      %329 = vector.broadcast %cst_121 : f32 to vector<16x16xf32>
      %330 = arith.maximumf %329, %328 : vector<16x16xf32>
      %331 = vector.broadcast %322 : vector<1x16xf32> to vector<16x16xf32>
      %332 = vector.broadcast %5 : vector<16x1xf32> to vector<16x16xf32>
      %333 = arith.subf %331, %332 : vector<16x16xf32>
      %334 = math.absf %333 : vector<16x16xf32>
      %cst_122 = arith.constant 1.000000e+00 : f32
      %335 = vector.broadcast %cst_122 : f32 to vector<16x16xf32>
      %336 = arith.subf %335, %334 : vector<16x16xf32>
      %cst_123 = arith.constant 0.000000e+00 : f32
      %337 = vector.broadcast %cst_123 : f32 to vector<16x16xf32>
      %338 = arith.maximumf %337, %336 : vector<16x16xf32>
      %cst_124 = arith.constant dense<0.000000e+00> : vector<32x16xf32>
      %339 = tpu.matmul %26, %338, %cst_124 {dimension_numbers = #tpu.dot_dimension_numbers<[1], [0], [0], [1], [0, 0, 1, 1], [], []>} : vector<32x16xf32>, vector<16x16xf32>, vector<32x16xf32> -> vector<32x16xf32>
      %340 = vector.extract_strided_slice %339 {offsets = [0, 0], sizes = [16, 16], strides = [1, 1]} : vector<32x16xf32> to vector<16x16xf32>
      %341 = arith.mulf %340, %330 : vector<16x16xf32>
      %cst_125 = arith.constant dense<0.000000e+00> : vector<16xf32>
      %342 = vector.multi_reduction <add>, %341, %cst_125 [0] : vector<16x16xf32> to vector<16xf32>
      %343 = vector.shape_cast %342 : vector<16xf32> to vector<1x16xf32>
      %344 = vector.extract_strided_slice %339 {offsets = [16, 0], sizes = [16, 16], strides = [1, 1]} : vector<32x16xf32> to vector<16x16xf32>
      %345 = arith.mulf %344, %330 : vector<16x16xf32>
      %cst_126 = arith.constant dense<0.000000e+00> : vector<16xf32>
      %346 = vector.multi_reduction <add>, %345, %cst_126 [0] : vector<16x16xf32> to vector<16xf32>
      %347 = vector.shape_cast %346 : vector<16xf32> to vector<1x16xf32>
      %348 = arith.addf %315, %343 : vector<1x16xf32>
      %349 = arith.index_cast %c7_i32 : i32 to index
      %c0_127 = arith.constant 0 : index
      %350 = vector.load %arg4[%349, %c0_127] : memref<32x16xf32, #tpu.memory_space<vmem>>, vector<1x16xf32>
      tpu.vector_store %arg4[%349, %c0_127], %348 {strides = array<i32>} : memref<32x16xf32, #tpu.memory_space<vmem>>, vector<1x16xf32>,
      %351 = arith.addf %318, %347 : vector<1x16xf32>
      %c16_i32_128 = arith.constant 16 : i32
      %352 = arith.addi %c16_i32_128, %c7_i32 : i32
      %353 = arith.index_cast %352 : i32 to index
      %c0_129 = arith.constant 0 : index
      %354 = vector.load %arg4[%353, %c0_129] : memref<32x16xf32, #tpu.memory_space<vmem>>, vector<1x16xf32>
      tpu.vector_store %arg4[%353, %c0_129], %351 {strides = array<i32>} : memref<32x16xf32, #tpu.memory_space<vmem>>, vector<1x16xf32>,
      %c8_i32 = arith.constant 8 : i32
      %355 = arith.index_cast %c8_i32 : i32 to index
      %c0_130 = arith.constant 0 : index
      %356 = vector.load %arg3[%355, %c0_130] : memref<32x16xf32, #tpu.memory_space<vmem>>, vector<1x16xf32>
      %c16_i32_131 = arith.constant 16 : i32
      %357 = arith.addi %c16_i32_131, %c8_i32 : i32
      %358 = arith.index_cast %357 : i32 to index
      %c0_132 = arith.constant 0 : index
      %359 = vector.load %arg3[%358, %c0_132] : memref<32x16xf32, #tpu.memory_space<vmem>>, vector<1x16xf32>
      %360 = arith.sitofp %c8_i32 : i32 to f32
      %361 = vector.broadcast %360 : f32 to vector<1x16xf32>
      %362 = arith.addf %361, %356 : vector<1x16xf32>
      %363 = arith.addf %1, %359 : vector<1x16xf32>
      %364 = vector.broadcast %362 : vector<1x16xf32> to vector<16x16xf32>
      %365 = vector.broadcast %3 : vector<16x1xf32> to vector<16x16xf32>
      %366 = arith.subf %364, %365 : vector<16x16xf32>
      %367 = math.absf %366 : vector<16x16xf32>
      %cst_133 = arith.constant 1.000000e+00 : f32
      %368 = vector.broadcast %cst_133 : f32 to vector<16x16xf32>
      %369 = arith.subf %368, %367 : vector<16x16xf32>
      %cst_134 = arith.constant 0.000000e+00 : f32
      %370 = vector.broadcast %cst_134 : f32 to vector<16x16xf32>
      %371 = arith.maximumf %370, %369 : vector<16x16xf32>
      %372 = vector.broadcast %363 : vector<1x16xf32> to vector<16x16xf32>
      %373 = vector.broadcast %5 : vector<16x1xf32> to vector<16x16xf32>
      %374 = arith.subf %372, %373 : vector<16x16xf32>
      %375 = math.absf %374 : vector<16x16xf32>
      %cst_135 = arith.constant 1.000000e+00 : f32
      %376 = vector.broadcast %cst_135 : f32 to vector<16x16xf32>
      %377 = arith.subf %376, %375 : vector<16x16xf32>
      %cst_136 = arith.constant 0.000000e+00 : f32
      %378 = vector.broadcast %cst_136 : f32 to vector<16x16xf32>
      %379 = arith.maximumf %378, %377 : vector<16x16xf32>
      %cst_137 = arith.constant dense<0.000000e+00> : vector<32x16xf32>
      %380 = tpu.matmul %26, %379, %cst_137 {dimension_numbers = #tpu.dot_dimension_numbers<[1], [0], [0], [1], [0, 0, 1, 1], [], []>} : vector<32x16xf32>, vector<16x16xf32>, vector<32x16xf32> -> vector<32x16xf32>
      %381 = vector.extract_strided_slice %380 {offsets = [0, 0], sizes = [16, 16], strides = [1, 1]} : vector<32x16xf32> to vector<16x16xf32>
      %382 = arith.mulf %381, %371 : vector<16x16xf32>
      %cst_138 = arith.constant dense<0.000000e+00> : vector<16xf32>
      %383 = vector.multi_reduction <add>, %382, %cst_138 [0] : vector<16x16xf32> to vector<16xf32>
      %384 = vector.shape_cast %383 : vector<16xf32> to vector<1x16xf32>
      %385 = vector.extract_strided_slice %380 {offsets = [16, 0], sizes = [16, 16], strides = [1, 1]} : vector<32x16xf32> to vector<16x16xf32>
      %386 = arith.mulf %385, %371 : vector<16x16xf32>
      %cst_139 = arith.constant dense<0.000000e+00> : vector<16xf32>
      %387 = vector.multi_reduction <add>, %386, %cst_139 [0] : vector<16x16xf32> to vector<16xf32>
      %388 = vector.shape_cast %387 : vector<16xf32> to vector<1x16xf32>
      %389 = arith.addf %356, %384 : vector<1x16xf32>
      %390 = arith.index_cast %c8_i32 : i32 to index
      %c0_140 = arith.constant 0 : index
      %391 = vector.load %arg4[%390, %c0_140] : memref<32x16xf32, #tpu.memory_space<vmem>>, vector<1x16xf32>
      tpu.vector_store %arg4[%390, %c0_140], %389 {strides = array<i32>} : memref<32x16xf32, #tpu.memory_space<vmem>>, vector<1x16xf32>,
      %392 = arith.addf %359, %388 : vector<1x16xf32>
      %c16_i32_141 = arith.constant 16 : i32
      %393 = arith.addi %c16_i32_141, %c8_i32 : i32
      %394 = arith.index_cast %393 : i32 to index
      %c0_142 = arith.constant 0 : index
      %395 = vector.load %arg4[%394, %c0_142] : memref<32x16xf32, #tpu.memory_space<vmem>>, vector<1x16xf32>
      tpu.vector_store %arg4[%394, %c0_142], %392 {strides = array<i32>} : memref<32x16xf32, #tpu.memory_space<vmem>>, vector<1x16xf32>,
      %c9_i32 = arith.constant 9 : i32
      %396 = arith.index_cast %c9_i32 : i32 to index
      %c0_143 = arith.constant 0 : index
      %397 = vector.load %arg3[%396, %c0_143] : memref<32x16xf32, #tpu.memory_space<vmem>>, vector<1x16xf32>
      %c16_i32_144 = arith.constant 16 : i32
      %398 = arith.addi %c16_i32_144, %c9_i32 : i32
      %399 = arith.index_cast %398 : i32 to index
      %c0_145 = arith.constant 0 : index
      %400 = vector.load %arg3[%399, %c0_145] : memref<32x16xf32, #tpu.memory_space<vmem>>, vector<1x16xf32>
      %401 = arith.sitofp %c9_i32 : i32 to f32
      %402 = vector.broadcast %401 : f32 to vector<1x16xf32>
      %403 = arith.addf %402, %397 : vector<1x16xf32>
      %404 = arith.addf %1, %400 : vector<1x16xf32>
      %405 = vector.broadcast %403 : vector<1x16xf32> to vector<16x16xf32>
      %406 = vector.broadcast %3 : vector<16x1xf32> to vector<16x16xf32>
      %407 = arith.subf %405, %406 : vector<16x16xf32>
      %408 = math.absf %407 : vector<16x16xf32>
      %cst_146 = arith.constant 1.000000e+00 : f32
      %409 = vector.broadcast %cst_146 : f32 to vector<16x16xf32>
      %410 = arith.subf %409, %408 : vector<16x16xf32>
      %cst_147 = arith.constant 0.000000e+00 : f32
      %411 = vector.broadcast %cst_147 : f32 to vector<16x16xf32>
      %412 = arith.maximumf %411, %410 : vector<16x16xf32>
      %413 = vector.broadcast %404 : vector<1x16xf32> to vector<16x16xf32>
      %414 = vector.broadcast %5 : vector<16x1xf32> to vector<16x16xf32>
      %415 = arith.subf %413, %414 : vector<16x16xf32>
      %416 = math.absf %415 : vector<16x16xf32>
      %cst_148 = arith.constant 1.000000e+00 : f32
      %417 = vector.broadcast %cst_148 : f32 to vector<16x16xf32>
      %418 = arith.subf %417, %416 : vector<16x16xf32>
      %cst_149 = arith.constant 0.000000e+00 : f32
      %419 = vector.broadcast %cst_149 : f32 to vector<16x16xf32>
      %420 = arith.maximumf %419, %418 : vector<16x16xf32>
      %cst_150 = arith.constant dense<0.000000e+00> : vector<32x16xf32>
      %421 = tpu.matmul %26, %420, %cst_150 {dimension_numbers = #tpu.dot_dimension_numbers<[1], [0], [0], [1], [0, 0, 1, 1], [], []>} : vector<32x16xf32>, vector<16x16xf32>, vector<32x16xf32> -> vector<32x16xf32>
      %422 = vector.extract_strided_slice %421 {offsets = [0, 0], sizes = [16, 16], strides = [1, 1]} : vector<32x16xf32> to vector<16x16xf32>
      %423 = arith.mulf %422, %412 : vector<16x16xf32>
      %cst_151 = arith.constant dense<0.000000e+00> : vector<16xf32>
      %424 = vector.multi_reduction <add>, %423, %cst_151 [0] : vector<16x16xf32> to vector<16xf32>
      %425 = vector.shape_cast %424 : vector<16xf32> to vector<1x16xf32>
      %426 = vector.extract_strided_slice %421 {offsets = [16, 0], sizes = [16, 16], strides = [1, 1]} : vector<32x16xf32> to vector<16x16xf32>
      %427 = arith.mulf %426, %412 : vector<16x16xf32>
      %cst_152 = arith.constant dense<0.000000e+00> : vector<16xf32>
      %428 = vector.multi_reduction <add>, %427, %cst_152 [0] : vector<16x16xf32> to vector<16xf32>
      %429 = vector.shape_cast %428 : vector<16xf32> to vector<1x16xf32>
      %430 = arith.addf %397, %425 : vector<1x16xf32>
      %431 = arith.index_cast %c9_i32 : i32 to index
      %c0_153 = arith.constant 0 : index
      %432 = vector.load %arg4[%431, %c0_153] : memref<32x16xf32, #tpu.memory_space<vmem>>, vector<1x16xf32>
      tpu.vector_store %arg4[%431, %c0_153], %430 {strides = array<i32>} : memref<32x16xf32, #tpu.memory_space<vmem>>, vector<1x16xf32>,
      %433 = arith.addf %400, %429 : vector<1x16xf32>
      %c16_i32_154 = arith.constant 16 : i32
      %434 = arith.addi %c16_i32_154, %c9_i32 : i32
      %435 = arith.index_cast %434 : i32 to index
      %c0_155 = arith.constant 0 : index
      %436 = vector.load %arg4[%435, %c0_155] : memref<32x16xf32, #tpu.memory_space<vmem>>, vector<1x16xf32>
      tpu.vector_store %arg4[%435, %c0_155], %433 {strides = array<i32>} : memref<32x16xf32, #tpu.memory_space<vmem>>, vector<1x16xf32>,
      %c10_i32 = arith.constant 10 : i32
      %437 = arith.index_cast %c10_i32 : i32 to index
      %c0_156 = arith.constant 0 : index
      %438 = vector.load %arg3[%437, %c0_156] : memref<32x16xf32, #tpu.memory_space<vmem>>, vector<1x16xf32>
      %c16_i32_157 = arith.constant 16 : i32
      %439 = arith.addi %c16_i32_157, %c10_i32 : i32
      %440 = arith.index_cast %439 : i32 to index
      %c0_158 = arith.constant 0 : index
      %441 = vector.load %arg3[%440, %c0_158] : memref<32x16xf32, #tpu.memory_space<vmem>>, vector<1x16xf32>
      %442 = arith.sitofp %c10_i32 : i32 to f32
      %443 = vector.broadcast %442 : f32 to vector<1x16xf32>
      %444 = arith.addf %443, %438 : vector<1x16xf32>
      %445 = arith.addf %1, %441 : vector<1x16xf32>
      %446 = vector.broadcast %444 : vector<1x16xf32> to vector<16x16xf32>
      %447 = vector.broadcast %3 : vector<16x1xf32> to vector<16x16xf32>
      %448 = arith.subf %446, %447 : vector<16x16xf32>
      %449 = math.absf %448 : vector<16x16xf32>
      %cst_159 = arith.constant 1.000000e+00 : f32
      %450 = vector.broadcast %cst_159 : f32 to vector<16x16xf32>
      %451 = arith.subf %450, %449 : vector<16x16xf32>
      %cst_160 = arith.constant 0.000000e+00 : f32
      %452 = vector.broadcast %cst_160 : f32 to vector<16x16xf32>
      %453 = arith.maximumf %452, %451 : vector<16x16xf32>
      %454 = vector.broadcast %445 : vector<1x16xf32> to vector<16x16xf32>
      %455 = vector.broadcast %5 : vector<16x1xf32> to vector<16x16xf32>
      %456 = arith.subf %454, %455 : vector<16x16xf32>
      %457 = math.absf %456 : vector<16x16xf32>
      %cst_161 = arith.constant 1.000000e+00 : f32
      %458 = vector.broadcast %cst_161 : f32 to vector<16x16xf32>
      %459 = arith.subf %458, %457 : vector<16x16xf32>
      %cst_162 = arith.constant 0.000000e+00 : f32
      %460 = vector.broadcast %cst_162 : f32 to vector<16x16xf32>
      %461 = arith.maximumf %460, %459 : vector<16x16xf32>
      %cst_163 = arith.constant dense<0.000000e+00> : vector<32x16xf32>
      %462 = tpu.matmul %26, %461, %cst_163 {dimension_numbers = #tpu.dot_dimension_numbers<[1], [0], [0], [1], [0, 0, 1, 1], [], []>} : vector<32x16xf32>, vector<16x16xf32>, vector<32x16xf32> -> vector<32x16xf32>
      %463 = vector.extract_strided_slice %462 {offsets = [0, 0], sizes = [16, 16], strides = [1, 1]} : vector<32x16xf32> to vector<16x16xf32>
      %464 = arith.mulf %463, %453 : vector<16x16xf32>
      %cst_164 = arith.constant dense<0.000000e+00> : vector<16xf32>
      %465 = vector.multi_reduction <add>, %464, %cst_164 [0] : vector<16x16xf32> to vector<16xf32>
      %466 = vector.shape_cast %465 : vector<16xf32> to vector<1x16xf32>
      %467 = vector.extract_strided_slice %462 {offsets = [16, 0], sizes = [16, 16], strides = [1, 1]} : vector<32x16xf32> to vector<16x16xf32>
      %468 = arith.mulf %467, %453 : vector<16x16xf32>
      %cst_165 = arith.constant dense<0.000000e+00> : vector<16xf32>
      %469 = vector.multi_reduction <add>, %468, %cst_165 [0] : vector<16x16xf32> to vector<16xf32>
      %470 = vector.shape_cast %469 : vector<16xf32> to vector<1x16xf32>
      %471 = arith.addf %438, %466 : vector<1x16xf32>
      %472 = arith.index_cast %c10_i32 : i32 to index
      %c0_166 = arith.constant 0 : index
      %473 = vector.load %arg4[%472, %c0_166] : memref<32x16xf32, #tpu.memory_space<vmem>>, vector<1x16xf32>
      tpu.vector_store %arg4[%472, %c0_166], %471 {strides = array<i32>} : memref<32x16xf32, #tpu.memory_space<vmem>>, vector<1x16xf32>,
      %474 = arith.addf %441, %470 : vector<1x16xf32>
      %c16_i32_167 = arith.constant 16 : i32
      %475 = arith.addi %c16_i32_167, %c10_i32 : i32
      %476 = arith.index_cast %475 : i32 to index
      %c0_168 = arith.constant 0 : index
      %477 = vector.load %arg4[%476, %c0_168] : memref<32x16xf32, #tpu.memory_space<vmem>>, vector<1x16xf32>
      tpu.vector_store %arg4[%476, %c0_168], %474 {strides = array<i32>} : memref<32x16xf32, #tpu.memory_space<vmem>>, vector<1x16xf32>,
      %c11_i32 = arith.constant 11 : i32
      %478 = arith.index_cast %c11_i32 : i32 to index
      %c0_169 = arith.constant 0 : index
      %479 = vector.load %arg3[%478, %c0_169] : memref<32x16xf32, #tpu.memory_space<vmem>>, vector<1x16xf32>
      %c16_i32_170 = arith.constant 16 : i32
      %480 = arith.addi %c16_i32_170, %c11_i32 : i32
      %481 = arith.index_cast %480 : i32 to index
      %c0_171 = arith.constant 0 : index
      %482 = vector.load %arg3[%481, %c0_171] : memref<32x16xf32, #tpu.memory_space<vmem>>, vector<1x16xf32>
      %483 = arith.sitofp %c11_i32 : i32 to f32
      %484 = vector.broadcast %483 : f32 to vector<1x16xf32>
      %485 = arith.addf %484, %479 : vector<1x16xf32>
      %486 = arith.addf %1, %482 : vector<1x16xf32>
      %487 = vector.broadcast %485 : vector<1x16xf32> to vector<16x16xf32>
      %488 = vector.broadcast %3 : vector<16x1xf32> to vector<16x16xf32>
      %489 = arith.subf %487, %488 : vector<16x16xf32>
      %490 = math.absf %489 : vector<16x16xf32>
      %cst_172 = arith.constant 1.000000e+00 : f32
      %491 = vector.broadcast %cst_172 : f32 to vector<16x16xf32>
      %492 = arith.subf %491, %490 : vector<16x16xf32>
      %cst_173 = arith.constant 0.000000e+00 : f32
      %493 = vector.broadcast %cst_173 : f32 to vector<16x16xf32>
      %494 = arith.maximumf %493, %492 : vector<16x16xf32>
      %495 = vector.broadcast %486 : vector<1x16xf32> to vector<16x16xf32>
      %496 = vector.broadcast %5 : vector<16x1xf32> to vector<16x16xf32>
      %497 = arith.subf %495, %496 : vector<16x16xf32>
      %498 = math.absf %497 : vector<16x16xf32>
      %cst_174 = arith.constant 1.000000e+00 : f32
      %499 = vector.broadcast %cst_174 : f32 to vector<16x16xf32>
      %500 = arith.subf %499, %498 : vector<16x16xf32>
      %cst_175 = arith.constant 0.000000e+00 : f32
      %501 = vector.broadcast %cst_175 : f32 to vector<16x16xf32>
      %502 = arith.maximumf %501, %500 : vector<16x16xf32>
      %cst_176 = arith.constant dense<0.000000e+00> : vector<32x16xf32>
      %503 = tpu.matmul %26, %502, %cst_176 {dimension_numbers = #tpu.dot_dimension_numbers<[1], [0], [0], [1], [0, 0, 1, 1], [], []>} : vector<32x16xf32>, vector<16x16xf32>, vector<32x16xf32> -> vector<32x16xf32>
      %504 = vector.extract_strided_slice %503 {offsets = [0, 0], sizes = [16, 16], strides = [1, 1]} : vector<32x16xf32> to vector<16x16xf32>
      %505 = arith.mulf %504, %494 : vector<16x16xf32>
      %cst_177 = arith.constant dense<0.000000e+00> : vector<16xf32>
      %506 = vector.multi_reduction <add>, %505, %cst_177 [0] : vector<16x16xf32> to vector<16xf32>
      %507 = vector.shape_cast %506 : vector<16xf32> to vector<1x16xf32>
      %508 = vector.extract_strided_slice %503 {offsets = [16, 0], sizes = [16, 16], strides = [1, 1]} : vector<32x16xf32> to vector<16x16xf32>
      %509 = arith.mulf %508, %494 : vector<16x16xf32>
      %cst_178 = arith.constant dense<0.000000e+00> : vector<16xf32>
      %510 = vector.multi_reduction <add>, %509, %cst_178 [0] : vector<16x16xf32> to vector<16xf32>
      %511 = vector.shape_cast %510 : vector<16xf32> to vector<1x16xf32>
      %512 = arith.addf %479, %507 : vector<1x16xf32>
      %513 = arith.index_cast %c11_i32 : i32 to index
      %c0_179 = arith.constant 0 : index
      %514 = vector.load %arg4[%513, %c0_179] : memref<32x16xf32, #tpu.memory_space<vmem>>, vector<1x16xf32>
      tpu.vector_store %arg4[%513, %c0_179], %512 {strides = array<i32>} : memref<32x16xf32, #tpu.memory_space<vmem>>, vector<1x16xf32>,
      %515 = arith.addf %482, %511 : vector<1x16xf32>
      %c16_i32_180 = arith.constant 16 : i32
      %516 = arith.addi %c16_i32_180, %c11_i32 : i32
      %517 = arith.index_cast %516 : i32 to index
      %c0_181 = arith.constant 0 : index
      %518 = vector.load %arg4[%517, %c0_181] : memref<32x16xf32, #tpu.memory_space<vmem>>, vector<1x16xf32>
      tpu.vector_store %arg4[%517, %c0_181], %515 {strides = array<i32>} : memref<32x16xf32, #tpu.memory_space<vmem>>, vector<1x16xf32>,
      %c12_i32 = arith.constant 12 : i32
      %519 = arith.index_cast %c12_i32 : i32 to index
      %c0_182 = arith.constant 0 : index
      %520 = vector.load %arg3[%519, %c0_182] : memref<32x16xf32, #tpu.memory_space<vmem>>, vector<1x16xf32>
      %c16_i32_183 = arith.constant 16 : i32
      %521 = arith.addi %c16_i32_183, %c12_i32 : i32
      %522 = arith.index_cast %521 : i32 to index
      %c0_184 = arith.constant 0 : index
      %523 = vector.load %arg3[%522, %c0_184] : memref<32x16xf32, #tpu.memory_space<vmem>>, vector<1x16xf32>
      %524 = arith.sitofp %c12_i32 : i32 to f32
      %525 = vector.broadcast %524 : f32 to vector<1x16xf32>
      %526 = arith.addf %525, %520 : vector<1x16xf32>
      %527 = arith.addf %1, %523 : vector<1x16xf32>
      %528 = vector.broadcast %526 : vector<1x16xf32> to vector<16x16xf32>
      %529 = vector.broadcast %3 : vector<16x1xf32> to vector<16x16xf32>
      %530 = arith.subf %528, %529 : vector<16x16xf32>
      %531 = math.absf %530 : vector<16x16xf32>
      %cst_185 = arith.constant 1.000000e+00 : f32
      %532 = vector.broadcast %cst_185 : f32 to vector<16x16xf32>
      %533 = arith.subf %532, %531 : vector<16x16xf32>
      %cst_186 = arith.constant 0.000000e+00 : f32
      %534 = vector.broadcast %cst_186 : f32 to vector<16x16xf32>
      %535 = arith.maximumf %534, %533 : vector<16x16xf32>
      %536 = vector.broadcast %527 : vector<1x16xf32> to vector<16x16xf32>
      %537 = vector.broadcast %5 : vector<16x1xf32> to vector<16x16xf32>
      %538 = arith.subf %536, %537 : vector<16x16xf32>
      %539 = math.absf %538 : vector<16x16xf32>
      %cst_187 = arith.constant 1.000000e+00 : f32
      %540 = vector.broadcast %cst_187 : f32 to vector<16x16xf32>
      %541 = arith.subf %540, %539 : vector<16x16xf32>
      %cst_188 = arith.constant 0.000000e+00 : f32
      %542 = vector.broadcast %cst_188 : f32 to vector<16x16xf32>
      %543 = arith.maximumf %542, %541 : vector<16x16xf32>
      %cst_189 = arith.constant dense<0.000000e+00> : vector<32x16xf32>
      %544 = tpu.matmul %26, %543, %cst_189 {dimension_numbers = #tpu.dot_dimension_numbers<[1], [0], [0], [1], [0, 0, 1, 1], [], []>} : vector<32x16xf32>, vector<16x16xf32>, vector<32x16xf32> -> vector<32x16xf32>
      %545 = vector.extract_strided_slice %544 {offsets = [0, 0], sizes = [16, 16], strides = [1, 1]} : vector<32x16xf32> to vector<16x16xf32>
      %546 = arith.mulf %545, %535 : vector<16x16xf32>
      %cst_190 = arith.constant dense<0.000000e+00> : vector<16xf32>
      %547 = vector.multi_reduction <add>, %546, %cst_190 [0] : vector<16x16xf32> to vector<16xf32>
      %548 = vector.shape_cast %547 : vector<16xf32> to vector<1x16xf32>
      %549 = vector.extract_strided_slice %544 {offsets = [16, 0], sizes = [16, 16], strides = [1, 1]} : vector<32x16xf32> to vector<16x16xf32>
      %550 = arith.mulf %549, %535 : vector<16x16xf32>
      %cst_191 = arith.constant dense<0.000000e+00> : vector<16xf32>
      %551 = vector.multi_reduction <add>, %550, %cst_191 [0] : vector<16x16xf32> to vector<16xf32>
      %552 = vector.shape_cast %551 : vector<16xf32> to vector<1x16xf32>
      %553 = arith.addf %520, %548 : vector<1x16xf32>
      %554 = arith.index_cast %c12_i32 : i32 to index
      %c0_192 = arith.constant 0 : index
      %555 = vector.load %arg4[%554, %c0_192] : memref<32x16xf32, #tpu.memory_space<vmem>>, vector<1x16xf32>
      tpu.vector_store %arg4[%554, %c0_192], %553 {strides = array<i32>} : memref<32x16xf32, #tpu.memory_space<vmem>>, vector<1x16xf32>,
      %556 = arith.addf %523, %552 : vector<1x16xf32>
      %c16_i32_193 = arith.constant 16 : i32
      %557 = arith.addi %c16_i32_193, %c12_i32 : i32
      %558 = arith.index_cast %557 : i32 to index
      %c0_194 = arith.constant 0 : index
      %559 = vector.load %arg4[%558, %c0_194] : memref<32x16xf32, #tpu.memory_space<vmem>>, vector<1x16xf32>
      tpu.vector_store %arg4[%558, %c0_194], %556 {strides = array<i32>} : memref<32x16xf32, #tpu.memory_space<vmem>>, vector<1x16xf32>,
      %c13_i32 = arith.constant 13 : i32
      %560 = arith.index_cast %c13_i32 : i32 to index
      %c0_195 = arith.constant 0 : index
      %561 = vector.load %arg3[%560, %c0_195] : memref<32x16xf32, #tpu.memory_space<vmem>>, vector<1x16xf32>
      %c16_i32_196 = arith.constant 16 : i32
      %562 = arith.addi %c16_i32_196, %c13_i32 : i32
      %563 = arith.index_cast %562 : i32 to index
      %c0_197 = arith.constant 0 : index
      %564 = vector.load %arg3[%563, %c0_197] : memref<32x16xf32, #tpu.memory_space<vmem>>, vector<1x16xf32>
      %565 = arith.sitofp %c13_i32 : i32 to f32
      %566 = vector.broadcast %565 : f32 to vector<1x16xf32>
      %567 = arith.addf %566, %561 : vector<1x16xf32>
      %568 = arith.addf %1, %564 : vector<1x16xf32>
      %569 = vector.broadcast %567 : vector<1x16xf32> to vector<16x16xf32>
      %570 = vector.broadcast %3 : vector<16x1xf32> to vector<16x16xf32>
      %571 = arith.subf %569, %570 : vector<16x16xf32>
      %572 = math.absf %571 : vector<16x16xf32>
      %cst_198 = arith.constant 1.000000e+00 : f32
      %573 = vector.broadcast %cst_198 : f32 to vector<16x16xf32>
      %574 = arith.subf %573, %572 : vector<16x16xf32>
      %cst_199 = arith.constant 0.000000e+00 : f32
      %575 = vector.broadcast %cst_199 : f32 to vector<16x16xf32>
      %576 = arith.maximumf %575, %574 : vector<16x16xf32>
      %577 = vector.broadcast %568 : vector<1x16xf32> to vector<16x16xf32>
      %578 = vector.broadcast %5 : vector<16x1xf32> to vector<16x16xf32>
      %579 = arith.subf %577, %578 : vector<16x16xf32>
      %580 = math.absf %579 : vector<16x16xf32>
      %cst_200 = arith.constant 1.000000e+00 : f32
      %581 = vector.broadcast %cst_200 : f32 to vector<16x16xf32>
      %582 = arith.subf %581, %580 : vector<16x16xf32>
      %cst_201 = arith.constant 0.000000e+00 : f32
      %583 = vector.broadcast %cst_201 : f32 to vector<16x16xf32>
      %584 = arith.maximumf %583, %582 : vector<16x16xf32>
      %cst_202 = arith.constant dense<0.000000e+00> : vector<32x16xf32>
      %585 = tpu.matmul %26, %584, %cst_202 {dimension_numbers = #tpu.dot_dimension_numbers<[1], [0], [0], [1], [0, 0, 1, 1], [], []>} : vector<32x16xf32>, vector<16x16xf32>, vector<32x16xf32> -> vector<32x16xf32>
      %586 = vector.extract_strided_slice %585 {offsets = [0, 0], sizes = [16, 16], strides = [1, 1]} : vector<32x16xf32> to vector<16x16xf32>
      %587 = arith.mulf %586, %576 : vector<16x16xf32>
      %cst_203 = arith.constant dense<0.000000e+00> : vector<16xf32>
      %588 = vector.multi_reduction <add>, %587, %cst_203 [0] : vector<16x16xf32> to vector<16xf32>
      %589 = vector.shape_cast %588 : vector<16xf32> to vector<1x16xf32>
      %590 = vector.extract_strided_slice %585 {offsets = [16, 0], sizes = [16, 16], strides = [1, 1]} : vector<32x16xf32> to vector<16x16xf32>
      %591 = arith.mulf %590, %576 : vector<16x16xf32>
      %cst_204 = arith.constant dense<0.000000e+00> : vector<16xf32>
      %592 = vector.multi_reduction <add>, %591, %cst_204 [0] : vector<16x16xf32> to vector<16xf32>
      %593 = vector.shape_cast %592 : vector<16xf32> to vector<1x16xf32>
      %594 = arith.addf %561, %589 : vector<1x16xf32>
      %595 = arith.index_cast %c13_i32 : i32 to index
      %c0_205 = arith.constant 0 : index
      %596 = vector.load %arg4[%595, %c0_205] : memref<32x16xf32, #tpu.memory_space<vmem>>, vector<1x16xf32>
      tpu.vector_store %arg4[%595, %c0_205], %594 {strides = array<i32>} : memref<32x16xf32, #tpu.memory_space<vmem>>, vector<1x16xf32>,
      %597 = arith.addf %564, %593 : vector<1x16xf32>
      %c16_i32_206 = arith.constant 16 : i32
      %598 = arith.addi %c16_i32_206, %c13_i32 : i32
      %599 = arith.index_cast %598 : i32 to index
      %c0_207 = arith.constant 0 : index
      %600 = vector.load %arg4[%599, %c0_207] : memref<32x16xf32, #tpu.memory_space<vmem>>, vector<1x16xf32>
      tpu.vector_store %arg4[%599, %c0_207], %597 {strides = array<i32>} : memref<32x16xf32, #tpu.memory_space<vmem>>, vector<1x16xf32>,
      %c14_i32 = arith.constant 14 : i32
      %601 = arith.index_cast %c14_i32 : i32 to index
      %c0_208 = arith.constant 0 : index
      %602 = vector.load %arg3[%601, %c0_208] : memref<32x16xf32, #tpu.memory_space<vmem>>, vector<1x16xf32>
      %c16_i32_209 = arith.constant 16 : i32
      %603 = arith.addi %c16_i32_209, %c14_i32 : i32
      %604 = arith.index_cast %603 : i32 to index
      %c0_210 = arith.constant 0 : index
      %605 = vector.load %arg3[%604, %c0_210] : memref<32x16xf32, #tpu.memory_space<vmem>>, vector<1x16xf32>
      %606 = arith.sitofp %c14_i32 : i32 to f32
      %607 = vector.broadcast %606 : f32 to vector<1x16xf32>
      %608 = arith.addf %607, %602 : vector<1x16xf32>
      %609 = arith.addf %1, %605 : vector<1x16xf32>
      %610 = vector.broadcast %608 : vector<1x16xf32> to vector<16x16xf32>
      %611 = vector.broadcast %3 : vector<16x1xf32> to vector<16x16xf32>
      %612 = arith.subf %610, %611 : vector<16x16xf32>
      %613 = math.absf %612 : vector<16x16xf32>
      %cst_211 = arith.constant 1.000000e+00 : f32
      %614 = vector.broadcast %cst_211 : f32 to vector<16x16xf32>
      %615 = arith.subf %614, %613 : vector<16x16xf32>
      %cst_212 = arith.constant 0.000000e+00 : f32
      %616 = vector.broadcast %cst_212 : f32 to vector<16x16xf32>
      %617 = arith.maximumf %616, %615 : vector<16x16xf32>
      %618 = vector.broadcast %609 : vector<1x16xf32> to vector<16x16xf32>
      %619 = vector.broadcast %5 : vector<16x1xf32> to vector<16x16xf32>
      %620 = arith.subf %618, %619 : vector<16x16xf32>
      %621 = math.absf %620 : vector<16x16xf32>
      %cst_213 = arith.constant 1.000000e+00 : f32
      %622 = vector.broadcast %cst_213 : f32 to vector<16x16xf32>
      %623 = arith.subf %622, %621 : vector<16x16xf32>
      %cst_214 = arith.constant 0.000000e+00 : f32
      %624 = vector.broadcast %cst_214 : f32 to vector<16x16xf32>
      %625 = arith.maximumf %624, %623 : vector<16x16xf32>
      %cst_215 = arith.constant dense<0.000000e+00> : vector<32x16xf32>
      %626 = tpu.matmul %26, %625, %cst_215 {dimension_numbers = #tpu.dot_dimension_numbers<[1], [0], [0], [1], [0, 0, 1, 1], [], []>} : vector<32x16xf32>, vector<16x16xf32>, vector<32x16xf32> -> vector<32x16xf32>
      %627 = vector.extract_strided_slice %626 {offsets = [0, 0], sizes = [16, 16], strides = [1, 1]} : vector<32x16xf32> to vector<16x16xf32>
      %628 = arith.mulf %627, %617 : vector<16x16xf32>
      %cst_216 = arith.constant dense<0.000000e+00> : vector<16xf32>
      %629 = vector.multi_reduction <add>, %628, %cst_216 [0] : vector<16x16xf32> to vector<16xf32>
      %630 = vector.shape_cast %629 : vector<16xf32> to vector<1x16xf32>
      %631 = vector.extract_strided_slice %626 {offsets = [16, 0], sizes = [16, 16], strides = [1, 1]} : vector<32x16xf32> to vector<16x16xf32>
      %632 = arith.mulf %631, %617 : vector<16x16xf32>
      %cst_217 = arith.constant dense<0.000000e+00> : vector<16xf32>
      %633 = vector.multi_reduction <add>, %632, %cst_217 [0] : vector<16x16xf32> to vector<16xf32>
      %634 = vector.shape_cast %633 : vector<16xf32> to vector<1x16xf32>
      %635 = arith.addf %602, %630 : vector<1x16xf32>
      %636 = arith.index_cast %c14_i32 : i32 to index
      %c0_218 = arith.constant 0 : index
      %637 = vector.load %arg4[%636, %c0_218] : memref<32x16xf32, #tpu.memory_space<vmem>>, vector<1x16xf32>
      tpu.vector_store %arg4[%636, %c0_218], %635 {strides = array<i32>} : memref<32x16xf32, #tpu.memory_space<vmem>>, vector<1x16xf32>,
      %638 = arith.addf %605, %634 : vector<1x16xf32>
      %c16_i32_219 = arith.constant 16 : i32
      %639 = arith.addi %c16_i32_219, %c14_i32 : i32
      %640 = arith.index_cast %639 : i32 to index
      %c0_220 = arith.constant 0 : index
      %641 = vector.load %arg4[%640, %c0_220] : memref<32x16xf32, #tpu.memory_space<vmem>>, vector<1x16xf32>
      tpu.vector_store %arg4[%640, %c0_220], %638 {strides = array<i32>} : memref<32x16xf32, #tpu.memory_space<vmem>>, vector<1x16xf32>,
      %c15_i32 = arith.constant 15 : i32
      %642 = arith.index_cast %c15_i32 : i32 to index
      %c0_221 = arith.constant 0 : index
      %643 = vector.load %arg3[%642, %c0_221] : memref<32x16xf32, #tpu.memory_space<vmem>>, vector<1x16xf32>
      %c16_i32_222 = arith.constant 16 : i32
      %644 = arith.addi %c16_i32_222, %c15_i32 : i32
      %645 = arith.index_cast %644 : i32 to index
      %c0_223 = arith.constant 0 : index
      %646 = vector.load %arg3[%645, %c0_223] : memref<32x16xf32, #tpu.memory_space<vmem>>, vector<1x16xf32>
      %647 = arith.sitofp %c15_i32 : i32 to f32
      %648 = vector.broadcast %647 : f32 to vector<1x16xf32>
      %649 = arith.addf %648, %643 : vector<1x16xf32>
      %650 = arith.addf %1, %646 : vector<1x16xf32>
      %651 = vector.broadcast %649 : vector<1x16xf32> to vector<16x16xf32>
      %652 = vector.broadcast %3 : vector<16x1xf32> to vector<16x16xf32>
      %653 = arith.subf %651, %652 : vector<16x16xf32>
      %654 = math.absf %653 : vector<16x16xf32>
      %cst_224 = arith.constant 1.000000e+00 : f32
      %655 = vector.broadcast %cst_224 : f32 to vector<16x16xf32>
      %656 = arith.subf %655, %654 : vector<16x16xf32>
      %cst_225 = arith.constant 0.000000e+00 : f32
      %657 = vector.broadcast %cst_225 : f32 to vector<16x16xf32>
      %658 = arith.maximumf %657, %656 : vector<16x16xf32>
      %659 = vector.broadcast %650 : vector<1x16xf32> to vector<16x16xf32>
      %660 = vector.broadcast %5 : vector<16x1xf32> to vector<16x16xf32>
      %661 = arith.subf %659, %660 : vector<16x16xf32>
      %662 = math.absf %661 : vector<16x16xf32>
      %cst_226 = arith.constant 1.000000e+00 : f32
      %663 = vector.broadcast %cst_226 : f32 to vector<16x16xf32>
      %664 = arith.subf %663, %662 : vector<16x16xf32>
      %cst_227 = arith.constant 0.000000e+00 : f32
      %665 = vector.broadcast %cst_227 : f32 to vector<16x16xf32>
      %666 = arith.maximumf %665, %664 : vector<16x16xf32>
      %cst_228 = arith.constant dense<0.000000e+00> : vector<32x16xf32>
      %667 = tpu.matmul %26, %666, %cst_228 {dimension_numbers = #tpu.dot_dimension_numbers<[1], [0], [0], [1], [0, 0, 1, 1], [], []>} : vector<32x16xf32>, vector<16x16xf32>, vector<32x16xf32> -> vector<32x16xf32>
      %668 = vector.extract_strided_slice %667 {offsets = [0, 0], sizes = [16, 16], strides = [1, 1]} : vector<32x16xf32> to vector<16x16xf32>
      %669 = arith.mulf %668, %658 : vector<16x16xf32>
      %cst_229 = arith.constant dense<0.000000e+00> : vector<16xf32>
      %670 = vector.multi_reduction <add>, %669, %cst_229 [0] : vector<16x16xf32> to vector<16xf32>
      %671 = vector.shape_cast %670 : vector<16xf32> to vector<1x16xf32>
      %672 = vector.extract_strided_slice %667 {offsets = [16, 0], sizes = [16, 16], strides = [1, 1]} : vector<32x16xf32> to vector<16x16xf32>
      %673 = arith.mulf %672, %658 : vector<16x16xf32>
      %cst_230 = arith.constant dense<0.000000e+00> : vector<16xf32>
      %674 = vector.multi_reduction <add>, %673, %cst_230 [0] : vector<16x16xf32> to vector<16xf32>
      %675 = vector.shape_cast %674 : vector<16xf32> to vector<1x16xf32>
      %676 = arith.addf %643, %671 : vector<1x16xf32>
      %677 = arith.index_cast %c15_i32 : i32 to index
      %c0_231 = arith.constant 0 : index
      %678 = vector.load %arg4[%677, %c0_231] : memref<32x16xf32, #tpu.memory_space<vmem>>, vector<1x16xf32>
      tpu.vector_store %arg4[%677, %c0_231], %676 {strides = array<i32>} : memref<32x16xf32, #tpu.memory_space<vmem>>, vector<1x16xf32>,
      %679 = arith.addf %646, %675 : vector<1x16xf32>
      %c16_i32_232 = arith.constant 16 : i32
      %680 = arith.addi %c16_i32_232, %c15_i32 : i32
      %681 = arith.index_cast %680 : i32 to index
      %c0_233 = arith.constant 0 : index
      %682 = vector.load %arg4[%681, %c0_233] : memref<32x16xf32, #tpu.memory_space<vmem>>, vector<1x16xf32>
      tpu.vector_store %arg4[%681, %c0_233], %679 {strides = array<i32>} : memref<32x16xf32, #tpu.memory_space<vmem>>, vector<1x16xf32>,
      %c16_i32_234 = arith.constant 16 : i32
      %c0_235 = arith.constant 0 : index
      %c0_236 = arith.constant 0 : index
      %683 = vector.load %arg4[%c0_235, %c0_236] : memref<32x16xf32, #tpu.memory_space<vmem>>, vector<32x16xf32>
      %c0_237 = arith.constant 0 : index
      %c0_238 = arith.constant 0 : index
      %684 = vector.load %arg3[%c0_237, %c0_238] : memref<32x16xf32, #tpu.memory_space<vmem>>, vector<32x16xf32>
      tpu.vector_store %arg3[%c0_237, %c0_238], %683 {strides = array<i32>} : memref<32x16xf32, #tpu.memory_space<vmem>>, vector<32x16xf32>,
    }
    %c0_17 = arith.constant 0 : index
    %c0_18 = arith.constant 0 : index
    %22 = vector.load %arg3[%c0_17, %c0_18] : memref<32x16xf32, #tpu.memory_space<vmem>>, vector<32x16xf32>
    %c1_19 = arith.constant 1 : index
    %c0_20 = arith.constant 0 : index
    %c0_21 = arith.constant 0 : index
    %23 = vector.load %arg2[%c1_19, %c0_20, %c0_21] : memref<2x32x16xf32, #tpu.memory_space<vmem>>, vector<1x32x16xf32>
    %24 = vector.shape_cast %23 : vector<1x32x16xf32> to vector<32x16xf32>
    %25 = vector.shape_cast %22 : vector<32x16xf32> to vector<1x32x16xf32>
    tpu.vector_store %arg2[%c1_19, %c0_20, %c0_21], %25 {strides = array<i32>} : memref<2x32x16xf32, #tpu.memory_space<vmem>>, vector<1x32x16xf32>,
    return
  }
  func.func @transform_0(%arg0: i32) -> (i32, i32, i32) {
    %c0_i32 = arith.constant 0 : i32
    %c0_i32_0 = arith.constant 0 : i32
    %c0_i32_1 = arith.constant 0 : i32
    return %arg0, %c0_i32, %c0_i32_0 : i32, i32, i32
  }
  func.func @transform_1(%arg0: i32) -> (i32, i32, i32) {
    %c0_i32 = arith.constant 0 : i32
    %c0_i32_0 = arith.constant 0 : i32
    %c0_i32_1 = arith.constant 0 : i32
    return %arg0, %c0_i32, %c0_i32_0 : i32, i32, i32
  }
}

</mosaic_0001>

<llo_original>
// kernel: tpu_custom_call.1
$region0: #{tpu_custom_call.1}
  #allocation0 [shape = 'u32[]', space=smem, size = 0x4, offset = 0x4, fixed_abs, tag = 'smem constant byte address 0x4 - core index']
  #allocation1 [shape = 'u32[144,128]{1,0:T(1,128)}', space=vmem, size = 0x12000, scoped, tag = 'internal scratch']
  #allocation2 [shape = 'f32[32,16]{1,0:T(8,128)}', space=vmem, size = 0x4000, scoped, tag = 'scratch operand']
  #allocation3 [shape = 'f32[32,16]{1,0:T(8,128)}', space=vmem, size = 0x4000, scoped, tag = 'scratch operand']
  %s0 = inlined_call_operand.vmem [shape: f32[2,32,16], index: 0, kind: input, shape index: {}]
  %s1 = inlined_call_operand.vmem [shape: f32[2,32,16], index: 1, kind: output, shape index: {}]
  %s2 = sld [smem:[#allocation0]]
  $region28: #{tpu_custom_call.1} parent=0
    _
  %s4 = ssub.s32 1, %s2
  %s5 = scalar_select 0, %s4, %s2
  // Predicated region
  $region2: #{tpu_custom_call.1} parent=0 // pred_check
    _
  $region3: #{tpu_custom_call.1} parent=0 // pred_check_branch
    %7 = sbr.rel (0) target = $region5
  $region4: #{tpu_custom_call.1} parent=0 // pred_region
    _
  $region5: #{tpu_custom_call.1} parent=0 // pred_fallthru
    _
  %v8 = vlaneseq
  %v9 = vand.u32 %v8, 127
  %v10 = vcvt.s32.f32 %v9
  %v11 = vlaneseq
  %v12 = vshrl.u32 %v11, 7
  %v13 = vadd.s32 %v12, 8
  %v14 = vcvt.s32.f32 %v12
  %v15 = vcvt.s32.f32 %v13
  %v16 = vld [vmem:[%s0] sm:$0xff]
  %v17 = vld [vmem:[%s0 + $0x8] sm:$0xff]
  %v18 = vld [vmem:[%s0 + $0x10] sm:$0xff]
  %v19 = vld [vmem:[%s0 + $0x18] sm:$0xff]
  %v20 = vmul.f32 %v16, 0.0625
  %v21 = vmul.f32 %v17, 0.0625
  %v22 = vmul.f32 %v18, 0.0625
  %v23 = vmul.f32 %v19, 0.0625
  %vm24 = vcmask 130048
  %25 = vst.msk [vmem:[#allocation2] sm:$0xff] %vm24, %v20
  %26 = vst.msk [vmem:[#allocation2 + $0x8] sm:$0xff] %vm24, %v21
  %27 = vst.msk [vmem:[#allocation2 + $0x10] sm:$0xff] %vm24, %v22
  %28 = vst.msk [vmem:[#allocation2 + $0x18] sm:$0xff] %vm24, %v23
  loop: start=0, step=1, limit=4
  $region6: #{tpu_custom_call.1} parent=0 // loop_pre_header
    _
  $region7: #{tpu_custom_call.1} parent=0 // loop_header
    %s30 = sphi 0, %s34
    %p31 = scmp.ge.s32.totalorder %s30, 4
  $region8: #{tpu_custom_call.1} parent=0 // loop_header_branch
    %33 = sbr.rel (%p31) target = $region12
  $region9: #{tpu_custom_call.1} parent=0 // loop_body
    %v35 = vld [vmem:[#allocation2] sm:$0xff]
    %v36 = vld [vmem:[#allocation2 + $0x8] sm:$0xff]
    %v37 = vld [vmem:[#allocation2 + $0x10] sm:$0xff]
    %v38 = vld [vmem:[#allocation2 + $0x18] sm:$0xff]
    %v39 = vld [vmem:[#allocation2] sm:$0x1]
    %v40 = vld [vmem:[#allocation2 + $0x10] sm:$0x1]
    %v41 = vadd.f32 %v39, 0.0
    %v42 = vadd.f32 %v10, %v40
    %v43 = vlaneseq
    %v44 = vshrl.u32 %v43, 7
    %v45 = vsub.s32 0, %v44
    %v46 = vrot.slane %v41, %v45
    %v47 = vsub.f32 %v46, %v14
    %v48 = vsub.f32 %v46, %v15
    %v49 = vand.u32 2147483647, %v47
    %v50 = vand.u32 2147483647, %v48
    %v51 = vsub.f32 1.0, %v49
    %v52 = vsub.f32 1.0, %v50
    %v53 = vmax.f32 %v51, 0.0
    %v54 = vmax.f32 %v52, 0.0
    %v55 = vlaneseq
    %v56 = vshrl.u32 %v55, 7
    %v57 = vsub.s32 0, %v56
    %v58 = vrot.slane %v42, %v57
    %v59 = vsub.f32 %v58, %v14
    %v60 = vsub.f32 %v58, %v15
    %v61 = vand.u32 2147483647, %v59
    %v62 = vand.u32 2147483647, %v60
    %v63 = vsub.f32 1.0, %v61
    %v64 = vsub.f32 1.0, %v62
    %v65 = vmax.f32 %v63, 0.0
    %v66 = vmax.f32 %v64, 0.0
    %v68 = vsel %vm24, %v35, 0
    %v71 = vsel %vm24, %v36, 0
    %v74 = vsel %vm24, %v37, 0
    %v77 = vsel %vm24, %v38, 0
    %79 = vmatprep.subr.mxu0 0.0
    %80 = vmatpush1.msra.mxu0 %v65
    %81 = vmatprep.subr.mxu0 0.0
    %82 = vmatpush1.msra.mxu0 %v66
    %83 = vmatprep.subr.mxu0 0.0
    %84 = vmatpush1.msra.mxu0 0.0
    %85 = vmatprep.subr.mxu0 0.0
    %86 = vmatpush1.msra.mxu0 0.0
    %87 = vmatprep.subr.mxu0 0.0
    %88 = vmatpush1.msra.mxu0 0.0
    %89 = vmatprep.subr.mxu0 0.0
    %90 = vmatpush1.msra.mxu0 0.0
    %91 = vmatprep.subr.mxu0 0.0
    %92 = vmatpush1.msra.mxu0 0.0
    %93 = vmatprep.subr.mxu0 0.0
    %94 = vmatpush1.msra.mxu0 0.0
    %95 = vmatprep.subr.mxu0 0.0
    %96 = vmatpush1.msra.mxu0 0.0
    %97 = vmatprep.subr.mxu0 0.0
    %98 = vmatpush1.msra.mxu0 0.0
    %99 = vmatprep.subr.mxu0 0.0
    %100 = vmatpush1.msra.mxu0 0.0
    %101 = vmatprep.subr.mxu0 0.0
    %102 = vmatpush1.msra.mxu0 0.0
    %103 = vmatprep.subr.mxu0 0.0
    %104 = vmatpush1.msra.mxu0 0.0
    %105 = vmatprep.subr.mxu0 0.0
    %106 = vmatpush1.msra.mxu0 0.0
    %107 = vmatprep.subr.mxu0 0.0
    %108 = vmatpush1.msra.mxu0 0.0
    %109 = vmatprep.subr.mxu0 0.0
    %110 = vmatpush1.msra.mxu0 0.0
    %111 = vmatprep.subr.mxu0 0.0
    %112 = vmatpush1.msra.mxu0 0.0
    %113 = vmatprep.subr.mxu0 0.0
    %114 = vmatpush1.msra.mxu0 0.0
    %115 = vmatprep.subr.mxu0 0.0
    %116 = vmatpush1.msra.mxu0 0.0
    %117 = vmatprep.subr.mxu0 0.0
    %118 = vmatpush1.msra.mxu0 0.0
    %119 = vmatprep.subr.mxu0 0.0
    %120 = vmatpush1.msra.mxu0 0.0
    %121 = vmatprep.subr.mxu0 0.0
    %122 = vmatpush1.msra.mxu0 0.0
    %123 = vmatprep.subr.mxu0 0.0
    %124 = vmatpush1.msra.mxu0 0.0
    %125 = vmatprep.subr.mxu0 0.0
    %126 = vmatpush1.msra.mxu0 0.0
    %127 = vmatprep.subr.mxu0 0.0
    %128 = vmatpush1.msra.mxu0 0.0
    %129 = vmatprep.subr.mxu0 0.0
    %130 = vmatpush1.msra.mxu0 0.0
    %131 = vmatprep.subr.mxu0 0.0
    %132 = vmatpush1.msra.mxu0 0.0
    %133 = vmatprep.subr.mxu0 0.0
    %134 = vmatpush1.msra.mxu0 0.0
    %135 = vmatprep.subr.mxu0 0.0
    %136 = vmatpush1.msra.mxu0 0.0
    %137 = vmatprep.subr.mxu0 0.0
    %138 = vmatpush1.msra.mxu0 0.0
    %139 = vmatprep.subr.mxu0 0.0
    %140 = vmatpush1.msra.mxu0 0.0
    %141 = vmatprep.subr.mxu0 0.0
    %142 = vmatpush1.msra.mxu0 0.0
    %143 = vmatprep.mubr.f32.mxu0 0.0
    %144 = vmatmul.mubr.f32.gmra.mrb[0].mxu0 %v68
    %v145 = vpop.f32.mrb[0].mxu0
    %v146 = vadd.f32 0.0, %v145
    %v147 = vpop.f32.mrb[0].mxu0
    %148 = vmatprep.mubr.f32.mxu0 0.0
    %149 = vmatmul.mubr.f32.gmra.mrb[0].mxu0 %v71
    %v150 = vpop.f32.mrb[0].mxu0
    %v151 = vadd.f32 0.0, %v150
    %v152 = vpop.f32.mrb[0].mxu0
    %153 = vmatprep.mubr.f32.mxu0 0.0
    %154 = vmatmul.mubr.f32.gmra.mrb[0].mxu0 %v74
    %v155 = vpop.f32.mrb[0].mxu0
    %v156 = vadd.f32 0.0, %v155
    %v157 = vpop.f32.mrb[0].mxu0
    %158 = vmatprep.mubr.f32.mxu0 0.0
    %159 = vmatmul.mubr.f32.gmra.mrb[0].mxu0 %v77
    %v160 = vpop.f32.mrb[0].mxu0
    %v161 = vadd.f32 0.0, %v160
    %v162 = vpop.f32.mrb[0].mxu0
    %163 = vdwg.mxu0
    %v164 = vmul.f32 %v146, %v53
    %v165 = vmul.f32 %v151, %v54
    %v166 = vsel %vm24, %v164, 0.0
    %v167 = vsel %vm24, %v165, 0.0
    %v168 = vadd.f32 %v166, %v167
    %v169 = vrot.slane %v168, 4
    %v170 = vadd.f32 %v168, %v169
    %v171 = vrot.slane %v170, 2
    %v172 = vadd.f32 %v170, %v171
    %v173 = vrot.slane %v172, 1
    %v174 = vadd.f32 %v172, %v173
    %v175 = vmul.f32 %v156, %v53
    %v176 = vmul.f32 %v161, %v54
    %v177 = vsel %vm24, %v175, 0.0
    %v178 = vsel %vm24, %v176, 0.0
    %v179 = vadd.f32 %v177, %v178
    %v180 = vrot.slane %v179, 4
    %v181 = vadd.f32 %v179, %v180
    %v182 = vrot.slane %v181, 2
    %v183 = vadd.f32 %v181, %v182
    %v184 = vrot.slane %v183, 1
    %v185 = vadd.f32 %v183, %v184
    %v186 = vadd.f32 %v39, %v174
    %vm187 = vcmask 122880
    %188 = vst.msk [vmem:[#allocation3] sm:$0x1] %vm187, %v186
    %v189 = vadd.f32 %v40, %v185
    %190 = vst.msk [vmem:[#allocation3 + $0x10] sm:$0x1] %vm187, %v189
    %v191 = vld [vmem:[#allocation2 + $0x1] sm:$0x1]
    %v192 = vld [vmem:[#allocation2 + $0x11] sm:$0x1]
    %v193 = vadd.f32 %v191, 1.0
    %v194 = vadd.f32 %v10, %v192
    %v195 = vlaneseq
    %v196 = vshrl.u32 %v195, 7
    %v197 = vsub.s32 0, %v196
    %v198 = vrot.slane %v193, %v197
    %v199 = vsub.f32 %v198, %v14
    %v200 = vsub.f32 %v198, %v15
    %v201 = vand.u32 2147483647, %v199
    %v202 = vand.u32 2147483647, %v200
    %v203 = vsub.f32 1.0, %v201
    %v204 = vsub.f32 1.0, %v202
    %v205 = vmax.f32 %v203, 0.0
    %v206 = vmax.f32 %v204, 0.0
    %v207 = vlaneseq
    %v208 = vshrl.u32 %v207, 7
    %v209 = vsub.s32 0, %v208
    %v210 = vrot.slane %v194, %v209
    %v211 = vsub.f32 %v210, %v14
    %v212 = vsub.f32 %v210, %v15
    %v213 = vand.u32 2147483647, %v211
    %v214 = vand.u32 2147483647, %v212
    %v215 = vsub.f32 1.0, %v213
    %v216 = vsub.f32 1.0, %v214
    %v217 = vmax.f32 %v215, 0.0
    %v218 = vmax.f32 %v216, 0.0
    %219 = vmatprep.subr.mxu0 0.0
    %220 = vmatpush1.msra.mxu0 %v217
    %221 = vmatprep.subr.mxu0 0.0
    %222 = vmatpush1.msra.mxu0 %v218
    %223 = vmatprep.subr.mxu0 0.0
    %224 = vmatpush1.msra.mxu0 0.0
    %225 = vmatprep.subr.mxu0 0.0
    %226 = vmatpush1.msra.mxu0 0.0
    %227 = vmatprep.subr.mxu0 0.0
    %228 = vmatpush1.msra.mxu0 0.0
    %229 = vmatprep.subr.mxu0 0.0
    %230 = vmatpush1.msra.mxu0 0.0
    %231 = vmatprep.subr.mxu0 0.0
    %232 = vmatpush1.msra.mxu0 0.0
    %233 = vmatprep.subr.mxu0 0.0
    %234 = vmatpush1.msra.mxu0 0.0
    %235 = vmatprep.subr.mxu0 0.0
    %236 = vmatpush1.msra.mxu0 0.0
    %237 = vmatprep.subr.mxu0 0.0
    %238 = vmatpush1.msra.mxu0 0.0
    %239 = vmatprep.subr.mxu0 0.0
    %240 = vmatpush1.msra.mxu0 0.0
    %241 = vmatprep.subr.mxu0 0.0
    %242 = vmatpush1.msra.mxu0 0.0
    %243 = vmatprep.subr.mxu0 0.0
    %244 = vmatpush1.msra.mxu0 0.0
    %245 = vmatprep.subr.mxu0 0.0
    %246 = vmatpush1.msra.mxu0 0.0
    %247 = vmatprep.subr.mxu0 0.0
    %248 = vmatpush1.msra.mxu0 0.0
    %249 = vmatprep.subr.mxu0 0.0
    %250 = vmatpush1.msra.mxu0 0.0
    %251 = vmatprep.subr.mxu0 0.0
    %252 = vmatpush1.msra.mxu0 0.0
    %253 = vmatprep.subr.mxu0 0.0
    %254 = vmatpush1.msra.mxu0 0.0
    %255 = vmatprep.subr.mxu0 0.0
    %256 = vmatpush1.msra.mxu0 0.0
    %257 = vmatprep.subr.mxu0 0.0
    %258 = vmatpush1.msra.mxu0 0.0
    %259 = vmatprep.subr.mxu0 0.0
    %260 = vmatpush1.msra.mxu0 0.0
    %261 = vmatprep.subr.mxu0 0.0
    %262 = vmatpush1.msra.mxu0 0.0
    %263 = vmatprep.subr.mxu0 0.0
    %264 = vmatpush1.msra.mxu0 0.0
    %265 = vmatprep.subr.mxu0 0.0
    %266 = vmatpush1.msra.mxu0 0.0
    %267 = vmatprep.subr.mxu0 0.0
    %268 = vmatpush1.msra.mxu0 0.0
    %269 = vmatprep.subr.mxu0 0.0
    %270 = vmatpush1.msra.mxu0 0.0
    %271 = vmatprep.subr.mxu0 0.0
    %272 = vmatpush1.msra.mxu0 0.0
    %273 = vmatprep.subr.mxu0 0.0
    %274 = vmatpush1.msra.mxu0 0.0
    %275 = vmatprep.subr.mxu0 0.0
    %276 = vmatpush1.msra.mxu0 0.0
    %277 = vmatprep.subr.mxu0 0.0
    %278 = vmatpush1.msra.mxu0 0.0
    %279 = vmatprep.subr.mxu0 0.0
    %280 = vmatpush1.msra.mxu0 0.0
    %281 = vmatprep.subr.mxu0 0.0
    %282 = vmatpush1.msra.mxu0 0.0
    %283 = vmatprep.mubr.f32.mxu0 0.0
    %284 = vmatmul.mubr.f32.gmra.mrb[0].mxu0 %v68
    %v285 = vpop.f32.mrb[0].mxu0
    %v286 = vadd.f32 0.0, %v285
    %v287 = vpop.f32.mrb[0].mxu0
    %288 = vmatprep.mubr.f32.mxu0 0.0
    %289 = vmatmul.mubr.f32.gmra.mrb[0].mxu0 %v71
    %v290 = vpop.f32.mrb[0].mxu0
    %v291 = vadd.f32 0.0, %v290
    %v292 = vpop.f32.mrb[0].mxu0
    %293 = vmatprep.mubr.f32.mxu0 0.0
    %294 = vmatmul.mubr.f32.gmra.mrb[0].mxu0 %v74
    %v295 = vpop.f32.mrb[0].mxu0
    %v296 = vadd.f32 0.0, %v295
    %v297 = vpop.f32.mrb[0].mxu0
    %298 = vmatprep.mubr.f32.mxu0 0.0
    %299 = vmatmul.mubr.f32.gmra.mrb[0].mxu0 %v77
    %v300 = vpop.f32.mrb[0].mxu0
    %v301 = vadd.f32 0.0, %v300
    %v302 = vpop.f32.mrb[0].mxu0
    %303 = vdwg.mxu0
    %v304 = vmul.f32 %v286, %v205
    %v305 = vmul.f32 %v291, %v206
    %v306 = vsel %vm24, %v304, 0.0
    %v307 = vsel %vm24, %v305, 0.0
    %v308 = vadd.f32 %v306, %v307
    %v309 = vrot.slane %v308, 4
    %v310 = vadd.f32 %v308, %v309
    %v311 = vrot.slane %v310, 2
    %v312 = vadd.f32 %v310, %v311
    %v313 = vrot.slane %v312, 1
    %v314 = vadd.f32 %v312, %v313
    %v315 = vmul.f32 %v296, %v205
    %v316 = vmul.f32 %v301, %v206
    %v317 = vsel %vm24, %v315, 0.0
    %v318 = vsel %vm24, %v316, 0.0
    %v319 = vadd.f32 %v317, %v318
    %v320 = vrot.slane %v319, 4
    %v321 = vadd.f32 %v319, %v320
    %v322 = vrot.slane %v321, 2
    %v323 = vadd.f32 %v321, %v322
    %v324 = vrot.slane %v323, 1
    %v325 = vadd.f32 %v323, %v324
    %v326 = vadd.f32 %v191, %v314
    %327 = vst.msk [vmem:[#allocation3 + $0x1] sm:$0x1] %vm187, %v326
    %v328 = vadd.f32 %v192, %v325
    %329 = vst.msk [vmem:[#allocation3 + $0x11] sm:$0x1] %vm187, %v328
    %v330 = vld [vmem:[#allocation2 + $0x2] sm:$0x1]
    %v331 = vld [vmem:[#allocation2 + $0x12] sm:$0x1]
    %v332 = vadd.f32 %v330, 2.0
    %v333 = vadd.f32 %v10, %v331
    %v334 = vlaneseq
    %v335 = vshrl.u32 %v334, 7
    %v336 = vsub.s32 0, %v335
    %v337 = vrot.slane %v332, %v336
    %v338 = vsub.f32 %v337, %v14
    %v339 = vsub.f32 %v337, %v15
    %v340 = vand.u32 2147483647, %v338
    %v341 = vand.u32 2147483647, %v339
    %v342 = vsub.f32 1.0, %v340
    %v343 = vsub.f32 1.0, %v341
    %v344 = vmax.f32 %v342, 0.0
    %v345 = vmax.f32 %v343, 0.0
    %v346 = vlaneseq
    %v347 = vshrl.u32 %v346, 7
    %v348 = vsub.s32 0, %v347
    %v349 = vrot.slane %v333, %v348
    %v350 = vsub.f32 %v349, %v14
    %v351 = vsub.f32 %v349, %v15
    %v352 = vand.u32 2147483647, %v350
    %v353 = vand.u32 2147483647, %v351
    %v354 = vsub.f32 1.0, %v352
    %v355 = vsub.f32 1.0, %v353
    %v356 = vmax.f32 %v354, 0.0
    %v357 = vmax.f32 %v355, 0.0
    %358 = vmatprep.subr.mxu0 0.0
    %359 = vmatpush1.msra.mxu0 %v356
    %360 = vmatprep.subr.mxu0 0.0
    %361 = vmatpush1.msra.mxu0 %v357
    %362 = vmatprep.subr.mxu0 0.0
    %363 = vmatpush1.msra.mxu0 0.0
    %364 = vmatprep.subr.mxu0 0.0
    %365 = vmatpush1.msra.mxu0 0.0
    %366 = vmatprep.subr.mxu0 0.0
    %367 = vmatpush1.msra.mxu0 0.0
    %368 = vmatprep.subr.mxu0 0.0
    %369 = vmatpush1.msra.mxu0 0.0
    %370 = vmatprep.subr.mxu0 0.0
    %371 = vmatpush1.msra.mxu0 0.0
    %372 = vmatprep.subr.mxu0 0.0
    %373 = vmatpush1.msra.mxu0 0.0
    %374 = vmatprep.subr.mxu0 0.0
    %375 = vmatpush1.msra.mxu0 0.0
    %376 = vmatprep.subr.mxu0 0.0
    %377 = vmatpush1.msra.mxu0 0.0
    %378 = vmatprep.subr.mxu0 0.0
    %379 = vmatpush1.msra.mxu0 0.0
    %380 = vmatprep.subr.mxu0 0.0
    %381 = vmatpush1.msra.mxu0 0.0
    %382 = vmatprep.subr.mxu0 0.0
    %383 = vmatpush1.msra.mxu0 0.0
    %384 = vmatprep.subr.mxu0 0.0
    %385 = vmatpush1.msra.mxu0 0.0
    %386 = vmatprep.subr.mxu0 0.0
    %387 = vmatpush1.msra.mxu0 0.0
    %388 = vmatprep.subr.mxu0 0.0
    %389 = vmatpush1.msra.mxu0 0.0
    %390 = vmatprep.subr.mxu0 0.0
    %391 = vmatpush1.msra.mxu0 0.0
    %392 = vmatprep.subr.mxu0 0.0
    %393 = vmatpush1.msra.mxu0 0.0
    %394 = vmatprep.subr.mxu0 0.0
    %395 = vmatpush1.msra.mxu0 0.0
    %396 = vmatprep.subr.mxu0 0.0
    %397 = vmatpush1.msra.mxu0 0.0
    %398 = vmatprep.subr.mxu0 0.0
    %399 = vmatpush1.msra.mxu0 0.0
    %400 = vmatprep.subr.mxu0 0.0
    %401 = vmatpush1.msra.mxu0 0.0
    %402 = vmatprep.subr.mxu0 0.0
    %403 = vmatpush1.msra.mxu0 0.0
    %404 = vmatprep.subr.mxu0 0.0
    %405 = vmatpush1.msra.mxu0 0.0
    %406 = vmatprep.subr.mxu0 0.0
    %407 = vmatpush1.msra.mxu0 0.0
    %408 = vmatprep.subr.mxu0 0.0
    %409 = vmatpush1.msra.mxu0 0.0
    %410 = vmatprep.subr.mxu0 0.0
    %411 = vmatpush1.msra.mxu0 0.0
    %412 = vmatprep.subr.mxu0 0.0
    %413 = vmatpush1.msra.mxu0 0.0
    %414 = vmatprep.subr.mxu0 0.0
    %415 = vmatpush1.msra.mxu0 0.0
    %416 = vmatprep.subr.mxu0 0.0
    %417 = vmatpush1.msra.mxu0 0.0
    %418 = vmatprep.subr.mxu0 0.0
    %419 = vmatpush1.msra.mxu0 0.0
    %420 = vmatprep.subr.mxu0 0.0
    %421 = vmatpush1.msra.mxu0 0.0
    %422 = vmatprep.mubr.f32.mxu0 0.0
    %423 = vmatmul.mubr.f32.gmra.mrb[0].mxu0 %v68
    %v424 = vpop.f32.mrb[0].mxu0
    %v425 = vadd.f32 0.0, %v424
    %v426 = vpop.f32.mrb[0].mxu0
    %427 = vmatprep.mubr.f32.mxu0 0.0
    %428 = vmatmul.mubr.f32.gmra.mrb[0].mxu0 %v71
    %v429 = vpop.f32.mrb[0].mxu0
    %v430 = vadd.f32 0.0, %v429
    %v431 = vpop.f32.mrb[0].mxu0
    %432 = vmatprep.mubr.f32.mxu0 0.0
    %433 = vmatmul.mubr.f32.gmra.mrb[0].mxu0 %v74
    %v434 = vpop.f32.mrb[0].mxu0
    %v435 = vadd.f32 0.0, %v434
    %v436 = vpop.f32.mrb[0].mxu0
    %437 = vmatprep.mubr.f32.mxu0 0.0
    %438 = vmatmul.mubr.f32.gmra.mrb[0].mxu0 %v77
    %v439 = vpop.f32.mrb[0].mxu0
    %v440 = vadd.f32 0.0, %v439
    %v441 = vpop.f32.mrb[0].mxu0
    %442 = vdwg.mxu0
    %v443 = vmul.f32 %v425, %v344
    %v444 = vmul.f32 %v430, %v345
    %v445 = vsel %vm24, %v443, 0.0
    %v446 = vsel %vm24, %v444, 0.0
    %v447 = vadd.f32 %v445, %v446
    %v448 = vrot.slane %v447, 4
    %v449 = vadd.f32 %v447, %v448
    %v450 = vrot.slane %v449, 2
    %v451 = vadd.f32 %v449, %v450
    %v452 = vrot.slane %v451, 1
    %v453 = vadd.f32 %v451, %v452
    %v454 = vmul.f32 %v435, %v344
    %v455 = vmul.f32 %v440, %v345
    %v456 = vsel %vm24, %v454, 0.0
    %v457 = vsel %vm24, %v455, 0.0
    %v458 = vadd.f32 %v456, %v457
    %v459 = vrot.slane %v458, 4
    %v460 = vadd.f32 %v458, %v459
    %v461 = vrot.slane %v460, 2
    %v462 = vadd.f32 %v460, %v461
    %v463 = vrot.slane %v462, 1
    %v464 = vadd.f32 %v462, %v463
    %v465 = vadd.f32 %v330, %v453
    %466 = vst.msk [vmem:[#allocation3 + $0x2] sm:$0x1] %vm187, %v465
    %v467 = vadd.f32 %v331, %v464
    %468 = vst.msk [vmem:[#allocation3 + $0x12] sm:$0x1] %vm187, %v467
    %v469 = vld [vmem:[#allocation2 + $0x3] sm:$0x1]
    %v470 = vld [vmem:[#allocation2 + $0x13] sm:$0x1]
    %v471 = vadd.f32 %v469, 3.0
    %v472 = vadd.f32 %v10, %v470
    %v473 = vlaneseq
    %v474 = vshrl.u32 %v473, 7
    %v475 = vsub.s32 0, %v474
    %v476 = vrot.slane %v471, %v475
    %v477 = vsub.f32 %v476, %v14
    %v478 = vsub.f32 %v476, %v15
    %v479 = vand.u32 2147483647, %v477
    %v480 = vand.u32 2147483647, %v478
    %v481 = vsub.f32 1.0, %v479
    %v482 = vsub.f32 1.0, %v480
    %v483 = vmax.f32 %v481, 0.0
    %v484 = vmax.f32 %v482, 0.0
    %v485 = vlaneseq
    %v486 = vshrl.u32 %v485, 7
    %v487 = vsub.s32 0, %v486
    %v488 = vrot.slane %v472, %v487
    %v489 = vsub.f32 %v488, %v14
    %v490 = vsub.f32 %v488, %v15
    %v491 = vand.u32 2147483647, %v489
    %v492 = vand.u32 2147483647, %v490
    %v493 = vsub.f32 1.0, %v491
    %v494 = vsub.f32 1.0, %v492
    %v495 = vmax.f32 %v493, 0.0
    %v496 = vmax.f32 %v494, 0.0
    %497 = vmatprep.subr.mxu0 0.0
    %498 = vmatpush1.msra.mxu0 %v495
    %499 = vmatprep.subr.mxu0 0.0
    %500 = vmatpush1.msra.mxu0 %v496
    %501 = vmatprep.subr.mxu0 0.0
    %502 = vmatpush1.msra.mxu0 0.0
    %503 = vmatprep.subr.mxu0 0.0
    %504 = vmatpush1.msra.mxu0 0.0
    %505 = vmatprep.subr.mxu0 0.0
    %506 = vmatpush1.msra.mxu0 0.0
    %507 = vmatprep.subr.mxu0 0.0
    %508 = vmatpush1.msra.mxu0 0.0
    %509 = vmatprep.subr.mxu0 0.0
    %510 = vmatpush1.msra.mxu0 0.0
    %511 = vmatprep.subr.mxu0 0.0
    %512 = vmatpush1.msra.mxu0 0.0
    %513 = vmatprep.subr.mxu0 0.0
    %514 = vmatpush1.msra.mxu0 0.0
    %515 = vmatprep.subr.mxu0 0.0
    %516 = vmatpush1.msra.mxu0 0.0
    %517 = vmatprep.subr.mxu0 0.0
    %518 = vmatpush1.msra.mxu0 0.0
    %519 = vmatprep.subr.mxu0 0.0
    %520 = vmatpush1.msra.mxu0 0.0
    %521 = vmatprep.subr.mxu0 0.0
    %522 = vmatpush1.msra.mxu0 0.0
    %523 = vmatprep.subr.mxu0 0.0
    %524 = vmatpush1.msra.mxu0 0.0
    %525 = vmatprep.subr.mxu0 0.0
    %526 = vmatpush1.msra.mxu0 0.0
    %527 = vmatprep.subr.mxu0 0.0
    %528 = vmatpush1.msra.mxu0 0.0
    %529 = vmatprep.subr.mxu0 0.0
    %530 = vmatpush1.msra.mxu0 0.0
    %531 = vmatprep.subr.mxu0 0.0
    %532 = vmatpush1.msra.mxu0 0.0
    %533 = vmatprep.subr.mxu0 0.0
    %534 = vmatpush1.msra.mxu0 0.0
    %535 = vmatprep.subr.mxu0 0.0
    %536 = vmatpush1.msra.mxu0 0.0
    %537 = vmatprep.subr.mxu0 0.0
    %538 = vmatpush1.msra.mxu0 0.0
    %539 = vmatprep.subr.mxu0 0.0
    %540 = vmatpush1.msra.mxu0 0.0
    %541 = vmatprep.subr.mxu0 0.0
    %542 = vmatpush1.msra.mxu0 0.0
    %543 = vmatprep.subr.mxu0 0.0
    %544 = vmatpush1.msra.mxu0 0.0
    %545 = vmatprep.subr.mxu0 0.0
    %546 = vmatpush1.msra.mxu0 0.0
    %547 = vmatprep.subr.mxu0 0.0
    %548 = vmatpush1.msra.mxu0 0.0
    %549 = vmatprep.subr.mxu0 0.0
    %550 = vmatpush1.msra.mxu0 0.0
    %551 = vmatprep.subr.mxu0 0.0
    %552 = vmatpush1.msra.mxu0 0.0
    %553 = vmatprep.subr.mxu0 0.0
    %554 = vmatpush1.msra.mxu0 0.0
    %555 = vmatprep.subr.mxu0 0.0
    %556 = vmatpush1.msra.mxu0 0.0
    %557 = vmatprep.subr.mxu0 0.0
    %558 = vmatpush1.msra.mxu0 0.0
    %559 = vmatprep.subr.mxu0 0.0
    %560 = vmatpush1.msra.mxu0 0.0
    %561 = vmatprep.mubr.f32.mxu0 0.0
    %562 = vmatmul.mubr.f32.gmra.mrb[0].mxu0 %v68
    %v563 = vpop.f32.mrb[0].mxu0
    %v564 = vadd.f32 0.0, %v563
    %v565 = vpop.f32.mrb[0].mxu0
    %566 = vmatprep.mubr.f32.mxu0 0.0
    %567 = vmatmul.mubr.f32.gmra.mrb[0].mxu0 %v71
    %v568 = vpop.f32.mrb[0].mxu0
    %v569 = vadd.f32 0.0, %v568
    %v570 = vpop.f32.mrb[0].mxu0
    %571 = vmatprep.mubr.f32.mxu0 0.0
    %572 = vmatmul.mubr.f32.gmra.mrb[0].mxu0 %v74
    %v573 = vpop.f32.mrb[0].mxu0
    %v574 = vadd.f32 0.0, %v573
    %v575 = vpop.f32.mrb[0].mxu0
    %576 = vmatprep.mubr.f32.mxu0 0.0
    %577 = vmatmul.mubr.f32.gmra.mrb[0].mxu0 %v77
    %v578 = vpop.f32.mrb[0].mxu0
    %v579 = vadd.f32 0.0, %v578
    %v580 = vpop.f32.mrb[0].mxu0
    %581 = vdwg.mxu0
    %v582 = vmul.f32 %v564, %v483
    %v583 = vmul.f32 %v569, %v484
    %v584 = vsel %vm24, %v582, 0.0
    %v585 = vsel %vm24, %v583, 0.0
    %v586 = vadd.f32 %v584, %v585
    %v587 = vrot.slane %v586, 4
    %v588 = vadd.f32 %v586, %v587
    %v589 = vrot.slane %v588, 2
    %v590 = vadd.f32 %v588, %v589
    %v591 = vrot.slane %v590, 1
    %v592 = vadd.f32 %v590, %v591
    %v593 = vmul.f32 %v574, %v483
    %v594 = vmul.f32 %v579, %v484
    %v595 = vsel %vm24, %v593, 0.0
    %v596 = vsel %vm24, %v594, 0.0
    %v597 = vadd.f32 %v595, %v596
    %v598 = vrot.slane %v597, 4
    %v599 = vadd.f32 %v597, %v598
    %v600 = vrot.slane %v599, 2
    %v601 = vadd.f32 %v599, %v600
    %v602 = vrot.slane %v601, 1
    %v603 = vadd.f32 %v601, %v602
    %v604 = vadd.f32 %v469, %v592
    %605 = vst.msk [vmem:[#allocation3 + $0x3] sm:$0x1] %vm187, %v604
    %v606 = vadd.f32 %v470, %v603
    %607 = vst.msk [vmem:[#allocation3 + $0x13] sm:$0x1] %vm187, %v606
    %v608 = vld [vmem:[#allocation2 + $0x4] sm:$0x1]
    %v609 = vld [vmem:[#allocation2 + $0x14] sm:$0x1]
    %v610 = vadd.f32 %v608, 4.0
    %v611 = vadd.f32 %v10, %v609
    %v612 = vlaneseq
    %v613 = vshrl.u32 %v612, 7
    %v614 = vsub.s32 0, %v613
    %v615 = vrot.slane %v610, %v614
    %v616 = vsub.f32 %v615, %v14
    %v617 = vsub.f32 %v615, %v15
    %v618 = vand.u32 2147483647, %v616
    %v619 = vand.u32 2147483647, %v617
    %v620 = vsub.f32 1.0, %v618
    %v621 = vsub.f32 1.0, %v619
    %v622 = vmax.f32 %v620, 0.0
    %v623 = vmax.f32 %v621, 0.0
    %v624 = vlaneseq
    %v625 = vshrl.u32 %v624, 7
    %v626 = vsub.s32 0, %v625
    %v627 = vrot.slane %v611, %v626
    %v628 = vsub.f32 %v627, %v14
    %v629 = vsub.f32 %v627, %v15
    %v630 = vand.u32 2147483647, %v628
    %v631 = vand.u32 2147483647, %v629
    %v632 = vsub.f32 1.0, %v630
    %v633 = vsub.f32 1.0, %v631
    %v634 = vmax.f32 %v632, 0.0
    %v635 = vmax.f32 %v633, 0.0
    %636 = vmatprep.subr.mxu0 0.0
    %637 = vmatpush1.msra.mxu0 %v634
    %638 = vmatprep.subr.mxu0 0.0
    %639 = vmatpush1.msra.mxu0 %v635
    %640 = vmatprep.subr.mxu0 0.0
    %641 = vmatpush1.msra.mxu0 0.0
    %642 = vmatprep.subr.mxu0 0.0
    %643 = vmatpush1.msra.mxu0 0.0
    %644 = vmatprep.subr.mxu0 0.0
    %645 = vmatpush1.msra.mxu0 0.0
    %646 = vmatprep.subr.mxu0 0.0
    %647 = vmatpush1.msra.mxu0 0.0
    %648 = vmatprep.subr.mxu0 0.0
    %649 = vmatpush1.msra.mxu0 0.0
    %650 = vmatprep.subr.mxu0 0.0
    %651 = vmatpush1.msra.mxu0 0.0
    %652 = vmatprep.subr.mxu0 0.0
    %653 = vmatpush1.msra.mxu0 0.0
    %654 = vmatprep.subr.mxu0 0.0
    %655 = vmatpush1.msra.mxu0 0.0
    %656 = vmatprep.subr.mxu0 0.0
    %657 = vmatpush1.msra.mxu0 0.0
    %658 = vmatprep.subr.mxu0 0.0
    %659 = vmatpush1.msra.mxu0 0.0
    %660 = vmatprep.subr.mxu0 0.0
    %661 = vmatpush1.msra.mxu0 0.0
    %662 = vmatprep.subr.mxu0 0.0
    %663 = vmatpush1.msra.mxu0 0.0
    %664 = vmatprep.subr.mxu0 0.0
    %665 = vmatpush1.msra.mxu0 0.0
    %666 = vmatprep.subr.mxu0 0.0
    %667 = vmatpush1.msra.mxu0 0.0
    %668 = vmatprep.subr.mxu0 0.0
    %669 = vmatpush1.msra.mxu0 0.0
    %670 = vmatprep.subr.mxu0 0.0
    %671 = vmatpush1.msra.mxu0 0.0
    %672 = vmatprep.subr.mxu0 0.0
    %673 = vmatpush1.msra.mxu0 0.0
    %674 = vmatprep.subr.mxu0 0.0
    %675 = vmatpush1.msra.mxu0 0.0
    %676 = vmatprep.subr.mxu0 0.0
    %677 = vmatpush1.msra.mxu0 0.0
    %678 = vmatprep.subr.mxu0 0.0
    %679 = vmatpush1.msra.mxu0 0.0
    %680 = vmatprep.subr.mxu0 0.0
    %681 = vmatpush1.msra.mxu0 0.0
    %682 = vmatprep.subr.mxu0 0.0
    %683 = vmatpush1.msra.mxu0 0.0
    %684 = vmatprep.subr.mxu0 0.0
    %685 = vmatpush1.msra.mxu0 0.0
    %686 = vmatprep.subr.mxu0 0.0
    %687 = vmatpush1.msra.mxu0 0.0
    %688 = vmatprep.subr.mxu0 0.0
    %689 = vmatpush1.msra.mxu0 0.0
    %690 = vmatprep.subr.mxu0 0.0
    %691 = vmatpush1.msra.mxu0 0.0
    %692 = vmatprep.subr.mxu0 0.0
    %693 = vmatpush1.msra.mxu0 0.0
    %694 = vmatprep.subr.mxu0 0.0
    %695 = vmatpush1.msra.mxu0 0.0
    %696 = vmatprep.subr.mxu0 0.0
    %697 = vmatpush1.msra.mxu0 0.0
    %698 = vmatprep.subr.mxu0 0.0
    %699 = vmatpush1.msra.mxu0 0.0
    %700 = vmatprep.mubr.f32.mxu0 0.0
    %701 = vmatmul.mubr.f32.gmra.mrb[0].mxu0 %v68
    %v702 = vpop.f32.mrb[0].mxu0
    %v703 = vadd.f32 0.0, %v702
    %v704 = vpop.f32.mrb[0].mxu0
    %705 = vmatprep.mubr.f32.mxu0 0.0
    %706 = vmatmul.mubr.f32.gmra.mrb[0].mxu0 %v71
    %v707 = vpop.f32.mrb[0].mxu0
    %v708 = vadd.f32 0.0, %v707
    %v709 = vpop.f32.mrb[0].mxu0
    %710 = vmatprep.mubr.f32.mxu0 0.0
    %711 = vmatmul.mubr.f32.gmra.mrb[0].mxu0 %v74
    %v712 = vpop.f32.mrb[0].mxu0
    %v713 = vadd.f32 0.0, %v712
    %v714 = vpop.f32.mrb[0].mxu0
    %715 = vmatprep.mubr.f32.mxu0 0.0
    %716 = vmatmul.mubr.f32.gmra.mrb[0].mxu0 %v77
    %v717 = vpop.f32.mrb[0].mxu0
    %v718 = vadd.f32 0.0, %v717
    %v719 = vpop.f32.mrb[0].mxu0
    %720 = vdwg.mxu0
    %v721 = vmul.f32 %v703, %v622
    %v722 = vmul.f32 %v708, %v623
    %v723 = vsel %vm24, %v721, 0.0
    %v724 = vsel %vm24, %v722, 0.0
    %v725 = vadd.f32 %v723, %v724
    %v726 = vrot.slane %v725, 4
    %v727 = vadd.f32 %v725, %v726
    %v728 = vrot.slane %v727, 2
    %v729 = vadd.f32 %v727, %v728
    %v730 = vrot.slane %v729, 1
    %v731 = vadd.f32 %v729, %v730
    %v732 = vmul.f32 %v713, %v622
    %v733 = vmul.f32 %v718, %v623
    %v734 = vsel %vm24, %v732, 0.0
    %v735 = vsel %vm24, %v733, 0.0
    %v736 = vadd.f32 %v734, %v735
    %v737 = vrot.slane %v736, 4
    %v738 = vadd.f32 %v736, %v737
    %v739 = vrot.slane %v738, 2
    %v740 = vadd.f32 %v738, %v739
    %v741 = vrot.slane %v740, 1
    %v742 = vadd.f32 %v740, %v741
    %v743 = vadd.f32 %v608, %v731
    %744 = vst.msk [vmem:[#allocation3 + $0x4] sm:$0x1] %vm187, %v743
    %v745 = vadd.f32 %v609, %v742
    %746 = vst.msk [vmem:[#allocation3 + $0x14] sm:$0x1] %vm187, %v745
    %v747 = vld [vmem:[#allocation2 + $0x5] sm:$0x1]
    %v748 = vld [vmem:[#allocation2 + $0x15] sm:$0x1]
    %v749 = vadd.f32 %v747, 5.0
    %v750 = vadd.f32 %v10, %v748
    %v751 = vlaneseq
    %v752 = vshrl.u32 %v751, 7
    %v753 = vsub.s32 0, %v752
    %v754 = vrot.slane %v749, %v753
    %v755 = vsub.f32 %v754, %v14
    %v756 = vsub.f32 %v754, %v15
    %v757 = vand.u32 2147483647, %v755
    %v758 = vand.u32 2147483647, %v756
    %v759 = vsub.f32 1.0, %v757
    %v760 = vsub.f32 1.0, %v758
    %v761 = vmax.f32 %v759, 0.0
    %v762 = vmax.f32 %v760, 0.0
    %v763 = vlaneseq
    %v764 = vshrl.u32 %v763, 7
    %v765 = vsub.s32 0, %v764
    %v766 = vrot.slane %v750, %v765
    %v767 = vsub.f32 %v766, %v14
    %v768 = vsub.f32 %v766, %v15
    %v769 = vand.u32 2147483647, %v767
    %v770 = vand.u32 2147483647, %v768
    %v771 = vsub.f32 1.0, %v769
    %v772 = vsub.f32 1.0, %v770
    %v773 = vmax.f32 %v771, 0.0
    %v774 = vmax.f32 %v772, 0.0
    %775 = vmatprep.subr.mxu0 0.0
    %776 = vmatpush1.msra.mxu0 %v773
    %777 = vmatprep.subr.mxu0 0.0
    %778 = vmatpush1.msra.mxu0 %v774
    %779 = vmatprep.subr.mxu0 0.0
    %780 = vmatpush1.msra.mxu0 0.0
    %781 = vmatprep.subr.mxu0 0.0
    %782 = vmatpush1.msra.mxu0 0.0
    %783 = vmatprep.subr.mxu0 0.0
    %784 = vmatpush1.msra.mxu0 0.0
    %785 = vmatprep.subr.mxu0 0.0
    %786 = vmatpush1.msra.mxu0 0.0
    %787 = vmatprep.subr.mxu0 0.0
    %788 = vmatpush1.msra.mxu0 0.0
    %789 = vmatprep.subr.mxu0 0.0
    %790 = vmatpush1.msra.mxu0 0.0
    %791 = vmatprep.subr.mxu0 0.0
    %792 = vmatpush1.msra.mxu0 0.0
    %793 = vmatprep.subr.mxu0 0.0
    %794 = vmatpush1.msra.mxu0 0.0
    %795 = vmatprep.subr.mxu0 0.0
    %796 = vmatpush1.msra.mxu0 0.0
    %797 = vmatprep.subr.mxu0 0.0
    %798 = vmatpush1.msra.mxu0 0.0
    %799 = vmatprep.subr.mxu0 0.0
    %800 = vmatpush1.msra.mxu0 0.0
    %801 = vmatprep.subr.mxu0 0.0
    %802 = vmatpush1.msra.mxu0 0.0
    %803 = vmatprep.subr.mxu0 0.0
    %804 = vmatpush1.msra.mxu0 0.0
    %805 = vmatprep.subr.mxu0 0.0
    %806 = vmatpush1.msra.mxu0 0.0
    %807 = vmatprep.subr.mxu0 0.0
    %808 = vmatpush1.msra.mxu0 0.0
    %809 = vmatprep.subr.mxu0 0.0
    %810 = vmatpush1.msra.mxu0 0.0
    %811 = vmatprep.subr.mxu0 0.0
    %812 = vmatpush1.msra.mxu0 0.0
    %813 = vmatprep.subr.mxu0 0.0
    %814 = vmatpush1.msra.mxu0 0.0
    %815 = vmatprep.subr.mxu0 0.0
    %816 = vmatpush1.msra.mxu0 0.0
    %817 = vmatprep.subr.mxu0 0.0
    %818 = vmatpush1.msra.mxu0 0.0
    %819 = vmatprep.subr.mxu0 0.0
    %820 = vmatpush1.msra.mxu0 0.0
    %821 = vmatprep.subr.mxu0 0.0
    %822 = vmatpush1.msra.mxu0 0.0
    %823 = vmatprep.subr.mxu0 0.0
    %824 = vmatpush1.msra.mxu0 0.0
    %825 = vmatprep.subr.mxu0 0.0
    %826 = vmatpush1.msra.mxu0 0.0
    %827 = vmatprep.subr.mxu0 0.0
    %828 = vmatpush1.msra.mxu0 0.0
    %829 = vmatprep.subr.mxu0 0.0
    %830 = vmatpush1.msra.mxu0 0.0
    %831 = vmatprep.subr.mxu0 0.0
    %832 = vmatpush1.msra.mxu0 0.0
    %833 = vmatprep.subr.mxu0 0.0
    %834 = vmatpush1.msra.mxu0 0.0
    %835 = vmatprep.subr.mxu0 0.0
    %836 = vmatpush1.msra.mxu0 0.0
    %837 = vmatprep.subr.mxu0 0.0
    %838 = vmatpush1.msra.mxu0 0.0
    %839 = vmatprep.mubr.f32.mxu0 0.0
    %840 = vmatmul.mubr.f32.gmra.mrb[0].mxu0 %v68
    %v841 = vpop.f32.mrb[0].mxu0
    %v842 = vadd.f32 0.0, %v841
    %v843 = vpop.f32.mrb[0].mxu0
    %844 = vmatprep.mubr.f32.mxu0 0.0
    %845 = vmatmul.mubr.f32.gmra.mrb[0].mxu0 %v71
    %v846 = vpop.f32.mrb[0].mxu0
    %v847 = vadd.f32 0.0, %v846
    %v848 = vpop.f32.mrb[0].mxu0
    %849 = vmatprep.mubr.f32.mxu0 0.0
    %850 = vmatmul.mubr.f32.gmra.mrb[0].mxu0 %v74
    %v851 = vpop.f32.mrb[0].mxu0
    %v852 = vadd.f32 0.0, %v851
    %v853 = vpop.f32.mrb[0].mxu0
    %854 = vmatprep.mubr.f32.mxu0 0.0
    %855 = vmatmul.mubr.f32.gmra.mrb[0].mxu0 %v77
    %v856 = vpop.f32.mrb[0].mxu0
    %v857 = vadd.f32 0.0, %v856
    %v858 = vpop.f32.mrb[0].mxu0
    %859 = vdwg.mxu0
    %v860 = vmul.f32 %v842, %v761
    %v861 = vmul.f32 %v847, %v762
    %v862 = vsel %vm24, %v860, 0.0
    %v863 = vsel %vm24, %v861, 0.0
    %v864 = vadd.f32 %v862, %v863
    %v865 = vrot.slane %v864, 4
    %v866 = vadd.f32 %v864, %v865
    %v867 = vrot.slane %v866, 2
    %v868 = vadd.f32 %v866, %v867
    %v869 = vrot.slane %v868, 1
    %v870 = vadd.f32 %v868, %v869
    %v871 = vmul.f32 %v852, %v761
    %v872 = vmul.f32 %v857, %v762
    %v873 = vsel %vm24, %v871, 0.0
    %v874 = vsel %vm24, %v872, 0.0
    %v875 = vadd.f32 %v873, %v874
    %v876 = vrot.slane %v875, 4
    %v877 = vadd.f32 %v875, %v876
    %v878 = vrot.slane %v877, 2
    %v879 = vadd.f32 %v877, %v878
    %v880 = vrot.slane %v879, 1
    %v881 = vadd.f32 %v879, %v880
    %v882 = vadd.f32 %v747, %v870
    %883 = vst.msk [vmem:[#allocation3 + $0x5] sm:$0x1] %vm187, %v882
    %v884 = vadd.f32 %v748, %v881
    %885 = vst.msk [vmem:[#allocation3 + $0x15] sm:$0x1] %vm187, %v884
    %v886 = vld [vmem:[#allocation2 + $0x6] sm:$0x1]
    %v887 = vld [vmem:[#allocation2 + $0x16] sm:$0x1]
    %v888 = vadd.f32 %v886, 6.0
    %v889 = vadd.f32 %v10, %v887
    %v890 = vlaneseq
    %v891 = vshrl.u32 %v890, 7
    %v892 = vsub.s32 0, %v891
    %v893 = vrot.slane %v888, %v892
    %v894 = vsub.f32 %v893, %v14
    %v895 = vsub.f32 %v893, %v15
    %v896 = vand.u32 2147483647, %v894
    %v897 = vand.u32 2147483647, %v895
    %v898 = vsub.f32 1.0, %v896
    %v899 = vsub.f32 1.0, %v897
    %v900 = vmax.f32 %v898, 0.0
    %v901 = vmax.f32 %v899, 0.0
    %v902 = vlaneseq
    %v903 = vshrl.u32 %v902, 7
    %v904 = vsub.s32 0, %v903
    %v905 = vrot.slane %v889, %v904
    %v906 = vsub.f32 %v905, %v14
    %v907 = vsub.f32 %v905, %v15
    %v908 = vand.u32 2147483647, %v906
    %v909 = vand.u32 2147483647, %v907
    %v910 = vsub.f32 1.0, %v908
    %v911 = vsub.f32 1.0, %v909
    %v912 = vmax.f32 %v910, 0.0
    %v913 = vmax.f32 %v911, 0.0
    %914 = vmatprep.subr.mxu0 0.0
    %915 = vmatpush1.msra.mxu0 %v912
    %916 = vmatprep.subr.mxu0 0.0
    %917 = vmatpush1.msra.mxu0 %v913
    %918 = vmatprep.subr.mxu0 0.0
    %919 = vmatpush1.msra.mxu0 0.0
    %920 = vmatprep.subr.mxu0 0.0
    %921 = vmatpush1.msra.mxu0 0.0
    %922 = vmatprep.subr.mxu0 0.0
    %923 = vmatpush1.msra.mxu0 0.0
    %924 = vmatprep.subr.mxu0 0.0
    %925 = vmatpush1.msra.mxu0 0.0
    %926 = vmatprep.subr.mxu0 0.0
    %927 = vmatpush1.msra.mxu0 0.0
    %928 = vmatprep.subr.mxu0 0.0
    %929 = vmatpush1.msra.mxu0 0.0
    %930 = vmatprep.subr.mxu0 0.0
    %931 = vmatpush1.msra.mxu0 0.0
    %932 = vmatprep.subr.mxu0 0.0
    %933 = vmatpush1.msra.mxu0 0.0
    %934 = vmatprep.subr.mxu0 0.0
    %935 = vmatpush1.msra.mxu0 0.0
    %936 = vmatprep.subr.mxu0 0.0
    %937 = vmatpush1.msra.mxu0 0.0
    %938 = vmatprep.subr.mxu0 0.0
    %939 = vmatpush1.msra.mxu0 0.0
    %940 = vmatprep.subr.mxu0 0.0
    %941 = vmatpush1.msra.mxu0 0.0
    %942 = vmatprep.subr.mxu0 0.0
    %943 = vmatpush1.msra.mxu0 0.0
    %944 = vmatprep.subr.mxu0 0.0
    %945 = vmatpush1.msra.mxu0 0.0
    %946 = vmatprep.subr.mxu0 0.0
    %947 = vmatpush1.msra.mxu0 0.0
    %948 = vmatprep.subr.mxu0 0.0
    %949 = vmatpush1.msra.mxu0 0.0
    %950 = vmatprep.subr.mxu0 0.0
    %951 = vmatpush1.msra.mxu0 0.0
    %952 = vmatprep.subr.mxu0 0.0
    %953 = vmatpush1.msra.mxu0 0.0
    %954 = vmatprep.subr.mxu0 0.0
    %955 = vmatpush1.msra.mxu0 0.0
    %956 = vmatprep.subr.mxu0 0.0
    %957 = vmatpush1.msra.mxu0 0.0
    %958 = vmatprep.subr.mxu0 0.0
    %959 = vmatpush1.msra.mxu0 0.0
    %960 = vmatprep.subr.mxu0 0.0
    %961 = vmatpush1.msra.mxu0 0.0
    %962 = vmatprep.subr.mxu0 0.0
    %963 = vmatpush1.msra.mxu0 0.0
    %964 = vmatprep.subr.mxu0 0.0
    %965 = vmatpush1.msra.mxu0 0.0
    %966 = vmatprep.subr.mxu0 0.0
    %967 = vmatpush1.msra.mxu0 0.0
    %968 = vmatprep.subr.mxu0 0.0
    %969 = vmatpush1.msra.mxu0 0.0
    %970 = vmatprep.subr.mxu0 0.0
    %971 = vmatpush1.msra.mxu0 0.0
    %972 = vmatprep.subr.mxu0 0.0
    %973 = vmatpush1.msra.mxu0 0.0
    %974 = vmatprep.subr.mxu0 0.0
    %975 = vmatpush1.msra.mxu0 0.0
    %976 = vmatprep.subr.mxu0 0.0
    %977 = vmatpush1.msra.mxu0 0.0
    %978 = vmatprep.mubr.f32.mxu0 0.0
    %979 = vmatmul.mubr.f32.gmra.mrb[0].mxu0 %v68
    %v980 = vpop.f32.mrb[0].mxu0
    %v981 = vadd.f32 0.0, %v980
    %v982 = vpop.f32.mrb[0].mxu0
    %983 = vmatprep.mubr.f32.mxu0 0.0
    %984 = vmatmul.mubr.f32.gmra.mrb[0].mxu0 %v71
    %v985 = vpop.f32.mrb[0].mxu0
    %v986 = vadd.f32 0.0, %v985
    %v987 = vpop.f32.mrb[0].mxu0
    %988 = vmatprep.mubr.f32.mxu0 0.0
    %989 = vmatmul.mubr.f32.gmra.mrb[0].mxu0 %v74
    %v990 = vpop.f32.mrb[0].mxu0
    %v991 = vadd.f32 0.0, %v990
    %v992 = vpop.f32.mrb[0].mxu0
    %993 = vmatprep.mubr.f32.mxu0 0.0
    %994 = vmatmul.mubr.f32.gmra.mrb[0].mxu0 %v77
    %v995 = vpop.f32.mrb[0].mxu0
    %v996 = vadd.f32 0.0, %v995
    %v997 = vpop.f32.mrb[0].mxu0
    %998 = vdwg.mxu0
    %v999 = vmul.f32 %v981, %v900
    %v1000 = vmul.f32 %v986, %v901
    %v1001 = vsel %vm24, %v999, 0.0
    %v1002 = vsel %vm24, %v1000, 0.0
    %v1003 = vadd.f32 %v1001, %v1002
    %v1004 = vrot.slane %v1003, 4
    %v1005 = vadd.f32 %v1003, %v1004
    %v1006 = vrot.slane %v1005, 2
    %v1007 = vadd.f32 %v1005, %v1006
    %v1008 = vrot.slane %v1007, 1
    %v1009 = vadd.f32 %v1007, %v1008
    %v1010 = vmul.f32 %v991, %v900
    %v1011 = vmul.f32 %v996, %v901
    %v1012 = vsel %vm24, %v1010, 0.0
    %v1013 = vsel %vm24, %v1011, 0.0
    %v1014 = vadd.f32 %v1012, %v1013
    %v1015 = vrot.slane %v1014, 4
    %v1016 = vadd.f32 %v1014, %v1015
    %v1017 = vrot.slane %v1016, 2
    %v1018 = vadd.f32 %v1016, %v1017
    %v1019 = vrot.slane %v1018, 1
    %v1020 = vadd.f32 %v1018, %v1019
    %v1021 = vadd.f32 %v886, %v1009
    %1022 = vst.msk [vmem:[#allocation3 + $0x6] sm:$0x1] %vm187, %v1021
    %v1023 = vadd.f32 %v887, %v1020
    %1024 = vst.msk [vmem:[#allocation3 + $0x16] sm:$0x1] %vm187, %v1023
    %v1025 = vld [vmem:[#allocation2 + $0x7] sm:$0x1]
    %v1026 = vld [vmem:[#allocation2 + $0x17] sm:$0x1]
    %v1027 = vadd.f32 %v1025, 7.0
    %v1028 = vadd.f32 %v10, %v1026
    %v1029 = vlaneseq
    %v1030 = vshrl.u32 %v1029, 7
    %v1031 = vsub.s32 0, %v1030
    %v1032 = vrot.slane %v1027, %v1031
    %v1033 = vsub.f32 %v1032, %v14
    %v1034 = vsub.f32 %v1032, %v15
    %v1035 = vand.u32 2147483647, %v1033
    %v1036 = vand.u32 2147483647, %v1034
    %v1037 = vsub.f32 1.0, %v1035
    %v1038 = vsub.f32 1.0, %v1036
    %v1039 = vmax.f32 %v1037, 0.0
    %v1040 = vmax.f32 %v1038, 0.0
    %v1041 = vlaneseq
    %v1042 = vshrl.u32 %v1041, 7
    %v1043 = vsub.s32 0, %v1042
    %v1044 = vrot.slane %v1028, %v1043
    %v1045 = vsub.f32 %v1044, %v14
    %v1046 = vsub.f32 %v1044, %v15
    %v1047 = vand.u32 2147483647, %v1045
    %v1048 = vand.u32 2147483647, %v1046
    %v1049 = vsub.f32 1.0, %v1047
    %v1050 = vsub.f32 1.0, %v1048
    %v1051 = vmax.f32 %v1049, 0.0
    %v1052 = vmax.f32 %v1050, 0.0
    %1053 = vmatprep.subr.mxu0 0.0
    %1054 = vmatpush1.msra.mxu0 %v1051
    %1055 = vmatprep.subr.mxu0 0.0
    %1056 = vmatpush1.msra.mxu0 %v1052
    %1057 = vmatprep.subr.mxu0 0.0
    %1058 = vmatpush1.msra.mxu0 0.0
    %1059 = vmatprep.subr.mxu0 0.0
    %1060 = vmatpush1.msra.mxu0 0.0
    %1061 = vmatprep.subr.mxu0 0.0
    %1062 = vmatpush1.msra.mxu0 0.0
    %1063 = vmatprep.subr.mxu0 0.0
    %1064 = vmatpush1.msra.mxu0 0.0
    %1065 = vmatprep.subr.mxu0 0.0
    %1066 = vmatpush1.msra.mxu0 0.0
    %1067 = vmatprep.subr.mxu0 0.0
    %1068 = vmatpush1.msra.mxu0 0.0
    %1069 = vmatprep.subr.mxu0 0.0
    %1070 = vmatpush1.msra.mxu0 0.0
    %1071 = vmatprep.subr.mxu0 0.0
    %1072 = vmatpush1.msra.mxu0 0.0
    %1073 = vmatprep.subr.mxu0 0.0
    %1074 = vmatpush1.msra.mxu0 0.0
    %1075 = vmatprep.subr.mxu0 0.0
    %1076 = vmatpush1.msra.mxu0 0.0
    %1077 = vmatprep.subr.mxu0 0.0
    %1078 = vmatpush1.msra.mxu0 0.0
    %1079 = vmatprep.subr.mxu0 0.0
    %1080 = vmatpush1.msra.mxu0 0.0
    %1081 = vmatprep.subr.mxu0 0.0
    %1082 = vmatpush1.msra.mxu0 0.0
    %1083 = vmatprep.subr.mxu0 0.0
    %1084 = vmatpush1.msra.mxu0 0.0
    %1085 = vmatprep.subr.mxu0 0.0
    %1086 = vmatpush1.msra.mxu0 0.0
    %1087 = vmatprep.subr.mxu0 0.0
    %1088 = vmatpush1.msra.mxu0 0.0
    %1089 = vmatprep.subr.mxu0 0.0
    %1090 = vmatpush1.msra.mxu0 0.0
    %1091 = vmatprep.subr.mxu0 0.0
    %1092 = vmatpush1.msra.mxu0 0.0
    %1093 = vmatprep.subr.mxu0 0.0
    %1094 = vmatpush1.msra.mxu0 0.0
    %1095 = vmatprep.subr.mxu0 0.0
    %1096 = vmatpush1.msra.mxu0 0.0
    %1097 = vmatprep.subr.mxu0 0.0
    %1098 = vmatpush1.msra.mxu0 0.0
    %1099 = vmatprep.subr.mxu0 0.0
    %1100 = vmatpush1.msra.mxu0 0.0
    %1101 = vmatprep.subr.mxu0 0.0
    %1102 = vmatpush1.msra.mxu0 0.0
    %1103 = vmatprep.subr.mxu0 0.0
    %1104 = vmatpush1.msra.mxu0 0.0
    %1105 = vmatprep.subr.mxu0 0.0
    %1106 = vmatpush1.msra.mxu0 0.0
    %1107 = vmatprep.subr.mxu0 0.0
    %1108 = vmatpush1.msra.mxu0 0.0
    %1109 = vmatprep.subr.mxu0 0.0
    %1110 = vmatpush1.msra.mxu0 0.0
    %1111 = vmatprep.subr.mxu0 0.0
    %1112 = vmatpush1.msra.mxu0 0.0
    %1113 = vmatprep.subr.mxu0 0.0
    %1114 = vmatpush1.msra.mxu0 0.0
    %1115 = vmatprep.subr.mxu0 0.0
    %1116 = vmatpush1.msra.mxu0 0.0
    %1117 = vmatprep.mubr.f32.mxu0 0.0
    %1118 = vmatmul.mubr.f32.gmra.mrb[0].mxu0 %v68
    %v1119 = vpop.f32.mrb[0].mxu0
    %v1120 = vadd.f32 0.0, %v1119
    %v1121 = vpop.f32.mrb[0].mxu0
    %1122 = vmatprep.mubr.f32.mxu0 0.0
    %1123 = vmatmul.mubr.f32.gmra.mrb[0].mxu0 %v71
    %v1124 = vpop.f32.mrb[0].mxu0
    %v1125 = vadd.f32 0.0, %v1124
    %v1126 = vpop.f32.mrb[0].mxu0
    %1127 = vmatprep.mubr.f32.mxu0 0.0
    %1128 = vmatmul.mubr.f32.gmra.mrb[0].mxu0 %v74
    %v1129 = vpop.f32.mrb[0].mxu0
    %v1130 = vadd.f32 0.0, %v1129
    %v1131 = vpop.f32.mrb[0].mxu0
    %1132 = vmatprep.mubr.f32.mxu0 0.0
    %1133 = vmatmul.mubr.f32.gmra.mrb[0].mxu0 %v77
    %v1134 = vpop.f32.mrb[0].mxu0
    %v1135 = vadd.f32 0.0, %v1134
    %v1136 = vpop.f32.mrb[0].mxu0
    %1137 = vdwg.mxu0
    %v1138 = vmul.f32 %v1120, %v1039
    %v1139 = vmul.f32 %v1125, %v1040
    %v1140 = vsel %vm24, %v1138, 0.0
    %v1141 = vsel %vm24, %v1139, 0.0
    %v1142 = vadd.f32 %v1140, %v1141
    %v1143 = vrot.slane %v1142, 4
    %v1144 = vadd.f32 %v1142, %v1143
    %v1145 = vrot.slane %v1144, 2
    %v1146 = vadd.f32 %v1144, %v1145
    %v1147 = vrot.slane %v1146, 1
    %v1148 = vadd.f32 %v1146, %v1147
    %v1149 = vmul.f32 %v1130, %v1039
    %v1150 = vmul.f32 %v1135, %v1040
    %v1151 = vsel %vm24, %v1149, 0.0
    %v1152 = vsel %vm24, %v1150, 0.0
    %v1153 = vadd.f32 %v1151, %v1152
    %v1154 = vrot.slane %v1153, 4
    %v1155 = vadd.f32 %v1153, %v1154
    %v1156 = vrot.slane %v1155, 2
    %v1157 = vadd.f32 %v1155, %v1156
    %v1158 = vrot.slane %v1157, 1
    %v1159 = vadd.f32 %v1157, %v1158
    %v1160 = vadd.f32 %v1025, %v1148
    %1161 = vst.msk [vmem:[#allocation3 + $0x7] sm:$0x1] %vm187, %v1160
    %v1162 = vadd.f32 %v1026, %v1159
    %1163 = vst.msk [vmem:[#allocation3 + $0x17] sm:$0x1] %vm187, %v1162
    %v1164 = vld [vmem:[#allocation2 + $0x8] sm:$0x1]
    %v1165 = vld [vmem:[#allocation2 + $0x18] sm:$0x1]
    %v1166 = vadd.f32 %v1164, 8.0
    %v1167 = vadd.f32 %v10, %v1165
    %v1168 = vlaneseq
    %v1169 = vshrl.u32 %v1168, 7
    %v1170 = vsub.s32 0, %v1169
    %v1171 = vrot.slane %v1166, %v1170
    %v1172 = vsub.f32 %v1171, %v14
    %v1173 = vsub.f32 %v1171, %v15
    %v1174 = vand.u32 2147483647, %v1172
    %v1175 = vand.u32 2147483647, %v1173
    %v1176 = vsub.f32 1.0, %v1174
    %v1177 = vsub.f32 1.0, %v1175
    %v1178 = vmax.f32 %v1176, 0.0
    %v1179 = vmax.f32 %v1177, 0.0
    %v1180 = vlaneseq
    %v1181 = vshrl.u32 %v1180, 7
    %v1182 = vsub.s32 0, %v1181
    %v1183 = vrot.slane %v1167, %v1182
    %v1184 = vsub.f32 %v1183, %v14
    %v1185 = vsub.f32 %v1183, %v15
    %v1186 = vand.u32 2147483647, %v1184
    %v1187 = vand.u32 2147483647, %v1185
    %v1188 = vsub.f32 1.0, %v1186
    %v1189 = vsub.f32 1.0, %v1187
    %v1190 = vmax.f32 %v1188, 0.0
    %v1191 = vmax.f32 %v1189, 0.0
    %1192 = vmatprep.subr.mxu0 0.0
    %1193 = vmatpush1.msra.mxu0 %v1190
    %1194 = vmatprep.subr.mxu0 0.0
    %1195 = vmatpush1.msra.mxu0 %v1191
    %1196 = vmatprep.subr.mxu0 0.0
    %1197 = vmatpush1.msra.mxu0 0.0
    %1198 = vmatprep.subr.mxu0 0.0
    %1199 = vmatpush1.msra.mxu0 0.0
    %1200 = vmatprep.subr.mxu0 0.0
    %1201 = vmatpush1.msra.mxu0 0.0
    %1202 = vmatprep.subr.mxu0 0.0
    %1203 = vmatpush1.msra.mxu0 0.0
    %1204 = vmatprep.subr.mxu0 0.0
    %1205 = vmatpush1.msra.mxu0 0.0
    %1206 = vmatprep.subr.mxu0 0.0
    %1207 = vmatpush1.msra.mxu0 0.0
    %1208 = vmatprep.subr.mxu0 0.0
    %1209 = vmatpush1.msra.mxu0 0.0
    %1210 = vmatprep.subr.mxu0 0.0
    %1211 = vmatpush1.msra.mxu0 0.0
    %1212 = vmatprep.subr.mxu0 0.0
    %1213 = vmatpush1.msra.mxu0 0.0
    %1214 = vmatprep.subr.mxu0 0.0
    %1215 = vmatpush1.msra.mxu0 0.0
    %1216 = vmatprep.subr.mxu0 0.0
    %1217 = vmatpush1.msra.mxu0 0.0
    %1218 = vmatprep.subr.mxu0 0.0
    %1219 = vmatpush1.msra.mxu0 0.0
    %1220 = vmatprep.subr.mxu0 0.0
    %1221 = vmatpush1.msra.mxu0 0.0
    %1222 = vmatprep.subr.mxu0 0.0
    %1223 = vmatpush1.msra.mxu0 0.0
    %1224 = vmatprep.subr.mxu0 0.0
    %1225 = vmatpush1.msra.mxu0 0.0
    %1226 = vmatprep.subr.mxu0 0.0
    %1227 = vmatpush1.msra.mxu0 0.0
    %1228 = vmatprep.subr.mxu0 0.0
    %1229 = vmatpush1.msra.mxu0 0.0
    %1230 = vmatprep.subr.mxu0 0.0
    %1231 = vmatpush1.msra.mxu0 0.0
    %1232 = vmatprep.subr.mxu0 0.0
    %1233 = vmatpush1.msra.mxu0 0.0
    %1234 = vmatprep.subr.mxu0 0.0
    %1235 = vmatpush1.msra.mxu0 0.0
    %1236 = vmatprep.subr.mxu0 0.0
    %1237 = vmatpush1.msra.mxu0 0.0
    %1238 = vmatprep.subr.mxu0 0.0
    %1239 = vmatpush1.msra.mxu0 0.0
    %1240 = vmatprep.subr.mxu0 0.0
    %1241 = vmatpush1.msra.mxu0 0.0
    %1242 = vmatprep.subr.mxu0 0.0
    %1243 = vmatpush1.msra.mxu0 0.0
    %1244 = vmatprep.subr.mxu0 0.0
    %1245 = vmatpush1.msra.mxu0 0.0
    %1246 = vmatprep.subr.mxu0 0.0
    %1247 = vmatpush1.msra.mxu0 0.0
    %1248 = vmatprep.subr.mxu0 0.0
    %1249 = vmatpush1.msra.mxu0 0.0
    %1250 = vmatprep.subr.mxu0 0.0
    %1251 = vmatpush1.msra.mxu0 0.0
    %1252 = vmatprep.subr.mxu0 0.0
    %1253 = vmatpush1.msra.mxu0 0.0
    %1254 = vmatprep.subr.mxu0 0.0
    %1255 = vmatpush1.msra.mxu0 0.0
    %1256 = vmatprep.mubr.f32.mxu0 0.0
    %1257 = vmatmul.mubr.f32.gmra.mrb[0].mxu0 %v68
    %v1258 = vpop.f32.mrb[0].mxu0
    %v1259 = vadd.f32 0.0, %v1258
    %v1260 = vpop.f32.mrb[0].mxu0
    %1261 = vmatprep.mubr.f32.mxu0 0.0
    %1262 = vmatmul.mubr.f32.gmra.mrb[0].mxu0 %v71
    %v1263 = vpop.f32.mrb[0].mxu0
    %v1264 = vadd.f32 0.0, %v1263
    %v1265 = vpop.f32.mrb[0].mxu0
    %1266 = vmatprep.mubr.f32.mxu0 0.0
    %1267 = vmatmul.mubr.f32.gmra.mrb[0].mxu0 %v74
    %v1268 = vpop.f32.mrb[0].mxu0
    %v1269 = vadd.f32 0.0, %v1268
    %v1270 = vpop.f32.mrb[0].mxu0
    %1271 = vmatprep.mubr.f32.mxu0 0.0
    %1272 = vmatmul.mubr.f32.gmra.mrb[0].mxu0 %v77
    %v1273 = vpop.f32.mrb[0].mxu0
    %v1274 = vadd.f32 0.0, %v1273
    %v1275 = vpop.f32.mrb[0].mxu0
    %1276 = vdwg.mxu0
    %v1277 = vmul.f32 %v1259, %v1178
    %v1278 = vmul.f32 %v1264, %v1179
    %v1279 = vsel %vm24, %v1277, 0.0
    %v1280 = vsel %vm24, %v1278, 0.0
    %v1281 = vadd.f32 %v1279, %v1280
    %v1282 = vrot.slane %v1281, 4
    %v1283 = vadd.f32 %v1281, %v1282
    %v1284 = vrot.slane %v1283, 2
    %v1285 = vadd.f32 %v1283, %v1284
    %v1286 = vrot.slane %v1285, 1
    %v1287 = vadd.f32 %v1285, %v1286
    %v1288 = vmul.f32 %v1269, %v1178
    %v1289 = vmul.f32 %v1274, %v1179
    %v1290 = vsel %vm24, %v1288, 0.0
    %v1291 = vsel %vm24, %v1289, 0.0
    %v1292 = vadd.f32 %v1290, %v1291
    %v1293 = vrot.slane %v1292, 4
    %v1294 = vadd.f32 %v1292, %v1293
    %v1295 = vrot.slane %v1294, 2
    %v1296 = vadd.f32 %v1294, %v1295
    %v1297 = vrot.slane %v1296, 1
    %v1298 = vadd.f32 %v1296, %v1297
    %v1299 = vadd.f32 %v1164, %v1287
    %1300 = vst.msk [vmem:[#allocation3 + $0x8] sm:$0x1] %vm187, %v1299
    %v1301 = vadd.f32 %v1165, %v1298
    %1302 = vst.msk [vmem:[#allocation3 + $0x18] sm:$0x1] %vm187, %v1301
    %v1303 = vld [vmem:[#allocation2 + $0x9] sm:$0x1]
    %v1304 = vld [vmem:[#allocation2 + $0x19] sm:$0x1]
    %v1305 = vadd.f32 %v1303, 9.0
    %v1306 = vadd.f32 %v10, %v1304
    %v1307 = vlaneseq
    %v1308 = vshrl.u32 %v1307, 7
    %v1309 = vsub.s32 0, %v1308
    %v1310 = vrot.slane %v1305, %v1309
    %v1311 = vsub.f32 %v1310, %v14
    %v1312 = vsub.f32 %v1310, %v15
    %v1313 = vand.u32 2147483647, %v1311
    %v1314 = vand.u32 2147483647, %v1312
    %v1315 = vsub.f32 1.0, %v1313
    %v1316 = vsub.f32 1.0, %v1314
    %v1317 = vmax.f32 %v1315, 0.0
    %v1318 = vmax.f32 %v1316, 0.0
    %v1319 = vlaneseq
    %v1320 = vshrl.u32 %v1319, 7
    %v1321 = vsub.s32 0, %v1320
    %v1322 = vrot.slane %v1306, %v1321
    %v1323 = vsub.f32 %v1322, %v14
    %v1324 = vsub.f32 %v1322, %v15
    %v1325 = vand.u32 2147483647, %v1323
    %v1326 = vand.u32 2147483647, %v1324
    %v1327 = vsub.f32 1.0, %v1325
    %v1328 = vsub.f32 1.0, %v1326
    %v1329 = vmax.f32 %v1327, 0.0
    %v1330 = vmax.f32 %v1328, 0.0
    %1331 = vmatprep.subr.mxu0 0.0
    %1332 = vmatpush1.msra.mxu0 %v1329
    %1333 = vmatprep.subr.mxu0 0.0
    %1334 = vmatpush1.msra.mxu0 %v1330
    %1335 = vmatprep.subr.mxu0 0.0
    %1336 = vmatpush1.msra.mxu0 0.0
    %1337 = vmatprep.subr.mxu0 0.0
    %1338 = vmatpush1.msra.mxu0 0.0
    %1339 = vmatprep.subr.mxu0 0.0
    %1340 = vmatpush1.msra.mxu0 0.0
    %1341 = vmatprep.subr.mxu0 0.0
    %1342 = vmatpush1.msra.mxu0 0.0
    %1343 = vmatprep.subr.mxu0 0.0
    %1344 = vmatpush1.msra.mxu0 0.0
    %1345 = vmatprep.subr.mxu0 0.0
    %1346 = vmatpush1.msra.mxu0 0.0
    %1347 = vmatprep.subr.mxu0 0.0
    %1348 = vmatpush1.msra.mxu0 0.0
    %1349 = vmatprep.subr.mxu0 0.0
    %1350 = vmatpush1.msra.mxu0 0.0
    %1351 = vmatprep.subr.mxu0 0.0
    %1352 = vmatpush1.msra.mxu0 0.0
    %1353 = vmatprep.subr.mxu0 0.0
    %1354 = vmatpush1.msra.mxu0 0.0
    %1355 = vmatprep.subr.mxu0 0.0
    %1356 = vmatpush1.msra.mxu0 0.0
    %1357 = vmatprep.subr.mxu0 0.0
    %1358 = vmatpush1.msra.mxu0 0.0
    %1359 = vmatprep.subr.mxu0 0.0
    %1360 = vmatpush1.msra.mxu0 0.0
    %1361 = vmatprep.subr.mxu0 0.0
    %1362 = vmatpush1.msra.mxu0 0.0
    %1363 = vmatprep.subr.mxu0 0.0
    %1364 = vmatpush1.msra.mxu0 0.0
    %1365 = vmatprep.subr.mxu0 0.0
    %1366 = vmatpush1.msra.mxu0 0.0
    %1367 = vmatprep.subr.mxu0 0.0
    %1368 = vmatpush1.msra.mxu0 0.0
    %1369 = vmatprep.subr.mxu0 0.0
    %1370 = vmatpush1.msra.mxu0 0.0
    %1371 = vmatprep.subr.mxu0 0.0
    %1372 = vmatpush1.msra.mxu0 0.0
    %1373 = vmatprep.subr.mxu0 0.0
    %1374 = vmatpush1.msra.mxu0 0.0
    %1375 = vmatprep.subr.mxu0 0.0
    %1376 = vmatpush1.msra.mxu0 0.0
    %1377 = vmatprep.subr.mxu0 0.0
    %1378 = vmatpush1.msra.mxu0 0.0
    %1379 = vmatprep.subr.mxu0 0.0
    %1380 = vmatpush1.msra.mxu0 0.0
    %1381 = vmatprep.subr.mxu0 0.0
    %1382 = vmatpush1.msra.mxu0 0.0
    %1383 = vmatprep.subr.mxu0 0.0
    %1384 = vmatpush1.msra.mxu0 0.0
    %1385 = vmatprep.subr.mxu0 0.0
    %1386 = vmatpush1.msra.mxu0 0.0
    %1387 = vmatprep.subr.mxu0 0.0
    %1388 = vmatpush1.msra.mxu0 0.0
    %1389 = vmatprep.subr.mxu0 0.0
    %1390 = vmatpush1.msra.mxu0 0.0
    %1391 = vmatprep.subr.mxu0 0.0
    %1392 = vmatpush1.msra.mxu0 0.0
    %1393 = vmatprep.subr.mxu0 0.0
    %1394 = vmatpush1.msra.mxu0 0.0
    %1395 = vmatprep.mubr.f32.mxu0 0.0
    %1396 = vmatmul.mubr.f32.gmra.mrb[0].mxu0 %v68
    %v1397 = vpop.f32.mrb[0].mxu0
    %v1398 = vadd.f32 0.0, %v1397
    %v1399 = vpop.f32.mrb[0].mxu0
    %1400 = vmatprep.mubr.f32.mxu0 0.0
    %1401 = vmatmul.mubr.f32.gmra.mrb[0].mxu0 %v71
    %v1402 = vpop.f32.mrb[0].mxu0
    %v1403 = vadd.f32 0.0, %v1402
    %v1404 = vpop.f32.mrb[0].mxu0
    %1405 = vmatprep.mubr.f32.mxu0 0.0
    %1406 = vmatmul.mubr.f32.gmra.mrb[0].mxu0 %v74
    %v1407 = vpop.f32.mrb[0].mxu0
    %v1408 = vadd.f32 0.0, %v1407
    %v1409 = vpop.f32.mrb[0].mxu0
    %1410 = vmatprep.mubr.f32.mxu0 0.0
    %1411 = vmatmul.mubr.f32.gmra.mrb[0].mxu0 %v77
    %v1412 = vpop.f32.mrb[0].mxu0
    %v1413 = vadd.f32 0.0, %v1412
    %v1414 = vpop.f32.mrb[0].mxu0
    %1415 = vdwg.mxu0
    %v1416 = vmul.f32 %v1398, %v1317
    %v1417 = vmul.f32 %v1403, %v1318
    %v1418 = vsel %vm24, %v1416, 0.0
    %v1419 = vsel %vm24, %v1417, 0.0
    %v1420 = vadd.f32 %v1418, %v1419
    %v1421 = vrot.slane %v1420, 4
    %v1422 = vadd.f32 %v1420, %v1421
    %v1423 = vrot.slane %v1422, 2
    %v1424 = vadd.f32 %v1422, %v1423
    %v1425 = vrot.slane %v1424, 1
    %v1426 = vadd.f32 %v1424, %v1425
    %v1427 = vmul.f32 %v1408, %v1317
    %v1428 = vmul.f32 %v1413, %v1318
    %v1429 = vsel %vm24, %v1427, 0.0
    %v1430 = vsel %vm24, %v1428, 0.0
    %v1431 = vadd.f32 %v1429, %v1430
    %v1432 = vrot.slane %v1431, 4
    %v1433 = vadd.f32 %v1431, %v1432
    %v1434 = vrot.slane %v1433, 2
    %v1435 = vadd.f32 %v1433, %v1434
    %v1436 = vrot.slane %v1435, 1
    %v1437 = vadd.f32 %v1435, %v1436
    %v1438 = vadd.f32 %v1303, %v1426
    %1439 = vst.msk [vmem:[#allocation3 + $0x9] sm:$0x1] %vm187, %v1438
    %v1440 = vadd.f32 %v1304, %v1437
    %1441 = vst.msk [vmem:[#allocation3 + $0x19] sm:$0x1] %vm187, %v1440
    %v1442 = vld [vmem:[#allocation2 + $0xa] sm:$0x1]
    %v1443 = vld [vmem:[#allocation2 + $0x1a] sm:$0x1]
    %v1444 = vadd.f32 %v1442, 10.0
    %v1445 = vadd.f32 %v10, %v1443
    %v1446 = vlaneseq
    %v1447 = vshrl.u32 %v1446, 7
    %v1448 = vsub.s32 0, %v1447
    %v1449 = vrot.slane %v1444, %v1448
    %v1450 = vsub.f32 %v1449, %v14
    %v1451 = vsub.f32 %v1449, %v15
    %v1452 = vand.u32 2147483647, %v1450
    %v1453 = vand.u32 2147483647, %v1451
    %v1454 = vsub.f32 1.0, %v1452
    %v1455 = vsub.f32 1.0, %v1453
    %v1456 = vmax.f32 %v1454, 0.0
    %v1457 = vmax.f32 %v1455, 0.0
    %v1458 = vlaneseq
    %v1459 = vshrl.u32 %v1458, 7
    %v1460 = vsub.s32 0, %v1459
    %v1461 = vrot.slane %v1445, %v1460
    %v1462 = vsub.f32 %v1461, %v14
    %v1463 = vsub.f32 %v1461, %v15
    %v1464 = vand.u32 2147483647, %v1462
    %v1465 = vand.u32 2147483647, %v1463
    %v1466 = vsub.f32 1.0, %v1464
    %v1467 = vsub.f32 1.0, %v1465
    %v1468 = vmax.f32 %v1466, 0.0
    %v1469 = vmax.f32 %v1467, 0.0
    %1470 = vmatprep.subr.mxu0 0.0
    %1471 = vmatpush1.msra.mxu0 %v1468
    %1472 = vmatprep.subr.mxu0 0.0
    %1473 = vmatpush1.msra.mxu0 %v1469
    %1474 = vmatprep.subr.mxu0 0.0
    %1475 = vmatpush1.msra.mxu0 0.0
    %1476 = vmatprep.subr.mxu0 0.0
    %1477 = vmatpush1.msra.mxu0 0.0
    %1478 = vmatprep.subr.mxu0 0.0
    %1479 = vmatpush1.msra.mxu0 0.0
    %1480 = vmatprep.subr.mxu0 0.0
    %1481 = vmatpush1.msra.mxu0 0.0
    %1482 = vmatprep.subr.mxu0 0.0
    %1483 = vmatpush1.msra.mxu0 0.0
    %1484 = vmatprep.subr.mxu0 0.0
    %1485 = vmatpush1.msra.mxu0 0.0
    %1486 = vmatprep.subr.mxu0 0.0
    %1487 = vmatpush1.msra.mxu0 0.0
    %1488 = vmatprep.subr.mxu0 0.0
    %1489 = vmatpush1.msra.mxu0 0.0
    %1490 = vmatprep.subr.mxu0 0.0
    %1491 = vmatpush1.msra.mxu0 0.0
    %1492 = vmatprep.subr.mxu0 0.0
    %1493 = vmatpush1.msra.mxu0 0.0
    %1494 = vmatprep.subr.mxu0 0.0
    %1495 = vmatpush1.msra.mxu0 0.0
    %1496 = vmatprep.subr.mxu0 0.0
    %1497 = vmatpush1.msra.mxu0 0.0
    %1498 = vmatprep.subr.mxu0 0.0
    %1499 = vmatpush1.msra.mxu0 0.0
    %1500 = vmatprep.subr.mxu0 0.0
    %1501 = vmatpush1.msra.mxu0 0.0
    %1502 = vmatprep.subr.mxu0 0.0
    %1503 = vmatpush1.msra.mxu0 0.0
    %1504 = vmatprep.subr.mxu0 0.0
    %1505 = vmatpush1.msra.mxu0 0.0
    %1506 = vmatprep.subr.mxu0 0.0
    %1507 = vmatpush1.msra.mxu0 0.0
    %1508 = vmatprep.subr.mxu0 0.0
    %1509 = vmatpush1.msra.mxu0 0.0
    %1510 = vmatprep.subr.mxu0 0.0
    %1511 = vmatpush1.msra.mxu0 0.0
    %1512 = vmatprep.subr.mxu0 0.0
    %1513 = vmatpush1.msra.mxu0 0.0
    %1514 = vmatprep.subr.mxu0 0.0
    %1515 = vmatpush1.msra.mxu0 0.0
    %1516 = vmatprep.subr.mxu0 0.0
    %1517 = vmatpush1.msra.mxu0 0.0
    %1518 = vmatprep.subr.mxu0 0.0
    %1519 = vmatpush1.msra.mxu0 0.0
    %1520 = vmatprep.subr.mxu0 0.0
    %1521 = vmatpush1.msra.mxu0 0.0
    %1522 = vmatprep.subr.mxu0 0.0
    %1523 = vmatpush1.msra.mxu0 0.0
    %1524 = vmatprep.subr.mxu0 0.0
    %1525 = vmatpush1.msra.mxu0 0.0
    %1526 = vmatprep.subr.mxu0 0.0
    %1527 = vmatpush1.msra.mxu0 0.0
    %1528 = vmatprep.subr.mxu0 0.0
    %1529 = vmatpush1.msra.mxu0 0.0
    %1530 = vmatprep.subr.mxu0 0.0
    %1531 = vmatpush1.msra.mxu0 0.0
    %1532 = vmatprep.subr.mxu0 0.0
    %1533 = vmatpush1.msra.mxu0 0.0
    %1534 = vmatprep.mubr.f32.mxu0 0.0
    %1535 = vmatmul.mubr.f32.gmra.mrb[0].mxu0 %v68
    %v1536 = vpop.f32.mrb[0].mxu0
    %v1537 = vadd.f32 0.0, %v1536
    %v1538 = vpop.f32.mrb[0].mxu0
    %1539 = vmatprep.mubr.f32.mxu0 0.0
    %1540 = vmatmul.mubr.f32.gmra.mrb[0].mxu0 %v71
    %v1541 = vpop.f32.mrb[0].mxu0
    %v1542 = vadd.f32 0.0, %v1541
    %v1543 = vpop.f32.mrb[0].mxu0
    %1544 = vmatprep.mubr.f32.mxu0 0.0
    %1545 = vmatmul.mubr.f32.gmra.mrb[0].mxu0 %v74
    %v1546 = vpop.f32.mrb[0].mxu0
    %v1547 = vadd.f32 0.0, %v1546
    %v1548 = vpop.f32.mrb[0].mxu0
    %1549 = vmatprep.mubr.f32.mxu0 0.0
    %1550 = vmatmul.mubr.f32.gmra.mrb[0].mxu0 %v77
    %v1551 = vpop.f32.mrb[0].mxu0
    %v1552 = vadd.f32 0.0, %v1551
    %v1553 = vpop.f32.mrb[0].mxu0
    %1554 = vdwg.mxu0
    %v1555 = vmul.f32 %v1537, %v1456
    %v1556 = vmul.f32 %v1542, %v1457
    %v1557 = vsel %vm24, %v1555, 0.0
    %v1558 = vsel %vm24, %v1556, 0.0
    %v1559 = vadd.f32 %v1557, %v1558
    %v1560 = vrot.slane %v1559, 4
    %v1561 = vadd.f32 %v1559, %v1560
    %v1562 = vrot.slane %v1561, 2
    %v1563 = vadd.f32 %v1561, %v1562
    %v1564 = vrot.slane %v1563, 1
    %v1565 = vadd.f32 %v1563, %v1564
    %v1566 = vmul.f32 %v1547, %v1456
    %v1567 = vmul.f32 %v1552, %v1457
    %v1568 = vsel %vm24, %v1566, 0.0
    %v1569 = vsel %vm24, %v1567, 0.0
    %v1570 = vadd.f32 %v1568, %v1569
    %v1571 = vrot.slane %v1570, 4
    %v1572 = vadd.f32 %v1570, %v1571
    %v1573 = vrot.slane %v1572, 2
    %v1574 = vadd.f32 %v1572, %v1573
    %v1575 = vrot.slane %v1574, 1
    %v1576 = vadd.f32 %v1574, %v1575
    %v1577 = vadd.f32 %v1442, %v1565
    %1578 = vst.msk [vmem:[#allocation3 + $0xa] sm:$0x1] %vm187, %v1577
    %v1579 = vadd.f32 %v1443, %v1576
    %1580 = vst.msk [vmem:[#allocation3 + $0x1a] sm:$0x1] %vm187, %v1579
    %v1581 = vld [vmem:[#allocation2 + $0xb] sm:$0x1]
    %v1582 = vld [vmem:[#allocation2 + $0x1b] sm:$0x1]
    %v1583 = vadd.f32 %v1581, 11.0
    %v1584 = vadd.f32 %v10, %v1582
    %v1585 = vlaneseq
    %v1586 = vshrl.u32 %v1585, 7
    %v1587 = vsub.s32 0, %v1586
    %v1588 = vrot.slane %v1583, %v1587
    %v1589 = vsub.f32 %v1588, %v14
    %v1590 = vsub.f32 %v1588, %v15
    %v1591 = vand.u32 2147483647, %v1589
    %v1592 = vand.u32 2147483647, %v1590
    %v1593 = vsub.f32 1.0, %v1591
    %v1594 = vsub.f32 1.0, %v1592
    %v1595 = vmax.f32 %v1593, 0.0
    %v1596 = vmax.f32 %v1594, 0.0
    %v1597 = vlaneseq
    %v1598 = vshrl.u32 %v1597, 7
    %v1599 = vsub.s32 0, %v1598
    %v1600 = vrot.slane %v1584, %v1599
    %v1601 = vsub.f32 %v1600, %v14
    %v1602 = vsub.f32 %v1600, %v15
    %v1603 = vand.u32 2147483647, %v1601
    %v1604 = vand.u32 2147483647, %v1602
    %v1605 = vsub.f32 1.0, %v1603
    %v1606 = vsub.f32 1.0, %v1604
    %v1607 = vmax.f32 %v1605, 0.0
    %v1608 = vmax.f32 %v1606, 0.0
    %1609 = vmatprep.subr.mxu0 0.0
    %1610 = vmatpush1.msra.mxu0 %v1607
    %1611 = vmatprep.subr.mxu0 0.0
    %1612 = vmatpush1.msra.mxu0 %v1608
    %1613 = vmatprep.subr.mxu0 0.0
    %1614 = vmatpush1.msra.mxu0 0.0
    %1615 = vmatprep.subr.mxu0 0.0
    %1616 = vmatpush1.msra.mxu0 0.0
    %1617 = vmatprep.subr.mxu0 0.0
    %1618 = vmatpush1.msra.mxu0 0.0
    %1619 = vmatprep.subr.mxu0 0.0
    %1620 = vmatpush1.msra.mxu0 0.0
    %1621 = vmatprep.subr.mxu0 0.0
    %1622 = vmatpush1.msra.mxu0 0.0
    %1623 = vmatprep.subr.mxu0 0.0
    %1624 = vmatpush1.msra.mxu0 0.0
    %1625 = vmatprep.subr.mxu0 0.0
    %1626 = vmatpush1.msra.mxu0 0.0
    %1627 = vmatprep.subr.mxu0 0.0
    %1628 = vmatpush1.msra.mxu0 0.0
    %1629 = vmatprep.subr.mxu0 0.0
    %1630 = vmatpush1.msra.mxu0 0.0
    %1631 = vmatprep.subr.mxu0 0.0
    %1632 = vmatpush1.msra.mxu0 0.0
    %1633 = vmatprep.subr.mxu0 0.0
    %1634 = vmatpush1.msra.mxu0 0.0
    %1635 = vmatprep.subr.mxu0 0.0
    %1636 = vmatpush1.msra.mxu0 0.0
    %1637 = vmatprep.subr.mxu0 0.0
    %1638 = vmatpush1.msra.mxu0 0.0
    %1639 = vmatprep.subr.mxu0 0.0
    %1640 = vmatpush1.msra.mxu0 0.0
    %1641 = vmatprep.subr.mxu0 0.0
    %1642 = vmatpush1.msra.mxu0 0.0
    %1643 = vmatprep.subr.mxu0 0.0
    %1644 = vmatpush1.msra.mxu0 0.0
    %1645 = vmatprep.subr.mxu0 0.0
    %1646 = vmatpush1.msra.mxu0 0.0
    %1647 = vmatprep.subr.mxu0 0.0
    %1648 = vmatpush1.msra.mxu0 0.0
    %1649 = vmatprep.subr.mxu0 0.0
    %1650 = vmatpush1.msra.mxu0 0.0
    %1651 = vmatprep.subr.mxu0 0.0
    %1652 = vmatpush1.msra.mxu0 0.0
    %1653 = vmatprep.subr.mxu0 0.0
    %1654 = vmatpush1.msra.mxu0 0.0
    %1655 = vmatprep.subr.mxu0 0.0
    %1656 = vmatpush1.msra.mxu0 0.0
    %1657 = vmatprep.subr.mxu0 0.0
    %1658 = vmatpush1.msra.mxu0 0.0
    %1659 = vmatprep.subr.mxu0 0.0
    %1660 = vmatpush1.msra.mxu0 0.0
    %1661 = vmatprep.subr.mxu0 0.0
    %1662 = vmatpush1.msra.mxu0 0.0
    %1663 = vmatprep.subr.mxu0 0.0
    %1664 = vmatpush1.msra.mxu0 0.0
    %1665 = vmatprep.subr.mxu0 0.0
    %1666 = vmatpush1.msra.mxu0 0.0
    %1667 = vmatprep.subr.mxu0 0.0
    %1668 = vmatpush1.msra.mxu0 0.0
    %1669 = vmatprep.subr.mxu0 0.0
    %1670 = vmatpush1.msra.mxu0 0.0
    %1671 = vmatprep.subr.mxu0 0.0
    %1672 = vmatpush1.msra.mxu0 0.0
    %1673 = vmatprep.mubr.f32.mxu0 0.0
    %1674 = vmatmul.mubr.f32.gmra.mrb[0].mxu0 %v68
    %v1675 = vpop.f32.mrb[0].mxu0
    %v1676 = vadd.f32 0.0, %v1675
    %v1677 = vpop.f32.mrb[0].mxu0
    %1678 = vmatprep.mubr.f32.mxu0 0.0
    %1679 = vmatmul.mubr.f32.gmra.mrb[0].mxu0 %v71
    %v1680 = vpop.f32.mrb[0].mxu0
    %v1681 = vadd.f32 0.0, %v1680
    %v1682 = vpop.f32.mrb[0].mxu0
    %1683 = vmatprep.mubr.f32.mxu0 0.0
    %1684 = vmatmul.mubr.f32.gmra.mrb[0].mxu0 %v74
    %v1685 = vpop.f32.mrb[0].mxu0
    %v1686 = vadd.f32 0.0, %v1685
    %v1687 = vpop.f32.mrb[0].mxu0
    %1688 = vmatprep.mubr.f32.mxu0 0.0
    %1689 = vmatmul.mubr.f32.gmra.mrb[0].mxu0 %v77
    %v1690 = vpop.f32.mrb[0].mxu0
    %v1691 = vadd.f32 0.0, %v1690
    %v1692 = vpop.f32.mrb[0].mxu0
    %1693 = vdwg.mxu0
    %v1694 = vmul.f32 %v1676, %v1595
    %v1695 = vmul.f32 %v1681, %v1596
    %v1696 = vsel %vm24, %v1694, 0.0
    %v1697 = vsel %vm24, %v1695, 0.0
    %v1698 = vadd.f32 %v1696, %v1697
    %v1699 = vrot.slane %v1698, 4
    %v1700 = vadd.f32 %v1698, %v1699
    %v1701 = vrot.slane %v1700, 2
    %v1702 = vadd.f32 %v1700, %v1701
    %v1703 = vrot.slane %v1702, 1
    %v1704 = vadd.f32 %v1702, %v1703
    %v1705 = vmul.f32 %v1686, %v1595
    %v1706 = vmul.f32 %v1691, %v1596
    %v1707 = vsel %vm24, %v1705, 0.0
    %v1708 = vsel %vm24, %v1706, 0.0
    %v1709 = vadd.f32 %v1707, %v1708
    %v1710 = vrot.slane %v1709, 4
    %v1711 = vadd.f32 %v1709, %v1710
    %v1712 = vrot.slane %v1711, 2
    %v1713 = vadd.f32 %v1711, %v1712
    %v1714 = vrot.slane %v1713, 1
    %v1715 = vadd.f32 %v1713, %v1714
    %v1716 = vadd.f32 %v1581, %v1704
    %1717 = vst.msk [vmem:[#allocation3 + $0xb] sm:$0x1] %vm187, %v1716
    %v1718 = vadd.f32 %v1582, %v1715
    %1719 = vst.msk [vmem:[#allocation3 + $0x1b] sm:$0x1] %vm187, %v1718
    %v1720 = vld [vmem:[#allocation2 + $0xc] sm:$0x1]
    %v1721 = vld [vmem:[#allocation2 + $0x1c] sm:$0x1]
    %v1722 = vadd.f32 %v1720, 12.0
    %v1723 = vadd.f32 %v10, %v1721
    %v1724 = vlaneseq
    %v1725 = vshrl.u32 %v1724, 7
    %v1726 = vsub.s32 0, %v1725
    %v1727 = vrot.slane %v1722, %v1726
    %v1728 = vsub.f32 %v1727, %v14
    %v1729 = vsub.f32 %v1727, %v15
    %v1730 = vand.u32 2147483647, %v1728
    %v1731 = vand.u32 2147483647, %v1729
    %v1732 = vsub.f32 1.0, %v1730
    %v1733 = vsub.f32 1.0, %v1731
    %v1734 = vmax.f32 %v1732, 0.0
    %v1735 = vmax.f32 %v1733, 0.0
    %v1736 = vlaneseq
    %v1737 = vshrl.u32 %v1736, 7
    %v1738 = vsub.s32 0, %v1737
    %v1739 = vrot.slane %v1723, %v1738
    %v1740 = vsub.f32 %v1739, %v14
    %v1741 = vsub.f32 %v1739, %v15
    %v1742 = vand.u32 2147483647, %v1740
    %v1743 = vand.u32 2147483647, %v1741
    %v1744 = vsub.f32 1.0, %v1742
    %v1745 = vsub.f32 1.0, %v1743
    %v1746 = vmax.f32 %v1744, 0.0
    %v1747 = vmax.f32 %v1745, 0.0
    %1748 = vmatprep.subr.mxu0 0.0
    %1749 = vmatpush1.msra.mxu0 %v1746
    %1750 = vmatprep.subr.mxu0 0.0
    %1751 = vmatpush1.msra.mxu0 %v1747
    %1752 = vmatprep.subr.mxu0 0.0
    %1753 = vmatpush1.msra.mxu0 0.0
    %1754 = vmatprep.subr.mxu0 0.0
    %1755 = vmatpush1.msra.mxu0 0.0
    %1756 = vmatprep.subr.mxu0 0.0
    %1757 = vmatpush1.msra.mxu0 0.0
    %1758 = vmatprep.subr.mxu0 0.0
    %1759 = vmatpush1.msra.mxu0 0.0
    %1760 = vmatprep.subr.mxu0 0.0
    %1761 = vmatpush1.msra.mxu0 0.0
    %1762 = vmatprep.subr.mxu0 0.0
    %1763 = vmatpush1.msra.mxu0 0.0
    %1764 = vmatprep.subr.mxu0 0.0
    %1765 = vmatpush1.msra.mxu0 0.0
    %1766 = vmatprep.subr.mxu0 0.0
    %1767 = vmatpush1.msra.mxu0 0.0
    %1768 = vmatprep.subr.mxu0 0.0
    %1769 = vmatpush1.msra.mxu0 0.0
    %1770 = vmatprep.subr.mxu0 0.0
    %1771 = vmatpush1.msra.mxu0 0.0
    %1772 = vmatprep.subr.mxu0 0.0
    %1773 = vmatpush1.msra.mxu0 0.0
    %1774 = vmatprep.subr.mxu0 0.0
    %1775 = vmatpush1.msra.mxu0 0.0
    %1776 = vmatprep.subr.mxu0 0.0
    %1777 = vmatpush1.msra.mxu0 0.0
    %1778 = vmatprep.subr.mxu0 0.0
    %1779 = vmatpush1.msra.mxu0 0.0
    %1780 = vmatprep.subr.mxu0 0.0
    %1781 = vmatpush1.msra.mxu0 0.0
    %1782 = vmatprep.subr.mxu0 0.0
    %1783 = vmatpush1.msra.mxu0 0.0
    %1784 = vmatprep.subr.mxu0 0.0
    %1785 = vmatpush1.msra.mxu0 0.0
    %1786 = vmatprep.subr.mxu0 0.0
    %1787 = vmatpush1.msra.mxu0 0.0
    %1788 = vmatprep.subr.mxu0 0.0
    %1789 = vmatpush1.msra.mxu0 0.0
    %1790 = vmatprep.subr.mxu0 0.0
    %1791 = vmatpush1.msra.mxu0 0.0
    %1792 = vmatprep.subr.mxu0 0.0
    %1793 = vmatpush1.msra.mxu0 0.0
    %1794 = vmatprep.subr.mxu0 0.0
    %1795 = vmatpush1.msra.mxu0 0.0
    %1796 = vmatprep.subr.mxu0 0.0
    %1797 = vmatpush1.msra.mxu0 0.0
    %1798 = vmatprep.subr.mxu0 0.0
    %1799 = vmatpush1.msra.mxu0 0.0
    %1800 = vmatprep.subr.mxu0 0.0
    %1801 = vmatpush1.msra.mxu0 0.0
    %1802 = vmatprep.subr.mxu0 0.0
    %1803 = vmatpush1.msra.mxu0 0.0
    %1804 = vmatprep.subr.mxu0 0.0
    %1805 = vmatpush1.msra.mxu0 0.0
    %1806 = vmatprep.subr.mxu0 0.0
    %1807 = vmatpush1.msra.mxu0 0.0
    %1808 = vmatprep.subr.mxu0 0.0
    %1809 = vmatpush1.msra.mxu0 0.0
    %1810 = vmatprep.subr.mxu0 0.0
    %1811 = vmatpush1.msra.mxu0 0.0
    %1812 = vmatprep.mubr.f32.mxu0 0.0
    %1813 = vmatmul.mubr.f32.gmra.mrb[0].mxu0 %v68
    %v1814 = vpop.f32.mrb[0].mxu0
    %v1815 = vadd.f32 0.0, %v1814
    %v1816 = vpop.f32.mrb[0].mxu0
    %1817 = vmatprep.mubr.f32.mxu0 0.0
    %1818 = vmatmul.mubr.f32.gmra.mrb[0].mxu0 %v71
    %v1819 = vpop.f32.mrb[0].mxu0
    %v1820 = vadd.f32 0.0, %v1819
    %v1821 = vpop.f32.mrb[0].mxu0
    %1822 = vmatprep.mubr.f32.mxu0 0.0
    %1823 = vmatmul.mubr.f32.gmra.mrb[0].mxu0 %v74
    %v1824 = vpop.f32.mrb[0].mxu0
    %v1825 = vadd.f32 0.0, %v1824
    %v1826 = vpop.f32.mrb[0].mxu0
    %1827 = vmatprep.mubr.f32.mxu0 0.0
    %1828 = vmatmul.mubr.f32.gmra.mrb[0].mxu0 %v77
    %v1829 = vpop.f32.mrb[0].mxu0
    %v1830 = vadd.f32 0.0, %v1829
    %v1831 = vpop.f32.mrb[0].mxu0
    %1832 = vdwg.mxu0
    %v1833 = vmul.f32 %v1815, %v1734
    %v1834 = vmul.f32 %v1820, %v1735
    %v1835 = vsel %vm24, %v1833, 0.0
    %v1836 = vsel %vm24, %v1834, 0.0
    %v1837 = vadd.f32 %v1835, %v1836
    %v1838 = vrot.slane %v1837, 4
    %v1839 = vadd.f32 %v1837, %v1838
    %v1840 = vrot.slane %v1839, 2
    %v1841 = vadd.f32 %v1839, %v1840
    %v1842 = vrot.slane %v1841, 1
    %v1843 = vadd.f32 %v1841, %v1842
    %v1844 = vmul.f32 %v1825, %v1734
    %v1845 = vmul.f32 %v1830, %v1735
    %v1846 = vsel %vm24, %v1844, 0.0
    %v1847 = vsel %vm24, %v1845, 0.0
    %v1848 = vadd.f32 %v1846, %v1847
    %v1849 = vrot.slane %v1848, 4
    %v1850 = vadd.f32 %v1848, %v1849
    %v1851 = vrot.slane %v1850, 2
    %v1852 = vadd.f32 %v1850, %v1851
    %v1853 = vrot.slane %v1852, 1
    %v1854 = vadd.f32 %v1852, %v1853
    %v1855 = vadd.f32 %v1720, %v1843
    %1856 = vst.msk [vmem:[#allocation3 + $0xc] sm:$0x1] %vm187, %v1855
    %v1857 = vadd.f32 %v1721, %v1854
    %1858 = vst.msk [vmem:[#allocation3 + $0x1c] sm:$0x1] %vm187, %v1857
    %v1859 = vld [vmem:[#allocation2 + $0xd] sm:$0x1]
    %v1860 = vld [vmem:[#allocation2 + $0x1d] sm:$0x1]
    %v1861 = vadd.f32 %v1859, 13.0
    %v1862 = vadd.f32 %v10, %v1860
    %v1863 = vlaneseq
    %v1864 = vshrl.u32 %v1863, 7
    %v1865 = vsub.s32 0, %v1864
    %v1866 = vrot.slane %v1861, %v1865
    %v1867 = vsub.f32 %v1866, %v14
    %v1868 = vsub.f32 %v1866, %v15
    %v1869 = vand.u32 2147483647, %v1867
    %v1870 = vand.u32 2147483647, %v1868
    %v1871 = vsub.f32 1.0, %v1869
    %v1872 = vsub.f32 1.0, %v1870
    %v1873 = vmax.f32 %v1871, 0.0
    %v1874 = vmax.f32 %v1872, 0.0
    %v1875 = vlaneseq
    %v1876 = vshrl.u32 %v1875, 7
    %v1877 = vsub.s32 0, %v1876
    %v1878 = vrot.slane %v1862, %v1877
    %v1879 = vsub.f32 %v1878, %v14
    %v1880 = vsub.f32 %v1878, %v15
    %v1881 = vand.u32 2147483647, %v1879
    %v1882 = vand.u32 2147483647, %v1880
    %v1883 = vsub.f32 1.0, %v1881
    %v1884 = vsub.f32 1.0, %v1882
    %v1885 = vmax.f32 %v1883, 0.0
    %v1886 = vmax.f32 %v1884, 0.0
    %1887 = vmatprep.subr.mxu0 0.0
    %1888 = vmatpush1.msra.mxu0 %v1885
    %1889 = vmatprep.subr.mxu0 0.0
    %1890 = vmatpush1.msra.mxu0 %v1886
    %1891 = vmatprep.subr.mxu0 0.0
    %1892 = vmatpush1.msra.mxu0 0.0
    %1893 = vmatprep.subr.mxu0 0.0
    %1894 = vmatpush1.msra.mxu0 0.0
    %1895 = vmatprep.subr.mxu0 0.0
    %1896 = vmatpush1.msra.mxu0 0.0
    %1897 = vmatprep.subr.mxu0 0.0
    %1898 = vmatpush1.msra.mxu0 0.0
    %1899 = vmatprep.subr.mxu0 0.0
    %1900 = vmatpush1.msra.mxu0 0.0
    %1901 = vmatprep.subr.mxu0 0.0
    %1902 = vmatpush1.msra.mxu0 0.0
    %1903 = vmatprep.subr.mxu0 0.0
    %1904 = vmatpush1.msra.mxu0 0.0
    %1905 = vmatprep.subr.mxu0 0.0
    %1906 = vmatpush1.msra.mxu0 0.0
    %1907 = vmatprep.subr.mxu0 0.0
    %1908 = vmatpush1.msra.mxu0 0.0
    %1909 = vmatprep.subr.mxu0 0.0
    %1910 = vmatpush1.msra.mxu0 0.0
    %1911 = vmatprep.subr.mxu0 0.0
    %1912 = vmatpush1.msra.mxu0 0.0
    %1913 = vmatprep.subr.mxu0 0.0
    %1914 = vmatpush1.msra.mxu0 0.0
    %1915 = vmatprep.subr.mxu0 0.0
    %1916 = vmatpush1.msra.mxu0 0.0
    %1917 = vmatprep.subr.mxu0 0.0
    %1918 = vmatpush1.msra.mxu0 0.0
    %1919 = vmatprep.subr.mxu0 0.0
    %1920 = vmatpush1.msra.mxu0 0.0
    %1921 = vmatprep.subr.mxu0 0.0
    %1922 = vmatpush1.msra.mxu0 0.0
    %1923 = vmatprep.subr.mxu0 0.0
    %1924 = vmatpush1.msra.mxu0 0.0
    %1925 = vmatprep.subr.mxu0 0.0
    %1926 = vmatpush1.msra.mxu0 0.0
    %1927 = vmatprep.subr.mxu0 0.0
    %1928 = vmatpush1.msra.mxu0 0.0
    %1929 = vmatprep.subr.mxu0 0.0
    %1930 = vmatpush1.msra.mxu0 0.0
    %1931 = vmatprep.subr.mxu0 0.0
    %1932 = vmatpush1.msra.mxu0 0.0
    %1933 = vmatprep.subr.mxu0 0.0
    %1934 = vmatpush1.msra.mxu0 0.0
    %1935 = vmatprep.subr.mxu0 0.0
    %1936 = vmatpush1.msra.mxu0 0.0
    %1937 = vmatprep.subr.mxu0 0.0
    %1938 = vmatpush1.msra.mxu0 0.0
    %1939 = vmatprep.subr.mxu0 0.0
    %1940 = vmatpush1.msra.mxu0 0.0
    %1941 = vmatprep.subr.mxu0 0.0
    %1942 = vmatpush1.msra.mxu0 0.0
    %1943 = vmatprep.subr.mxu0 0.0
    %1944 = vmatpush1.msra.mxu0 0.0
    %1945 = vmatprep.subr.mxu0 0.0
    %1946 = vmatpush1.msra.mxu0 0.0
    %1947 = vmatprep.subr.mxu0 0.0
    %1948 = vmatpush1.msra.mxu0 0.0
    %1949 = vmatprep.subr.mxu0 0.0
    %1950 = vmatpush1.msra.mxu0 0.0
    %1951 = vmatprep.mubr.f32.mxu0 0.0
    %1952 = vmatmul.mubr.f32.gmra.mrb[0].mxu0 %v68
    %v1953 = vpop.f32.mrb[0].mxu0
    %v1954 = vadd.f32 0.0, %v1953
    %v1955 = vpop.f32.mrb[0].mxu0
    %1956 = vmatprep.mubr.f32.mxu0 0.0
    %1957 = vmatmul.mubr.f32.gmra.mrb[0].mxu0 %v71
    %v1958 = vpop.f32.mrb[0].mxu0
    %v1959 = vadd.f32 0.0, %v1958
    %v1960 = vpop.f32.mrb[0].mxu0
    %1961 = vmatprep.mubr.f32.mxu0 0.0
    %1962 = vmatmul.mubr.f32.gmra.mrb[0].mxu0 %v74
    %v1963 = vpop.f32.mrb[0].mxu0
    %v1964 = vadd.f32 0.0, %v1963
    %v1965 = vpop.f32.mrb[0].mxu0
    %1966 = vmatprep.mubr.f32.mxu0 0.0
    %1967 = vmatmul.mubr.f32.gmra.mrb[0].mxu0 %v77
    %v1968 = vpop.f32.mrb[0].mxu0
    %v1969 = vadd.f32 0.0, %v1968
    %v1970 = vpop.f32.mrb[0].mxu0
    %1971 = vdwg.mxu0
    %v1972 = vmul.f32 %v1954, %v1873
    %v1973 = vmul.f32 %v1959, %v1874
    %v1974 = vsel %vm24, %v1972, 0.0
    %v1975 = vsel %vm24, %v1973, 0.0
    %v1976 = vadd.f32 %v1974, %v1975
    %v1977 = vrot.slane %v1976, 4
    %v1978 = vadd.f32 %v1976, %v1977
    %v1979 = vrot.slane %v1978, 2
    %v1980 = vadd.f32 %v1978, %v1979
    %v1981 = vrot.slane %v1980, 1
    %v1982 = vadd.f32 %v1980, %v1981
    %v1983 = vmul.f32 %v1964, %v1873
    %v1984 = vmul.f32 %v1969, %v1874
    %v1985 = vsel %vm24, %v1983, 0.0
    %v1986 = vsel %vm24, %v1984, 0.0
    %v1987 = vadd.f32 %v1985, %v1986
    %v1988 = vrot.slane %v1987, 4
    %v1989 = vadd.f32 %v1987, %v1988
    %v1990 = vrot.slane %v1989, 2
    %v1991 = vadd.f32 %v1989, %v1990
    %v1992 = vrot.slane %v1991, 1
    %v1993 = vadd.f32 %v1991, %v1992
    %v1994 = vadd.f32 %v1859, %v1982
    %1995 = vst.msk [vmem:[#allocation3 + $0xd] sm:$0x1] %vm187, %v1994
    %v1996 = vadd.f32 %v1860, %v1993
    %1997 = vst.msk [vmem:[#allocation3 + $0x1d] sm:$0x1] %vm187, %v1996
    %v1998 = vld [vmem:[#allocation2 + $0xe] sm:$0x1]
    %v1999 = vld [vmem:[#allocation2 + $0x1e] sm:$0x1]
    %v2000 = vadd.f32 %v1998, 14.0
    %v2001 = vadd.f32 %v10, %v1999
    %v2002 = vlaneseq
    %v2003 = vshrl.u32 %v2002, 7
    %v2004 = vsub.s32 0, %v2003
    %v2005 = vrot.slane %v2000, %v2004
    %v2006 = vsub.f32 %v2005, %v14
    %v2007 = vsub.f32 %v2005, %v15
    %v2008 = vand.u32 2147483647, %v2006
    %v2009 = vand.u32 2147483647, %v2007
    %v2010 = vsub.f32 1.0, %v2008
    %v2011 = vsub.f32 1.0, %v2009
    %v2012 = vmax.f32 %v2010, 0.0
    %v2013 = vmax.f32 %v2011, 0.0
    %v2014 = vlaneseq
    %v2015 = vshrl.u32 %v2014, 7
    %v2016 = vsub.s32 0, %v2015
    %v2017 = vrot.slane %v2001, %v2016
    %v2018 = vsub.f32 %v2017, %v14
    %v2019 = vsub.f32 %v2017, %v15
    %v2020 = vand.u32 2147483647, %v2018
    %v2021 = vand.u32 2147483647, %v2019
    %v2022 = vsub.f32 1.0, %v2020
    %v2023 = vsub.f32 1.0, %v2021
    %v2024 = vmax.f32 %v2022, 0.0
    %v2025 = vmax.f32 %v2023, 0.0
    %2026 = vmatprep.subr.mxu0 0.0
    %2027 = vmatpush1.msra.mxu0 %v2024
    %2028 = vmatprep.subr.mxu0 0.0
    %2029 = vmatpush1.msra.mxu0 %v2025
    %2030 = vmatprep.subr.mxu0 0.0
    %2031 = vmatpush1.msra.mxu0 0.0
    %2032 = vmatprep.subr.mxu0 0.0
    %2033 = vmatpush1.msra.mxu0 0.0
    %2034 = vmatprep.subr.mxu0 0.0
    %2035 = vmatpush1.msra.mxu0 0.0
    %2036 = vmatprep.subr.mxu0 0.0
    %2037 = vmatpush1.msra.mxu0 0.0
    %2038 = vmatprep.subr.mxu0 0.0
    %2039 = vmatpush1.msra.mxu0 0.0
    %2040 = vmatprep.subr.mxu0 0.0
    %2041 = vmatpush1.msra.mxu0 0.0
    %2042 = vmatprep.subr.mxu0 0.0
    %2043 = vmatpush1.msra.mxu0 0.0
    %2044 = vmatprep.subr.mxu0 0.0
    %2045 = vmatpush1.msra.mxu0 0.0
    %2046 = vmatprep.subr.mxu0 0.0
    %2047 = vmatpush1.msra.mxu0 0.0
    %2048 = vmatprep.subr.mxu0 0.0
    %2049 = vmatpush1.msra.mxu0 0.0
    %2050 = vmatprep.subr.mxu0 0.0
    %2051 = vmatpush1.msra.mxu0 0.0
    %2052 = vmatprep.subr.mxu0 0.0
    %2053 = vmatpush1.msra.mxu0 0.0
    %2054 = vmatprep.subr.mxu0 0.0
    %2055 = vmatpush1.msra.mxu0 0.0
    %2056 = vmatprep.subr.mxu0 0.0
    %2057 = vmatpush1.msra.mxu0 0.0
    %2058 = vmatprep.subr.mxu0 0.0
    %2059 = vmatpush1.msra.mxu0 0.0
    %2060 = vmatprep.subr.mxu0 0.0
    %2061 = vmatpush1.msra.mxu0 0.0
    %2062 = vmatprep.subr.mxu0 0.0
    %2063 = vmatpush1.msra.mxu0 0.0
    %2064 = vmatprep.subr.mxu0 0.0
    %2065 = vmatpush1.msra.mxu0 0.0
    %2066 = vmatprep.subr.mxu0 0.0
    %2067 = vmatpush1.msra.mxu0 0.0
    %2068 = vmatprep.subr.mxu0 0.0
    %2069 = vmatpush1.msra.mxu0 0.0
    %2070 = vmatprep.subr.mxu0 0.0
    %2071 = vmatpush1.msra.mxu0 0.0
    %2072 = vmatprep.subr.mxu0 0.0
    %2073 = vmatpush1.msra.mxu0 0.0
    %2074 = vmatprep.subr.mxu0 0.0
    %2075 = vmatpush1.msra.mxu0 0.0
    %2076 = vmatprep.subr.mxu0 0.0
    %2077 = vmatpush1.msra.mxu0 0.0
    %2078 = vmatprep.subr.mxu0 0.0
    %2079 = vmatpush1.msra.mxu0 0.0
    %2080 = vmatprep.subr.mxu0 0.0
    %2081 = vmatpush1.msra.mxu0 0.0
    %2082 = vmatprep.subr.mxu0 0.0
    %2083 = vmatpush1.msra.mxu0 0.0
    %2084 = vmatprep.subr.mxu0 0.0
    %2085 = vmatpush1.msra.mxu0 0.0
    %2086 = vmatprep.subr.mxu0 0.0
    %2087 = vmatpush1.msra.mxu0 0.0
    %2088 = vmatprep.subr.mxu0 0.0
    %2089 = vmatpush1.msra.mxu0 0.0
    %2090 = vmatprep.mubr.f32.mxu0 0.0
    %2091 = vmatmul.mubr.f32.gmra.mrb[0].mxu0 %v68
    %v2092 = vpop.f32.mrb[0].mxu0
    %v2093 = vadd.f32 0.0, %v2092
    %v2094 = vpop.f32.mrb[0].mxu0
    %2095 = vmatprep.mubr.f32.mxu0 0.0
    %2096 = vmatmul.mubr.f32.gmra.mrb[0].mxu0 %v71
    %v2097 = vpop.f32.mrb[0].mxu0
    %v2098 = vadd.f32 0.0, %v2097
    %v2099 = vpop.f32.mrb[0].mxu0
    %2100 = vmatprep.mubr.f32.mxu0 0.0
    %2101 = vmatmul.mubr.f32.gmra.mrb[0].mxu0 %v74
    %v2102 = vpop.f32.mrb[0].mxu0
    %v2103 = vadd.f32 0.0, %v2102
    %v2104 = vpop.f32.mrb[0].mxu0
    %2105 = vmatprep.mubr.f32.mxu0 0.0
    %2106 = vmatmul.mubr.f32.gmra.mrb[0].mxu0 %v77
    %v2107 = vpop.f32.mrb[0].mxu0
    %v2108 = vadd.f32 0.0, %v2107
    %v2109 = vpop.f32.mrb[0].mxu0
    %2110 = vdwg.mxu0
    %v2111 = vmul.f32 %v2093, %v2012
    %v2112 = vmul.f32 %v2098, %v2013
    %v2113 = vsel %vm24, %v2111, 0.0
    %v2114 = vsel %vm24, %v2112, 0.0
    %v2115 = vadd.f32 %v2113, %v2114
    %v2116 = vrot.slane %v2115, 4
    %v2117 = vadd.f32 %v2115, %v2116
    %v2118 = vrot.slane %v2117, 2
    %v2119 = vadd.f32 %v2117, %v2118
    %v2120 = vrot.slane %v2119, 1
    %v2121 = vadd.f32 %v2119, %v2120
    %v2122 = vmul.f32 %v2103, %v2012
    %v2123 = vmul.f32 %v2108, %v2013
    %v2124 = vsel %vm24, %v2122, 0.0
    %v2125 = vsel %vm24, %v2123, 0.0
    %v2126 = vadd.f32 %v2124, %v2125
    %v2127 = vrot.slane %v2126, 4
    %v2128 = vadd.f32 %v2126, %v2127
    %v2129 = vrot.slane %v2128, 2
    %v2130 = vadd.f32 %v2128, %v2129
    %v2131 = vrot.slane %v2130, 1
    %v2132 = vadd.f32 %v2130, %v2131
    %v2133 = vadd.f32 %v1998, %v2121
    %2134 = vst.msk [vmem:[#allocation3 + $0xe] sm:$0x1] %vm187, %v2133
    %v2135 = vadd.f32 %v1999, %v2132
    %2136 = vst.msk [vmem:[#allocation3 + $0x1e] sm:$0x1] %vm187, %v2135
    %v2137 = vld [vmem:[#allocation2 + $0xf] sm:$0x1]
    %v2138 = vld [vmem:[#allocation2 + $0x1f] sm:$0x1]
    %v2139 = vadd.f32 %v2137, 15.0
    %v2140 = vadd.f32 %v10, %v2138
    %v2141 = vlaneseq
    %v2142 = vshrl.u32 %v2141, 7
    %v2143 = vsub.s32 0, %v2142
    %v2144 = vrot.slane %v2139, %v2143
    %v2145 = vsub.f32 %v2144, %v14
    %v2146 = vsub.f32 %v2144, %v15
    %v2147 = vand.u32 2147483647, %v2145
    %v2148 = vand.u32 2147483647, %v2146
    %v2149 = vsub.f32 1.0, %v2147
    %v2150 = vsub.f32 1.0, %v2148
    %v2151 = vmax.f32 %v2149, 0.0
    %v2152 = vmax.f32 %v2150, 0.0
    %v2153 = vlaneseq
    %v2154 = vshrl.u32 %v2153, 7
    %v2155 = vsub.s32 0, %v2154
    %v2156 = vrot.slane %v2140, %v2155
    %v2157 = vsub.f32 %v2156, %v14
    %v2158 = vsub.f32 %v2156, %v15
    %v2159 = vand.u32 2147483647, %v2157
    %v2160 = vand.u32 2147483647, %v2158
    %v2161 = vsub.f32 1.0, %v2159
    %v2162 = vsub.f32 1.0, %v2160
    %v2163 = vmax.f32 %v2161, 0.0
    %v2164 = vmax.f32 %v2162, 0.0
    %2165 = vmatprep.subr.mxu0 0.0
    %2166 = vmatpush1.msra.mxu0 %v2163
    %2167 = vmatprep.subr.mxu0 0.0
    %2168 = vmatpush1.msra.mxu0 %v2164
    %2169 = vmatprep.subr.mxu0 0.0
    %2170 = vmatpush1.msra.mxu0 0.0
    %2171 = vmatprep.subr.mxu0 0.0
    %2172 = vmatpush1.msra.mxu0 0.0
    %2173 = vmatprep.subr.mxu0 0.0
    %2174 = vmatpush1.msra.mxu0 0.0
    %2175 = vmatprep.subr.mxu0 0.0
    %2176 = vmatpush1.msra.mxu0 0.0
    %2177 = vmatprep.subr.mxu0 0.0
    %2178 = vmatpush1.msra.mxu0 0.0
    %2179 = vmatprep.subr.mxu0 0.0
    %2180 = vmatpush1.msra.mxu0 0.0
    %2181 = vmatprep.subr.mxu0 0.0
    %2182 = vmatpush1.msra.mxu0 0.0
    %2183 = vmatprep.subr.mxu0 0.0
    %2184 = vmatpush1.msra.mxu0 0.0
    %2185 = vmatprep.subr.mxu0 0.0
    %2186 = vmatpush1.msra.mxu0 0.0
    %2187 = vmatprep.subr.mxu0 0.0
    %2188 = vmatpush1.msra.mxu0 0.0
    %2189 = vmatprep.subr.mxu0 0.0
    %2190 = vmatpush1.msra.mxu0 0.0
    %2191 = vmatprep.subr.mxu0 0.0
    %2192 = vmatpush1.msra.mxu0 0.0
    %2193 = vmatprep.subr.mxu0 0.0
    %2194 = vmatpush1.msra.mxu0 0.0
    %2195 = vmatprep.subr.mxu0 0.0
    %2196 = vmatpush1.msra.mxu0 0.0
    %2197 = vmatprep.subr.mxu0 0.0
    %2198 = vmatpush1.msra.mxu0 0.0
    %2199 = vmatprep.subr.mxu0 0.0
    %2200 = vmatpush1.msra.mxu0 0.0
    %2201 = vmatprep.subr.mxu0 0.0
    %2202 = vmatpush1.msra.mxu0 0.0
    %2203 = vmatprep.subr.mxu0 0.0
    %2204 = vmatpush1.msra.mxu0 0.0
    %2205 = vmatprep.subr.mxu0 0.0
    %2206 = vmatpush1.msra.mxu0 0.0
    %2207 = vmatprep.subr.mxu0 0.0
    %2208 = vmatpush1.msra.mxu0 0.0
    %2209 = vmatprep.subr.mxu0 0.0
    %2210 = vmatpush1.msra.mxu0 0.0
    %2211 = vmatprep.subr.mxu0 0.0
    %2212 = vmatpush1.msra.mxu0 0.0
    %2213 = vmatprep.subr.mxu0 0.0
    %2214 = vmatpush1.msra.mxu0 0.0
    %2215 = vmatprep.subr.mxu0 0.0
    %2216 = vmatpush1.msra.mxu0 0.0
    %2217 = vmatprep.subr.mxu0 0.0
    %2218 = vmatpush1.msra.mxu0 0.0
    %2219 = vmatprep.subr.mxu0 0.0
    %2220 = vmatpush1.msra.mxu0 0.0
    %2221 = vmatprep.subr.mxu0 0.0
    %2222 = vmatpush1.msra.mxu0 0.0
    %2223 = vmatprep.subr.mxu0 0.0
    %2224 = vmatpush1.msra.mxu0 0.0
    %2225 = vmatprep.subr.mxu0 0.0
    %2226 = vmatpush1.msra.mxu0 0.0
    %2227 = vmatprep.subr.mxu0 0.0
    %2228 = vmatpush1.msra.mxu0 0.0
    %2229 = vmatprep.mubr.f32.mxu0 0.0
    %2230 = vmatmul.mubr.f32.gmra.mrb[0].mxu0 %v68
    %v2231 = vpop.f32.mrb[0].mxu0
    %v2232 = vadd.f32 0.0, %v2231
    %v2233 = vpop.f32.mrb[0].mxu0
    %2234 = vmatprep.mubr.f32.mxu0 0.0
    %2235 = vmatmul.mubr.f32.gmra.mrb[0].mxu0 %v71
    %v2236 = vpop.f32.mrb[0].mxu0
    %v2237 = vadd.f32 0.0, %v2236
    %v2238 = vpop.f32.mrb[0].mxu0
    %2239 = vmatprep.mubr.f32.mxu0 0.0
    %2240 = vmatmul.mubr.f32.gmra.mrb[0].mxu0 %v74
    %v2241 = vpop.f32.mrb[0].mxu0
    %v2242 = vadd.f32 0.0, %v2241
    %v2243 = vpop.f32.mrb[0].mxu0
    %2244 = vmatprep.mubr.f32.mxu0 0.0
    %2245 = vmatmul.mubr.f32.gmra.mrb[0].mxu0 %v77
    %v2246 = vpop.f32.mrb[0].mxu0
    %v2247 = vadd.f32 0.0, %v2246
    %v2248 = vpop.f32.mrb[0].mxu0
    %2249 = vdwg.mxu0
    %v2250 = vmul.f32 %v2232, %v2151
    %v2251 = vmul.f32 %v2237, %v2152
    %v2252 = vsel %vm24, %v2250, 0.0
    %v2253 = vsel %vm24, %v2251, 0.0
    %v2254 = vadd.f32 %v2252, %v2253
    %v2255 = vrot.slane %v2254, 4
    %v2256 = vadd.f32 %v2254, %v2255
    %v2257 = vrot.slane %v2256, 2
    %v2258 = vadd.f32 %v2256, %v2257
    %v2259 = vrot.slane %v2258, 1
    %v2260 = vadd.f32 %v2258, %v2259
    %v2261 = vmul.f32 %v2242, %v2151
    %v2262 = vmul.f32 %v2247, %v2152
    %v2263 = vsel %vm24, %v2261, 0.0
    %v2264 = vsel %vm24, %v2262, 0.0
    %v2265 = vadd.f32 %v2263, %v2264
    %v2266 = vrot.slane %v2265, 4
    %v2267 = vadd.f32 %v2265, %v2266
    %v2268 = vrot.slane %v2267, 2
    %v2269 = vadd.f32 %v2267, %v2268
    %v2270 = vrot.slane %v2269, 1
    %v2271 = vadd.f32 %v2269, %v2270
    %v2272 = vadd.f32 %v2137, %v2260
    %2273 = vst.msk [vmem:[#allocation3 + $0xf] sm:$0x1] %vm187, %v2272
    %v2274 = vadd.f32 %v2138, %v2271
    %2275 = vst.msk [vmem:[#allocation3 + $0x1f] sm:$0x1] %vm187, %v2274
    %v2276 = vld [vmem:[#allocation3] sm:$0xff]
    %v2277 = vld [vmem:[#allocation3 + $0x8] sm:$0xff]
    %v2278 = vld [vmem:[#allocation3 + $0x10] sm:$0xff]
    %v2279 = vld [vmem:[#allocation3 + $0x18] sm:$0xff]
    %2280 = vst.msk [vmem:[#allocation2] sm:$0xff] %vm24, %v2276
    %2281 = vst.msk [vmem:[#allocation2 + $0x8] sm:$0xff] %vm24, %v2277
    %2282 = vst.msk [vmem:[#allocation2 + $0x10] sm:$0xff] %vm24, %v2278
    %2283 = vst.msk [vmem:[#allocation2 + $0x18] sm:$0xff] %vm24, %v2279
  $region10: #{tpu_custom_call.1} parent=0 // loop_footer
    %s34 = sadd.s32 1, %s30
  $region11: #{tpu_custom_call.1} parent=0 // loop_footer_branch
    %29 = sbr.rel target = $region7
  $region12: #{tpu_custom_call.1} parent=0 // loop_exit
    _
  %v2284 = vld [vmem:[#allocation2] sm:$0xff]
  %v2285 = vld [vmem:[#allocation2 + $0x8] sm:$0xff]
  %v2286 = vld [vmem:[#allocation2 + $0x10] sm:$0xff]
  %v2287 = vld [vmem:[#allocation2 + $0x18] sm:$0xff]
  %2288 = vst.msk [vmem:[%s1] sm:$0xff] %vm24, %v2284
  %2289 = vst.msk [vmem:[%s1 + $0x8] sm:$0xff] %vm24, %v2285
  %2290 = vst.msk [vmem:[%s1 + $0x10] sm:$0xff] %vm24, %v2286
  %2291 = vst.msk [vmem:[%s1 + $0x18] sm:$0xff] %vm24, %v2287
  %s2292 = scalar_lea.vmem %s0, 32
  %v2293 = vld [vmem:[%s2292] sm:$0xff]
  %v2294 = vld [vmem:[%s2292 + $0x8] sm:$0xff]
  %v2295 = vld [vmem:[%s2292 + $0x10] sm:$0xff]
  %v2296 = vld [vmem:[%s2292 + $0x18] sm:$0xff]
  %v2297 = vmul.f32 %v2293, 0.0625
  %v2298 = vmul.f32 %v2294, 0.0625
  %v2299 = vmul.f32 %v2295, 0.0625
  %v2300 = vmul.f32 %v2296, 0.0625
  %2301 = vst.msk [vmem:[#allocation2] sm:$0xff] %vm24, %v2297
  %2302 = vst.msk [vmem:[#allocation2 + $0x8] sm:$0xff] %vm24, %v2298
  %2303 = vst.msk [vmem:[#allocation2 + $0x10] sm:$0xff] %vm24, %v2299
  %2304 = vst.msk [vmem:[#allocation2 + $0x18] sm:$0xff] %vm24, %v2300
  loop: start=0, step=1, limit=4
  $region13: #{tpu_custom_call.1} parent=0 // loop_pre_header
    _
  $region14: #{tpu_custom_call.1} parent=0 // loop_header
    %s2306 = sphi 0, %s2310
    %p2307 = scmp.ge.s32.totalorder %s2306, 4
  $region15: #{tpu_custom_call.1} parent=0 // loop_header_branch
    %2309 = sbr.rel (%p2307) target = $region19
  $region16: #{tpu_custom_call.1} parent=0 // loop_body
    %v2311 = vld [vmem:[#allocation2] sm:$0xff]
    %v2312 = vld [vmem:[#allocation2 + $0x8] sm:$0xff]
    %v2313 = vld [vmem:[#allocation2 + $0x10] sm:$0xff]
    %v2314 = vld [vmem:[#allocation2 + $0x18] sm:$0xff]
    %v2315 = vld [vmem:[#allocation2] sm:$0x1]
    %v2316 = vld [vmem:[#allocation2 + $0x10] sm:$0x1]
    %v2317 = vadd.f32 %v2315, 0.0
    %v2318 = vadd.f32 %v10, %v2316
    %v2319 = vlaneseq
    %v2320 = vshrl.u32 %v2319, 7
    %v2321 = vsub.s32 0, %v2320
    %v2322 = vrot.slane %v2317, %v2321
    %v2323 = vsub.f32 %v2322, %v14
    %v2324 = vsub.f32 %v2322, %v15
    %v2325 = vand.u32 2147483647, %v2323
    %v2326 = vand.u32 2147483647, %v2324
    %v2327 = vsub.f32 1.0, %v2325
    %v2328 = vsub.f32 1.0, %v2326
    %v2329 = vmax.f32 %v2327, 0.0
    %v2330 = vmax.f32 %v2328, 0.0
    %v2331 = vlaneseq
    %v2332 = vshrl.u32 %v2331, 7
    %v2333 = vsub.s32 0, %v2332
    %v2334 = vrot.slane %v2318, %v2333
    %v2335 = vsub.f32 %v2334, %v14
    %v2336 = vsub.f32 %v2334, %v15
    %v2337 = vand.u32 2147483647, %v2335
    %v2338 = vand.u32 2147483647, %v2336
    %v2339 = vsub.f32 1.0, %v2337
    %v2340 = vsub.f32 1.0, %v2338
    %v2341 = vmax.f32 %v2339, 0.0
    %v2342 = vmax.f32 %v2340, 0.0
    %v2344 = vsel %vm24, %v2311, 0
    %v2347 = vsel %vm24, %v2312, 0
    %v2350 = vsel %vm24, %v2313, 0
    %v2353 = vsel %vm24, %v2314, 0
    %2355 = vmatprep.subr.mxu0 0.0
    %2356 = vmatpush1.msra.mxu0 %v2341
    %2357 = vmatprep.subr.mxu0 0.0
    %2358 = vmatpush1.msra.mxu0 %v2342
    %2359 = vmatprep.subr.mxu0 0.0
    %2360 = vmatpush1.msra.mxu0 0.0
    %2361 = vmatprep.subr.mxu0 0.0
    %2362 = vmatpush1.msra.mxu0 0.0
    %2363 = vmatprep.subr.mxu0 0.0
    %2364 = vmatpush1.msra.mxu0 0.0
    %2365 = vmatprep.subr.mxu0 0.0
    %2366 = vmatpush1.msra.mxu0 0.0
    %2367 = vmatprep.subr.mxu0 0.0
    %2368 = vmatpush1.msra.mxu0 0.0
    %2369 = vmatprep.subr.mxu0 0.0
    %2370 = vmatpush1.msra.mxu0 0.0
    %2371 = vmatprep.subr.mxu0 0.0
    %2372 = vmatpush1.msra.mxu0 0.0
    %2373 = vmatprep.subr.mxu0 0.0
    %2374 = vmatpush1.msra.mxu0 0.0
    %2375 = vmatprep.subr.mxu0 0.0
    %2376 = vmatpush1.msra.mxu0 0.0
    %2377 = vmatprep.subr.mxu0 0.0
    %2378 = vmatpush1.msra.mxu0 0.0
    %2379 = vmatprep.subr.mxu0 0.0
    %2380 = vmatpush1.msra.mxu0 0.0
    %2381 = vmatprep.subr.mxu0 0.0
    %2382 = vmatpush1.msra.mxu0 0.0
    %2383 = vmatprep.subr.mxu0 0.0
    %2384 = vmatpush1.msra.mxu0 0.0
    %2385 = vmatprep.subr.mxu0 0.0
    %2386 = vmatpush1.msra.mxu0 0.0
    %2387 = vmatprep.subr.mxu0 0.0
    %2388 = vmatpush1.msra.mxu0 0.0
    %2389 = vmatprep.subr.mxu0 0.0
    %2390 = vmatpush1.msra.mxu0 0.0
    %2391 = vmatprep.subr.mxu0 0.0
    %2392 = vmatpush1.msra.mxu0 0.0
    %2393 = vmatprep.subr.mxu0 0.0
    %2394 = vmatpush1.msra.mxu0 0.0
    %2395 = vmatprep.subr.mxu0 0.0
    %2396 = vmatpush1.msra.mxu0 0.0
    %2397 = vmatprep.subr.mxu0 0.0
    %2398 = vmatpush1.msra.mxu0 0.0
    %2399 = vmatprep.subr.mxu0 0.0
    %2400 = vmatpush1.msra.mxu0 0.0
    %2401 = vmatprep.subr.mxu0 0.0
    %2402 = vmatpush1.msra.mxu0 0.0
    %2403 = vmatprep.subr.mxu0 0.0
    %2404 = vmatpush1.msra.mxu0 0.0
    %2405 = vmatprep.subr.mxu0 0.0
    %2406 = vmatpush1.msra.mxu0 0.0
    %2407 = vmatprep.subr.mxu0 0.0
    %2408 = vmatpush1.msra.mxu0 0.0
    %2409 = vmatprep.subr.mxu0 0.0
    %2410 = vmatpush1.msra.mxu0 0.0
    %2411 = vmatprep.subr.mxu0 0.0
    %2412 = vmatpush1.msra.mxu0 0.0
    %2413 = vmatprep.subr.mxu0 0.0
    %2414 = vmatpush1.msra.mxu0 0.0
    %2415 = vmatprep.subr.mxu0 0.0
    %2416 = vmatpush1.msra.mxu0 0.0
    %2417 = vmatprep.subr.mxu0 0.0
    %2418 = vmatpush1.msra.mxu0 0.0
    %2419 = vmatprep.mubr.f32.mxu0 0.0
    %2420 = vmatmul.mubr.f32.gmra.mrb[0].mxu0 %v2344
    %v2421 = vpop.f32.mrb[0].mxu0
    %v2422 = vadd.f32 0.0, %v2421
    %v2423 = vpop.f32.mrb[0].mxu0
    %2424 = vmatprep.mubr.f32.mxu0 0.0
    %2425 = vmatmul.mubr.f32.gmra.mrb[0].mxu0 %v2347
    %v2426 = vpop.f32.mrb[0].mxu0
    %v2427 = vadd.f32 0.0, %v2426
    %v2428 = vpop.f32.mrb[0].mxu0
    %2429 = vmatprep.mubr.f32.mxu0 0.0
    %2430 = vmatmul.mubr.f32.gmra.mrb[0].mxu0 %v2350
    %v2431 = vpop.f32.mrb[0].mxu0
    %v2432 = vadd.f32 0.0, %v2431
    %v2433 = vpop.f32.mrb[0].mxu0
    %2434 = vmatprep.mubr.f32.mxu0 0.0
    %2435 = vmatmul.mubr.f32.gmra.mrb[0].mxu0 %v2353
    %v2436 = vpop.f32.mrb[0].mxu0
    %v2437 = vadd.f32 0.0, %v2436
    %v2438 = vpop.f32.mrb[0].mxu0
    %2439 = vdwg.mxu0
    %v2440 = vmul.f32 %v2422, %v2329
    %v2441 = vmul.f32 %v2427, %v2330
    %v2442 = vsel %vm24, %v2440, 0.0
    %v2443 = vsel %vm24, %v2441, 0.0
    %v2444 = vadd.f32 %v2442, %v2443
    %v2445 = vrot.slane %v2444, 4
    %v2446 = vadd.f32 %v2444, %v2445
    %v2447 = vrot.slane %v2446, 2
    %v2448 = vadd.f32 %v2446, %v2447
    %v2449 = vrot.slane %v2448, 1
    %v2450 = vadd.f32 %v2448, %v2449
    %v2451 = vmul.f32 %v2432, %v2329
    %v2452 = vmul.f32 %v2437, %v2330
    %v2453 = vsel %vm24, %v2451, 0.0
    %v2454 = vsel %vm24, %v2452, 0.0
    %v2455 = vadd.f32 %v2453, %v2454
    %v2456 = vrot.slane %v2455, 4
    %v2457 = vadd.f32 %v2455, %v2456
    %v2458 = vrot.slane %v2457, 2
    %v2459 = vadd.f32 %v2457, %v2458
    %v2460 = vrot.slane %v2459, 1
    %v2461 = vadd.f32 %v2459, %v2460
    %v2462 = vadd.f32 %v2315, %v2450
    %vm2463 = vcmask 122880
    %2464 = vst.msk [vmem:[#allocation3] sm:$0x1] %vm2463, %v2462
    %v2465 = vadd.f32 %v2316, %v2461
    %2466 = vst.msk [vmem:[#allocation3 + $0x10] sm:$0x1] %vm2463, %v2465
    %v2467 = vld [vmem:[#allocation2 + $0x1] sm:$0x1]
    %v2468 = vld [vmem:[#allocation2 + $0x11] sm:$0x1]
    %v2469 = vadd.f32 %v2467, 1.0
    %v2470 = vadd.f32 %v10, %v2468
    %v2471 = vlaneseq
    %v2472 = vshrl.u32 %v2471, 7
    %v2473 = vsub.s32 0, %v2472
    %v2474 = vrot.slane %v2469, %v2473
    %v2475 = vsub.f32 %v2474, %v14
    %v2476 = vsub.f32 %v2474, %v15
    %v2477 = vand.u32 2147483647, %v2475
    %v2478 = vand.u32 2147483647, %v2476
    %v2479 = vsub.f32 1.0, %v2477
    %v2480 = vsub.f32 1.0, %v2478
    %v2481 = vmax.f32 %v2479, 0.0
    %v2482 = vmax.f32 %v2480, 0.0
    %v2483 = vlaneseq
    %v2484 = vshrl.u32 %v2483, 7
    %v2485 = vsub.s32 0, %v2484
    %v2486 = vrot.slane %v2470, %v2485
    %v2487 = vsub.f32 %v2486, %v14
    %v2488 = vsub.f32 %v2486, %v15
    %v2489 = vand.u32 2147483647, %v2487
    %v2490 = vand.u32 2147483647, %v2488
    %v2491 = vsub.f32 1.0, %v2489
    %v2492 = vsub.f32 1.0, %v2490
    %v2493 = vmax.f32 %v2491, 0.0
    %v2494 = vmax.f32 %v2492, 0.0
    %2495 = vmatprep.subr.mxu0 0.0
    %2496 = vmatpush1.msra.mxu0 %v2493
    %2497 = vmatprep.subr.mxu0 0.0
    %2498 = vmatpush1.msra.mxu0 %v2494
    %2499 = vmatprep.subr.mxu0 0.0
    %2500 = vmatpush1.msra.mxu0 0.0
    %2501 = vmatprep.subr.mxu0 0.0
    %2502 = vmatpush1.msra.mxu0 0.0
    %2503 = vmatprep.subr.mxu0 0.0
    %2504 = vmatpush1.msra.mxu0 0.0
    %2505 = vmatprep.subr.mxu0 0.0
    %2506 = vmatpush1.msra.mxu0 0.0
    %2507 = vmatprep.subr.mxu0 0.0
    %2508 = vmatpush1.msra.mxu0 0.0
    %2509 = vmatprep.subr.mxu0 0.0
    %2510 = vmatpush1.msra.mxu0 0.0
    %2511 = vmatprep.subr.mxu0 0.0
    %2512 = vmatpush1.msra.mxu0 0.0
    %2513 = vmatprep.subr.mxu0 0.0
    %2514 = vmatpush1.msra.mxu0 0.0
    %2515 = vmatprep.subr.mxu0 0.0
    %2516 = vmatpush1.msra.mxu0 0.0
    %2517 = vmatprep.subr.mxu0 0.0
    %2518 = vmatpush1.msra.mxu0 0.0
    %2519 = vmatprep.subr.mxu0 0.0
    %2520 = vmatpush1.msra.mxu0 0.0
    %2521 = vmatprep.subr.mxu0 0.0
    %2522 = vmatpush1.msra.mxu0 0.0
    %2523 = vmatprep.subr.mxu0 0.0
    %2524 = vmatpush1.msra.mxu0 0.0
    %2525 = vmatprep.subr.mxu0 0.0
    %2526 = vmatpush1.msra.mxu0 0.0
    %2527 = vmatprep.subr.mxu0 0.0
    %2528 = vmatpush1.msra.mxu0 0.0
    %2529 = vmatprep.subr.mxu0 0.0
    %2530 = vmatpush1.msra.mxu0 0.0
    %2531 = vmatprep.subr.mxu0 0.0
    %2532 = vmatpush1.msra.mxu0 0.0
    %2533 = vmatprep.subr.mxu0 0.0
    %2534 = vmatpush1.msra.mxu0 0.0
    %2535 = vmatprep.subr.mxu0 0.0
    %2536 = vmatpush1.msra.mxu0 0.0
    %2537 = vmatprep.subr.mxu0 0.0
    %2538 = vmatpush1.msra.mxu0 0.0
    %2539 = vmatprep.subr.mxu0 0.0
    %2540 = vmatpush1.msra.mxu0 0.0
    %2541 = vmatprep.subr.mxu0 0.0
    %2542 = vmatpush1.msra.mxu0 0.0
    %2543 = vmatprep.subr.mxu0 0.0
    %2544 = vmatpush1.msra.mxu0 0.0
    %2545 = vmatprep.subr.mxu0 0.0
    %2546 = vmatpush1.msra.mxu0 0.0
    %2547 = vmatprep.subr.mxu0 0.0
    %2548 = vmatpush1.msra.mxu0 0.0
    %2549 = vmatprep.subr.mxu0 0.0
    %2550 = vmatpush1.msra.mxu0 0.0
    %2551 = vmatprep.subr.mxu0 0.0
    %2552 = vmatpush1.msra.mxu0 0.0
    %2553 = vmatprep.subr.mxu0 0.0
    %2554 = vmatpush1.msra.mxu0 0.0
    %2555 = vmatprep.subr.mxu0 0.0
    %2556 = vmatpush1.msra.mxu0 0.0
    %2557 = vmatprep.subr.mxu0 0.0
    %2558 = vmatpush1.msra.mxu0 0.0
    %2559 = vmatprep.mubr.f32.mxu0 0.0
    %2560 = vmatmul.mubr.f32.gmra.mrb[0].mxu0 %v2344
    %v2561 = vpop.f32.mrb[0].mxu0
    %v2562 = vadd.f32 0.0, %v2561
    %v2563 = vpop.f32.mrb[0].mxu0
    %2564 = vmatprep.mubr.f32.mxu0 0.0
    %2565 = vmatmul.mubr.f32.gmra.mrb[0].mxu0 %v2347
    %v2566 = vpop.f32.mrb[0].mxu0
    %v2567 = vadd.f32 0.0, %v2566
    %v2568 = vpop.f32.mrb[0].mxu0
    %2569 = vmatprep.mubr.f32.mxu0 0.0
    %2570 = vmatmul.mubr.f32.gmra.mrb[0].mxu0 %v2350
    %v2571 = vpop.f32.mrb[0].mxu0
    %v2572 = vadd.f32 0.0, %v2571
    %v2573 = vpop.f32.mrb[0].mxu0
    %2574 = vmatprep.mubr.f32.mxu0 0.0
    %2575 = vmatmul.mubr.f32.gmra.mrb[0].mxu0 %v2353
    %v2576 = vpop.f32.mrb[0].mxu0
    %v2577 = vadd.f32 0.0, %v2576
    %v2578 = vpop.f32.mrb[0].mxu0
    %2579 = vdwg.mxu0
    %v2580 = vmul.f32 %v2562, %v2481
    %v2581 = vmul.f32 %v2567, %v2482
    %v2582 = vsel %vm24, %v2580, 0.0
    %v2583 = vsel %vm24, %v2581, 0.0
    %v2584 = vadd.f32 %v2582, %v2583
    %v2585 = vrot.slane %v2584, 4
    %v2586 = vadd.f32 %v2584, %v2585
    %v2587 = vrot.slane %v2586, 2
    %v2588 = vadd.f32 %v2586, %v2587
    %v2589 = vrot.slane %v2588, 1
    %v2590 = vadd.f32 %v2588, %v2589
    %v2591 = vmul.f32 %v2572, %v2481
    %v2592 = vmul.f32 %v2577, %v2482
    %v2593 = vsel %vm24, %v2591, 0.0
    %v2594 = vsel %vm24, %v2592, 0.0
    %v2595 = vadd.f32 %v2593, %v2594
    %v2596 = vrot.slane %v2595, 4
    %v2597 = vadd.f32 %v2595, %v2596
    %v2598 = vrot.slane %v2597, 2
    %v2599 = vadd.f32 %v2597, %v2598
    %v2600 = vrot.slane %v2599, 1
    %v2601 = vadd.f32 %v2599, %v2600
    %v2602 = vadd.f32 %v2467, %v2590
    %2603 = vst.msk [vmem:[#allocation3 + $0x1] sm:$0x1] %vm2463, %v2602
    %v2604 = vadd.f32 %v2468, %v2601
    %2605 = vst.msk [vmem:[#allocation3 + $0x11] sm:$0x1] %vm2463, %v2604
    %v2606 = vld [vmem:[#allocation2 + $0x2] sm:$0x1]
    %v2607 = vld [vmem:[#allocation2 + $0x12] sm:$0x1]
    %v2608 = vadd.f32 %v2606, 2.0
    %v2609 = vadd.f32 %v10, %v2607
    %v2610 = vlaneseq
    %v2611 = vshrl.u32 %v2610, 7
    %v2612 = vsub.s32 0, %v2611
    %v2613 = vrot.slane %v2608, %v2612
    %v2614 = vsub.f32 %v2613, %v14
    %v2615 = vsub.f32 %v2613, %v15
    %v2616 = vand.u32 2147483647, %v2614
    %v2617 = vand.u32 2147483647, %v2615
    %v2618 = vsub.f32 1.0, %v2616
    %v2619 = vsub.f32 1.0, %v2617
    %v2620 = vmax.f32 %v2618, 0.0
    %v2621 = vmax.f32 %v2619, 0.0
    %v2622 = vlaneseq
    %v2623 = vshrl.u32 %v2622, 7
    %v2624 = vsub.s32 0, %v2623
    %v2625 = vrot.slane %v2609, %v2624
    %v2626 = vsub.f32 %v2625, %v14
    %v2627 = vsub.f32 %v2625, %v15
    %v2628 = vand.u32 2147483647, %v2626
    %v2629 = vand.u32 2147483647, %v2627
    %v2630 = vsub.f32 1.0, %v2628
    %v2631 = vsub.f32 1.0, %v2629
    %v2632 = vmax.f32 %v2630, 0.0
    %v2633 = vmax.f32 %v2631, 0.0
    %2634 = vmatprep.subr.mxu0 0.0
    %2635 = vmatpush1.msra.mxu0 %v2632
    %2636 = vmatprep.subr.mxu0 0.0
    %2637 = vmatpush1.msra.mxu0 %v2633
    %2638 = vmatprep.subr.mxu0 0.0
    %2639 = vmatpush1.msra.mxu0 0.0
    %2640 = vmatprep.subr.mxu0 0.0
    %2641 = vmatpush1.msra.mxu0 0.0
    %2642 = vmatprep.subr.mxu0 0.0
    %2643 = vmatpush1.msra.mxu0 0.0
    %2644 = vmatprep.subr.mxu0 0.0
    %2645 = vmatpush1.msra.mxu0 0.0
    %2646 = vmatprep.subr.mxu0 0.0
    %2647 = vmatpush1.msra.mxu0 0.0
    %2648 = vmatprep.subr.mxu0 0.0
    %2649 = vmatpush1.msra.mxu0 0.0
    %2650 = vmatprep.subr.mxu0 0.0
    %2651 = vmatpush1.msra.mxu0 0.0
    %2652 = vmatprep.subr.mxu0 0.0
    %2653 = vmatpush1.msra.mxu0 0.0
    %2654 = vmatprep.subr.mxu0 0.0
    %2655 = vmatpush1.msra.mxu0 0.0
    %2656 = vmatprep.subr.mxu0 0.0
    %2657 = vmatpush1.msra.mxu0 0.0
    %2658 = vmatprep.subr.mxu0 0.0
    %2659 = vmatpush1.msra.mxu0 0.0
    %2660 = vmatprep.subr.mxu0 0.0
    %2661 = vmatpush1.msra.mxu0 0.0
    %2662 = vmatprep.subr.mxu0 0.0
    %2663 = vmatpush1.msra.mxu0 0.0
    %2664 = vmatprep.subr.mxu0 0.0
    %2665 = vmatpush1.msra.mxu0 0.0
    %2666 = vmatprep.subr.mxu0 0.0
    %2667 = vmatpush1.msra.mxu0 0.0
    %2668 = vmatprep.subr.mxu0 0.0
    %2669 = vmatpush1.msra.mxu0 0.0
    %2670 = vmatprep.subr.mxu0 0.0
    %2671 = vmatpush1.msra.mxu0 0.0
    %2672 = vmatprep.subr.mxu0 0.0
    %2673 = vmatpush1.msra.mxu0 0.0
    %2674 = vmatprep.subr.mxu0 0.0
    %2675 = vmatpush1.msra.mxu0 0.0
    %2676 = vmatprep.subr.mxu0 0.0
    %2677 = vmatpush1.msra.mxu0 0.0
    %2678 = vmatprep.subr.mxu0 0.0
    %2679 = vmatpush1.msra.mxu0 0.0
    %2680 = vmatprep.subr.mxu0 0.0
    %2681 = vmatpush1.msra.mxu0 0.0
    %2682 = vmatprep.subr.mxu0 0.0
    %2683 = vmatpush1.msra.mxu0 0.0
    %2684 = vmatprep.subr.mxu0 0.0
    %2685 = vmatpush1.msra.mxu0 0.0
    %2686 = vmatprep.subr.mxu0 0.0
    %2687 = vmatpush1.msra.mxu0 0.0
    %2688 = vmatprep.subr.mxu0 0.0
    %2689 = vmatpush1.msra.mxu0 0.0
    %2690 = vmatprep.subr.mxu0 0.0
    %2691 = vmatpush1.msra.mxu0 0.0
    %2692 = vmatprep.subr.mxu0 0.0
    %2693 = vmatpush1.msra.mxu0 0.0
    %2694 = vmatprep.subr.mxu0 0.0
    %2695 = vmatpush1.msra.mxu0 0.0
    %2696 = vmatprep.subr.mxu0 0.0
    %2697 = vmatpush1.msra.mxu0 0.0
    %2698 = vmatprep.mubr.f32.mxu0 0.0
    %2699 = vmatmul.mubr.f32.gmra.mrb[0].mxu0 %v2344
    %v2700 = vpop.f32.mrb[0].mxu0
    %v2701 = vadd.f32 0.0, %v2700
    %v2702 = vpop.f32.mrb[0].mxu0
    %2703 = vmatprep.mubr.f32.mxu0 0.0
    %2704 = vmatmul.mubr.f32.gmra.mrb[0].mxu0 %v2347
    %v2705 = vpop.f32.mrb[0].mxu0
    %v2706 = vadd.f32 0.0, %v2705
    %v2707 = vpop.f32.mrb[0].mxu0
    %2708 = vmatprep.mubr.f32.mxu0 0.0
    %2709 = vmatmul.mubr.f32.gmra.mrb[0].mxu0 %v2350
    %v2710 = vpop.f32.mrb[0].mxu0
    %v2711 = vadd.f32 0.0, %v2710
    %v2712 = vpop.f32.mrb[0].mxu0
    %2713 = vmatprep.mubr.f32.mxu0 0.0
    %2714 = vmatmul.mubr.f32.gmra.mrb[0].mxu0 %v2353
    %v2715 = vpop.f32.mrb[0].mxu0
    %v2716 = vadd.f32 0.0, %v2715
    %v2717 = vpop.f32.mrb[0].mxu0
    %2718 = vdwg.mxu0
    %v2719 = vmul.f32 %v2701, %v2620
    %v2720 = vmul.f32 %v2706, %v2621
    %v2721 = vsel %vm24, %v2719, 0.0
    %v2722 = vsel %vm24, %v2720, 0.0
    %v2723 = vadd.f32 %v2721, %v2722
    %v2724 = vrot.slane %v2723, 4
    %v2725 = vadd.f32 %v2723, %v2724
    %v2726 = vrot.slane %v2725, 2
    %v2727 = vadd.f32 %v2725, %v2726
    %v2728 = vrot.slane %v2727, 1
    %v2729 = vadd.f32 %v2727, %v2728
    %v2730 = vmul.f32 %v2711, %v2620
    %v2731 = vmul.f32 %v2716, %v2621
    %v2732 = vsel %vm24, %v2730, 0.0
    %v2733 = vsel %vm24, %v2731, 0.0
    %v2734 = vadd.f32 %v2732, %v2733
    %v2735 = vrot.slane %v2734, 4
    %v2736 = vadd.f32 %v2734, %v2735
    %v2737 = vrot.slane %v2736, 2
    %v2738 = vadd.f32 %v2736, %v2737
    %v2739 = vrot.slane %v2738, 1
    %v2740 = vadd.f32 %v2738, %v2739
    %v2741 = vadd.f32 %v2606, %v2729
    %2742 = vst.msk [vmem:[#allocation3 + $0x2] sm:$0x1] %vm2463, %v2741
    %v2743 = vadd.f32 %v2607, %v2740
    %2744 = vst.msk [vmem:[#allocation3 + $0x12] sm:$0x1] %vm2463, %v2743
    %v2745 = vld [vmem:[#allocation2 + $0x3] sm:$0x1]
    %v2746 = vld [vmem:[#allocation2 + $0x13] sm:$0x1]
    %v2747 = vadd.f32 %v2745, 3.0
    %v2748 = vadd.f32 %v10, %v2746
    %v2749 = vlaneseq
    %v2750 = vshrl.u32 %v2749, 7
    %v2751 = vsub.s32 0, %v2750
    %v2752 = vrot.slane %v2747, %v2751
    %v2753 = vsub.f32 %v2752, %v14
    %v2754 = vsub.f32 %v2752, %v15
    %v2755 = vand.u32 2147483647, %v2753
    %v2756 = vand.u32 2147483647, %v2754
    %v2757 = vsub.f32 1.0, %v2755
    %v2758 = vsub.f32 1.0, %v2756
    %v2759 = vmax.f32 %v2757, 0.0
    %v2760 = vmax.f32 %v2758, 0.0
    %v2761 = vlaneseq
    %v2762 = vshrl.u32 %v2761, 7
    %v2763 = vsub.s32 0, %v2762
    %v2764 = vrot.slane %v2748, %v2763
    %v2765 = vsub.f32 %v2764, %v14
    %v2766 = vsub.f32 %v2764, %v15
    %v2767 = vand.u32 2147483647, %v2765
    %v2768 = vand.u32 2147483647, %v2766
    %v2769 = vsub.f32 1.0, %v2767
    %v2770 = vsub.f32 1.0, %v2768
    %v2771 = vmax.f32 %v2769, 0.0
    %v2772 = vmax.f32 %v2770, 0.0
    %2773 = vmatprep.subr.mxu0 0.0
    %2774 = vmatpush1.msra.mxu0 %v2771
    %2775 = vmatprep.subr.mxu0 0.0
    %2776 = vmatpush1.msra.mxu0 %v2772
    %2777 = vmatprep.subr.mxu0 0.0
    %2778 = vmatpush1.msra.mxu0 0.0
    %2779 = vmatprep.subr.mxu0 0.0
    %2780 = vmatpush1.msra.mxu0 0.0
    %2781 = vmatprep.subr.mxu0 0.0
    %2782 = vmatpush1.msra.mxu0 0.0
    %2783 = vmatprep.subr.mxu0 0.0
    %2784 = vmatpush1.msra.mxu0 0.0
    %2785 = vmatprep.subr.mxu0 0.0
    %2786 = vmatpush1.msra.mxu0 0.0
    %2787 = vmatprep.subr.mxu0 0.0
    %2788 = vmatpush1.msra.mxu0 0.0
    %2789 = vmatprep.subr.mxu0 0.0
    %2790 = vmatpush1.msra.mxu0 0.0
    %2791 = vmatprep.subr.mxu0 0.0
    %2792 = vmatpush1.msra.mxu0 0.0
    %2793 = vmatprep.subr.mxu0 0.0
    %2794 = vmatpush1.msra.mxu0 0.0
    %2795 = vmatprep.subr.mxu0 0.0
    %2796 = vmatpush1.msra.mxu0 0.0
    %2797 = vmatprep.subr.mxu0 0.0
    %2798 = vmatpush1.msra.mxu0 0.0
    %2799 = vmatprep.subr.mxu0 0.0
    %2800 = vmatpush1.msra.mxu0 0.0
    %2801 = vmatprep.subr.mxu0 0.0
    %2802 = vmatpush1.msra.mxu0 0.0
    %2803 = vmatprep.subr.mxu0 0.0
    %2804 = vmatpush1.msra.mxu0 0.0
    %2805 = vmatprep.subr.mxu0 0.0
    %2806 = vmatpush1.msra.mxu0 0.0
    %2807 = vmatprep.subr.mxu0 0.0
    %2808 = vmatpush1.msra.mxu0 0.0
    %2809 = vmatprep.subr.mxu0 0.0
    %2810 = vmatpush1.msra.mxu0 0.0
    %2811 = vmatprep.subr.mxu0 0.0
    %2812 = vmatpush1.msra.mxu0 0.0
    %2813 = vmatprep.subr.mxu0 0.0
    %2814 = vmatpush1.msra.mxu0 0.0
    %2815 = vmatprep.subr.mxu0 0.0
    %2816 = vmatpush1.msra.mxu0 0.0
    %2817 = vmatprep.subr.mxu0 0.0
    %2818 = vmatpush1.msra.mxu0 0.0
    %2819 = vmatprep.subr.mxu0 0.0
    %2820 = vmatpush1.msra.mxu0 0.0
    %2821 = vmatprep.subr.mxu0 0.0
    %2822 = vmatpush1.msra.mxu0 0.0
    %2823 = vmatprep.subr.mxu0 0.0
    %2824 = vmatpush1.msra.mxu0 0.0
    %2825 = vmatprep.subr.mxu0 0.0
    %2826 = vmatpush1.msra.mxu0 0.0
    %2827 = vmatprep.subr.mxu0 0.0
    %2828 = vmatpush1.msra.mxu0 0.0
    %2829 = vmatprep.subr.mxu0 0.0
    %2830 = vmatpush1.msra.mxu0 0.0
    %2831 = vmatprep.subr.mxu0 0.0
    %2832 = vmatpush1.msra.mxu0 0.0
    %2833 = vmatprep.subr.mxu0 0.0
    %2834 = vmatpush1.msra.mxu0 0.0
    %2835 = vmatprep.subr.mxu0 0.0
    %2836 = vmatpush1.msra.mxu0 0.0
    %2837 = vmatprep.mubr.f32.mxu0 0.0
    %2838 = vmatmul.mubr.f32.gmra.mrb[0].mxu0 %v2344
    %v2839 = vpop.f32.mrb[0].mxu0
    %v2840 = vadd.f32 0.0, %v2839
    %v2841 = vpop.f32.mrb[0].mxu0
    %2842 = vmatprep.mubr.f32.mxu0 0.0
    %2843 = vmatmul.mubr.f32.gmra.mrb[0].mxu0 %v2347
    %v2844 = vpop.f32.mrb[0].mxu0
    %v2845 = vadd.f32 0.0, %v2844
    %v2846 = vpop.f32.mrb[0].mxu0
    %2847 = vmatprep.mubr.f32.mxu0 0.0
    %2848 = vmatmul.mubr.f32.gmra.mrb[0].mxu0 %v2350
    %v2849 = vpop.f32.mrb[0].mxu0
    %v2850 = vadd.f32 0.0, %v2849
    %v2851 = vpop.f32.mrb[0].mxu0
    %2852 = vmatprep.mubr.f32.mxu0 0.0
    %2853 = vmatmul.mubr.f32.gmra.mrb[0].mxu0 %v2353
    %v2854 = vpop.f32.mrb[0].mxu0
    %v2855 = vadd.f32 0.0, %v2854
    %v2856 = vpop.f32.mrb[0].mxu0
    %2857 = vdwg.mxu0
    %v2858 = vmul.f32 %v2840, %v2759
    %v2859 = vmul.f32 %v2845, %v2760
    %v2860 = vsel %vm24, %v2858, 0.0
    %v2861 = vsel %vm24, %v2859, 0.0
    %v2862 = vadd.f32 %v2860, %v2861
    %v2863 = vrot.slane %v2862, 4
    %v2864 = vadd.f32 %v2862, %v2863
    %v2865 = vrot.slane %v2864, 2
    %v2866 = vadd.f32 %v2864, %v2865
    %v2867 = vrot.slane %v2866, 1
    %v2868 = vadd.f32 %v2866, %v2867
    %v2869 = vmul.f32 %v2850, %v2759
    %v2870 = vmul.f32 %v2855, %v2760
    %v2871 = vsel %vm24, %v2869, 0.0
    %v2872 = vsel %vm24, %v2870, 0.0
    %v2873 = vadd.f32 %v2871, %v2872
    %v2874 = vrot.slane %v2873, 4
    %v2875 = vadd.f32 %v2873, %v2874
    %v2876 = vrot.slane %v2875, 2
    %v2877 = vadd.f32 %v2875, %v2876
    %v2878 = vrot.slane %v2877, 1
    %v2879 = vadd.f32 %v2877, %v2878
    %v2880 = vadd.f32 %v2745, %v2868
    %2881 = vst.msk [vmem:[#allocation3 + $0x3] sm:$0x1] %vm2463, %v2880
    %v2882 = vadd.f32 %v2746, %v2879
    %2883 = vst.msk [vmem:[#allocation3 + $0x13] sm:$0x1] %vm2463, %v2882
    %v2884 = vld [vmem:[#allocation2 + $0x4] sm:$0x1]
    %v2885 = vld [vmem:[#allocation2 + $0x14] sm:$0x1]
    %v2886 = vadd.f32 %v2884, 4.0
    %v2887 = vadd.f32 %v10, %v2885
    %v2888 = vlaneseq
    %v2889 = vshrl.u32 %v2888, 7
    %v2890 = vsub.s32 0, %v2889
    %v2891 = vrot.slane %v2886, %v2890
    %v2892 = vsub.f32 %v2891, %v14
    %v2893 = vsub.f32 %v2891, %v15
    %v2894 = vand.u32 2147483647, %v2892
    %v2895 = vand.u32 2147483647, %v2893
    %v2896 = vsub.f32 1.0, %v2894
    %v2897 = vsub.f32 1.0, %v2895
    %v2898 = vmax.f32 %v2896, 0.0
    %v2899 = vmax.f32 %v2897, 0.0
    %v2900 = vlaneseq
    %v2901 = vshrl.u32 %v2900, 7
    %v2902 = vsub.s32 0, %v2901
    %v2903 = vrot.slane %v2887, %v2902
    %v2904 = vsub.f32 %v2903, %v14
    %v2905 = vsub.f32 %v2903, %v15
    %v2906 = vand.u32 2147483647, %v2904
    %v2907 = vand.u32 2147483647, %v2905
    %v2908 = vsub.f32 1.0, %v2906
    %v2909 = vsub.f32 1.0, %v2907
    %v2910 = vmax.f32 %v2908, 0.0
    %v2911 = vmax.f32 %v2909, 0.0
    %2912 = vmatprep.subr.mxu0 0.0
    %2913 = vmatpush1.msra.mxu0 %v2910
    %2914 = vmatprep.subr.mxu0 0.0
    %2915 = vmatpush1.msra.mxu0 %v2911
    %2916 = vmatprep.subr.mxu0 0.0
    %2917 = vmatpush1.msra.mxu0 0.0
    %2918 = vmatprep.subr.mxu0 0.0
    %2919 = vmatpush1.msra.mxu0 0.0
    %2920 = vmatprep.subr.mxu0 0.0
    %2921 = vmatpush1.msra.mxu0 0.0
    %2922 = vmatprep.subr.mxu0 0.0
    %2923 = vmatpush1.msra.mxu0 0.0
    %2924 = vmatprep.subr.mxu0 0.0
    %2925 = vmatpush1.msra.mxu0 0.0
    %2926 = vmatprep.subr.mxu0 0.0
    %2927 = vmatpush1.msra.mxu0 0.0
    %2928 = vmatprep.subr.mxu0 0.0
    %2929 = vmatpush1.msra.mxu0 0.0
    %2930 = vmatprep.subr.mxu0 0.0
    %2931 = vmatpush1.msra.mxu0 0.0
    %2932 = vmatprep.subr.mxu0 0.0
    %2933 = vmatpush1.msra.mxu0 0.0
    %2934 = vmatprep.subr.mxu0 0.0
    %2935 = vmatpush1.msra.mxu0 0.0
    %2936 = vmatprep.subr.mxu0 0.0
    %2937 = vmatpush1.msra.mxu0 0.0
    %2938 = vmatprep.subr.mxu0 0.0
    %2939 = vmatpush1.msra.mxu0 0.0
    %2940 = vmatprep.subr.mxu0 0.0
    %2941 = vmatpush1.msra.mxu0 0.0
    %2942 = vmatprep.subr.mxu0 0.0
    %2943 = vmatpush1.msra.mxu0 0.0
    %2944 = vmatprep.subr.mxu0 0.0
    %2945 = vmatpush1.msra.mxu0 0.0
    %2946 = vmatprep.subr.mxu0 0.0
    %2947 = vmatpush1.msra.mxu0 0.0
    %2948 = vmatprep.subr.mxu0 0.0
    %2949 = vmatpush1.msra.mxu0 0.0
    %2950 = vmatprep.subr.mxu0 0.0
    %2951 = vmatpush1.msra.mxu0 0.0
    %2952 = vmatprep.subr.mxu0 0.0
    %2953 = vmatpush1.msra.mxu0 0.0
    %2954 = vmatprep.subr.mxu0 0.0
    %2955 = vmatpush1.msra.mxu0 0.0
    %2956 = vmatprep.subr.mxu0 0.0
    %2957 = vmatpush1.msra.mxu0 0.0
    %2958 = vmatprep.subr.mxu0 0.0
    %2959 = vmatpush1.msra.mxu0 0.0
    %2960 = vmatprep.subr.mxu0 0.0
    %2961 = vmatpush1.msra.mxu0 0.0
    %2962 = vmatprep.subr.mxu0 0.0
    %2963 = vmatpush1.msra.mxu0 0.0
    %2964 = vmatprep.subr.mxu0 0.0
    %2965 = vmatpush1.msra.mxu0 0.0
    %2966 = vmatprep.subr.mxu0 0.0
    %2967 = vmatpush1.msra.mxu0 0.0
    %2968 = vmatprep.subr.mxu0 0.0
    %2969 = vmatpush1.msra.mxu0 0.0
    %2970 = vmatprep.subr.mxu0 0.0
    %2971 = vmatpush1.msra.mxu0 0.0
    %2972 = vmatprep.subr.mxu0 0.0
    %2973 = vmatpush1.msra.mxu0 0.0
    %2974 = vmatprep.subr.mxu0 0.0
    %2975 = vmatpush1.msra.mxu0 0.0
    %2976 = vmatprep.mubr.f32.mxu0 0.0
    %2977 = vmatmul.mubr.f32.gmra.mrb[0].mxu0 %v2344
    %v2978 = vpop.f32.mrb[0].mxu0
    %v2979 = vadd.f32 0.0, %v2978
    %v2980 = vpop.f32.mrb[0].mxu0
    %2981 = vmatprep.mubr.f32.mxu0 0.0
    %2982 = vmatmul.mubr.f32.gmra.mrb[0].mxu0 %v2347
    %v2983 = vpop.f32.mrb[0].mxu0
    %v2984 = vadd.f32 0.0, %v2983
    %v2985 = vpop.f32.mrb[0].mxu0
    %2986 = vmatprep.mubr.f32.mxu0 0.0
    %2987 = vmatmul.mubr.f32.gmra.mrb[0].mxu0 %v2350
    %v2988 = vpop.f32.mrb[0].mxu0
    %v2989 = vadd.f32 0.0, %v2988
    %v2990 = vpop.f32.mrb[0].mxu0
    %2991 = vmatprep.mubr.f32.mxu0 0.0
    %2992 = vmatmul.mubr.f32.gmra.mrb[0].mxu0 %v2353
    %v2993 = vpop.f32.mrb[0].mxu0
    %v2994 = vadd.f32 0.0, %v2993
    %v2995 = vpop.f32.mrb[0].mxu0
    %2996 = vdwg.mxu0
    %v2997 = vmul.f32 %v2979, %v2898
    %v2998 = vmul.f32 %v2984, %v2899
    %v2999 = vsel %vm24, %v2997, 0.0
    %v3000 = vsel %vm24, %v2998, 0.0
    %v3001 = vadd.f32 %v2999, %v3000
    %v3002 = vrot.slane %v3001, 4
    %v3003 = vadd.f32 %v3001, %v3002
    %v3004 = vrot.slane %v3003, 2
    %v3005 = vadd.f32 %v3003, %v3004
    %v3006 = vrot.slane %v3005, 1
    %v3007 = vadd.f32 %v3005, %v3006
    %v3008 = vmul.f32 %v2989, %v2898
    %v3009 = vmul.f32 %v2994, %v2899
    %v3010 = vsel %vm24, %v3008, 0.0
    %v3011 = vsel %vm24, %v3009, 0.0
    %v3012 = vadd.f32 %v3010, %v3011
    %v3013 = vrot.slane %v3012, 4
    %v3014 = vadd.f32 %v3012, %v3013
    %v3015 = vrot.slane %v3014, 2
    %v3016 = vadd.f32 %v3014, %v3015
    %v3017 = vrot.slane %v3016, 1
    %v3018 = vadd.f32 %v3016, %v3017
    %v3019 = vadd.f32 %v2884, %v3007
    %3020 = vst.msk [vmem:[#allocation3 + $0x4] sm:$0x1] %vm2463, %v3019
    %v3021 = vadd.f32 %v2885, %v3018
    %3022 = vst.msk [vmem:[#allocation3 + $0x14] sm:$0x1] %vm2463, %v3021
    %v3023 = vld [vmem:[#allocation2 + $0x5] sm:$0x1]
    %v3024 = vld [vmem:[#allocation2 + $0x15] sm:$0x1]
    %v3025 = vadd.f32 %v3023, 5.0
    %v3026 = vadd.f32 %v10, %v3024
    %v3027 = vlaneseq
    %v3028 = vshrl.u32 %v3027, 7
    %v3029 = vsub.s32 0, %v3028
    %v3030 = vrot.slane %v3025, %v3029
    %v3031 = vsub.f32 %v3030, %v14
    %v3032 = vsub.f32 %v3030, %v15
    %v3033 = vand.u32 2147483647, %v3031
    %v3034 = vand.u32 2147483647, %v3032
    %v3035 = vsub.f32 1.0, %v3033
    %v3036 = vsub.f32 1.0, %v3034
    %v3037 = vmax.f32 %v3035, 0.0
    %v3038 = vmax.f32 %v3036, 0.0
    %v3039 = vlaneseq
    %v3040 = vshrl.u32 %v3039, 7
    %v3041 = vsub.s32 0, %v3040
    %v3042 = vrot.slane %v3026, %v3041
    %v3043 = vsub.f32 %v3042, %v14
    %v3044 = vsub.f32 %v3042, %v15
    %v3045 = vand.u32 2147483647, %v3043
    %v3046 = vand.u32 2147483647, %v3044
    %v3047 = vsub.f32 1.0, %v3045
    %v3048 = vsub.f32 1.0, %v3046
    %v3049 = vmax.f32 %v3047, 0.0
    %v3050 = vmax.f32 %v3048, 0.0
    %3051 = vmatprep.subr.mxu0 0.0
    %3052 = vmatpush1.msra.mxu0 %v3049
    %3053 = vmatprep.subr.mxu0 0.0
    %3054 = vmatpush1.msra.mxu0 %v3050
    %3055 = vmatprep.subr.mxu0 0.0
    %3056 = vmatpush1.msra.mxu0 0.0
    %3057 = vmatprep.subr.mxu0 0.0
    %3058 = vmatpush1.msra.mxu0 0.0
    %3059 = vmatprep.subr.mxu0 0.0
    %3060 = vmatpush1.msra.mxu0 0.0
    %3061 = vmatprep.subr.mxu0 0.0
    %3062 = vmatpush1.msra.mxu0 0.0
    %3063 = vmatprep.subr.mxu0 0.0
    %3064 = vmatpush1.msra.mxu0 0.0
    %3065 = vmatprep.subr.mxu0 0.0
    %3066 = vmatpush1.msra.mxu0 0.0
    %3067 = vmatprep.subr.mxu0 0.0
    %3068 = vmatpush1.msra.mxu0 0.0
    %3069 = vmatprep.subr.mxu0 0.0
    %3070 = vmatpush1.msra.mxu0 0.0
    %3071 = vmatprep.subr.mxu0 0.0
    %3072 = vmatpush1.msra.mxu0 0.0
    %3073 = vmatprep.subr.mxu0 0.0
    %3074 = vmatpush1.msra.mxu0 0.0
    %3075 = vmatprep.subr.mxu0 0.0
    %3076 = vmatpush1.msra.mxu0 0.0
    %3077 = vmatprep.subr.mxu0 0.0
    %3078 = vmatpush1.msra.mxu0 0.0
    %3079 = vmatprep.subr.mxu0 0.0
    %3080 = vmatpush1.msra.mxu0 0.0
    %3081 = vmatprep.subr.mxu0 0.0
    %3082 = vmatpush1.msra.mxu0 0.0
    %3083 = vmatprep.subr.mxu0 0.0
    %3084 = vmatpush1.msra.mxu0 0.0
    %3085 = vmatprep.subr.mxu0 0.0
    %3086 = vmatpush1.msra.mxu0 0.0
    %3087 = vmatprep.subr.mxu0 0.0
    %3088 = vmatpush1.msra.mxu0 0.0
    %3089 = vmatprep.subr.mxu0 0.0
    %3090 = vmatpush1.msra.mxu0 0.0
    %3091 = vmatprep.subr.mxu0 0.0
    %3092 = vmatpush1.msra.mxu0 0.0
    %3093 = vmatprep.subr.mxu0 0.0
    %3094 = vmatpush1.msra.mxu0 0.0
    %3095 = vmatprep.subr.mxu0 0.0
    %3096 = vmatpush1.msra.mxu0 0.0
    %3097 = vmatprep.subr.mxu0 0.0
    %3098 = vmatpush1.msra.mxu0 0.0
    %3099 = vmatprep.subr.mxu0 0.0
    %3100 = vmatpush1.msra.mxu0 0.0
    %3101 = vmatprep.subr.mxu0 0.0
    %3102 = vmatpush1.msra.mxu0 0.0
    %3103 = vmatprep.subr.mxu0 0.0
    %3104 = vmatpush1.msra.mxu0 0.0
    %3105 = vmatprep.subr.mxu0 0.0
    %3106 = vmatpush1.msra.mxu0 0.0
    %3107 = vmatprep.subr.mxu0 0.0
    %3108 = vmatpush1.msra.mxu0 0.0
    %3109 = vmatprep.subr.mxu0 0.0
    %3110 = vmatpush1.msra.mxu0 0.0
    %3111 = vmatprep.subr.mxu0 0.0
    %3112 = vmatpush1.msra.mxu0 0.0
    %3113 = vmatprep.subr.mxu0 0.0
    %3114 = vmatpush1.msra.mxu0 0.0
    %3115 = vmatprep.mubr.f32.mxu0 0.0
    %3116 = vmatmul.mubr.f32.gmra.mrb[0].mxu0 %v2344
    %v3117 = vpop.f32.mrb[0].mxu0
    %v3118 = vadd.f32 0.0, %v3117
    %v3119 = vpop.f32.mrb[0].mxu0
    %3120 = vmatprep.mubr.f32.mxu0 0.0
    %3121 = vmatmul.mubr.f32.gmra.mrb[0].mxu0 %v2347
    %v3122 = vpop.f32.mrb[0].mxu0
    %v3123 = vadd.f32 0.0, %v3122
    %v3124 = vpop.f32.mrb[0].mxu0
    %3125 = vmatprep.mubr.f32.mxu0 0.0
    %3126 = vmatmul.mubr.f32.gmra.mrb[0].mxu0 %v2350
    %v3127 = vpop.f32.mrb[0].mxu0
    %v3128 = vadd.f32 0.0, %v3127
    %v3129 = vpop.f32.mrb[0].mxu0
    %3130 = vmatprep.mubr.f32.mxu0 0.0
    %3131 = vmatmul.mubr.f32.gmra.mrb[0].mxu0 %v2353
    %v3132 = vpop.f32.mrb[0].mxu0
    %v3133 = vadd.f32 0.0, %v3132
    %v3134 = vpop.f32.mrb[0].mxu0
    %3135 = vdwg.mxu0
    %v3136 = vmul.f32 %v3118, %v3037
    %v3137 = vmul.f32 %v3123, %v3038
    %v3138 = vsel %vm24, %v3136, 0.0
    %v3139 = vsel %vm24, %v3137, 0.0
    %v3140 = vadd.f32 %v3138, %v3139
    %v3141 = vrot.slane %v3140, 4
    %v3142 = vadd.f32 %v3140, %v3141
    %v3143 = vrot.slane %v3142, 2
    %v3144 = vadd.f32 %v3142, %v3143
    %v3145 = vrot.slane %v3144, 1
    %v3146 = vadd.f32 %v3144, %v3145
    %v3147 = vmul.f32 %v3128, %v3037
    %v3148 = vmul.f32 %v3133, %v3038
    %v3149 = vsel %vm24, %v3147, 0.0
    %v3150 = vsel %vm24, %v3148, 0.0
    %v3151 = vadd.f32 %v3149, %v3150
    %v3152 = vrot.slane %v3151, 4
    %v3153 = vadd.f32 %v3151, %v3152
    %v3154 = vrot.slane %v3153, 2
    %v3155 = vadd.f32 %v3153, %v3154
    %v3156 = vrot.slane %v3155, 1
    %v3157 = vadd.f32 %v3155, %v3156
    %v3158 = vadd.f32 %v3023, %v3146
    %3159 = vst.msk [vmem:[#allocation3 + $0x5] sm:$0x1] %vm2463, %v3158
    %v3160 = vadd.f32 %v3024, %v3157
    %3161 = vst.msk [vmem:[#allocation3 + $0x15] sm:$0x1] %vm2463, %v3160
    %v3162 = vld [vmem:[#allocation2 + $0x6] sm:$0x1]
    %v3163 = vld [vmem:[#allocation2 + $0x16] sm:$0x1]
    %v3164 = vadd.f32 %v3162, 6.0
    %v3165 = vadd.f32 %v10, %v3163
    %v3166 = vlaneseq
    %v3167 = vshrl.u32 %v3166, 7
    %v3168 = vsub.s32 0, %v3167
    %v3169 = vrot.slane %v3164, %v3168
    %v3170 = vsub.f32 %v3169, %v14
    %v3171 = vsub.f32 %v3169, %v15
    %v3172 = vand.u32 2147483647, %v3170
    %v3173 = vand.u32 2147483647, %v3171
    %v3174 = vsub.f32 1.0, %v3172
    %v3175 = vsub.f32 1.0, %v3173
    %v3176 = vmax.f32 %v3174, 0.0
    %v3177 = vmax.f32 %v3175, 0.0
    %v3178 = vlaneseq
    %v3179 = vshrl.u32 %v3178, 7
    %v3180 = vsub.s32 0, %v3179
    %v3181 = vrot.slane %v3165, %v3180
    %v3182 = vsub.f32 %v3181, %v14
    %v3183 = vsub.f32 %v3181, %v15
    %v3184 = vand.u32 2147483647, %v3182
    %v3185 = vand.u32 2147483647, %v3183
    %v3186 = vsub.f32 1.0, %v3184
    %v3187 = vsub.f32 1.0, %v3185
    %v3188 = vmax.f32 %v3186, 0.0
    %v3189 = vmax.f32 %v3187, 0.0
    %3190 = vmatprep.subr.mxu0 0.0
    %3191 = vmatpush1.msra.mxu0 %v3188
    %3192 = vmatprep.subr.mxu0 0.0
    %3193 = vmatpush1.msra.mxu0 %v3189
    %3194 = vmatprep.subr.mxu0 0.0
    %3195 = vmatpush1.msra.mxu0 0.0
    %3196 = vmatprep.subr.mxu0 0.0
    %3197 = vmatpush1.msra.mxu0 0.0
    %3198 = vmatprep.subr.mxu0 0.0
    %3199 = vmatpush1.msra.mxu0 0.0
    %3200 = vmatprep.subr.mxu0 0.0
    %3201 = vmatpush1.msra.mxu0 0.0
    %3202 = vmatprep.subr.mxu0 0.0
    %3203 = vmatpush1.msra.mxu0 0.0
    %3204 = vmatprep.subr.mxu0 0.0
    %3205 = vmatpush1.msra.mxu0 0.0
    %3206 = vmatprep.subr.mxu0 0.0
    %3207 = vmatpush1.msra.mxu0 0.0
    %3208 = vmatprep.subr.mxu0 0.0
    %3209 = vmatpush1.msra.mxu0 0.0
    %3210 = vmatprep.subr.mxu0 0.0
    %3211 = vmatpush1.msra.mxu0 0.0
    %3212 = vmatprep.subr.mxu0 0.0
    %3213 = vmatpush1.msra.mxu0 0.0
    %3214 = vmatprep.subr.mxu0 0.0
    %3215 = vmatpush1.msra.mxu0 0.0
    %3216 = vmatprep.subr.mxu0 0.0
    %3217 = vmatpush1.msra.mxu0 0.0
    %3218 = vmatprep.subr.mxu0 0.0
    %3219 = vmatpush1.msra.mxu0 0.0
    %3220 = vmatprep.subr.mxu0 0.0
    %3221 = vmatpush1.msra.mxu0 0.0
    %3222 = vmatprep.subr.mxu0 0.0
    %3223 = vmatpush1.msra.mxu0 0.0
    %3224 = vmatprep.subr.mxu0 0.0
    %3225 = vmatpush1.msra.mxu0 0.0
    %3226 = vmatprep.subr.mxu0 0.0
    %3227 = vmatpush1.msra.mxu0 0.0
    %3228 = vmatprep.subr.mxu0 0.0
    %3229 = vmatpush1.msra.mxu0 0.0
    %3230 = vmatprep.subr.mxu0 0.0
    %3231 = vmatpush1.msra.mxu0 0.0
    %3232 = vmatprep.subr.mxu0 0.0
    %3233 = vmatpush1.msra.mxu0 0.0
    %3234 = vmatprep.subr.mxu0 0.0
    %3235 = vmatpush1.msra.mxu0 0.0
    %3236 = vmatprep.subr.mxu0 0.0
    %3237 = vmatpush1.msra.mxu0 0.0
    %3238 = vmatprep.subr.mxu0 0.0
    %3239 = vmatpush1.msra.mxu0 0.0
    %3240 = vmatprep.subr.mxu0 0.0
    %3241 = vmatpush1.msra.mxu0 0.0
    %3242 = vmatprep.subr.mxu0 0.0
    %3243 = vmatpush1.msra.mxu0 0.0
    %3244 = vmatprep.subr.mxu0 0.0
    %3245 = vmatpush1.msra.mxu0 0.0
    %3246 = vmatprep.subr.mxu0 0.0
    %3247 = vmatpush1.msra.mxu0 0.0
    %3248 = vmatprep.subr.mxu0 0.0
    %3249 = vmatpush1.msra.mxu0 0.0
    %3250 = vmatprep.subr.mxu0 0.0
    %3251 = vmatpush1.msra.mxu0 0.0
    %3252 = vmatprep.subr.mxu0 0.0
    %3253 = vmatpush1.msra.mxu0 0.0
    %3254 = vmatprep.mubr.f32.mxu0 0.0
    %3255 = vmatmul.mubr.f32.gmra.mrb[0].mxu0 %v2344
    %v3256 = vpop.f32.mrb[0].mxu0
    %v3257 = vadd.f32 0.0, %v3256
    %v3258 = vpop.f32.mrb[0].mxu0
    %3259 = vmatprep.mubr.f32.mxu0 0.0
    %3260 = vmatmul.mubr.f32.gmra.mrb[0].mxu0 %v2347
    %v3261 = vpop.f32.mrb[0].mxu0
    %v3262 = vadd.f32 0.0, %v3261
    %v3263 = vpop.f32.mrb[0].mxu0
    %3264 = vmatprep.mubr.f32.mxu0 0.0
    %3265 = vmatmul.mubr.f32.gmra.mrb[0].mxu0 %v2350
    %v3266 = vpop.f32.mrb[0].mxu0
    %v3267 = vadd.f32 0.0, %v3266
    %v3268 = vpop.f32.mrb[0].mxu0
    %3269 = vmatprep.mubr.f32.mxu0 0.0
    %3270 = vmatmul.mubr.f32.gmra.mrb[0].mxu0 %v2353
    %v3271 = vpop.f32.mrb[0].mxu0
    %v3272 = vadd.f32 0.0, %v3271
    %v3273 = vpop.f32.mrb[0].mxu0
    %3274 = vdwg.mxu0
    %v3275 = vmul.f32 %v3257, %v3176
    %v3276 = vmul.f32 %v3262, %v3177
    %v3277 = vsel %vm24, %v3275, 0.0
    %v3278 = vsel %vm24, %v3276, 0.0
    %v3279 = vadd.f32 %v3277, %v3278
    %v3280 = vrot.slane %v3279, 4
    %v3281 = vadd.f32 %v3279, %v3280
    %v3282 = vrot.slane %v3281, 2
    %v3283 = vadd.f32 %v3281, %v3282
    %v3284 = vrot.slane %v3283, 1
    %v3285 = vadd.f32 %v3283, %v3284
    %v3286 = vmul.f32 %v3267, %v3176
    %v3287 = vmul.f32 %v3272, %v3177
    %v3288 = vsel %vm24, %v3286, 0.0
    %v3289 = vsel %vm24, %v3287, 0.0
    %v3290 = vadd.f32 %v3288, %v3289
    %v3291 = vrot.slane %v3290, 4
    %v3292 = vadd.f32 %v3290, %v3291
    %v3293 = vrot.slane %v3292, 2
    %v3294 = vadd.f32 %v3292, %v3293
    %v3295 = vrot.slane %v3294, 1
    %v3296 = vadd.f32 %v3294, %v3295
    %v3297 = vadd.f32 %v3162, %v3285
    %3298 = vst.msk [vmem:[#allocation3 + $0x6] sm:$0x1] %vm2463, %v3297
    %v3299 = vadd.f32 %v3163, %v3296
    %3300 = vst.msk [vmem:[#allocation3 + $0x16] sm:$0x1] %vm2463, %v3299
    %v3301 = vld [vmem:[#allocation2 + $0x7] sm:$0x1]
    %v3302 = vld [vmem:[#allocation2 + $0x17] sm:$0x1]
    %v3303 = vadd.f32 %v3301, 7.0
    %v3304 = vadd.f32 %v10, %v3302
    %v3305 = vlaneseq
    %v3306 = vshrl.u32 %v3305, 7
    %v3307 = vsub.s32 0, %v3306
    %v3308 = vrot.slane %v3303, %v3307
    %v3309 = vsub.f32 %v3308, %v14
    %v3310 = vsub.f32 %v3308, %v15
    %v3311 = vand.u32 2147483647, %v3309
    %v3312 = vand.u32 2147483647, %v3310
    %v3313 = vsub.f32 1.0, %v3311
    %v3314 = vsub.f32 1.0, %v3312
    %v3315 = vmax.f32 %v3313, 0.0
    %v3316 = vmax.f32 %v3314, 0.0
    %v3317 = vlaneseq
    %v3318 = vshrl.u32 %v3317, 7
    %v3319 = vsub.s32 0, %v3318
    %v3320 = vrot.slane %v3304, %v3319
    %v3321 = vsub.f32 %v3320, %v14
    %v3322 = vsub.f32 %v3320, %v15
    %v3323 = vand.u32 2147483647, %v3321
    %v3324 = vand.u32 2147483647, %v3322
    %v3325 = vsub.f32 1.0, %v3323
    %v3326 = vsub.f32 1.0, %v3324
    %v3327 = vmax.f32 %v3325, 0.0
    %v3328 = vmax.f32 %v3326, 0.0
    %3329 = vmatprep.subr.mxu0 0.0
    %3330 = vmatpush1.msra.mxu0 %v3327
    %3331 = vmatprep.subr.mxu0 0.0
    %3332 = vmatpush1.msra.mxu0 %v3328
    %3333 = vmatprep.subr.mxu0 0.0
    %3334 = vmatpush1.msra.mxu0 0.0
    %3335 = vmatprep.subr.mxu0 0.0
    %3336 = vmatpush1.msra.mxu0 0.0
    %3337 = vmatprep.subr.mxu0 0.0
    %3338 = vmatpush1.msra.mxu0 0.0
    %3339 = vmatprep.subr.mxu0 0.0
    %3340 = vmatpush1.msra.mxu0 0.0
    %3341 = vmatprep.subr.mxu0 0.0
    %3342 = vmatpush1.msra.mxu0 0.0
    %3343 = vmatprep.subr.mxu0 0.0
    %3344 = vmatpush1.msra.mxu0 0.0
    %3345 = vmatprep.subr.mxu0 0.0
    %3346 = vmatpush1.msra.mxu0 0.0
    %3347 = vmatprep.subr.mxu0 0.0
    %3348 = vmatpush1.msra.mxu0 0.0
    %3349 = vmatprep.subr.mxu0 0.0
    %3350 = vmatpush1.msra.mxu0 0.0
    %3351 = vmatprep.subr.mxu0 0.0
    %3352 = vmatpush1.msra.mxu0 0.0
    %3353 = vmatprep.subr.mxu0 0.0
    %3354 = vmatpush1.msra.mxu0 0.0
    %3355 = vmatprep.subr.mxu0 0.0
    %3356 = vmatpush1.msra.mxu0 0.0
    %3357 = vmatprep.subr.mxu0 0.0
    %3358 = vmatpush1.msra.mxu0 0.0
    %3359 = vmatprep.subr.mxu0 0.0
    %3360 = vmatpush1.msra.mxu0 0.0
    %3361 = vmatprep.subr.mxu0 0.0
    %3362 = vmatpush1.msra.mxu0 0.0
    %3363 = vmatprep.subr.mxu0 0.0
    %3364 = vmatpush1.msra.mxu0 0.0
    %3365 = vmatprep.subr.mxu0 0.0
    %3366 = vmatpush1.msra.mxu0 0.0
    %3367 = vmatprep.subr.mxu0 0.0
    %3368 = vmatpush1.msra.mxu0 0.0
    %3369 = vmatprep.subr.mxu0 0.0
    %3370 = vmatpush1.msra.mxu0 0.0
    %3371 = vmatprep.subr.mxu0 0.0
    %3372 = vmatpush1.msra.mxu0 0.0
    %3373 = vmatprep.subr.mxu0 0.0
    %3374 = vmatpush1.msra.mxu0 0.0
    %3375 = vmatprep.subr.mxu0 0.0
    %3376 = vmatpush1.msra.mxu0 0.0
    %3377 = vmatprep.subr.mxu0 0.0
    %3378 = vmatpush1.msra.mxu0 0.0
    %3379 = vmatprep.subr.mxu0 0.0
    %3380 = vmatpush1.msra.mxu0 0.0
    %3381 = vmatprep.subr.mxu0 0.0
    %3382 = vmatpush1.msra.mxu0 0.0
    %3383 = vmatprep.subr.mxu0 0.0
    %3384 = vmatpush1.msra.mxu0 0.0
    %3385 = vmatprep.subr.mxu0 0.0
    %3386 = vmatpush1.msra.mxu0 0.0
    %3387 = vmatprep.subr.mxu0 0.0
    %3388 = vmatpush1.msra.mxu0 0.0
    %3389 = vmatprep.subr.mxu0 0.0
    %3390 = vmatpush1.msra.mxu0 0.0
    %3391 = vmatprep.subr.mxu0 0.0
    %3392 = vmatpush1.msra.mxu0 0.0
    %3393 = vmatprep.mubr.f32.mxu0 0.0
    %3394 = vmatmul.mubr.f32.gmra.mrb[0].mxu0 %v2344
    %v3395 = vpop.f32.mrb[0].mxu0
    %v3396 = vadd.f32 0.0, %v3395
    %v3397 = vpop.f32.mrb[0].mxu0
    %3398 = vmatprep.mubr.f32.mxu0 0.0
    %3399 = vmatmul.mubr.f32.gmra.mrb[0].mxu0 %v2347
    %v3400 = vpop.f32.mrb[0].mxu0
    %v3401 = vadd.f32 0.0, %v3400
    %v3402 = vpop.f32.mrb[0].mxu0
    %3403 = vmatprep.mubr.f32.mxu0 0.0
    %3404 = vmatmul.mubr.f32.gmra.mrb[0].mxu0 %v2350
    %v3405 = vpop.f32.mrb[0].mxu0
    %v3406 = vadd.f32 0.0, %v3405
    %v3407 = vpop.f32.mrb[0].mxu0
    %3408 = vmatprep.mubr.f32.mxu0 0.0
    %3409 = vmatmul.mubr.f32.gmra.mrb[0].mxu0 %v2353
    %v3410 = vpop.f32.mrb[0].mxu0
    %v3411 = vadd.f32 0.0, %v3410
    %v3412 = vpop.f32.mrb[0].mxu0
    %3413 = vdwg.mxu0
    %v3414 = vmul.f32 %v3396, %v3315
    %v3415 = vmul.f32 %v3401, %v3316
    %v3416 = vsel %vm24, %v3414, 0.0
    %v3417 = vsel %vm24, %v3415, 0.0
    %v3418 = vadd.f32 %v3416, %v3417
    %v3419 = vrot.slane %v3418, 4
    %v3420 = vadd.f32 %v3418, %v3419
    %v3421 = vrot.slane %v3420, 2
    %v3422 = vadd.f32 %v3420, %v3421
    %v3423 = vrot.slane %v3422, 1
    %v3424 = vadd.f32 %v3422, %v3423
    %v3425 = vmul.f32 %v3406, %v3315
    %v3426 = vmul.f32 %v3411, %v3316
    %v3427 = vsel %vm24, %v3425, 0.0
    %v3428 = vsel %vm24, %v3426, 0.0
    %v3429 = vadd.f32 %v3427, %v3428
    %v3430 = vrot.slane %v3429, 4
    %v3431 = vadd.f32 %v3429, %v3430
    %v3432 = vrot.slane %v3431, 2
    %v3433 = vadd.f32 %v3431, %v3432
    %v3434 = vrot.slane %v3433, 1
    %v3435 = vadd.f32 %v3433, %v3434
    %v3436 = vadd.f32 %v3301, %v3424
    %3437 = vst.msk [vmem:[#allocation3 + $0x7] sm:$0x1] %vm2463, %v3436
    %v3438 = vadd.f32 %v3302, %v3435
    %3439 = vst.msk [vmem:[#allocation3 + $0x17] sm:$0x1] %vm2463, %v3438
    %v3440 = vld [vmem:[#allocation2 + $0x8] sm:$0x1]
    %v3441 = vld [vmem:[#allocation2 + $0x18] sm:$0x1]
    %v3442 = vadd.f32 %v3440, 8.0
    %v3443 = vadd.f32 %v10, %v3441
    %v3444 = vlaneseq
    %v3445 = vshrl.u32 %v3444, 7
    %v3446 = vsub.s32 0, %v3445
    %v3447 = vrot.slane %v3442, %v3446
    %v3448 = vsub.f32 %v3447, %v14
    %v3449 = vsub.f32 %v3447, %v15
    %v3450 = vand.u32 2147483647, %v3448
    %v3451 = vand.u32 2147483647, %v3449
    %v3452 = vsub.f32 1.0, %v3450
    %v3453 = vsub.f32 1.0, %v3451
    %v3454 = vmax.f32 %v3452, 0.0
    %v3455 = vmax.f32 %v3453, 0.0
    %v3456 = vlaneseq
    %v3457 = vshrl.u32 %v3456, 7
    %v3458 = vsub.s32 0, %v3457
    %v3459 = vrot.slane %v3443, %v3458
    %v3460 = vsub.f32 %v3459, %v14
    %v3461 = vsub.f32 %v3459, %v15
    %v3462 = vand.u32 2147483647, %v3460
    %v3463 = vand.u32 2147483647, %v3461
    %v3464 = vsub.f32 1.0, %v3462
    %v3465 = vsub.f32 1.0, %v3463
    %v3466 = vmax.f32 %v3464, 0.0
    %v3467 = vmax.f32 %v3465, 0.0
    %3468 = vmatprep.subr.mxu0 0.0
    %3469 = vmatpush1.msra.mxu0 %v3466
    %3470 = vmatprep.subr.mxu0 0.0
    %3471 = vmatpush1.msra.mxu0 %v3467
    %3472 = vmatprep.subr.mxu0 0.0
    %3473 = vmatpush1.msra.mxu0 0.0
    %3474 = vmatprep.subr.mxu0 0.0
    %3475 = vmatpush1.msra.mxu0 0.0
    %3476 = vmatprep.subr.mxu0 0.0
    %3477 = vmatpush1.msra.mxu0 0.0
    %3478 = vmatprep.subr.mxu0 0.0
    %3479 = vmatpush1.msra.mxu0 0.0
    %3480 = vmatprep.subr.mxu0 0.0
    %3481 = vmatpush1.msra.mxu0 0.0
    %3482 = vmatprep.subr.mxu0 0.0
    %3483 = vmatpush1.msra.mxu0 0.0
    %3484 = vmatprep.subr.mxu0 0.0
    %3485 = vmatpush1.msra.mxu0 0.0
    %3486 = vmatprep.subr.mxu0 0.0
    %3487 = vmatpush1.msra.mxu0 0.0
    %3488 = vmatprep.subr.mxu0 0.0
    %3489 = vmatpush1.msra.mxu0 0.0
    %3490 = vmatprep.subr.mxu0 0.0
    %3491 = vmatpush1.msra.mxu0 0.0
    %3492 = vmatprep.subr.mxu0 0.0
    %3493 = vmatpush1.msra.mxu0 0.0
    %3494 = vmatprep.subr.mxu0 0.0
    %3495 = vmatpush1.msra.mxu0 0.0
    %3496 = vmatprep.subr.mxu0 0.0
    %3497 = vmatpush1.msra.mxu0 0.0
    %3498 = vmatprep.subr.mxu0 0.0
    %3499 = vmatpush1.msra.mxu0 0.0
    %3500 = vmatprep.subr.mxu0 0.0
    %3501 = vmatpush1.msra.mxu0 0.0
    %3502 = vmatprep.subr.mxu0 0.0
    %3503 = vmatpush1.msra.mxu0 0.0
    %3504 = vmatprep.subr.mxu0 0.0
    %3505 = vmatpush1.msra.mxu0 0.0
    %3506 = vmatprep.subr.mxu0 0.0
    %3507 = vmatpush1.msra.mxu0 0.0
    %3508 = vmatprep.subr.mxu0 0.0
    %3509 = vmatpush1.msra.mxu0 0.0
    %3510 = vmatprep.subr.mxu0 0.0
    %3511 = vmatpush1.msra.mxu0 0.0
    %3512 = vmatprep.subr.mxu0 0.0
    %3513 = vmatpush1.msra.mxu0 0.0
    %3514 = vmatprep.subr.mxu0 0.0
    %3515 = vmatpush1.msra.mxu0 0.0
    %3516 = vmatprep.subr.mxu0 0.0
    %3517 = vmatpush1.msra.mxu0 0.0
    %3518 = vmatprep.subr.mxu0 0.0
    %3519 = vmatpush1.msra.mxu0 0.0
    %3520 = vmatprep.subr.mxu0 0.0
    %3521 = vmatpush1.msra.mxu0 0.0
    %3522 = vmatprep.subr.mxu0 0.0
    %3523 = vmatpush1.msra.mxu0 0.0
    %3524 = vmatprep.subr.mxu0 0.0
    %3525 = vmatpush1.msra.mxu0 0.0
    %3526 = vmatprep.subr.mxu0 0.0
    %3527 = vmatpush1.msra.mxu0 0.0
    %3528 = vmatprep.subr.mxu0 0.0
    %3529 = vmatpush1.msra.mxu0 0.0
    %3530 = vmatprep.subr.mxu0 0.0
    %3531 = vmatpush1.msra.mxu0 0.0
    %3532 = vmatprep.mubr.f32.mxu0 0.0
    %3533 = vmatmul.mubr.f32.gmra.mrb[0].mxu0 %v2344
    %v3534 = vpop.f32.mrb[0].mxu0
    %v3535 = vadd.f32 0.0, %v3534
    %v3536 = vpop.f32.mrb[0].mxu0
    %3537 = vmatprep.mubr.f32.mxu0 0.0
    %3538 = vmatmul.mubr.f32.gmra.mrb[0].mxu0 %v2347
    %v3539 = vpop.f32.mrb[0].mxu0
    %v3540 = vadd.f32 0.0, %v3539
    %v3541 = vpop.f32.mrb[0].mxu0
    %3542 = vmatprep.mubr.f32.mxu0 0.0
    %3543 = vmatmul.mubr.f32.gmra.mrb[0].mxu0 %v2350
    %v3544 = vpop.f32.mrb[0].mxu0
    %v3545 = vadd.f32 0.0, %v3544
    %v3546 = vpop.f32.mrb[0].mxu0
    %3547 = vmatprep.mubr.f32.mxu0 0.0
    %3548 = vmatmul.mubr.f32.gmra.mrb[0].mxu0 %v2353
    %v3549 = vpop.f32.mrb[0].mxu0
    %v3550 = vadd.f32 0.0, %v3549
    %v3551 = vpop.f32.mrb[0].mxu0
    %3552 = vdwg.mxu0
    %v3553 = vmul.f32 %v3535, %v3454
    %v3554 = vmul.f32 %v3540, %v3455
    %v3555 = vsel %vm24, %v3553, 0.0
    %v3556 = vsel %vm24, %v3554, 0.0
    %v3557 = vadd.f32 %v3555, %v3556
    %v3558 = vrot.slane %v3557, 4
    %v3559 = vadd.f32 %v3557, %v3558
    %v3560 = vrot.slane %v3559, 2
    %v3561 = vadd.f32 %v3559, %v3560
    %v3562 = vrot.slane %v3561, 1
    %v3563 = vadd.f32 %v3561, %v3562
    %v3564 = vmul.f32 %v3545, %v3454
    %v3565 = vmul.f32 %v3550, %v3455
    %v3566 = vsel %vm24, %v3564, 0.0
    %v3567 = vsel %vm24, %v3565, 0.0
    %v3568 = vadd.f32 %v3566, %v3567
    %v3569 = vrot.slane %v3568, 4
    %v3570 = vadd.f32 %v3568, %v3569
    %v3571 = vrot.slane %v3570, 2
    %v3572 = vadd.f32 %v3570, %v3571
    %v3573 = vrot.slane %v3572, 1
    %v3574 = vadd.f32 %v3572, %v3573
    %v3575 = vadd.f32 %v3440, %v3563
    %3576 = vst.msk [vmem:[#allocation3 + $0x8] sm:$0x1] %vm2463, %v3575
    %v3577 = vadd.f32 %v3441, %v3574
    %3578 = vst.msk [vmem:[#allocation3 + $0x18] sm:$0x1] %vm2463, %v3577
    %v3579 = vld [vmem:[#allocation2 + $0x9] sm:$0x1]
    %v3580 = vld [vmem:[#allocation2 + $0x19] sm:$0x1]
    %v3581 = vadd.f32 %v3579, 9.0
    %v3582 = vadd.f32 %v10, %v3580
    %v3583 = vlaneseq
    %v3584 = vshrl.u32 %v3583, 7
    %v3585 = vsub.s32 0, %v3584
    %v3586 = vrot.slane %v3581, %v3585
    %v3587 = vsub.f32 %v3586, %v14
    %v3588 = vsub.f32 %v3586, %v15
    %v3589 = vand.u32 2147483647, %v3587
    %v3590 = vand.u32 2147483647, %v3588
    %v3591 = vsub.f32 1.0, %v3589
    %v3592 = vsub.f32 1.0, %v3590
    %v3593 = vmax.f32 %v3591, 0.0
    %v3594 = vmax.f32 %v3592, 0.0
    %v3595 = vlaneseq
    %v3596 = vshrl.u32 %v3595, 7
    %v3597 = vsub.s32 0, %v3596
    %v3598 = vrot.slane %v3582, %v3597
    %v3599 = vsub.f32 %v3598, %v14
    %v3600 = vsub.f32 %v3598, %v15
    %v3601 = vand.u32 2147483647, %v3599
    %v3602 = vand.u32 2147483647, %v3600
    %v3603 = vsub.f32 1.0, %v3601
    %v3604 = vsub.f32 1.0, %v3602
    %v3605 = vmax.f32 %v3603, 0.0
    %v3606 = vmax.f32 %v3604, 0.0
    %3607 = vmatprep.subr.mxu0 0.0
    %3608 = vmatpush1.msra.mxu0 %v3605
    %3609 = vmatprep.subr.mxu0 0.0
    %3610 = vmatpush1.msra.mxu0 %v3606
    %3611 = vmatprep.subr.mxu0 0.0
    %3612 = vmatpush1.msra.mxu0 0.0
    %3613 = vmatprep.subr.mxu0 0.0
    %3614 = vmatpush1.msra.mxu0 0.0
    %3615 = vmatprep.subr.mxu0 0.0
    %3616 = vmatpush1.msra.mxu0 0.0
    %3617 = vmatprep.subr.mxu0 0.0
    %3618 = vmatpush1.msra.mxu0 0.0
    %3619 = vmatprep.subr.mxu0 0.0
    %3620 = vmatpush1.msra.mxu0 0.0
    %3621 = vmatprep.subr.mxu0 0.0
    %3622 = vmatpush1.msra.mxu0 0.0
    %3623 = vmatprep.subr.mxu0 0.0
    %3624 = vmatpush1.msra.mxu0 0.0
    %3625 = vmatprep.subr.mxu0 0.0
    %3626 = vmatpush1.msra.mxu0 0.0
    %3627 = vmatprep.subr.mxu0 0.0
    %3628 = vmatpush1.msra.mxu0 0.0
    %3629 = vmatprep.subr.mxu0 0.0
    %3630 = vmatpush1.msra.mxu0 0.0
    %3631 = vmatprep.subr.mxu0 0.0
    %3632 = vmatpush1.msra.mxu0 0.0
    %3633 = vmatprep.subr.mxu0 0.0
    %3634 = vmatpush1.msra.mxu0 0.0
    %3635 = vmatprep.subr.mxu0 0.0
    %3636 = vmatpush1.msra.mxu0 0.0
    %3637 = vmatprep.subr.mxu0 0.0
    %3638 = vmatpush1.msra.mxu0 0.0
    %3639 = vmatprep.subr.mxu0 0.0
    %3640 = vmatpush1.msra.mxu0 0.0
    %3641 = vmatprep.subr.mxu0 0.0
    %3642 = vmatpush1.msra.mxu0 0.0
    %3643 = vmatprep.subr.mxu0 0.0
    %3644 = vmatpush1.msra.mxu0 0.0
    %3645 = vmatprep.subr.mxu0 0.0
    %3646 = vmatpush1.msra.mxu0 0.0
    %3647 = vmatprep.subr.mxu0 0.0
    %3648 = vmatpush1.msra.mxu0 0.0
    %3649 = vmatprep.subr.mxu0 0.0
    %3650 = vmatpush1.msra.mxu0 0.0
    %3651 = vmatprep.subr.mxu0 0.0
    %3652 = vmatpush1.msra.mxu0 0.0
    %3653 = vmatprep.subr.mxu0 0.0
    %3654 = vmatpush1.msra.mxu0 0.0
    %3655 = vmatprep.subr.mxu0 0.0
    %3656 = vmatpush1.msra.mxu0 0.0
    %3657 = vmatprep.subr.mxu0 0.0
    %3658 = vmatpush1.msra.mxu0 0.0
    %3659 = vmatprep.subr.mxu0 0.0
    %3660 = vmatpush1.msra.mxu0 0.0
    %3661 = vmatprep.subr.mxu0 0.0
    %3662 = vmatpush1.msra.mxu0 0.0
    %3663 = vmatprep.subr.mxu0 0.0
    %3664 = vmatpush1.msra.mxu0 0.0
    %3665 = vmatprep.subr.mxu0 0.0
    %3666 = vmatpush1.msra.mxu0 0.0
    %3667 = vmatprep.subr.mxu0 0.0
    %3668 = vmatpush1.msra.mxu0 0.0
    %3669 = vmatprep.subr.mxu0 0.0
    %3670 = vmatpush1.msra.mxu0 0.0
    %3671 = vmatprep.mubr.f32.mxu0 0.0
    %3672 = vmatmul.mubr.f32.gmra.mrb[0].mxu0 %v2344
    %v3673 = vpop.f32.mrb[0].mxu0
    %v3674 = vadd.f32 0.0, %v3673
    %v3675 = vpop.f32.mrb[0].mxu0
    %3676 = vmatprep.mubr.f32.mxu0 0.0
    %3677 = vmatmul.mubr.f32.gmra.mrb[0].mxu0 %v2347
    %v3678 = vpop.f32.mrb[0].mxu0
    %v3679 = vadd.f32 0.0, %v3678
    %v3680 = vpop.f32.mrb[0].mxu0
    %3681 = vmatprep.mubr.f32.mxu0 0.0
    %3682 = vmatmul.mubr.f32.gmra.mrb[0].mxu0 %v2350
    %v3683 = vpop.f32.mrb[0].mxu0
    %v3684 = vadd.f32 0.0, %v3683
    %v3685 = vpop.f32.mrb[0].mxu0
    %3686 = vmatprep.mubr.f32.mxu0 0.0
    %3687 = vmatmul.mubr.f32.gmra.mrb[0].mxu0 %v2353
    %v3688 = vpop.f32.mrb[0].mxu0
    %v3689 = vadd.f32 0.0, %v3688
    %v3690 = vpop.f32.mrb[0].mxu0
    %3691 = vdwg.mxu0
    %v3692 = vmul.f32 %v3674, %v3593
    %v3693 = vmul.f32 %v3679, %v3594
    %v3694 = vsel %vm24, %v3692, 0.0
    %v3695 = vsel %vm24, %v3693, 0.0
    %v3696 = vadd.f32 %v3694, %v3695
    %v3697 = vrot.slane %v3696, 4
    %v3698 = vadd.f32 %v3696, %v3697
    %v3699 = vrot.slane %v3698, 2
    %v3700 = vadd.f32 %v3698, %v3699
    %v3701 = vrot.slane %v3700, 1
    %v3702 = vadd.f32 %v3700, %v3701
    %v3703 = vmul.f32 %v3684, %v3593
    %v3704 = vmul.f32 %v3689, %v3594
    %v3705 = vsel %vm24, %v3703, 0.0
    %v3706 = vsel %vm24, %v3704, 0.0
    %v3707 = vadd.f32 %v3705, %v3706
    %v3708 = vrot.slane %v3707, 4
    %v3709 = vadd.f32 %v3707, %v3708
    %v3710 = vrot.slane %v3709, 2
    %v3711 = vadd.f32 %v3709, %v3710
    %v3712 = vrot.slane %v3711, 1
    %v3713 = vadd.f32 %v3711, %v3712
    %v3714 = vadd.f32 %v3579, %v3702
    %3715 = vst.msk [vmem:[#allocation3 + $0x9] sm:$0x1] %vm2463, %v3714
    %v3716 = vadd.f32 %v3580, %v3713
    %3717 = vst.msk [vmem:[#allocation3 + $0x19] sm:$0x1] %vm2463, %v3716
    %v3718 = vld [vmem:[#allocation2 + $0xa] sm:$0x1]
    %v3719 = vld [vmem:[#allocation2 + $0x1a] sm:$0x1]
    %v3720 = vadd.f32 %v3718, 10.0
    %v3721 = vadd.f32 %v10, %v3719
    %v3722 = vlaneseq
    %v3723 = vshrl.u32 %v3722, 7
    %v3724 = vsub.s32 0, %v3723
    %v3725 = vrot.slane %v3720, %v3724
    %v3726 = vsub.f32 %v3725, %v14
    %v3727 = vsub.f32 %v3725, %v15
    %v3728 = vand.u32 2147483647, %v3726
    %v3729 = vand.u32 2147483647, %v3727
    %v3730 = vsub.f32 1.0, %v3728
    %v3731 = vsub.f32 1.0, %v3729
    %v3732 = vmax.f32 %v3730, 0.0
    %v3733 = vmax.f32 %v3731, 0.0
    %v3734 = vlaneseq
    %v3735 = vshrl.u32 %v3734, 7
    %v3736 = vsub.s32 0, %v3735
    %v3737 = vrot.slane %v3721, %v3736
    %v3738 = vsub.f32 %v3737, %v14
    %v3739 = vsub.f32 %v3737, %v15
    %v3740 = vand.u32 2147483647, %v3738
    %v3741 = vand.u32 2147483647, %v3739
    %v3742 = vsub.f32 1.0, %v3740
    %v3743 = vsub.f32 1.0, %v3741
    %v3744 = vmax.f32 %v3742, 0.0
    %v3745 = vmax.f32 %v3743, 0.0
    %3746 = vmatprep.subr.mxu0 0.0
    %3747 = vmatpush1.msra.mxu0 %v3744
    %3748 = vmatprep.subr.mxu0 0.0
    %3749 = vmatpush1.msra.mxu0 %v3745
    %3750 = vmatprep.subr.mxu0 0.0
    %3751 = vmatpush1.msra.mxu0 0.0
    %3752 = vmatprep.subr.mxu0 0.0
    %3753 = vmatpush1.msra.mxu0 0.0
    %3754 = vmatprep.subr.mxu0 0.0
    %3755 = vmatpush1.msra.mxu0 0.0
    %3756 = vmatprep.subr.mxu0 0.0
    %3757 = vmatpush1.msra.mxu0 0.0
    %3758 = vmatprep.subr.mxu0 0.0
    %3759 = vmatpush1.msra.mxu0 0.0
    %3760 = vmatprep.subr.mxu0 0.0
    %3761 = vmatpush1.msra.mxu0 0.0
    %3762 = vmatprep.subr.mxu0 0.0
    %3763 = vmatpush1.msra.mxu0 0.0
    %3764 = vmatprep.subr.mxu0 0.0
    %3765 = vmatpush1.msra.mxu0 0.0
    %3766 = vmatprep.subr.mxu0 0.0
    %3767 = vmatpush1.msra.mxu0 0.0
    %3768 = vmatprep.subr.mxu0 0.0
    %3769 = vmatpush1.msra.mxu0 0.0
    %3770 = vmatprep.subr.mxu0 0.0
    %3771 = vmatpush1.msra.mxu0 0.0
    %3772 = vmatprep.subr.mxu0 0.0
    %3773 = vmatpush1.msra.mxu0 0.0
    %3774 = vmatprep.subr.mxu0 0.0
    %3775 = vmatpush1.msra.mxu0 0.0
    %3776 = vmatprep.subr.mxu0 0.0
    %3777 = vmatpush1.msra.mxu0 0.0
    %3778 = vmatprep.subr.mxu0 0.0
    %3779 = vmatpush1.msra.mxu0 0.0
    %3780 = vmatprep.subr.mxu0 0.0
    %3781 = vmatpush1.msra.mxu0 0.0
    %3782 = vmatprep.subr.mxu0 0.0
    %3783 = vmatpush1.msra.mxu0 0.0
    %3784 = vmatprep.subr.mxu0 0.0
    %3785 = vmatpush1.msra.mxu0 0.0
    %3786 = vmatprep.subr.mxu0 0.0
    %3787 = vmatpush1.msra.mxu0 0.0
    %3788 = vmatprep.subr.mxu0 0.0
    %3789 = vmatpush1.msra.mxu0 0.0
    %3790 = vmatprep.subr.mxu0 0.0
    %3791 = vmatpush1.msra.mxu0 0.0
    %3792 = vmatprep.subr.mxu0 0.0
    %3793 = vmatpush1.msra.mxu0 0.0
    %3794 = vmatprep.subr.mxu0 0.0
    %3795 = vmatpush1.msra.mxu0 0.0
    %3796 = vmatprep.subr.mxu0 0.0
    %3797 = vmatpush1.msra.mxu0 0.0
    %3798 = vmatprep.subr.mxu0 0.0
    %3799 = vmatpush1.msra.mxu0 0.0
    %3800 = vmatprep.subr.mxu0 0.0
    %3801 = vmatpush1.msra.mxu0 0.0
    %3802 = vmatprep.subr.mxu0 0.0
    %3803 = vmatpush1.msra.mxu0 0.0
    %3804 = vmatprep.subr.mxu0 0.0
    %3805 = vmatpush1.msra.mxu0 0.0
    %3806 = vmatprep.subr.mxu0 0.0
    %3807 = vmatpush1.msra.mxu0 0.0
    %3808 = vmatprep.subr.mxu0 0.0
    %3809 = vmatpush1.msra.mxu0 0.0
    %3810 = vmatprep.mubr.f32.mxu0 0.0
    %3811 = vmatmul.mubr.f32.gmra.mrb[0].mxu0 %v2344
    %v3812 = vpop.f32.mrb[0].mxu0
    %v3813 = vadd.f32 0.0, %v3812
    %v3814 = vpop.f32.mrb[0].mxu0
    %3815 = vmatprep.mubr.f32.mxu0 0.0
    %3816 = vmatmul.mubr.f32.gmra.mrb[0].mxu0 %v2347
    %v3817 = vpop.f32.mrb[0].mxu0
    %v3818 = vadd.f32 0.0, %v3817
    %v3819 = vpop.f32.mrb[0].mxu0
    %3820 = vmatprep.mubr.f32.mxu0 0.0
    %3821 = vmatmul.mubr.f32.gmra.mrb[0].mxu0 %v2350
    %v3822 = vpop.f32.mrb[0].mxu0
    %v3823 = vadd.f32 0.0, %v3822
    %v3824 = vpop.f32.mrb[0].mxu0
    %3825 = vmatprep.mubr.f32.mxu0 0.0
    %3826 = vmatmul.mubr.f32.gmra.mrb[0].mxu0 %v2353
    %v3827 = vpop.f32.mrb[0].mxu0
    %v3828 = vadd.f32 0.0, %v3827
    %v3829 = vpop.f32.mrb[0].mxu0
    %3830 = vdwg.mxu0
    %v3831 = vmul.f32 %v3813, %v3732
    %v3832 = vmul.f32 %v3818, %v3733
    %v3833 = vsel %vm24, %v3831, 0.0
    %v3834 = vsel %vm24, %v3832, 0.0
    %v3835 = vadd.f32 %v3833, %v3834
    %v3836 = vrot.slane %v3835, 4
    %v3837 = vadd.f32 %v3835, %v3836
    %v3838 = vrot.slane %v3837, 2
    %v3839 = vadd.f32 %v3837, %v3838
    %v3840 = vrot.slane %v3839, 1
    %v3841 = vadd.f32 %v3839, %v3840
    %v3842 = vmul.f32 %v3823, %v3732
    %v3843 = vmul.f32 %v3828, %v3733
    %v3844 = vsel %vm24, %v3842, 0.0
    %v3845 = vsel %vm24, %v3843, 0.0
    %v3846 = vadd.f32 %v3844, %v3845
    %v3847 = vrot.slane %v3846, 4
    %v3848 = vadd.f32 %v3846, %v3847
    %v3849 = vrot.slane %v3848, 2
    %v3850 = vadd.f32 %v3848, %v3849
    %v3851 = vrot.slane %v3850, 1
    %v3852 = vadd.f32 %v3850, %v3851
    %v3853 = vadd.f32 %v3718, %v3841
    %3854 = vst.msk [vmem:[#allocation3 + $0xa] sm:$0x1] %vm2463, %v3853
    %v3855 = vadd.f32 %v3719, %v3852
    %3856 = vst.msk [vmem:[#allocation3 + $0x1a] sm:$0x1] %vm2463, %v3855
    %v3857 = vld [vmem:[#allocation2 + $0xb] sm:$0x1]
    %v3858 = vld [vmem:[#allocation2 + $0x1b] sm:$0x1]
    %v3859 = vadd.f32 %v3857, 11.0
    %v3860 = vadd.f32 %v10, %v3858
    %v3861 = vlaneseq
    %v3862 = vshrl.u32 %v3861, 7
    %v3863 = vsub.s32 0, %v3862
    %v3864 = vrot.slane %v3859, %v3863
    %v3865 = vsub.f32 %v3864, %v14
    %v3866 = vsub.f32 %v3864, %v15
    %v3867 = vand.u32 2147483647, %v3865
    %v3868 = vand.u32 2147483647, %v3866
    %v3869 = vsub.f32 1.0, %v3867
    %v3870 = vsub.f32 1.0, %v3868
    %v3871 = vmax.f32 %v3869, 0.0
    %v3872 = vmax.f32 %v3870, 0.0
    %v3873 = vlaneseq
    %v3874 = vshrl.u32 %v3873, 7
    %v3875 = vsub.s32 0, %v3874
    %v3876 = vrot.slane %v3860, %v3875
    %v3877 = vsub.f32 %v3876, %v14
    %v3878 = vsub.f32 %v3876, %v15
    %v3879 = vand.u32 2147483647, %v3877
    %v3880 = vand.u32 2147483647, %v3878
    %v3881 = vsub.f32 1.0, %v3879
    %v3882 = vsub.f32 1.0, %v3880
    %v3883 = vmax.f32 %v3881, 0.0
    %v3884 = vmax.f32 %v3882, 0.0
    %3885 = vmatprep.subr.mxu0 0.0
    %3886 = vmatpush1.msra.mxu0 %v3883
    %3887 = vmatprep.subr.mxu0 0.0
    %3888 = vmatpush1.msra.mxu0 %v3884
    %3889 = vmatprep.subr.mxu0 0.0
    %3890 = vmatpush1.msra.mxu0 0.0
    %3891 = vmatprep.subr.mxu0 0.0
    %3892 = vmatpush1.msra.mxu0 0.0
    %3893 = vmatprep.subr.mxu0 0.0
    %3894 = vmatpush1.msra.mxu0 0.0
    %3895 = vmatprep.subr.mxu0 0.0
    %3896 = vmatpush1.msra.mxu0 0.0
    %3897 = vmatprep.subr.mxu0 0.0
    %3898 = vmatpush1.msra.mxu0 0.0
    %3899 = vmatprep.subr.mxu0 0.0
    %3900 = vmatpush1.msra.mxu0 0.0
    %3901 = vmatprep.subr.mxu0 0.0
    %3902 = vmatpush1.msra.mxu0 0.0
    %3903 = vmatprep.subr.mxu0 0.0
    %3904 = vmatpush1.msra.mxu0 0.0
    %3905 = vmatprep.subr.mxu0 0.0
    %3906 = vmatpush1.msra.mxu0 0.0
    %3907 = vmatprep.subr.mxu0 0.0
    %3908 = vmatpush1.msra.mxu0 0.0
    %3909 = vmatprep.subr.mxu0 0.0
    %3910 = vmatpush1.msra.mxu0 0.0
    %3911 = vmatprep.subr.mxu0 0.0
    %3912 = vmatpush1.msra.mxu0 0.0
    %3913 = vmatprep.subr.mxu0 0.0
    %3914 = vmatpush1.msra.mxu0 0.0
    %3915 = vmatprep.subr.mxu0 0.0
    %3916 = vmatpush1.msra.mxu0 0.0
    %3917 = vmatprep.subr.mxu0 0.0
    %3918 = vmatpush1.msra.mxu0 0.0
    %3919 = vmatprep.subr.mxu0 0.0
    %3920 = vmatpush1.msra.mxu0 0.0
    %3921 = vmatprep.subr.mxu0 0.0
    %3922 = vmatpush1.msra.mxu0 0.0
    %3923 = vmatprep.subr.mxu0 0.0
    %3924 = vmatpush1.msra.mxu0 0.0
    %3925 = vmatprep.subr.mxu0 0.0
    %3926 = vmatpush1.msra.mxu0 0.0
    %3927 = vmatprep.subr.mxu0 0.0
    %3928 = vmatpush1.msra.mxu0 0.0
    %3929 = vmatprep.subr.mxu0 0.0
    %3930 = vmatpush1.msra.mxu0 0.0
    %3931 = vmatprep.subr.mxu0 0.0
    %3932 = vmatpush1.msra.mxu0 0.0
    %3933 = vmatprep.subr.mxu0 0.0
    %3934 = vmatpush1.msra.mxu0 0.0
    %3935 = vmatprep.subr.mxu0 0.0
    %3936 = vmatpush1.msra.mxu0 0.0
    %3937 = vmatprep.subr.mxu0 0.0
    %3938 = vmatpush1.msra.mxu0 0.0
    %3939 = vmatprep.subr.mxu0 0.0
    %3940 = vmatpush1.msra.mxu0 0.0
    %3941 = vmatprep.subr.mxu0 0.0
    %3942 = vmatpush1.msra.mxu0 0.0
    %3943 = vmatprep.subr.mxu0 0.0
    %3944 = vmatpush1.msra.mxu0 0.0
    %3945 = vmatprep.subr.mxu0 0.0
    %3946 = vmatpush1.msra.mxu0 0.0
    %3947 = vmatprep.subr.mxu0 0.0
    %3948 = vmatpush1.msra.mxu0 0.0
    %3949 = vmatprep.mubr.f32.mxu0 0.0
    %3950 = vmatmul.mubr.f32.gmra.mrb[0].mxu0 %v2344
    %v3951 = vpop.f32.mrb[0].mxu0
    %v3952 = vadd.f32 0.0, %v3951
    %v3953 = vpop.f32.mrb[0].mxu0
    %3954 = vmatprep.mubr.f32.mxu0 0.0
    %3955 = vmatmul.mubr.f32.gmra.mrb[0].mxu0 %v2347
    %v3956 = vpop.f32.mrb[0].mxu0
    %v3957 = vadd.f32 0.0, %v3956
    %v3958 = vpop.f32.mrb[0].mxu0
    %3959 = vmatprep.mubr.f32.mxu0 0.0
    %3960 = vmatmul.mubr.f32.gmra.mrb[0].mxu0 %v2350
    %v3961 = vpop.f32.mrb[0].mxu0
    %v3962 = vadd.f32 0.0, %v3961
    %v3963 = vpop.f32.mrb[0].mxu0
    %3964 = vmatprep.mubr.f32.mxu0 0.0
    %3965 = vmatmul.mubr.f32.gmra.mrb[0].mxu0 %v2353
    %v3966 = vpop.f32.mrb[0].mxu0
    %v3967 = vadd.f32 0.0, %v3966
    %v3968 = vpop.f32.mrb[0].mxu0
    %3969 = vdwg.mxu0
    %v3970 = vmul.f32 %v3952, %v3871
    %v3971 = vmul.f32 %v3957, %v3872
    %v3972 = vsel %vm24, %v3970, 0.0
    %v3973 = vsel %vm24, %v3971, 0.0
    %v3974 = vadd.f32 %v3972, %v3973
    %v3975 = vrot.slane %v3974, 4
    %v3976 = vadd.f32 %v3974, %v3975
    %v3977 = vrot.slane %v3976, 2
    %v3978 = vadd.f32 %v3976, %v3977
    %v3979 = vrot.slane %v3978, 1
    %v3980 = vadd.f32 %v3978, %v3979
    %v3981 = vmul.f32 %v3962, %v3871
    %v3982 = vmul.f32 %v3967, %v3872
    %v3983 = vsel %vm24, %v3981, 0.0
    %v3984 = vsel %vm24, %v3982, 0.0
    %v3985 = vadd.f32 %v3983, %v3984
    %v3986 = vrot.slane %v3985, 4
    %v3987 = vadd.f32 %v3985, %v3986
    %v3988 = vrot.slane %v3987, 2
    %v3989 = vadd.f32 %v3987, %v3988
    %v3990 = vrot.slane %v3989, 1
    %v3991 = vadd.f32 %v3989, %v3990
    %v3992 = vadd.f32 %v3857, %v3980
    %3993 = vst.msk [vmem:[#allocation3 + $0xb] sm:$0x1] %vm2463, %v3992
    %v3994 = vadd.f32 %v3858, %v3991
    %3995 = vst.msk [vmem:[#allocation3 + $0x1b] sm:$0x1] %vm2463, %v3994
    %v3996 = vld [vmem:[#allocation2 + $0xc] sm:$0x1]
    %v3997 = vld [vmem:[#allocation2 + $0x1c] sm:$0x1]
    %v3998 = vadd.f32 %v3996, 12.0
    %v3999 = vadd.f32 %v10, %v3997
    %v4000 = vlaneseq
    %v4001 = vshrl.u32 %v4000, 7
    %v4002 = vsub.s32 0, %v4001
    %v4003 = vrot.slane %v3998, %v4002
    %v4004 = vsub.f32 %v4003, %v14
    %v4005 = vsub.f32 %v4003, %v15
    %v4006 = vand.u32 2147483647, %v4004
    %v4007 = vand.u32 2147483647, %v4005
    %v4008 = vsub.f32 1.0, %v4006
    %v4009 = vsub.f32 1.0, %v4007
    %v4010 = vmax.f32 %v4008, 0.0
    %v4011 = vmax.f32 %v4009, 0.0
    %v4012 = vlaneseq
    %v4013 = vshrl.u32 %v4012, 7
    %v4014 = vsub.s32 0, %v4013
    %v4015 = vrot.slane %v3999, %v4014
    %v4016 = vsub.f32 %v4015, %v14
    %v4017 = vsub.f32 %v4015, %v15
    %v4018 = vand.u32 2147483647, %v4016
    %v4019 = vand.u32 2147483647, %v4017
    %v4020 = vsub.f32 1.0, %v4018
    %v4021 = vsub.f32 1.0, %v4019
    %v4022 = vmax.f32 %v4020, 0.0
    %v4023 = vmax.f32 %v4021, 0.0
    %4024 = vmatprep.subr.mxu0 0.0
    %4025 = vmatpush1.msra.mxu0 %v4022
    %4026 = vmatprep.subr.mxu0 0.0
    %4027 = vmatpush1.msra.mxu0 %v4023
    %4028 = vmatprep.subr.mxu0 0.0
    %4029 = vmatpush1.msra.mxu0 0.0
    %4030 = vmatprep.subr.mxu0 0.0
    %4031 = vmatpush1.msra.mxu0 0.0
    %4032 = vmatprep.subr.mxu0 0.0
    %4033 = vmatpush1.msra.mxu0 0.0
    %4034 = vmatprep.subr.mxu0 0.0
    %4035 = vmatpush1.msra.mxu0 0.0
    %4036 = vmatprep.subr.mxu0 0.0
    %4037 = vmatpush1.msra.mxu0 0.0
    %4038 = vmatprep.subr.mxu0 0.0
    %4039 = vmatpush1.msra.mxu0 0.0
    %4040 = vmatprep.subr.mxu0 0.0
    %4041 = vmatpush1.msra.mxu0 0.0
    %4042 = vmatprep.subr.mxu0 0.0
    %4043 = vmatpush1.msra.mxu0 0.0
    %4044 = vmatprep.subr.mxu0 0.0
    %4045 = vmatpush1.msra.mxu0 0.0
    %4046 = vmatprep.subr.mxu0 0.0
    %4047 = vmatpush1.msra.mxu0 0.0
    %4048 = vmatprep.subr.mxu0 0.0
    %4049 = vmatpush1.msra.mxu0 0.0
    %4050 = vmatprep.subr.mxu0 0.0
    %4051 = vmatpush1.msra.mxu0 0.0
    %4052 = vmatprep.subr.mxu0 0.0
    %4053 = vmatpush1.msra.mxu0 0.0
    %4054 = vmatprep.subr.mxu0 0.0
    %4055 = vmatpush1.msra.mxu0 0.0
    %4056 = vmatprep.subr.mxu0 0.0
    %4057 = vmatpush1.msra.mxu0 0.0
    %4058 = vmatprep.subr.mxu0 0.0
    %4059 = vmatpush1.msra.mxu0 0.0
    %4060 = vmatprep.subr.mxu0 0.0
    %4061 = vmatpush1.msra.mxu0 0.0
    %4062 = vmatprep.subr.mxu0 0.0
    %4063 = vmatpush1.msra.mxu0 0.0
    %4064 = vmatprep.subr.mxu0 0.0
    %4065 = vmatpush1.msra.mxu0 0.0
    %4066 = vmatprep.subr.mxu0 0.0
    %4067 = vmatpush1.msra.mxu0 0.0
    %4068 = vmatprep.subr.mxu0 0.0
    %4069 = vmatpush1.msra.mxu0 0.0
    %4070 = vmatprep.subr.mxu0 0.0
    %4071 = vmatpush1.msra.mxu0 0.0
    %4072 = vmatprep.subr.mxu0 0.0
    %4073 = vmatpush1.msra.mxu0 0.0
    %4074 = vmatprep.subr.mxu0 0.0
    %4075 = vmatpush1.msra.mxu0 0.0
    %4076 = vmatprep.subr.mxu0 0.0
    %4077 = vmatpush1.msra.mxu0 0.0
    %4078 = vmatprep.subr.mxu0 0.0
    %4079 = vmatpush1.msra.mxu0 0.0
    %4080 = vmatprep.subr.mxu0 0.0
    %4081 = vmatpush1.msra.mxu0 0.0
    %4082 = vmatprep.subr.mxu0 0.0
    %4083 = vmatpush1.msra.mxu0 0.0
    %4084 = vmatprep.subr.mxu0 0.0
    %4085 = vmatpush1.msra.mxu0 0.0
    %4086 = vmatprep.subr.mxu0 0.0
    %4087 = vmatpush1.msra.mxu0 0.0
    %4088 = vmatprep.mubr.f32.mxu0 0.0
    %4089 = vmatmul.mubr.f32.gmra.mrb[0].mxu0 %v2344
    %v4090 = vpop.f32.mrb[0].mxu0
    %v4091 = vadd.f32 0.0, %v4090
    %v4092 = vpop.f32.mrb[0].mxu0
    %4093 = vmatprep.mubr.f32.mxu0 0.0
    %4094 = vmatmul.mubr.f32.gmra.mrb[0].mxu0 %v2347
    %v4095 = vpop.f32.mrb[0].mxu0
    %v4096 = vadd.f32 0.0, %v4095
    %v4097 = vpop.f32.mrb[0].mxu0
    %4098 = vmatprep.mubr.f32.mxu0 0.0
    %4099 = vmatmul.mubr.f32.gmra.mrb[0].mxu0 %v2350
    %v4100 = vpop.f32.mrb[0].mxu0
    %v4101 = vadd.f32 0.0, %v4100
    %v4102 = vpop.f32.mrb[0].mxu0
    %4103 = vmatprep.mubr.f32.mxu0 0.0
    %4104 = vmatmul.mubr.f32.gmra.mrb[0].mxu0 %v2353
    %v4105 = vpop.f32.mrb[0].mxu0
    %v4106 = vadd.f32 0.0, %v4105
    %v4107 = vpop.f32.mrb[0].mxu0
    %4108 = vdwg.mxu0
    %v4109 = vmul.f32 %v4091, %v4010
    %v4110 = vmul.f32 %v4096, %v4011
    %v4111 = vsel %vm24, %v4109, 0.0
    %v4112 = vsel %vm24, %v4110, 0.0
    %v4113 = vadd.f32 %v4111, %v4112
    %v4114 = vrot.slane %v4113, 4
    %v4115 = vadd.f32 %v4113, %v4114
    %v4116 = vrot.slane %v4115, 2
    %v4117 = vadd.f32 %v4115, %v4116
    %v4118 = vrot.slane %v4117, 1
    %v4119 = vadd.f32 %v4117, %v4118
    %v4120 = vmul.f32 %v4101, %v4010
    %v4121 = vmul.f32 %v4106, %v4011
    %v4122 = vsel %vm24, %v4120, 0.0
    %v4123 = vsel %vm24, %v4121, 0.0
    %v4124 = vadd.f32 %v4122, %v4123
    %v4125 = vrot.slane %v4124, 4
    %v4126 = vadd.f32 %v4124, %v4125
    %v4127 = vrot.slane %v4126, 2
    %v4128 = vadd.f32 %v4126, %v4127
    %v4129 = vrot.slane %v4128, 1
    %v4130 = vadd.f32 %v4128, %v4129
    %v4131 = vadd.f32 %v3996, %v4119
    %4132 = vst.msk [vmem:[#allocation3 + $0xc] sm:$0x1] %vm2463, %v4131
    %v4133 = vadd.f32 %v3997, %v4130
    %4134 = vst.msk [vmem:[#allocation3 + $0x1c] sm:$0x1] %vm2463, %v4133
    %v4135 = vld [vmem:[#allocation2 + $0xd] sm:$0x1]
    %v4136 = vld [vmem:[#allocation2 + $0x1d] sm:$0x1]
    %v4137 = vadd.f32 %v4135, 13.0
    %v4138 = vadd.f32 %v10, %v4136
    %v4139 = vlaneseq
    %v4140 = vshrl.u32 %v4139, 7
    %v4141 = vsub.s32 0, %v4140
    %v4142 = vrot.slane %v4137, %v4141
    %v4143 = vsub.f32 %v4142, %v14
    %v4144 = vsub.f32 %v4142, %v15
    %v4145 = vand.u32 2147483647, %v4143
    %v4146 = vand.u32 2147483647, %v4144
    %v4147 = vsub.f32 1.0, %v4145
    %v4148 = vsub.f32 1.0, %v4146
    %v4149 = vmax.f32 %v4147, 0.0
    %v4150 = vmax.f32 %v4148, 0.0
    %v4151 = vlaneseq
    %v4152 = vshrl.u32 %v4151, 7
    %v4153 = vsub.s32 0, %v4152
    %v4154 = vrot.slane %v4138, %v4153
    %v4155 = vsub.f32 %v4154, %v14
    %v4156 = vsub.f32 %v4154, %v15
    %v4157 = vand.u32 2147483647, %v4155
    %v4158 = vand.u32 2147483647, %v4156
    %v4159 = vsub.f32 1.0, %v4157
    %v4160 = vsub.f32 1.0, %v4158
    %v4161 = vmax.f32 %v4159, 0.0
    %v4162 = vmax.f32 %v4160, 0.0
    %4163 = vmatprep.subr.mxu0 0.0
    %4164 = vmatpush1.msra.mxu0 %v4161
    %4165 = vmatprep.subr.mxu0 0.0
    %4166 = vmatpush1.msra.mxu0 %v4162
    %4167 = vmatprep.subr.mxu0 0.0
    %4168 = vmatpush1.msra.mxu0 0.0
    %4169 = vmatprep.subr.mxu0 0.0
    %4170 = vmatpush1.msra.mxu0 0.0
    %4171 = vmatprep.subr.mxu0 0.0
    %4172 = vmatpush1.msra.mxu0 0.0
    %4173 = vmatprep.subr.mxu0 0.0
    %4174 = vmatpush1.msra.mxu0 0.0
    %4175 = vmatprep.subr.mxu0 0.0
    %4176 = vmatpush1.msra.mxu0 0.0
    %4177 = vmatprep.subr.mxu0 0.0
    %4178 = vmatpush1.msra.mxu0 0.0
    %4179 = vmatprep.subr.mxu0 0.0
    %4180 = vmatpush1.msra.mxu0 0.0
    %4181 = vmatprep.subr.mxu0 0.0
    %4182 = vmatpush1.msra.mxu0 0.0
    %4183 = vmatprep.subr.mxu0 0.0
    %4184 = vmatpush1.msra.mxu0 0.0
    %4185 = vmatprep.subr.mxu0 0.0
    %4186 = vmatpush1.msra.mxu0 0.0
    %4187 = vmatprep.subr.mxu0 0.0
    %4188 = vmatpush1.msra.mxu0 0.0
    %4189 = vmatprep.subr.mxu0 0.0
    %4190 = vmatpush1.msra.mxu0 0.0
    %4191 = vmatprep.subr.mxu0 0.0
    %4192 = vmatpush1.msra.mxu0 0.0
    %4193 = vmatprep.subr.mxu0 0.0
    %4194 = vmatpush1.msra.mxu0 0.0
    %4195 = vmatprep.subr.mxu0 0.0
    %4196 = vmatpush1.msra.mxu0 0.0
    %4197 = vmatprep.subr.mxu0 0.0
    %4198 = vmatpush1.msra.mxu0 0.0
    %4199 = vmatprep.subr.mxu0 0.0
    %4200 = vmatpush1.msra.mxu0 0.0
    %4201 = vmatprep.subr.mxu0 0.0
    %4202 = vmatpush1.msra.mxu0 0.0
    %4203 = vmatprep.subr.mxu0 0.0
    %4204 = vmatpush1.msra.mxu0 0.0
    %4205 = vmatprep.subr.mxu0 0.0
    %4206 = vmatpush1.msra.mxu0 0.0
    %4207 = vmatprep.subr.mxu0 0.0
    %4208 = vmatpush1.msra.mxu0 0.0
    %4209 = vmatprep.subr.mxu0 0.0
    %4210 = vmatpush1.msra.mxu0 0.0
    %4211 = vmatprep.subr.mxu0 0.0
    %4212 = vmatpush1.msra.mxu0 0.0
    %4213 = vmatprep.subr.mxu0 0.0
    %4214 = vmatpush1.msra.mxu0 0.0
    %4215 = vmatprep.subr.mxu0 0.0
    %4216 = vmatpush1.msra.mxu0 0.0
    %4217 = vmatprep.subr.mxu0 0.0
    %4218 = vmatpush1.msra.mxu0 0.0
    %4219 = vmatprep.subr.mxu0 0.0
    %4220 = vmatpush1.msra.mxu0 0.0
    %4221 = vmatprep.subr.mxu0 0.0
    %4222 = vmatpush1.msra.mxu0 0.0
    %4223 = vmatprep.subr.mxu0 0.0
    %4224 = vmatpush1.msra.mxu0 0.0
    %4225 = vmatprep.subr.mxu0 0.0
    %4226 = vmatpush1.msra.mxu0 0.0
    %4227 = vmatprep.mubr.f32.mxu0 0.0
    %4228 = vmatmul.mubr.f32.gmra.mrb[0].mxu0 %v2344
    %v4229 = vpop.f32.mrb[0].mxu0
    %v4230 = vadd.f32 0.0, %v4229
    %v4231 = vpop.f32.mrb[0].mxu0
    %4232 = vmatprep.mubr.f32.mxu0 0.0
    %4233 = vmatmul.mubr.f32.gmra.mrb[0].mxu0 %v2347
    %v4234 = vpop.f32.mrb[0].mxu0
    %v4235 = vadd.f32 0.0, %v4234
    %v4236 = vpop.f32.mrb[0].mxu0
    %4237 = vmatprep.mubr.f32.mxu0 0.0
    %4238 = vmatmul.mubr.f32.gmra.mrb[0].mxu0 %v2350
    %v4239 = vpop.f32.mrb[0].mxu0
    %v4240 = vadd.f32 0.0, %v4239
    %v4241 = vpop.f32.mrb[0].mxu0
    %4242 = vmatprep.mubr.f32.mxu0 0.0
    %4243 = vmatmul.mubr.f32.gmra.mrb[0].mxu0 %v2353
    %v4244 = vpop.f32.mrb[0].mxu0
    %v4245 = vadd.f32 0.0, %v4244
    %v4246 = vpop.f32.mrb[0].mxu0
    %4247 = vdwg.mxu0
    %v4248 = vmul.f32 %v4230, %v4149
    %v4249 = vmul.f32 %v4235, %v4150
    %v4250 = vsel %vm24, %v4248, 0.0
    %v4251 = vsel %vm24, %v4249, 0.0
    %v4252 = vadd.f32 %v4250, %v4251
    %v4253 = vrot.slane %v4252, 4
    %v4254 = vadd.f32 %v4252, %v4253
    %v4255 = vrot.slane %v4254, 2
    %v4256 = vadd.f32 %v4254, %v4255
    %v4257 = vrot.slane %v4256, 1
    %v4258 = vadd.f32 %v4256, %v4257
    %v4259 = vmul.f32 %v4240, %v4149
    %v4260 = vmul.f32 %v4245, %v4150
    %v4261 = vsel %vm24, %v4259, 0.0
    %v4262 = vsel %vm24, %v4260, 0.0
    %v4263 = vadd.f32 %v4261, %v4262
    %v4264 = vrot.slane %v4263, 4
    %v4265 = vadd.f32 %v4263, %v4264
    %v4266 = vrot.slane %v4265, 2
    %v4267 = vadd.f32 %v4265, %v4266
    %v4268 = vrot.slane %v4267, 1
    %v4269 = vadd.f32 %v4267, %v4268
    %v4270 = vadd.f32 %v4135, %v4258
    %4271 = vst.msk [vmem:[#allocation3 + $0xd] sm:$0x1] %vm2463, %v4270
    %v4272 = vadd.f32 %v4136, %v4269
    %4273 = vst.msk [vmem:[#allocation3 + $0x1d] sm:$0x1] %vm2463, %v4272
    %v4274 = vld [vmem:[#allocation2 + $0xe] sm:$0x1]
    %v4275 = vld [vmem:[#allocation2 + $0x1e] sm:$0x1]
    %v4276 = vadd.f32 %v4274, 14.0
    %v4277 = vadd.f32 %v10, %v4275
    %v4278 = vlaneseq
    %v4279 = vshrl.u32 %v4278, 7
    %v4280 = vsub.s32 0, %v4279
    %v4281 = vrot.slane %v4276, %v4280
    %v4282 = vsub.f32 %v4281, %v14
    %v4283 = vsub.f32 %v4281, %v15
    %v4284 = vand.u32 2147483647, %v4282
    %v4285 = vand.u32 2147483647, %v4283
    %v4286 = vsub.f32 1.0, %v4284
    %v4287 = vsub.f32 1.0, %v4285
    %v4288 = vmax.f32 %v4286, 0.0
    %v4289 = vmax.f32 %v4287, 0.0
    %v4290 = vlaneseq
    %v4291 = vshrl.u32 %v4290, 7
    %v4292 = vsub.s32 0, %v4291
    %v4293 = vrot.slane %v4277, %v4292
    %v4294 = vsub.f32 %v4293, %v14
    %v4295 = vsub.f32 %v4293, %v15
    %v4296 = vand.u32 2147483647, %v4294
    %v4297 = vand.u32 2147483647, %v4295
    %v4298 = vsub.f32 1.0, %v4296
    %v4299 = vsub.f32 1.0, %v4297
    %v4300 = vmax.f32 %v4298, 0.0
    %v4301 = vmax.f32 %v4299, 0.0
    %4302 = vmatprep.subr.mxu0 0.0
    %4303 = vmatpush1.msra.mxu0 %v4300
    %4304 = vmatprep.subr.mxu0 0.0
    %4305 = vmatpush1.msra.mxu0 %v4301
    %4306 = vmatprep.subr.mxu0 0.0
    %4307 = vmatpush1.msra.mxu0 0.0
    %4308 = vmatprep.subr.mxu0 0.0
    %4309 = vmatpush1.msra.mxu0 0.0
    %4310 = vmatprep.subr.mxu0 0.0
    %4311 = vmatpush1.msra.mxu0 0.0
    %4312 = vmatprep.subr.mxu0 0.0
    %4313 = vmatpush1.msra.mxu0 0.0
    %4314 = vmatprep.subr.mxu0 0.0
    %4315 = vmatpush1.msra.mxu0 0.0
    %4316 = vmatprep.subr.mxu0 0.0
    %4317 = vmatpush1.msra.mxu0 0.0
    %4318 = vmatprep.subr.mxu0 0.0
    %4319 = vmatpush1.msra.mxu0 0.0
    %4320 = vmatprep.subr.mxu0 0.0
    %4321 = vmatpush1.msra.mxu0 0.0
    %4322 = vmatprep.subr.mxu0 0.0
    %4323 = vmatpush1.msra.mxu0 0.0
    %4324 = vmatprep.subr.mxu0 0.0
    %4325 = vmatpush1.msra.mxu0 0.0
    %4326 = vmatprep.subr.mxu0 0.0
    %4327 = vmatpush1.msra.mxu0 0.0
    %4328 = vmatprep.subr.mxu0 0.0
    %4329 = vmatpush1.msra.mxu0 0.0
    %4330 = vmatprep.subr.mxu0 0.0
    %4331 = vmatpush1.msra.mxu0 0.0
    %4332 = vmatprep.subr.mxu0 0.0
    %4333 = vmatpush1.msra.mxu0 0.0
    %4334 = vmatprep.subr.mxu0 0.0
    %4335 = vmatpush1.msra.mxu0 0.0
    %4336 = vmatprep.subr.mxu0 0.0
    %4337 = vmatpush1.msra.mxu0 0.0
    %4338 = vmatprep.subr.mxu0 0.0
    %4339 = vmatpush1.msra.mxu0 0.0
    %4340 = vmatprep.subr.mxu0 0.0
    %4341 = vmatpush1.msra.mxu0 0.0
    %4342 = vmatprep.subr.mxu0 0.0
    %4343 = vmatpush1.msra.mxu0 0.0
    %4344 = vmatprep.subr.mxu0 0.0
    %4345 = vmatpush1.msra.mxu0 0.0
    %4346 = vmatprep.subr.mxu0 0.0
    %4347 = vmatpush1.msra.mxu0 0.0
    %4348 = vmatprep.subr.mxu0 0.0
    %4349 = vmatpush1.msra.mxu0 0.0
    %4350 = vmatprep.subr.mxu0 0.0
    %4351 = vmatpush1.msra.mxu0 0.0
    %4352 = vmatprep.subr.mxu0 0.0
    %4353 = vmatpush1.msra.mxu0 0.0
    %4354 = vmatprep.subr.mxu0 0.0
    %4355 = vmatpush1.msra.mxu0 0.0
    %4356 = vmatprep.subr.mxu0 0.0
    %4357 = vmatpush1.msra.mxu0 0.0
    %4358 = vmatprep.subr.mxu0 0.0
    %4359 = vmatpush1.msra.mxu0 0.0
    %4360 = vmatprep.subr.mxu0 0.0
    %4361 = vmatpush1.msra.mxu0 0.0
    %4362 = vmatprep.subr.mxu0 0.0
    %4363 = vmatpush1.msra.mxu0 0.0
    %4364 = vmatprep.subr.mxu0 0.0
    %4365 = vmatpush1.msra.mxu0 0.0
    %4366 = vmatprep.mubr.f32.mxu0 0.0
    %4367 = vmatmul.mubr.f32.gmra.mrb[0].mxu0 %v2344
    %v4368 = vpop.f32.mrb[0].mxu0
    %v4369 = vadd.f32 0.0, %v4368
    %v4370 = vpop.f32.mrb[0].mxu0
    %4371 = vmatprep.mubr.f32.mxu0 0.0
    %4372 = vmatmul.mubr.f32.gmra.mrb[0].mxu0 %v2347
    %v4373 = vpop.f32.mrb[0].mxu0
    %v4374 = vadd.f32 0.0, %v4373
    %v4375 = vpop.f32.mrb[0].mxu0
    %4376 = vmatprep.mubr.f32.mxu0 0.0
    %4377 = vmatmul.mubr.f32.gmra.mrb[0].mxu0 %v2350
    %v4378 = vpop.f32.mrb[0].mxu0
    %v4379 = vadd.f32 0.0, %v4378
    %v4380 = vpop.f32.mrb[0].mxu0
    %4381 = vmatprep.mubr.f32.mxu0 0.0
    %4382 = vmatmul.mubr.f32.gmra.mrb[0].mxu0 %v2353
    %v4383 = vpop.f32.mrb[0].mxu0
    %v4384 = vadd.f32 0.0, %v4383
    %v4385 = vpop.f32.mrb[0].mxu0
    %4386 = vdwg.mxu0
    %v4387 = vmul.f32 %v4369, %v4288
    %v4388 = vmul.f32 %v4374, %v4289
    %v4389 = vsel %vm24, %v4387, 0.0
    %v4390 = vsel %vm24, %v4388, 0.0
    %v4391 = vadd.f32 %v4389, %v4390
    %v4392 = vrot.slane %v4391, 4
    %v4393 = vadd.f32 %v4391, %v4392
    %v4394 = vrot.slane %v4393, 2
    %v4395 = vadd.f32 %v4393, %v4394
    %v4396 = vrot.slane %v4395, 1
    %v4397 = vadd.f32 %v4395, %v4396
    %v4398 = vmul.f32 %v4379, %v4288
    %v4399 = vmul.f32 %v4384, %v4289
    %v4400 = vsel %vm24, %v4398, 0.0
    %v4401 = vsel %vm24, %v4399, 0.0
    %v4402 = vadd.f32 %v4400, %v4401
    %v4403 = vrot.slane %v4402, 4
    %v4404 = vadd.f32 %v4402, %v4403
    %v4405 = vrot.slane %v4404, 2
    %v4406 = vadd.f32 %v4404, %v4405
    %v4407 = vrot.slane %v4406, 1
    %v4408 = vadd.f32 %v4406, %v4407
    %v4409 = vadd.f32 %v4274, %v4397
    %4410 = vst.msk [vmem:[#allocation3 + $0xe] sm:$0x1] %vm2463, %v4409
    %v4411 = vadd.f32 %v4275, %v4408
    %4412 = vst.msk [vmem:[#allocation3 + $0x1e] sm:$0x1] %vm2463, %v4411
    %v4413 = vld [vmem:[#allocation2 + $0xf] sm:$0x1]
    %v4414 = vld [vmem:[#allocation2 + $0x1f] sm:$0x1]
    %v4415 = vadd.f32 %v4413, 15.0
    %v4416 = vadd.f32 %v10, %v4414
    %v4417 = vlaneseq
    %v4418 = vshrl.u32 %v4417, 7
    %v4419 = vsub.s32 0, %v4418
    %v4420 = vrot.slane %v4415, %v4419
    %v4421 = vsub.f32 %v4420, %v14
    %v4422 = vsub.f32 %v4420, %v15
    %v4423 = vand.u32 2147483647, %v4421
    %v4424 = vand.u32 2147483647, %v4422
    %v4425 = vsub.f32 1.0, %v4423
    %v4426 = vsub.f32 1.0, %v4424
    %v4427 = vmax.f32 %v4425, 0.0
    %v4428 = vmax.f32 %v4426, 0.0
    %v4429 = vlaneseq
    %v4430 = vshrl.u32 %v4429, 7
    %v4431 = vsub.s32 0, %v4430
    %v4432 = vrot.slane %v4416, %v4431
    %v4433 = vsub.f32 %v4432, %v14
    %v4434 = vsub.f32 %v4432, %v15
    %v4435 = vand.u32 2147483647, %v4433
    %v4436 = vand.u32 2147483647, %v4434
    %v4437 = vsub.f32 1.0, %v4435
    %v4438 = vsub.f32 1.0, %v4436
    %v4439 = vmax.f32 %v4437, 0.0
    %v4440 = vmax.f32 %v4438, 0.0
    %4441 = vmatprep.subr.mxu0 0.0
    %4442 = vmatpush1.msra.mxu0 %v4439
    %4443 = vmatprep.subr.mxu0 0.0
    %4444 = vmatpush1.msra.mxu0 %v4440
    %4445 = vmatprep.subr.mxu0 0.0
    %4446 = vmatpush1.msra.mxu0 0.0
    %4447 = vmatprep.subr.mxu0 0.0
    %4448 = vmatpush1.msra.mxu0 0.0
    %4449 = vmatprep.subr.mxu0 0.0
    %4450 = vmatpush1.msra.mxu0 0.0
    %4451 = vmatprep.subr.mxu0 0.0
    %4452 = vmatpush1.msra.mxu0 0.0
    %4453 = vmatprep.subr.mxu0 0.0
    %4454 = vmatpush1.msra.mxu0 0.0
    %4455 = vmatprep.subr.mxu0 0.0
    %4456 = vmatpush1.msra.mxu0 0.0
    %4457 = vmatprep.subr.mxu0 0.0
    %4458 = vmatpush1.msra.mxu0 0.0
    %4459 = vmatprep.subr.mxu0 0.0
    %4460 = vmatpush1.msra.mxu0 0.0
    %4461 = vmatprep.subr.mxu0 0.0
    %4462 = vmatpush1.msra.mxu0 0.0
    %4463 = vmatprep.subr.mxu0 0.0
    %4464 = vmatpush1.msra.mxu0 0.0
    %4465 = vmatprep.subr.mxu0 0.0
    %4466 = vmatpush1.msra.mxu0 0.0
    %4467 = vmatprep.subr.mxu0 0.0
    %4468 = vmatpush1.msra.mxu0 0.0
    %4469 = vmatprep.subr.mxu0 0.0
    %4470 = vmatpush1.msra.mxu0 0.0
    %4471 = vmatprep.subr.mxu0 0.0
    %4472 = vmatpush1.msra.mxu0 0.0
    %4473 = vmatprep.subr.mxu0 0.0
    %4474 = vmatpush1.msra.mxu0 0.0
    %4475 = vmatprep.subr.mxu0 0.0
    %4476 = vmatpush1.msra.mxu0 0.0
    %4477 = vmatprep.subr.mxu0 0.0
    %4478 = vmatpush1.msra.mxu0 0.0
    %4479 = vmatprep.subr.mxu0 0.0
    %4480 = vmatpush1.msra.mxu0 0.0
    %4481 = vmatprep.subr.mxu0 0.0
    %4482 = vmatpush1.msra.mxu0 0.0
    %4483 = vmatprep.subr.mxu0 0.0
    %4484 = vmatpush1.msra.mxu0 0.0
    %4485 = vmatprep.subr.mxu0 0.0
    %4486 = vmatpush1.msra.mxu0 0.0
    %4487 = vmatprep.subr.mxu0 0.0
    %4488 = vmatpush1.msra.mxu0 0.0
    %4489 = vmatprep.subr.mxu0 0.0
    %4490 = vmatpush1.msra.mxu0 0.0
    %4491 = vmatprep.subr.mxu0 0.0
    %4492 = vmatpush1.msra.mxu0 0.0
    %4493 = vmatprep.subr.mxu0 0.0
    %4494 = vmatpush1.msra.mxu0 0.0
    %4495 = vmatprep.subr.mxu0 0.0
    %4496 = vmatpush1.msra.mxu0 0.0
    %4497 = vmatprep.subr.mxu0 0.0
    %4498 = vmatpush1.msra.mxu0 0.0
    %4499 = vmatprep.subr.mxu0 0.0
    %4500 = vmatpush1.msra.mxu0 0.0
    %4501 = vmatprep.subr.mxu0 0.0
    %4502 = vmatpush1.msra.mxu0 0.0
    %4503 = vmatprep.subr.mxu0 0.0
    %4504 = vmatpush1.msra.mxu0 0.0
    %4505 = vmatprep.mubr.f32.mxu0 0.0
    %4506 = vmatmul.mubr.f32.gmra.mrb[0].mxu0 %v2344
    %v4507 = vpop.f32.mrb[0].mxu0
    %v4508 = vadd.f32 0.0, %v4507
    %v4509 = vpop.f32.mrb[0].mxu0
    %4510 = vmatprep.mubr.f32.mxu0 0.0
    %4511 = vmatmul.mubr.f32.gmra.mrb[0].mxu0 %v2347
    %v4512 = vpop.f32.mrb[0].mxu0
    %v4513 = vadd.f32 0.0, %v4512
    %v4514 = vpop.f32.mrb[0].mxu0
    %4515 = vmatprep.mubr.f32.mxu0 0.0
    %4516 = vmatmul.mubr.f32.gmra.mrb[0].mxu0 %v2350
    %v4517 = vpop.f32.mrb[0].mxu0
    %v4518 = vadd.f32 0.0, %v4517
    %v4519 = vpop.f32.mrb[0].mxu0
    %4520 = vmatprep.mubr.f32.mxu0 0.0
    %4521 = vmatmul.mubr.f32.gmra.mrb[0].mxu0 %v2353
    %v4522 = vpop.f32.mrb[0].mxu0
    %v4523 = vadd.f32 0.0, %v4522
    %v4524 = vpop.f32.mrb[0].mxu0
    %4525 = vdwg.mxu0
    %v4526 = vmul.f32 %v4508, %v4427
    %v4527 = vmul.f32 %v4513, %v4428
    %v4528 = vsel %vm24, %v4526, 0.0
    %v4529 = vsel %vm24, %v4527, 0.0
    %v4530 = vadd.f32 %v4528, %v4529
    %v4531 = vrot.slane %v4530, 4
    %v4532 = vadd.f32 %v4530, %v4531
    %v4533 = vrot.slane %v4532, 2
    %v4534 = vadd.f32 %v4532, %v4533
    %v4535 = vrot.slane %v4534, 1
    %v4536 = vadd.f32 %v4534, %v4535
    %v4537 = vmul.f32 %v4518, %v4427
    %v4538 = vmul.f32 %v4523, %v4428
    %v4539 = vsel %vm24, %v4537, 0.0
    %v4540 = vsel %vm24, %v4538, 0.0
    %v4541 = vadd.f32 %v4539, %v4540
    %v4542 = vrot.slane %v4541, 4
    %v4543 = vadd.f32 %v4541, %v4542
    %v4544 = vrot.slane %v4543, 2
    %v4545 = vadd.f32 %v4543, %v4544
    %v4546 = vrot.slane %v4545, 1
    %v4547 = vadd.f32 %v4545, %v4546
    %v4548 = vadd.f32 %v4413, %v4536
    %4549 = vst.msk [vmem:[#allocation3 + $0xf] sm:$0x1] %vm2463, %v4548
    %v4550 = vadd.f32 %v4414, %v4547
    %4551 = vst.msk [vmem:[#allocation3 + $0x1f] sm:$0x1] %vm2463, %v4550
    %v4552 = vld [vmem:[#allocation3] sm:$0xff]
    %v4553 = vld [vmem:[#allocation3 + $0x8] sm:$0xff]
    %v4554 = vld [vmem:[#allocation3 + $0x10] sm:$0xff]
    %v4555 = vld [vmem:[#allocation3 + $0x18] sm:$0xff]
    %4556 = vst.msk [vmem:[#allocation2] sm:$0xff] %vm24, %v4552
    %4557 = vst.msk [vmem:[#allocation2 + $0x8] sm:$0xff] %vm24, %v4553
    %4558 = vst.msk [vmem:[#allocation2 + $0x10] sm:$0xff] %vm24, %v4554
    %4559 = vst.msk [vmem:[#allocation2 + $0x18] sm:$0xff] %vm24, %v4555
  $region17: #{tpu_custom_call.1} parent=0 // loop_footer
    %s2310 = sadd.s32 1, %s2306
  $region18: #{tpu_custom_call.1} parent=0 // loop_footer_branch
    %2305 = sbr.rel target = $region14
  $region19: #{tpu_custom_call.1} parent=0 // loop_exit
    _
  %v4560 = vld [vmem:[#allocation2] sm:$0xff]
  %v4561 = vld [vmem:[#allocation2 + $0x8] sm:$0xff]
  %v4562 = vld [vmem:[#allocation2 + $0x10] sm:$0xff]
  %v4563 = vld [vmem:[#allocation2 + $0x18] sm:$0xff]
  %s4564 = scalar_lea.vmem %s1, 32
  %4565 = vst.msk [vmem:[%s4564] sm:$0xff] %vm24, %v4560
  %4566 = vst.msk [vmem:[%s4564 + $0x8] sm:$0xff] %vm24, %v4561
  %4567 = vst.msk [vmem:[%s4564 + $0x10] sm:$0xff] %vm24, %v4562
  %4568 = vst.msk [vmem:[%s4564 + $0x18] sm:$0xff] %vm24, %v4563
  // Predicated region
  $region20: #{tpu_custom_call.1} parent=0 // pred_check
    _
  $region21: #{tpu_custom_call.1} parent=0 // pred_check_branch
    %4570 = sbr.rel (0) target = $region23
  $region22: #{tpu_custom_call.1} parent=0 // pred_region
    _
  $region23: #{tpu_custom_call.1} parent=0 // pred_fallthru
    _
  // Predicated region
  $region24: #{tpu_custom_call.1} parent=0 // pred_check
    _
  $region25: #{tpu_custom_call.1} parent=0 // pred_check_branch
    %4572 = sbr.rel (0) target = $region27
  $region26: #{tpu_custom_call.1} parent=0 // pred_region
    _
  $region27: #{tpu_custom_call.1} parent=0 // pred_fallthru
    _

</llo_original>
